<compile_context>
chip_gen: v7x
topology: tpu7x:2x2x1
jax: 0.10.0
libtpu: 0.0.40
codegen_flags: <defaults>
</compile_context>

<pallas_src>
import functools

import jax
import jax.numpy as jnp
from jax import lax
from jax.experimental import pallas as pl
from jax.experimental.pallas import tpu as pltpu

NEG_SLOPE = 0.01  # nn.LeakyReLU() default


def _leaky_relu(x):
    return jnp.where(x > 0, x, NEG_SLOPE * x)


def _residual_block_kernel(x_ref, w1_ref, b1_ref, w2_ref, b2_ref, out_ref,
                           padx_ref, padh_ref, col_ref, *, NB, H, W, C):
    f32 = jnp.float32
    M = NB * H * W

    # ---- zero only the 1-pixel halo of the padded scratches (interiors are fully
    #      rewritten every grid step) ----
    zrow = jnp.zeros((NB, 1, W + 2, C), f32)
    zcol = jnp.zeros((NB, H + 2, 1, C), f32)
    for ref in (padx_ref, padh_ref):
        ref[:, 0:1, :, :] = zrow
        ref[:, H + 1:H + 2, :, :] = zrow
        ref[:, :, 0:1, :] = zcol
        ref[:, :, W + 1:W + 2, :] = zcol

    # ---- stage the input block into the padded scratch (conv1 operand) ----
    padx_ref[:, 1:H + 1, 1:W + 1, :] = x_ref[...].astype(f32)

    def conv3x3_bn(pad_ref, w_ref, b_ref):
        # im2col: 9 shifted windows -> (NB, H, W, 9*C) scratch, then a single
        # K = 9*C MXU matmul.  BN scale is already folded into w_ref.
        for dy in range(3):
            for dx in range(3):
                t = dy * 3 + dx
                col_ref[:, :, :, t * C:(t + 1) * C] = \
                    pad_ref[:, dy:dy + H, dx:dx + W, :]
        patches = col_ref[...].reshape(M, 9 * C)          # trailing dim unchanged
        acc = jnp.dot(patches, w_ref[...], preferred_element_type=f32)
        return acc + b_ref[...]                            # BN shift

    # ---- conv1 -> bn1 -> leaky relu, restaged (padded) for conv2 ----
    h = _leaky_relu(conv3x3_bn(padx_ref, w1_ref, b1_ref))
    padh_ref[:, 1:H + 1, 1:W + 1, :] = h.reshape(NB, H, W, C)

    # ---- conv2 -> bn2 -> + identity residual -> leaky relu ----
    y = conv3x3_bn(padh_ref, w2_ref, b2_ref).reshape(NB, H, W, C)
    y = _leaky_relu(y + x_ref[...].astype(f32))
    out_ref[...] = y.astype(out_ref.dtype)


def _pick_batch_block(N, H, W, target_rows=2048):
    """Images per grid step: big enough M = NB*H*W to amortize per-step overhead,
    but keep >= 2 grid steps (when N allows) so v7x's two TensorCores are both fed."""
    nb = max(1, min(N, target_rows // max(1, H * W)))
    if N >= 2:
        nb = min(nb, max(1, N // 2))
    while N % nb:
        nb -= 1
    return nb


def residual_block(x_nhwc, w1, scale1, shift1, w2, scale2, shift2):
    """x_nhwc: (N, H, W, C); w*: (3, 3, Cin, Cout) HWIO; scale*/shift*: per-channel
    eval-mode BN folding (scale = gamma/sqrt(var+eps), shift = beta - mean*scale)."""
    N, H, W, C = x_nhwc.shape
    Cout = w1.shape[-1]
    assert C == Cout, "identity residual requires in_channels == out_channels"

    f32 = jnp.float32
    # Fold BN scale into the conv weights; reshape to im2col (9*Cin, Cout) form.
    w1m = (w1.astype(f32) * scale1.reshape(1, 1, 1, Cout)).reshape(9 * C, Cout)
    w2m = (w2.astype(f32) * scale2.reshape(1, 1, 1, Cout)).reshape(9 * C, Cout)
    b1 = shift1.reshape(1, Cout).astype(f32)
    b2 = shift2.reshape(1, Cout).astype(f32)

    NB = _pick_batch_block(N, H, W)
    grid = (N // NB,)

    kernel = functools.partial(_residual_block_kernel, NB=NB, H=H, W=W, C=C)

    # Rough per-step VMEM budget (f32 bytes): double-buffered in/out blocks + scratch.
    vmem_bytes = 4 * (4 * NB * H * W * C                     # 2x in + 2x out blocks
                      + 2 * NB * (H + 2) * (W + 2) * C       # padded scratches
                      + NB * H * W * 9 * C                   # im2col scratch
                      + 2 * 9 * C * C + 2 * C)               # weights + shifts
    vmem_limit = int(min(max(32 * 1024 * 1024, 2 * vmem_bytes), 100 * 1024 * 1024))

    return pl.pallas_call(
        kernel,
        out_shape=jax.ShapeDtypeStruct((N, H, W, C), x_nhwc.dtype),
        grid_spec=pltpu.PrefetchScalarGridSpec(
            num_scalar_prefetch=0,
            grid=grid,
            in_specs=[
                pl.BlockSpec((NB, H, W, C), lambda n: (n, 0, 0, 0)),
                pl.BlockSpec((9 * C, Cout), lambda n: (0, 0)),
                pl.BlockSpec((1, Cout), lambda n: (0, 0)),
                pl.BlockSpec((9 * C, Cout), lambda n: (0, 0)),
                pl.BlockSpec((1, Cout), lambda n: (0, 0)),
            ],
            out_specs=pl.BlockSpec((NB, H, W, C), lambda n: (n, 0, 0, 0)),
            scratch_shapes=[
                pltpu.VMEM((NB, H + 2, W + 2, C), f32),      # padded input
                pltpu.VMEM((NB, H + 2, W + 2, C), f32),      # padded hidden act
                pltpu.VMEM((NB, H, W, 9 * C), f32),          # im2col patches
            ],
        ),
        compiler_params=pltpu.CompilerParams(
            dimension_semantics=("parallel",),
            vmem_limit_bytes=vmem_limit,
        ),
    )(x_nhwc, w1m, b1, w2m, b2)


def _reference(x_nhwc, w1, scale1, shift1, w2, scale2, shift2):
    """Pure-JAX NHWC reference used only for verification."""
    dn = ("NHWC", "HWIO", "NHWC")
    out = lax.conv_general_dilated(x_nhwc, w1, (1, 1), "SAME", dimension_numbers=dn)
    out = out * scale1.reshape(1, 1, 1, -1) + shift1.reshape(1, 1, 1, -1)
    out = _leaky_relu(out)
    out = lax.conv_general_dilated(out, w2, (1, 1), "SAME", dimension_numbers=dn)
    out = out * scale2.reshape(1, 1, 1, -1) + shift2.reshape(1, 1, 1, -1)
    out = _leaky_relu(out + x_nhwc)
    return out


if __name__ == "__main__":
    N, H, W, C = 4, 16, 16, 8   # in_channels == out_channels, stride=1, no downsample
    eps = 1e-5

    key = jax.random.PRNGKey(0)
    ks = jax.random.split(key, 11)

    x = jax.random.normal(ks[0], (N, H, W, C), jnp.float32)

    # conv weights (HWIO), bias=False as in the module
    w1 = jax.random.normal(ks[1], (3, 3, C, C), jnp.float32) * 0.1
    w2 = jax.random.normal(ks[2], (3, 3, C, C), jnp.float32) * 0.1

    # BatchNorm parameters (eval-mode folding into scale/shift)
    gamma1 = 1.0 + 0.1 * jax.random.normal(ks[3], (C,), jnp.float32)
    beta1 = 0.1 * jax.random.normal(ks[4], (C,), jnp.float32)
    mean1 = 0.1 * jax.random.normal(ks[5], (C,), jnp.float32)
    var1 = jnp.abs(jax.random.normal(ks[6], (C,), jnp.float32)) + 0.5
    gamma2 = 1.0 + 0.1 * jax.random.normal(ks[7], (C,), jnp.float32)
    beta2 = 0.1 * jax.random.normal(ks[8], (C,), jnp.float32)
    mean2 = 0.1 * jax.random.normal(ks[9], (C,), jnp.float32)
    var2 = jnp.abs(jax.random.normal(ks[10], (C,), jnp.float32)) + 0.5

    scale1 = (gamma1 / jnp.sqrt(var1 + eps)).reshape(1, C)
    shift1 = (beta1 - mean1 * gamma1 / jnp.sqrt(var1 + eps)).reshape(1, C)
    scale2 = (gamma2 / jnp.sqrt(var2 + eps)).reshape(1, C)
    shift2 = (beta2 - mean2 * gamma2 / jnp.sqrt(var2 + eps)).reshape(1, C)

    out = residual_block(x, w1, scale1, shift1, w2, scale2, shift2)
    out = jax.block_until_ready(out)

    ref = _reference(x, w1, scale1, shift1, w2, scale2, shift2)
    assert out.shape == (N, H, W, C)
    assert jnp.allclose(out, ref, atol=1e-4, rtol=1e-4), "mismatch vs reference"

    print("KERNEL_OK")
</pallas_src>

<mosaic_0001>
module attributes {stable_mosaic.version = 11 : i64} {
  func.func @_residual_block_kernel(%arg0: i32, %arg1: memref<2x16x16x8xf32, #tpu.memory_space<vmem>>, %arg2: memref<72x8xf32, #tpu.memory_space<vmem>>, %arg3: memref<1x8xf32, #tpu.memory_space<vmem>>, %arg4: memref<72x8xf32, #tpu.memory_space<vmem>>, %arg5: memref<1x8xf32, #tpu.memory_space<vmem>>, %arg6: memref<2x16x16x8xf32, #tpu.memory_space<vmem>>, %arg7: memref<2x18x18x8xf32, #tpu.memory_space<vmem>>, %arg8: memref<2x18x18x8xf32, #tpu.memory_space<vmem>>, %arg9: memref<2x16x16x72xf32, #tpu.memory_space<vmem>>) attributes {dimension_semantics = [#tpu.dimension_semantics<parallel>], iteration_bounds = array<i64: 2>, scalar_prefetch = 0 : i64, scratch_operands = 3 : i64, tpu.core_type = #tpu.core_type<tc>, window_params = [{transform_indices = @transform_0, window_bounds = array<i64: 2, 16, 16, 8>}, {pipeline_mode = #tpu.pipeline_mode<synchronous>, transform_indices = @transform_1, window_bounds = array<i64: 72, 8>}, {pipeline_mode = #tpu.pipeline_mode<synchronous>, transform_indices = @transform_2, window_bounds = array<i64: 1, 8>}, {pipeline_mode = #tpu.pipeline_mode<synchronous>, transform_indices = @transform_3, window_bounds = array<i64: 72, 8>}, {pipeline_mode = #tpu.pipeline_mode<synchronous>, transform_indices = @transform_4, window_bounds = array<i64: 1, 8>}, {transform_indices = @transform_5, window_bounds = array<i64: 2, 16, 16, 8>}]} {
    %cst = arith.constant 0.000000e+00 : f32
    %0 = vector.broadcast %cst : f32 to vector<2x1x18x8xf32>
    %cst_0 = arith.constant 0.000000e+00 : f32
    %1 = vector.broadcast %cst_0 : f32 to vector<2x18x1x8xf32>
    %c0 = arith.constant 0 : index
    %c0_1 = arith.constant 0 : index
    %c0_2 = arith.constant 0 : index
    %c0_3 = arith.constant 0 : index
    %2 = vector.load %arg7[%c0, %c0_1, %c0_2, %c0_3] : memref<2x18x18x8xf32, #tpu.memory_space<vmem>>, vector<2x1x18x8xf32>
    tpu.vector_store %arg7[%c0, %c0_1, %c0_2, %c0_3], %0 {strides = array<i32>} : memref<2x18x18x8xf32, #tpu.memory_space<vmem>>, vector<2x1x18x8xf32>,
    %c0_4 = arith.constant 0 : index
    %c17 = arith.constant 17 : index
    %c0_5 = arith.constant 0 : index
    %c0_6 = arith.constant 0 : index
    %3 = vector.load %arg7[%c0_4, %c17, %c0_5, %c0_6] : memref<2x18x18x8xf32, #tpu.memory_space<vmem>>, vector<2x1x18x8xf32>
    tpu.vector_store %arg7[%c0_4, %c17, %c0_5, %c0_6], %0 {strides = array<i32>} : memref<2x18x18x8xf32, #tpu.memory_space<vmem>>, vector<2x1x18x8xf32>,
    %c0_7 = arith.constant 0 : index
    %c0_8 = arith.constant 0 : index
    %c0_9 = arith.constant 0 : index
    %c0_10 = arith.constant 0 : index
    %4 = vector.load %arg7[%c0_7, %c0_8, %c0_9, %c0_10] : memref<2x18x18x8xf32, #tpu.memory_space<vmem>>, vector<2x18x1x8xf32>
    tpu.vector_store %arg7[%c0_7, %c0_8, %c0_9, %c0_10], %1 {strides = array<i32>} : memref<2x18x18x8xf32, #tpu.memory_space<vmem>>, vector<2x18x1x8xf32>,
    %c0_11 = arith.constant 0 : index
    %c0_12 = arith.constant 0 : index
    %c17_13 = arith.constant 17 : index
    %c0_14 = arith.constant 0 : index
    %5 = vector.load %arg7[%c0_11, %c0_12, %c17_13, %c0_14] : memref<2x18x18x8xf32, #tpu.memory_space<vmem>>, vector<2x18x1x8xf32>
    tpu.vector_store %arg7[%c0_11, %c0_12, %c17_13, %c0_14], %1 {strides = array<i32>} : memref<2x18x18x8xf32, #tpu.memory_space<vmem>>, vector<2x18x1x8xf32>,
    %c0_15 = arith.constant 0 : index
    %c0_16 = arith.constant 0 : index
    %c0_17 = arith.constant 0 : index
    %c0_18 = arith.constant 0 : index
    %6 = vector.load %arg8[%c0_15, %c0_16, %c0_17, %c0_18] : memref<2x18x18x8xf32, #tpu.memory_space<vmem>>, vector<2x1x18x8xf32>
    tpu.vector_store %arg8[%c0_15, %c0_16, %c0_17, %c0_18], %0 {strides = array<i32>} : memref<2x18x18x8xf32, #tpu.memory_space<vmem>>, vector<2x1x18x8xf32>,
    %c0_19 = arith.constant 0 : index
    %c17_20 = arith.constant 17 : index
    %c0_21 = arith.constant 0 : index
    %c0_22 = arith.constant 0 : index
    %7 = vector.load %arg8[%c0_19, %c17_20, %c0_21, %c0_22] : memref<2x18x18x8xf32, #tpu.memory_space<vmem>>, vector<2x1x18x8xf32>
    tpu.vector_store %arg8[%c0_19, %c17_20, %c0_21, %c0_22], %0 {strides = array<i32>} : memref<2x18x18x8xf32, #tpu.memory_space<vmem>>, vector<2x1x18x8xf32>,
    %c0_23 = arith.constant 0 : index
    %c0_24 = arith.constant 0 : index
    %c0_25 = arith.constant 0 : index
    %c0_26 = arith.constant 0 : index
    %8 = vector.load %arg8[%c0_23, %c0_24, %c0_25, %c0_26] : memref<2x18x18x8xf32, #tpu.memory_space<vmem>>, vector<2x18x1x8xf32>
    tpu.vector_store %arg8[%c0_23, %c0_24, %c0_25, %c0_26], %1 {strides = array<i32>} : memref<2x18x18x8xf32, #tpu.memory_space<vmem>>, vector<2x18x1x8xf32>,
    %c0_27 = arith.constant 0 : index
    %c0_28 = arith.constant 0 : index
    %c17_29 = arith.constant 17 : index
    %c0_30 = arith.constant 0 : index
    %9 = vector.load %arg8[%c0_27, %c0_28, %c17_29, %c0_30] : memref<2x18x18x8xf32, #tpu.memory_space<vmem>>, vector<2x18x1x8xf32>
    tpu.vector_store %arg8[%c0_27, %c0_28, %c17_29, %c0_30], %1 {strides = array<i32>} : memref<2x18x18x8xf32, #tpu.memory_space<vmem>>, vector<2x18x1x8xf32>,
    %c0_31 = arith.constant 0 : index
    %c0_32 = arith.constant 0 : index
    %c0_33 = arith.constant 0 : index
    %c0_34 = arith.constant 0 : index
    %10 = vector.load %arg1[%c0_31, %c0_32, %c0_33, %c0_34] : memref<2x16x16x8xf32, #tpu.memory_space<vmem>>, vector<2x16x16x8xf32>
    %c0_35 = arith.constant 0 : index
    %c1 = arith.constant 1 : index
    %c1_36 = arith.constant 1 : index
    %c0_37 = arith.constant 0 : index
    %11 = vector.load %arg7[%c0_35, %c1, %c1_36, %c0_37] : memref<2x18x18x8xf32, #tpu.memory_space<vmem>>, vector<2x16x16x8xf32>
    tpu.vector_store %arg7[%c0_35, %c1, %c1_36, %c0_37], %10 {strides = array<i32>} : memref<2x18x18x8xf32, #tpu.memory_space<vmem>>, vector<2x16x16x8xf32>,
    %c0_38 = arith.constant 0 : index
    %c0_39 = arith.constant 0 : index
    %c0_40 = arith.constant 0 : index
    %c0_41 = arith.constant 0 : index
    %12 = vector.load %arg7[%c0_38, %c0_39, %c0_40, %c0_41] : memref<2x18x18x8xf32, #tpu.memory_space<vmem>>, vector<2x16x16x8xf32>
    %c0_42 = arith.constant 0 : index
    %c0_43 = arith.constant 0 : index
    %c0_44 = arith.constant 0 : index
    %c0_45 = arith.constant 0 : index
    %13 = vector.load %arg9[%c0_42, %c0_43, %c0_44, %c0_45] : memref<2x16x16x72xf32, #tpu.memory_space<vmem>>, vector<2x16x16x8xf32>
    tpu.vector_store %arg9[%c0_42, %c0_43, %c0_44, %c0_45], %12 {strides = array<i32>} : memref<2x16x16x72xf32, #tpu.memory_space<vmem>>, vector<2x16x16x8xf32>,
    %c0_46 = arith.constant 0 : index
    %c0_47 = arith.constant 0 : index
    %c1_48 = arith.constant 1 : index
    %c0_49 = arith.constant 0 : index
    %14 = vector.load %arg7[%c0_46, %c0_47, %c1_48, %c0_49] : memref<2x18x18x8xf32, #tpu.memory_space<vmem>>, vector<2x16x16x8xf32>
    %c0_50 = arith.constant 0 : index
    %c0_51 = arith.constant 0 : index
    %c0_52 = arith.constant 0 : index
    %c8 = arith.constant 8 : index
    %15 = vector.load %arg9[%c0_50, %c0_51, %c0_52, %c8] : memref<2x16x16x72xf32, #tpu.memory_space<vmem>>, vector<2x16x16x8xf32>
    tpu.vector_store %arg9[%c0_50, %c0_51, %c0_52, %c8], %14 {strides = array<i32>} : memref<2x16x16x72xf32, #tpu.memory_space<vmem>>, vector<2x16x16x8xf32>,
    %c0_53 = arith.constant 0 : index
    %c0_54 = arith.constant 0 : index
    %c2 = arith.constant 2 : index
    %c0_55 = arith.constant 0 : index
    %16 = vector.load %arg7[%c0_53, %c0_54, %c2, %c0_55] : memref<2x18x18x8xf32, #tpu.memory_space<vmem>>, vector<2x16x16x8xf32>
    %c0_56 = arith.constant 0 : index
    %c0_57 = arith.constant 0 : index
    %c0_58 = arith.constant 0 : index
    %c16 = arith.constant 16 : index
    %17 = vector.load %arg9[%c0_56, %c0_57, %c0_58, %c16] : memref<2x16x16x72xf32, #tpu.memory_space<vmem>>, vector<2x16x16x8xf32>
    tpu.vector_store %arg9[%c0_56, %c0_57, %c0_58, %c16], %16 {strides = array<i32>} : memref<2x16x16x72xf32, #tpu.memory_space<vmem>>, vector<2x16x16x8xf32>,
    %c0_59 = arith.constant 0 : index
    %c1_60 = arith.constant 1 : index
    %c0_61 = arith.constant 0 : index
    %c0_62 = arith.constant 0 : index
    %18 = vector.load %arg7[%c0_59, %c1_60, %c0_61, %c0_62] : memref<2x18x18x8xf32, #tpu.memory_space<vmem>>, vector<2x16x16x8xf32>
    %c0_63 = arith.constant 0 : index
    %c0_64 = arith.constant 0 : index
    %c0_65 = arith.constant 0 : index
    %c24 = arith.constant 24 : index
    %19 = vector.load %arg9[%c0_63, %c0_64, %c0_65, %c24] : memref<2x16x16x72xf32, #tpu.memory_space<vmem>>, vector<2x16x16x8xf32>
    tpu.vector_store %arg9[%c0_63, %c0_64, %c0_65, %c24], %18 {strides = array<i32>} : memref<2x16x16x72xf32, #tpu.memory_space<vmem>>, vector<2x16x16x8xf32>,
    %c0_66 = arith.constant 0 : index
    %c1_67 = arith.constant 1 : index
    %c1_68 = arith.constant 1 : index
    %c0_69 = arith.constant 0 : index
    %20 = vector.load %arg7[%c0_66, %c1_67, %c1_68, %c0_69] : memref<2x18x18x8xf32, #tpu.memory_space<vmem>>, vector<2x16x16x8xf32>
    %c0_70 = arith.constant 0 : index
    %c0_71 = arith.constant 0 : index
    %c0_72 = arith.constant 0 : index
    %c32 = arith.constant 32 : index
    %21 = vector.load %arg9[%c0_70, %c0_71, %c0_72, %c32] : memref<2x16x16x72xf32, #tpu.memory_space<vmem>>, vector<2x16x16x8xf32>
    tpu.vector_store %arg9[%c0_70, %c0_71, %c0_72, %c32], %20 {strides = array<i32>} : memref<2x16x16x72xf32, #tpu.memory_space<vmem>>, vector<2x16x16x8xf32>,
    %c0_73 = arith.constant 0 : index
    %c1_74 = arith.constant 1 : index
    %c2_75 = arith.constant 2 : index
    %c0_76 = arith.constant 0 : index
    %22 = vector.load %arg7[%c0_73, %c1_74, %c2_75, %c0_76] : memref<2x18x18x8xf32, #tpu.memory_space<vmem>>, vector<2x16x16x8xf32>
    %c0_77 = arith.constant 0 : index
    %c0_78 = arith.constant 0 : index
    %c0_79 = arith.constant 0 : index
    %c40 = arith.constant 40 : index
    %23 = vector.load %arg9[%c0_77, %c0_78, %c0_79, %c40] : memref<2x16x16x72xf32, #tpu.memory_space<vmem>>, vector<2x16x16x8xf32>
    tpu.vector_store %arg9[%c0_77, %c0_78, %c0_79, %c40], %22 {strides = array<i32>} : memref<2x16x16x72xf32, #tpu.memory_space<vmem>>, vector<2x16x16x8xf32>,
    %c0_80 = arith.constant 0 : index
    %c2_81 = arith.constant 2 : index
    %c0_82 = arith.constant 0 : index
    %c0_83 = arith.constant 0 : index
    %24 = vector.load %arg7[%c0_80, %c2_81, %c0_82, %c0_83] : memref<2x18x18x8xf32, #tpu.memory_space<vmem>>, vector<2x16x16x8xf32>
    %c0_84 = arith.constant 0 : index
    %c0_85 = arith.constant 0 : index
    %c0_86 = arith.constant 0 : index
    %c48 = arith.constant 48 : index
    %25 = vector.load %arg9[%c0_84, %c0_85, %c0_86, %c48] : memref<2x16x16x72xf32, #tpu.memory_space<vmem>>, vector<2x16x16x8xf32>
    tpu.vector_store %arg9[%c0_84, %c0_85, %c0_86, %c48], %24 {strides = array<i32>} : memref<2x16x16x72xf32, #tpu.memory_space<vmem>>, vector<2x16x16x8xf32>,
    %c0_87 = arith.constant 0 : index
    %c2_88 = arith.constant 2 : index
    %c1_89 = arith.constant 1 : index
    %c0_90 = arith.constant 0 : index
    %26 = vector.load %arg7[%c0_87, %c2_88, %c1_89, %c0_90] : memref<2x18x18x8xf32, #tpu.memory_space<vmem>>, vector<2x16x16x8xf32>
    %c0_91 = arith.constant 0 : index
    %c0_92 = arith.constant 0 : index
    %c0_93 = arith.constant 0 : index
    %c56 = arith.constant 56 : index
    %27 = vector.load %arg9[%c0_91, %c0_92, %c0_93, %c56] : memref<2x16x16x72xf32, #tpu.memory_space<vmem>>, vector<2x16x16x8xf32>
    tpu.vector_store %arg9[%c0_91, %c0_92, %c0_93, %c56], %26 {strides = array<i32>} : memref<2x16x16x72xf32, #tpu.memory_space<vmem>>, vector<2x16x16x8xf32>,
    %c0_94 = arith.constant 0 : index
    %c2_95 = arith.constant 2 : index
    %c2_96 = arith.constant 2 : index
    %c0_97 = arith.constant 0 : index
    %28 = vector.load %arg7[%c0_94, %c2_95, %c2_96, %c0_97] : memref<2x18x18x8xf32, #tpu.memory_space<vmem>>, vector<2x16x16x8xf32>
    %c0_98 = arith.constant 0 : index
    %c0_99 = arith.constant 0 : index
    %c0_100 = arith.constant 0 : index
    %c64 = arith.constant 64 : index
    %29 = vector.load %arg9[%c0_98, %c0_99, %c0_100, %c64] : memref<2x16x16x72xf32, #tpu.memory_space<vmem>>, vector<2x16x16x8xf32>
    tpu.vector_store %arg9[%c0_98, %c0_99, %c0_100, %c64], %28 {strides = array<i32>} : memref<2x16x16x72xf32, #tpu.memory_space<vmem>>, vector<2x16x16x8xf32>,
    %c0_101 = arith.constant 0 : index
    %c0_102 = arith.constant 0 : index
    %c0_103 = arith.constant 0 : index
    %c0_104 = arith.constant 0 : index
    %30 = vector.load %arg9[%c0_101, %c0_102, %c0_103, %c0_104] : memref<2x16x16x72xf32, #tpu.memory_space<vmem>>, vector<2x16x16x72xf32>
    %31 = vector.shape_cast %30 : vector<2x16x16x72xf32> to vector<512x72xf32>
    %c0_105 = arith.constant 0 : index
    %c0_106 = arith.constant 0 : index
    %32 = vector.load %arg2[%c0_105, %c0_106] : memref<72x8xf32, #tpu.memory_space<vmem>>, vector<72x8xf32>
    %cst_107 = arith.constant dense<0.000000e+00> : vector<512x8xf32>
    %33 = tpu.matmul %31, %32, %cst_107 {dimension_numbers = #tpu.dot_dimension_numbers<[1], [0], [0], [1], [0, 0, 1, 1], [], []>} : vector<512x72xf32>, vector<72x8xf32>, vector<512x8xf32> -> vector<512x8xf32>
    %c0_108 = arith.constant 0 : index
    %c0_109 = arith.constant 0 : index
    %34 = vector.load %arg3[%c0_108, %c0_109] : memref<1x8xf32, #tpu.memory_space<vmem>>, vector<1x8xf32>
    %35 = vector.broadcast %34 : vector<1x8xf32> to vector<512x8xf32>
    %36 = arith.addf %33, %35 : vector<512x8xf32>
    %cst_110 = arith.constant 0.000000e+00 : f32
    %37 = vector.broadcast %cst_110 : f32 to vector<512x8xf32>
    %38 = arith.cmpf ogt, %36, %37 : vector<512x8xf32>
    %cst_111 = arith.constant 0.00999999977 : f32
    %39 = vector.broadcast %cst_111 : f32 to vector<512x8xf32>
    %40 = arith.mulf %39, %36 : vector<512x8xf32>
    %41 = arith.select %38, %36, %40 : vector<512x8xi1>, vector<512x8xf32>
    %42 = vector.shape_cast %41 : vector<512x8xf32> to vector<2x16x16x8xf32>
    %c0_112 = arith.constant 0 : index
    %c1_113 = arith.constant 1 : index
    %c1_114 = arith.constant 1 : index
    %c0_115 = arith.constant 0 : index
    %43 = vector.load %arg8[%c0_112, %c1_113, %c1_114, %c0_115] : memref<2x18x18x8xf32, #tpu.memory_space<vmem>>, vector<2x16x16x8xf32>
    tpu.vector_store %arg8[%c0_112, %c1_113, %c1_114, %c0_115], %42 {strides = array<i32>} : memref<2x18x18x8xf32, #tpu.memory_space<vmem>>, vector<2x16x16x8xf32>,
    %c0_116 = arith.constant 0 : index
    %c0_117 = arith.constant 0 : index
    %c0_118 = arith.constant 0 : index
    %c0_119 = arith.constant 0 : index
    %44 = vector.load %arg8[%c0_116, %c0_117, %c0_118, %c0_119] : memref<2x18x18x8xf32, #tpu.memory_space<vmem>>, vector<2x16x16x8xf32>
    %c0_120 = arith.constant 0 : index
    %c0_121 = arith.constant 0 : index
    %c0_122 = arith.constant 0 : index
    %c0_123 = arith.constant 0 : index
    %45 = vector.load %arg9[%c0_120, %c0_121, %c0_122, %c0_123] : memref<2x16x16x72xf32, #tpu.memory_space<vmem>>, vector<2x16x16x8xf32>
    tpu.vector_store %arg9[%c0_120, %c0_121, %c0_122, %c0_123], %44 {strides = array<i32>} : memref<2x16x16x72xf32, #tpu.memory_space<vmem>>, vector<2x16x16x8xf32>,
    %c0_124 = arith.constant 0 : index
    %c0_125 = arith.constant 0 : index
    %c1_126 = arith.constant 1 : index
    %c0_127 = arith.constant 0 : index
    %46 = vector.load %arg8[%c0_124, %c0_125, %c1_126, %c0_127] : memref<2x18x18x8xf32, #tpu.memory_space<vmem>>, vector<2x16x16x8xf32>
    %c0_128 = arith.constant 0 : index
    %c0_129 = arith.constant 0 : index
    %c0_130 = arith.constant 0 : index
    %c8_131 = arith.constant 8 : index
    %47 = vector.load %arg9[%c0_128, %c0_129, %c0_130, %c8_131] : memref<2x16x16x72xf32, #tpu.memory_space<vmem>>, vector<2x16x16x8xf32>
    tpu.vector_store %arg9[%c0_128, %c0_129, %c0_130, %c8_131], %46 {strides = array<i32>} : memref<2x16x16x72xf32, #tpu.memory_space<vmem>>, vector<2x16x16x8xf32>,
    %c0_132 = arith.constant 0 : index
    %c0_133 = arith.constant 0 : index
    %c2_134 = arith.constant 2 : index
    %c0_135 = arith.constant 0 : index
    %48 = vector.load %arg8[%c0_132, %c0_133, %c2_134, %c0_135] : memref<2x18x18x8xf32, #tpu.memory_space<vmem>>, vector<2x16x16x8xf32>
    %c0_136 = arith.constant 0 : index
    %c0_137 = arith.constant 0 : index
    %c0_138 = arith.constant 0 : index
    %c16_139 = arith.constant 16 : index
    %49 = vector.load %arg9[%c0_136, %c0_137, %c0_138, %c16_139] : memref<2x16x16x72xf32, #tpu.memory_space<vmem>>, vector<2x16x16x8xf32>
    tpu.vector_store %arg9[%c0_136, %c0_137, %c0_138, %c16_139], %48 {strides = array<i32>} : memref<2x16x16x72xf32, #tpu.memory_space<vmem>>, vector<2x16x16x8xf32>,
    %c0_140 = arith.constant 0 : index
    %c1_141 = arith.constant 1 : index
    %c0_142 = arith.constant 0 : index
    %c0_143 = arith.constant 0 : index
    %50 = vector.load %arg8[%c0_140, %c1_141, %c0_142, %c0_143] : memref<2x18x18x8xf32, #tpu.memory_space<vmem>>, vector<2x16x16x8xf32>
    %c0_144 = arith.constant 0 : index
    %c0_145 = arith.constant 0 : index
    %c0_146 = arith.constant 0 : index
    %c24_147 = arith.constant 24 : index
    %51 = vector.load %arg9[%c0_144, %c0_145, %c0_146, %c24_147] : memref<2x16x16x72xf32, #tpu.memory_space<vmem>>, vector<2x16x16x8xf32>
    tpu.vector_store %arg9[%c0_144, %c0_145, %c0_146, %c24_147], %50 {strides = array<i32>} : memref<2x16x16x72xf32, #tpu.memory_space<vmem>>, vector<2x16x16x8xf32>,
    %c0_148 = arith.constant 0 : index
    %c1_149 = arith.constant 1 : index
    %c1_150 = arith.constant 1 : index
    %c0_151 = arith.constant 0 : index
    %52 = vector.load %arg8[%c0_148, %c1_149, %c1_150, %c0_151] : memref<2x18x18x8xf32, #tpu.memory_space<vmem>>, vector<2x16x16x8xf32>
    %c0_152 = arith.constant 0 : index
    %c0_153 = arith.constant 0 : index
    %c0_154 = arith.constant 0 : index
    %c32_155 = arith.constant 32 : index
    %53 = vector.load %arg9[%c0_152, %c0_153, %c0_154, %c32_155] : memref<2x16x16x72xf32, #tpu.memory_space<vmem>>, vector<2x16x16x8xf32>
    tpu.vector_store %arg9[%c0_152, %c0_153, %c0_154, %c32_155], %52 {strides = array<i32>} : memref<2x16x16x72xf32, #tpu.memory_space<vmem>>, vector<2x16x16x8xf32>,
    %c0_156 = arith.constant 0 : index
    %c1_157 = arith.constant 1 : index
    %c2_158 = arith.constant 2 : index
    %c0_159 = arith.constant 0 : index
    %54 = vector.load %arg8[%c0_156, %c1_157, %c2_158, %c0_159] : memref<2x18x18x8xf32, #tpu.memory_space<vmem>>, vector<2x16x16x8xf32>
    %c0_160 = arith.constant 0 : index
    %c0_161 = arith.constant 0 : index
    %c0_162 = arith.constant 0 : index
    %c40_163 = arith.constant 40 : index
    %55 = vector.load %arg9[%c0_160, %c0_161, %c0_162, %c40_163] : memref<2x16x16x72xf32, #tpu.memory_space<vmem>>, vector<2x16x16x8xf32>
    tpu.vector_store %arg9[%c0_160, %c0_161, %c0_162, %c40_163], %54 {strides = array<i32>} : memref<2x16x16x72xf32, #tpu.memory_space<vmem>>, vector<2x16x16x8xf32>,
    %c0_164 = arith.constant 0 : index
    %c2_165 = arith.constant 2 : index
    %c0_166 = arith.constant 0 : index
    %c0_167 = arith.constant 0 : index
    %56 = vector.load %arg8[%c0_164, %c2_165, %c0_166, %c0_167] : memref<2x18x18x8xf32, #tpu.memory_space<vmem>>, vector<2x16x16x8xf32>
    %c0_168 = arith.constant 0 : index
    %c0_169 = arith.constant 0 : index
    %c0_170 = arith.constant 0 : index
    %c48_171 = arith.constant 48 : index
    %57 = vector.load %arg9[%c0_168, %c0_169, %c0_170, %c48_171] : memref<2x16x16x72xf32, #tpu.memory_space<vmem>>, vector<2x16x16x8xf32>
    tpu.vector_store %arg9[%c0_168, %c0_169, %c0_170, %c48_171], %56 {strides = array<i32>} : memref<2x16x16x72xf32, #tpu.memory_space<vmem>>, vector<2x16x16x8xf32>,
    %c0_172 = arith.constant 0 : index
    %c2_173 = arith.constant 2 : index
    %c1_174 = arith.constant 1 : index
    %c0_175 = arith.constant 0 : index
    %58 = vector.load %arg8[%c0_172, %c2_173, %c1_174, %c0_175] : memref<2x18x18x8xf32, #tpu.memory_space<vmem>>, vector<2x16x16x8xf32>
    %c0_176 = arith.constant 0 : index
    %c0_177 = arith.constant 0 : index
    %c0_178 = arith.constant 0 : index
    %c56_179 = arith.constant 56 : index
    %59 = vector.load %arg9[%c0_176, %c0_177, %c0_178, %c56_179] : memref<2x16x16x72xf32, #tpu.memory_space<vmem>>, vector<2x16x16x8xf32>
    tpu.vector_store %arg9[%c0_176, %c0_177, %c0_178, %c56_179], %58 {strides = array<i32>} : memref<2x16x16x72xf32, #tpu.memory_space<vmem>>, vector<2x16x16x8xf32>,
    %c0_180 = arith.constant 0 : index
    %c2_181 = arith.constant 2 : index
    %c2_182 = arith.constant 2 : index
    %c0_183 = arith.constant 0 : index
    %60 = vector.load %arg8[%c0_180, %c2_181, %c2_182, %c0_183] : memref<2x18x18x8xf32, #tpu.memory_space<vmem>>, vector<2x16x16x8xf32>
    %c0_184 = arith.constant 0 : index
    %c0_185 = arith.constant 0 : index
    %c0_186 = arith.constant 0 : index
    %c64_187 = arith.constant 64 : index
    %61 = vector.load %arg9[%c0_184, %c0_185, %c0_186, %c64_187] : memref<2x16x16x72xf32, #tpu.memory_space<vmem>>, vector<2x16x16x8xf32>
    tpu.vector_store %arg9[%c0_184, %c0_185, %c0_186, %c64_187], %60 {strides = array<i32>} : memref<2x16x16x72xf32, #tpu.memory_space<vmem>>, vector<2x16x16x8xf32>,
    %c0_188 = arith.constant 0 : index
    %c0_189 = arith.constant 0 : index
    %c0_190 = arith.constant 0 : index
    %c0_191 = arith.constant 0 : index
    %62 = vector.load %arg9[%c0_188, %c0_189, %c0_190, %c0_191] : memref<2x16x16x72xf32, #tpu.memory_space<vmem>>, vector<2x16x16x72xf32>
    %63 = vector.shape_cast %62 : vector<2x16x16x72xf32> to vector<512x72xf32>
    %c0_192 = arith.constant 0 : index
    %c0_193 = arith.constant 0 : index
    %64 = vector.load %arg4[%c0_192, %c0_193] : memref<72x8xf32, #tpu.memory_space<vmem>>, vector<72x8xf32>
    %cst_194 = arith.constant dense<0.000000e+00> : vector<512x8xf32>
    %65 = tpu.matmul %63, %64, %cst_194 {dimension_numbers = #tpu.dot_dimension_numbers<[1], [0], [0], [1], [0, 0, 1, 1], [], []>} : vector<512x72xf32>, vector<72x8xf32>, vector<512x8xf32> -> vector<512x8xf32>
    %c0_195 = arith.constant 0 : index
    %c0_196 = arith.constant 0 : index
    %66 = vector.load %arg5[%c0_195, %c0_196] : memref<1x8xf32, #tpu.memory_space<vmem>>, vector<1x8xf32>
    %67 = vector.broadcast %66 : vector<1x8xf32> to vector<512x8xf32>
    %68 = arith.addf %65, %67 : vector<512x8xf32>
    %69 = vector.shape_cast %68 : vector<512x8xf32> to vector<2x16x16x8xf32>
    %c0_197 = arith.constant 0 : index
    %c0_198 = arith.constant 0 : index
    %c0_199 = arith.constant 0 : index
    %c0_200 = arith.constant 0 : index
    %70 = vector.load %arg1[%c0_197, %c0_198, %c0_199, %c0_200] : memref<2x16x16x8xf32, #tpu.memory_space<vmem>>, vector<2x16x16x8xf32>
    %71 = arith.addf %69, %70 : vector<2x16x16x8xf32>
    %cst_201 = arith.constant 0.000000e+00 : f32
    %72 = vector.broadcast %cst_201 : f32 to vector<2x16x16x8xf32>
    %73 = arith.cmpf ogt, %71, %72 : vector<2x16x16x8xf32>
    %cst_202 = arith.constant 0.00999999977 : f32
    %74 = vector.broadcast %cst_202 : f32 to vector<2x16x16x8xf32>
    %75 = arith.mulf %74, %71 : vector<2x16x16x8xf32>
    %76 = arith.select %73, %71, %75 : vector<2x16x16x8xi1>, vector<2x16x16x8xf32>
    %c0_203 = arith.constant 0 : index
    %c0_204 = arith.constant 0 : index
    %c0_205 = arith.constant 0 : index
    %c0_206 = arith.constant 0 : index
    %77 = vector.load %arg6[%c0_203, %c0_204, %c0_205, %c0_206] : memref<2x16x16x8xf32, #tpu.memory_space<vmem>>, vector<2x16x16x8xf32>
    tpu.vector_store %arg6[%c0_203, %c0_204, %c0_205, %c0_206], %76 {strides = array<i32>} : memref<2x16x16x8xf32, #tpu.memory_space<vmem>>, vector<2x16x16x8xf32>,
    return
  }
  func.func @transform_0(%arg0: i32) -> (i32, i32, i32, i32) {
    %c0_i32 = arith.constant 0 : i32
    %c0_i32_0 = arith.constant 0 : i32
    %c0_i32_1 = arith.constant 0 : i32
    %c0_i32_2 = arith.constant 0 : i32
    return %arg0, %c0_i32, %c0_i32_0, %c0_i32_1 : i32, i32, i32, i32
  }
  func.func @transform_1(%arg0: i32) -> (i32, i32) {
    %c0_i32 = arith.constant 0 : i32
    %c0_i32_0 = arith.constant 0 : i32
    %c0_i32_1 = arith.constant 0 : i32
    return %c0_i32, %c0_i32_0 : i32, i32
  }
  func.func @transform_2(%arg0: i32) -> (i32, i32) {
    %c0_i32 = arith.constant 0 : i32
    %c0_i32_0 = arith.constant 0 : i32
    %c0_i32_1 = arith.constant 0 : i32
    return %c0_i32, %c0_i32_0 : i32, i32
  }
  func.func @transform_3(%arg0: i32) -> (i32, i32) {
    %c0_i32 = arith.constant 0 : i32
    %c0_i32_0 = arith.constant 0 : i32
    %c0_i32_1 = arith.constant 0 : i32
    return %c0_i32, %c0_i32_0 : i32, i32
  }
  func.func @transform_4(%arg0: i32) -> (i32, i32) {
    %c0_i32 = arith.constant 0 : i32
    %c0_i32_0 = arith.constant 0 : i32
    %c0_i32_1 = arith.constant 0 : i32
    return %c0_i32, %c0_i32_0 : i32, i32
  }
  func.func @transform_5(%arg0: i32) -> (i32, i32, i32, i32) {
    %c0_i32 = arith.constant 0 : i32
    %c0_i32_0 = arith.constant 0 : i32
    %c0_i32_1 = arith.constant 0 : i32
    %c0_i32_2 = arith.constant 0 : i32
    return %arg0, %c0_i32, %c0_i32_0, %c0_i32_1 : i32, i32, i32, i32
  }
}

</mosaic_0001>

<llo_original>
// kernel: tpu_custom_call.1
$region0: #{tpu_custom_call.1}
  #allocation0 [shape = 'u32[]', space=smem, size = 0x4, offset = 0x4, fixed_abs, tag = 'smem constant byte address 0x4 - core index']
  #allocation1 [shape = 'u32[144,128]{1,0:T(1,128)}', space=vmem, size = 0x12000, scoped, tag = 'internal scratch']
  #allocation2 [shape = 'f32[2,18,18,8]{3,2,1,0:T(8,128)}', space=vmem, size = 0x6c000, scoped, tag = 'scratch operand']
  #allocation3 [shape = 'f32[2,18,18,8]{3,2,1,0:T(8,128)}', space=vmem, size = 0x6c000, scoped, tag = 'scratch operand']
  #allocation4 [shape = 'f32[2,16,16,72]{3,2,1,0:T(8,128)}', space=vmem, size = 0x40000, scoped, tag = 'scratch operand']
  %s0 = inlined_call_operand.vmem [shape: f32[4,16,16,8], index: 0, kind: input, shape index: {}]
  %s1 = inlined_call_operand.vmem [shape: f32[72,8], index: 1, kind: input, shape index: {}]
  %s2 = inlined_call_operand.vmem [shape: f32[1,8], index: 2, kind: input, shape index: {}]
  %s3 = inlined_call_operand.vmem [shape: f32[72,8], index: 3, kind: input, shape index: {}]
  %s4 = inlined_call_operand.vmem [shape: f32[1,8], index: 4, kind: input, shape index: {}]
  %s5 = inlined_call_operand.vmem [shape: f32[4,16,16,8], index: 5, kind: output, shape index: {}]
  %s6 = sld [smem:[#allocation0]]
  $region53: #{tpu_custom_call.1} parent=0
    _
  %s8 = ssub.s32 1, %s6
  %s9 = scalar_select 0, %s8, %s6
  loop: start=0, step=1, limit=4
  $region2: #{tpu_custom_call.1} parent=0 // loop_pre_header
    _
  $region3: #{tpu_custom_call.1} parent=0 // loop_header
    %s11 = sphi 0, %s15
    %p12 = scmp.ge.s32.totalorder %s11, 4
    %s21 = sphi 0, %s23
    %s24 = sphi 0, %s21
    %s25 = sphi 0, %s24
    %s41 = sphi 0, %s25
    %s45 = sphi 0, %s45
    %s47 = sphi 0, %s45
    %s48 = sphi 0, %s47
    %s62 = sphi 0, %s48
    %s66 = sphi 0, %s66
    %s68 = sphi 0, %s66
    %s69 = sphi 0, %s68
    %s83 = sphi 0, %s69
    %s87 = sphi 0, %s87
    %s89 = sphi 0, %s87
    %s90 = sphi 0, %s89
    %s104 = sphi 0, %s90
    %s108 = sphi 0, %s108
    %s110 = sphi 0, %s108
    %s111 = sphi 0, %s110
    %s125 = sphi 0, %s111
    %s131 = sphi 0, %s133
    %s134 = sphi 0, %s131
    %s135 = sphi 0, %s134
    %s151 = sphi 0, %s135
  $region4: #{tpu_custom_call.1} parent=0 // loop_header_branch
    %14 = sbr.rel (%p12) target = $region8
  $region5: #{tpu_custom_call.1} parent=0 // loop_body
    %s16 = ssub.s32 %s11, 1
    %s17 = ssub.s32 %s11, 2
    %s18 = sadd.s32 %s11, 1
    %s19 = ssub.s32 %s11, %s18
    %p20 = scmp.eq.s32.totalorder %s19, 0
    %s22 = sadd.s32 %s21, 1
    %s23 = scalar_select %p20, %s21, %s22
    %p26 = pneg %p20
    %p27 = scmp.eq.s32.totalorder %s11, 1
    %p28 = por %p26, %p27
    %p29 = scmp.ne.s32.totalorder %s21, %s24
    %p30 = scmp.eq.s32.totalorder %s11, 0
    %p31 = por %p29, %p30
    %p32 = scmp.ne.s32.totalorder %s21, %s24
    %p33 = scmp.eq.s32.totalorder %s16, 1
    %p34 = por %p32, %p33
    %p35 = scmp.ne.s32.totalorder %s24, %s25
    %p36 = scmp.eq.s32.totalorder %s16, 0
    %p37 = por %p35, %p36
    %p38 = scmp.ne.s32.totalorder %s24, %s25
    %p39 = scmp.eq.s32.totalorder %s17, 1
    %p40 = por %p38, %p39
    %p42 = scmp.ne.s32.totalorder %s25, %s41
    %p43 = scmp.eq.s32.totalorder %s17, 0
    %p44 = por %p42, %p43
    %s46 = sadd.s32 %s45, 1
    %p49 = scmp.eq.s32.totalorder %s11, 1
    %p50 = scmp.ne.s32.totalorder %s45, %s47
    %p51 = scmp.eq.s32.totalorder %s11, 0
    %p52 = por %p50, %p51
    %p53 = scmp.ne.s32.totalorder %s45, %s47
    %p54 = scmp.eq.s32.totalorder %s16, 1
    %p55 = por %p53, %p54
    %p56 = scmp.ne.s32.totalorder %s47, %s48
    %p57 = scmp.eq.s32.totalorder %s16, 0
    %p58 = por %p56, %p57
    %p59 = scmp.ne.s32.totalorder %s47, %s48
    %p60 = scmp.eq.s32.totalorder %s17, 1
    %p61 = por %p59, %p60
    %p63 = scmp.ne.s32.totalorder %s48, %s62
    %p64 = scmp.eq.s32.totalorder %s17, 0
    %p65 = por %p63, %p64
    %s67 = sadd.s32 %s66, 1
    %p70 = scmp.eq.s32.totalorder %s11, 1
    %p71 = scmp.ne.s32.totalorder %s66, %s68
    %p72 = scmp.eq.s32.totalorder %s11, 0
    %p73 = por %p71, %p72
    %p74 = scmp.ne.s32.totalorder %s66, %s68
    %p75 = scmp.eq.s32.totalorder %s16, 1
    %p76 = por %p74, %p75
    %p77 = scmp.ne.s32.totalorder %s68, %s69
    %p78 = scmp.eq.s32.totalorder %s16, 0
    %p79 = por %p77, %p78
    %p80 = scmp.ne.s32.totalorder %s68, %s69
    %p81 = scmp.eq.s32.totalorder %s17, 1
    %p82 = por %p80, %p81
    %p84 = scmp.ne.s32.totalorder %s69, %s83
    %p85 = scmp.eq.s32.totalorder %s17, 0
    %p86 = por %p84, %p85
    %s88 = sadd.s32 %s87, 1
    %p91 = scmp.eq.s32.totalorder %s11, 1
    %p92 = scmp.ne.s32.totalorder %s87, %s89
    %p93 = scmp.eq.s32.totalorder %s11, 0
    %p94 = por %p92, %p93
    %p95 = scmp.ne.s32.totalorder %s87, %s89
    %p96 = scmp.eq.s32.totalorder %s16, 1
    %p97 = por %p95, %p96
    %p98 = scmp.ne.s32.totalorder %s89, %s90
    %p99 = scmp.eq.s32.totalorder %s16, 0
    %p100 = por %p98, %p99
    %p101 = scmp.ne.s32.totalorder %s89, %s90
    %p102 = scmp.eq.s32.totalorder %s17, 1
    %p103 = por %p101, %p102
    %p105 = scmp.ne.s32.totalorder %s90, %s104
    %p106 = scmp.eq.s32.totalorder %s17, 0
    %p107 = por %p105, %p106
    %s109 = sadd.s32 %s108, 1
    %p112 = scmp.eq.s32.totalorder %s11, 1
    %p113 = scmp.ne.s32.totalorder %s108, %s110
    %p114 = scmp.eq.s32.totalorder %s11, 0
    %p115 = por %p113, %p114
    %p116 = scmp.ne.s32.totalorder %s108, %s110
    %p117 = scmp.eq.s32.totalorder %s16, 1
    %p118 = por %p116, %p117
    %p119 = scmp.ne.s32.totalorder %s110, %s111
    %p120 = scmp.eq.s32.totalorder %s16, 0
    %p121 = por %p119, %p120
    %p122 = scmp.ne.s32.totalorder %s110, %s111
    %p123 = scmp.eq.s32.totalorder %s17, 1
    %p124 = por %p122, %p123
    %p126 = scmp.ne.s32.totalorder %s111, %s125
    %p127 = scmp.eq.s32.totalorder %s17, 0
    %p128 = por %p126, %p127
    %s129 = ssub.s32 %s11, %s18
    %p130 = scmp.eq.s32.totalorder %s129, 0
    %s132 = sadd.s32 %s131, 1
    %s133 = scalar_select %p130, %s131, %s132
    %p136 = pneg %p130
    %p137 = scmp.eq.s32.totalorder %s11, 1
    %p138 = por %p136, %p137
    %p139 = scmp.ne.s32.totalorder %s131, %s134
    %p140 = scmp.eq.s32.totalorder %s11, 0
    %p141 = por %p139, %p140
    %p142 = scmp.ne.s32.totalorder %s131, %s134
    %p143 = scmp.eq.s32.totalorder %s16, 1
    %p144 = por %p142, %p143
    %p145 = scmp.ne.s32.totalorder %s134, %s135
    %p146 = scmp.eq.s32.totalorder %s16, 0
    %p147 = por %p145, %p146
    %p148 = scmp.ne.s32.totalorder %s134, %s135
    %p149 = scmp.eq.s32.totalorder %s17, 1
    %p150 = por %p148, %p149
    %p152 = scmp.ne.s32.totalorder %s135, %s151
    %p153 = scmp.eq.s32.totalorder %s17, 0
    %p154 = por %p152, %p153
    %p155 = scmp.le.s32.totalorder 1, %s11
    %p156 = scmp.lt.s32.totalorder %s11, 3
    %p157 = pnand %p155, %p156
    %p158 = pneg %p157
    // Predicated region
    $region9: #{tpu_custom_call.1} parent=5 // pred_check
      _
    $region10: #{tpu_custom_call.1} parent=5 // pred_check_branch
      %160 = sbr.rel (%p157) target = $region12
    $region11: #{tpu_custom_call.1} parent=5 // pred_region
      %s161 = ssub.s32 %s11, 1
      // Predicated region
      $region13: #{tpu_custom_call.1} parent=11 // pred_check
        %p162 = pneg %p58
      $region14: #{tpu_custom_call.1} parent=11 // pred_check_branch
        %164 = sbr.rel (%p162) target = $region16
      $region15: #{tpu_custom_call.1} parent=11 // pred_region
        _
      $region16: #{tpu_custom_call.1} parent=11 // pred_fallthru
        _
      // Predicated region
      $region17: #{tpu_custom_call.1} parent=11 // pred_check
        %p165 = pneg %p79
      $region18: #{tpu_custom_call.1} parent=11 // pred_check_branch
        %167 = sbr.rel (%p165) target = $region20
      $region19: #{tpu_custom_call.1} parent=11 // pred_region
        _
      $region20: #{tpu_custom_call.1} parent=11 // pred_fallthru
        _
      // Predicated region
      $region21: #{tpu_custom_call.1} parent=11 // pred_check
        %p168 = pneg %p100
      $region22: #{tpu_custom_call.1} parent=11 // pred_check_branch
        %170 = sbr.rel (%p168) target = $region24
      $region23: #{tpu_custom_call.1} parent=11 // pred_region
        _
      $region24: #{tpu_custom_call.1} parent=11 // pred_fallthru
        _
      // Predicated region
      $region25: #{tpu_custom_call.1} parent=11 // pred_check
        %p171 = pneg %p121
      $region26: #{tpu_custom_call.1} parent=11 // pred_check_branch
        %173 = sbr.rel (%p171) target = $region28
      $region27: #{tpu_custom_call.1} parent=11 // pred_region
        _
      $region28: #{tpu_custom_call.1} parent=11 // pred_fallthru
        _
    $region12: #{tpu_custom_call.1} parent=5 // pred_fallthru
      _
    %p174 = scmp.lt.s32.totalorder %s11, 2
    // Predicated region
    $region29: #{tpu_custom_call.1} parent=5 // pred_check
      %p175 = pneg %p174
    $region30: #{tpu_custom_call.1} parent=5 // pred_check_branch
      %177 = sbr.rel (%p175) target = $region32
    $region31: #{tpu_custom_call.1} parent=5 // pred_region
      // Predicated region
      $region33: #{tpu_custom_call.1} parent=31 // pred_check
        %p178 = pneg %p31
      $region34: #{tpu_custom_call.1} parent=31 // pred_check_branch
        %180 = sbr.rel (%p178) target = $region36
      $region35: #{tpu_custom_call.1} parent=31 // pred_region
        %s181 = smul.u32 2, %s11
        %p182 = scmp.lt.s32.totalorder %s181, 3
        %s183 = scalar_select %p182, %s181, 3
        %s184 = smul.addr %s183, 32
        %s185 = smul.addr %s184, 8
        %s186 = scalar_lea.vmem %s0, %s185
        %s187 = smul.u32 2, %s11
      $region36: #{tpu_custom_call.1} parent=31 // pred_fallthru
        _
    $region32: #{tpu_custom_call.1} parent=5 // pred_fallthru
      _
    %p188 = scmp.le.s32.totalorder 1, %s11
    %p189 = scmp.lt.s32.totalorder %s11, 3
    %p190 = pnand %p188, %p189
    %p191 = pneg %p190
    // Predicated region
    $region37: #{tpu_custom_call.1} parent=5 // pred_check
      _
    $region38: #{tpu_custom_call.1} parent=5 // pred_check_branch
      %193 = sbr.rel (%p190) target = $region40
    $region39: #{tpu_custom_call.1} parent=5 // pred_region
      %s194 = ssub.s32 %s11, 1
      %s195 = smul.u32 2, %s16
      %p196 = scmp.lt.s32.totalorder %s195, 3
      %s197 = scalar_select %p196, %s195, 3
      %s198 = smul.addr %s197, 32
      %s199 = smul.addr %s198, 8
      %s200 = scalar_lea.vmem %s0, %s199
      %p201 = pneg %p37
      %p202 = pneg %p34
      %p203 = pneg %p58
      %p204 = pneg %p55
      %p205 = pneg %p79
      %p206 = pneg %p76
      %p207 = pneg %p100
      %p208 = pneg %p97
      %p209 = pneg %p121
      %p210 = pneg %p118
      %p211 = pneg %p147
      %p212 = pneg %p144
      %s213 = smul.u32 2, %s16
      %p214 = scmp.lt.s32.totalorder %s213, 3
      %s215 = scalar_select %p214, %s213, 3
      %s216 = smul.addr %s215, 32
      %s217 = smul.addr %s216, 8
      %s218 = scalar_lea.vmem %s5, %s217
      %s219 = smul.u32 2, %s16
      %p220 = scmp.lt.s32.totalorder %s219, 3
      %s221 = scalar_select %p220, %s219, 3
      %s222 = smul.addr %s221, 32
      %s223 = smul.addr %s222, 8
      %s224 = scalar_lea.vmem %s0, %s223
      %s225 = smul.u32 2, %s16
      %s226 = smul.u32 2, %s16
      %p227 = scmp.lt.s32.totalorder %s226, 3
      %s228 = scalar_select %p227, %s226, 3
      %s229 = smul.addr %s228, 32
      %s230 = smul.addr %s229, 8
      %s231 = scalar_lea.vmem %s5, %s230
      %s232 = smul.u32 2, %s16
      %vm233 = vcmask 64512
      %234 = vst.msk [vmem:[#allocation2] sm:$0xff] %vm233, 0.0
      %235 = vst.msk [vmem:[#allocation2 + $0x8] sm:$0xff] %vm233, 0.0
      %vm236 = vcmask 58368
      %237 = vst.msk [vmem:[#allocation2 + $0x10] sm:$0x3] %vm236, 0.0
      %238 = vst.msk [vmem:[#allocation2 + $0x1b0] sm:$0xff] %vm233, 0.0
      %239 = vst.msk [vmem:[#allocation2 + $0x1b8] sm:$0xff] %vm233, 0.0
      %240 = vst.msk [vmem:[#allocation2 + $0x1c0] sm:$0x3] %vm236, 0.0
      %s241 = scalar_lea.vmem [#allocation2], 408
      %242 = vst.msk [vmem:[%s241] sm:$0xff] %vm233, 0.0
      %243 = vst.msk [vmem:[%s241 + $0x8] sm:$0xff] %vm233, 0.0
      %244 = vst.msk [vmem:[%s241 + $0x10] sm:$0x3] %vm236, 0.0
      %245 = vst.msk [vmem:[%s241 + $0x1b0] sm:$0xff] %vm233, 0.0
      %246 = vst.msk [vmem:[%s241 + $0x1b8] sm:$0xff] %vm233, 0.0
      %247 = vst.msk [vmem:[%s241 + $0x1c0] sm:$0x3] %vm236, 0.0
      %vm248 = vcmask 57344
      %249 = vst.msk [vmem:[#allocation2] sm:$0x1] %vm248, 0.0
      %250 = vst.msk [vmem:[#allocation2 + $0x18] sm:$0x1] %vm248, 0.0
      %251 = vst.msk [vmem:[#allocation2 + $0x30] sm:$0x1] %vm248, 0.0
      %252 = vst.msk [vmem:[#allocation2 + $0x48] sm:$0x1] %vm248, 0.0
      %253 = vst.msk [vmem:[#allocation2 + $0x60] sm:$0x1] %vm248, 0.0
      %254 = vst.msk [vmem:[#allocation2 + $0x78] sm:$0x1] %vm248, 0.0
      %255 = vst.msk [vmem:[#allocation2 + $0x90] sm:$0x1] %vm248, 0.0
      %256 = vst.msk [vmem:[#allocation2 + $0xa8] sm:$0x1] %vm248, 0.0
      %257 = vst.msk [vmem:[#allocation2 + $0xc0] sm:$0x1] %vm248, 0.0
      %258 = vst.msk [vmem:[#allocation2 + $0xd8] sm:$0x1] %vm248, 0.0
      %259 = vst.msk [vmem:[#allocation2 + $0xf0] sm:$0x1] %vm248, 0.0
      %260 = vst.msk [vmem:[#allocation2 + $0x108] sm:$0x1] %vm248, 0.0
      %261 = vst.msk [vmem:[#allocation2 + $0x120] sm:$0x1] %vm248, 0.0
      %262 = vst.msk [vmem:[#allocation2 + $0x138] sm:$0x1] %vm248, 0.0
      %263 = vst.msk [vmem:[#allocation2 + $0x150] sm:$0x1] %vm248, 0.0
      %264 = vst.msk [vmem:[#allocation2 + $0x168] sm:$0x1] %vm248, 0.0
      %265 = vst.msk [vmem:[#allocation2 + $0x180] sm:$0x1] %vm248, 0.0
      %266 = vst.msk [vmem:[#allocation2 + $0x198] sm:$0x1] %vm248, 0.0
      %267 = vst.msk [vmem:[#allocation2 + $0x1b0] sm:$0x1] %vm248, 0.0
      %268 = vst.msk [vmem:[#allocation2 + $0x1c8] sm:$0x1] %vm248, 0.0
      %269 = vst.msk [vmem:[#allocation2 + $0x1e0] sm:$0x1] %vm248, 0.0
      %270 = vst.msk [vmem:[#allocation2 + $0x1f8] sm:$0x1] %vm248, 0.0
      %271 = vst.msk [vmem:[#allocation2 + $0x210] sm:$0x1] %vm248, 0.0
      %272 = vst.msk [vmem:[#allocation2 + $0x228] sm:$0x1] %vm248, 0.0
      %273 = vst.msk [vmem:[#allocation2 + $0x240] sm:$0x1] %vm248, 0.0
      %274 = vst.msk [vmem:[#allocation2 + $0x258] sm:$0x1] %vm248, 0.0
      %275 = vst.msk [vmem:[#allocation2 + $0x270] sm:$0x1] %vm248, 0.0
      %276 = vst.msk [vmem:[#allocation2 + $0x288] sm:$0x1] %vm248, 0.0
      %277 = vst.msk [vmem:[#allocation2 + $0x2a0] sm:$0x1] %vm248, 0.0
      %278 = vst.msk [vmem:[#allocation2 + $0x2b8] sm:$0x1] %vm248, 0.0
      %279 = vst.msk [vmem:[#allocation2 + $0x2d0] sm:$0x1] %vm248, 0.0
      %280 = vst.msk [vmem:[#allocation2 + $0x2e8] sm:$0x1] %vm248, 0.0
      %281 = vst.msk [vmem:[#allocation2 + $0x300] sm:$0x1] %vm248, 0.0
      %282 = vst.msk [vmem:[#allocation2 + $0x318] sm:$0x1] %vm248, 0.0
      %283 = vst.msk [vmem:[#allocation2 + $0x330] sm:$0x1] %vm248, 0.0
      %284 = vst.msk [vmem:[#allocation2 + $0x348] sm:$0x1] %vm248, 0.0
      %285 = vst.msk [vmem:[#allocation2 + $0x11] sm:$0x1] %vm248, 0.0
      %286 = vst.msk [vmem:[#allocation2 + $0x29] sm:$0x1] %vm248, 0.0
      %287 = vst.msk [vmem:[#allocation2 + $0x41] sm:$0x1] %vm248, 0.0
      %288 = vst.msk [vmem:[#allocation2 + $0x59] sm:$0x1] %vm248, 0.0
      %289 = vst.msk [vmem:[#allocation2 + $0x71] sm:$0x1] %vm248, 0.0
      %290 = vst.msk [vmem:[#allocation2 + $0x89] sm:$0x1] %vm248, 0.0
      %291 = vst.msk [vmem:[#allocation2 + $0xa1] sm:$0x1] %vm248, 0.0
      %292 = vst.msk [vmem:[#allocation2 + $0xb9] sm:$0x1] %vm248, 0.0
      %293 = vst.msk [vmem:[#allocation2 + $0xd1] sm:$0x1] %vm248, 0.0
      %294 = vst.msk [vmem:[#allocation2 + $0xe9] sm:$0x1] %vm248, 0.0
      %295 = vst.msk [vmem:[#allocation2 + $0x101] sm:$0x1] %vm248, 0.0
      %296 = vst.msk [vmem:[#allocation2 + $0x119] sm:$0x1] %vm248, 0.0
      %297 = vst.msk [vmem:[#allocation2 + $0x131] sm:$0x1] %vm248, 0.0
      %298 = vst.msk [vmem:[#allocation2 + $0x149] sm:$0x1] %vm248, 0.0
      %299 = vst.msk [vmem:[#allocation2 + $0x161] sm:$0x1] %vm248, 0.0
      %300 = vst.msk [vmem:[#allocation2 + $0x179] sm:$0x1] %vm248, 0.0
      %301 = vst.msk [vmem:[#allocation2 + $0x191] sm:$0x1] %vm248, 0.0
      %302 = vst.msk [vmem:[#allocation2 + $0x1a9] sm:$0x1] %vm248, 0.0
      %303 = vst.msk [vmem:[#allocation2 + $0x1c1] sm:$0x1] %vm248, 0.0
      %304 = vst.msk [vmem:[#allocation2 + $0x1d9] sm:$0x1] %vm248, 0.0
      %305 = vst.msk [vmem:[#allocation2 + $0x1f1] sm:$0x1] %vm248, 0.0
      %306 = vst.msk [vmem:[#allocation2 + $0x209] sm:$0x1] %vm248, 0.0
      %307 = vst.msk [vmem:[#allocation2 + $0x221] sm:$0x1] %vm248, 0.0
      %308 = vst.msk [vmem:[#allocation2 + $0x239] sm:$0x1] %vm248, 0.0
      %309 = vst.msk [vmem:[#allocation2 + $0x251] sm:$0x1] %vm248, 0.0
      %310 = vst.msk [vmem:[#allocation2 + $0x269] sm:$0x1] %vm248, 0.0
      %311 = vst.msk [vmem:[#allocation2 + $0x281] sm:$0x1] %vm248, 0.0
      %312 = vst.msk [vmem:[#allocation2 + $0x299] sm:$0x1] %vm248, 0.0
      %313 = vst.msk [vmem:[#allocation2 + $0x2b1] sm:$0x1] %vm248, 0.0
      %314 = vst.msk [vmem:[#allocation2 + $0x2c9] sm:$0x1] %vm248, 0.0
      %315 = vst.msk [vmem:[#allocation2 + $0x2e1] sm:$0x1] %vm248, 0.0
      %316 = vst.msk [vmem:[#allocation2 + $0x2f9] sm:$0x1] %vm248, 0.0
      %317 = vst.msk [vmem:[#allocation2 + $0x311] sm:$0x1] %vm248, 0.0
      %318 = vst.msk [vmem:[#allocation2 + $0x329] sm:$0x1] %vm248, 0.0
      %319 = vst.msk [vmem:[#allocation2 + $0x341] sm:$0x1] %vm248, 0.0
      %320 = vst.msk [vmem:[#allocation2 + $0x359] sm:$0x1] %vm248, 0.0
      %321 = vst.msk [vmem:[#allocation3] sm:$0xff] %vm233, 0.0
      %322 = vst.msk [vmem:[#allocation3 + $0x8] sm:$0xff] %vm233, 0.0
      %323 = vst.msk [vmem:[#allocation3 + $0x10] sm:$0x3] %vm236, 0.0
      %324 = vst.msk [vmem:[#allocation3 + $0x1b0] sm:$0xff] %vm233, 0.0
      %325 = vst.msk [vmem:[#allocation3 + $0x1b8] sm:$0xff] %vm233, 0.0
      %326 = vst.msk [vmem:[#allocation3 + $0x1c0] sm:$0x3] %vm236, 0.0
      %s327 = scalar_lea.vmem [#allocation3], 408
      %328 = vst.msk [vmem:[%s327] sm:$0xff] %vm233, 0.0
      %329 = vst.msk [vmem:[%s327 + $0x8] sm:$0xff] %vm233, 0.0
      %330 = vst.msk [vmem:[%s327 + $0x10] sm:$0x3] %vm236, 0.0
      %331 = vst.msk [vmem:[%s327 + $0x1b0] sm:$0xff] %vm233, 0.0
      %332 = vst.msk [vmem:[%s327 + $0x1b8] sm:$0xff] %vm233, 0.0
      %333 = vst.msk [vmem:[%s327 + $0x1c0] sm:$0x3] %vm236, 0.0
      %334 = vst.msk [vmem:[#allocation3] sm:$0x1] %vm248, 0.0
      %335 = vst.msk [vmem:[#allocation3 + $0x18] sm:$0x1] %vm248, 0.0
      %336 = vst.msk [vmem:[#allocation3 + $0x30] sm:$0x1] %vm248, 0.0
      %337 = vst.msk [vmem:[#allocation3 + $0x48] sm:$0x1] %vm248, 0.0
      %338 = vst.msk [vmem:[#allocation3 + $0x60] sm:$0x1] %vm248, 0.0
      %339 = vst.msk [vmem:[#allocation3 + $0x78] sm:$0x1] %vm248, 0.0
      %340 = vst.msk [vmem:[#allocation3 + $0x90] sm:$0x1] %vm248, 0.0
      %341 = vst.msk [vmem:[#allocation3 + $0xa8] sm:$0x1] %vm248, 0.0
      %342 = vst.msk [vmem:[#allocation3 + $0xc0] sm:$0x1] %vm248, 0.0
      %343 = vst.msk [vmem:[#allocation3 + $0xd8] sm:$0x1] %vm248, 0.0
      %344 = vst.msk [vmem:[#allocation3 + $0xf0] sm:$0x1] %vm248, 0.0
      %345 = vst.msk [vmem:[#allocation3 + $0x108] sm:$0x1] %vm248, 0.0
      %346 = vst.msk [vmem:[#allocation3 + $0x120] sm:$0x1] %vm248, 0.0
      %347 = vst.msk [vmem:[#allocation3 + $0x138] sm:$0x1] %vm248, 0.0
      %348 = vst.msk [vmem:[#allocation3 + $0x150] sm:$0x1] %vm248, 0.0
      %349 = vst.msk [vmem:[#allocation3 + $0x168] sm:$0x1] %vm248, 0.0
      %350 = vst.msk [vmem:[#allocation3 + $0x180] sm:$0x1] %vm248, 0.0
      %351 = vst.msk [vmem:[#allocation3 + $0x198] sm:$0x1] %vm248, 0.0
      %352 = vst.msk [vmem:[#allocation3 + $0x1b0] sm:$0x1] %vm248, 0.0
      %353 = vst.msk [vmem:[#allocation3 + $0x1c8] sm:$0x1] %vm248, 0.0
      %354 = vst.msk [vmem:[#allocation3 + $0x1e0] sm:$0x1] %vm248, 0.0
      %355 = vst.msk [vmem:[#allocation3 + $0x1f8] sm:$0x1] %vm248, 0.0
      %356 = vst.msk [vmem:[#allocation3 + $0x210] sm:$0x1] %vm248, 0.0
      %357 = vst.msk [vmem:[#allocation3 + $0x228] sm:$0x1] %vm248, 0.0
      %358 = vst.msk [vmem:[#allocation3 + $0x240] sm:$0x1] %vm248, 0.0
      %359 = vst.msk [vmem:[#allocation3 + $0x258] sm:$0x1] %vm248, 0.0
      %360 = vst.msk [vmem:[#allocation3 + $0x270] sm:$0x1] %vm248, 0.0
      %361 = vst.msk [vmem:[#allocation3 + $0x288] sm:$0x1] %vm248, 0.0
      %362 = vst.msk [vmem:[#allocation3 + $0x2a0] sm:$0x1] %vm248, 0.0
      %363 = vst.msk [vmem:[#allocation3 + $0x2b8] sm:$0x1] %vm248, 0.0
      %364 = vst.msk [vmem:[#allocation3 + $0x2d0] sm:$0x1] %vm248, 0.0
      %365 = vst.msk [vmem:[#allocation3 + $0x2e8] sm:$0x1] %vm248, 0.0
      %366 = vst.msk [vmem:[#allocation3 + $0x300] sm:$0x1] %vm248, 0.0
      %367 = vst.msk [vmem:[#allocation3 + $0x318] sm:$0x1] %vm248, 0.0
      %368 = vst.msk [vmem:[#allocation3 + $0x330] sm:$0x1] %vm248, 0.0
      %369 = vst.msk [vmem:[#allocation3 + $0x348] sm:$0x1] %vm248, 0.0
      %370 = vst.msk [vmem:[#allocation3 + $0x11] sm:$0x1] %vm248, 0.0
      %371 = vst.msk [vmem:[#allocation3 + $0x29] sm:$0x1] %vm248, 0.0
      %372 = vst.msk [vmem:[#allocation3 + $0x41] sm:$0x1] %vm248, 0.0
      %373 = vst.msk [vmem:[#allocation3 + $0x59] sm:$0x1] %vm248, 0.0
      %374 = vst.msk [vmem:[#allocation3 + $0x71] sm:$0x1] %vm248, 0.0
      %375 = vst.msk [vmem:[#allocation3 + $0x89] sm:$0x1] %vm248, 0.0
      %376 = vst.msk [vmem:[#allocation3 + $0xa1] sm:$0x1] %vm248, 0.0
      %377 = vst.msk [vmem:[#allocation3 + $0xb9] sm:$0x1] %vm248, 0.0
      %378 = vst.msk [vmem:[#allocation3 + $0xd1] sm:$0x1] %vm248, 0.0
      %379 = vst.msk [vmem:[#allocation3 + $0xe9] sm:$0x1] %vm248, 0.0
      %380 = vst.msk [vmem:[#allocation3 + $0x101] sm:$0x1] %vm248, 0.0
      %381 = vst.msk [vmem:[#allocation3 + $0x119] sm:$0x1] %vm248, 0.0
      %382 = vst.msk [vmem:[#allocation3 + $0x131] sm:$0x1] %vm248, 0.0
      %383 = vst.msk [vmem:[#allocation3 + $0x149] sm:$0x1] %vm248, 0.0
      %384 = vst.msk [vmem:[#allocation3 + $0x161] sm:$0x1] %vm248, 0.0
      %385 = vst.msk [vmem:[#allocation3 + $0x179] sm:$0x1] %vm248, 0.0
      %386 = vst.msk [vmem:[#allocation3 + $0x191] sm:$0x1] %vm248, 0.0
      %387 = vst.msk [vmem:[#allocation3 + $0x1a9] sm:$0x1] %vm248, 0.0
      %388 = vst.msk [vmem:[#allocation3 + $0x1c1] sm:$0x1] %vm248, 0.0
      %389 = vst.msk [vmem:[#allocation3 + $0x1d9] sm:$0x1] %vm248, 0.0
      %390 = vst.msk [vmem:[#allocation3 + $0x1f1] sm:$0x1] %vm248, 0.0
      %391 = vst.msk [vmem:[#allocation3 + $0x209] sm:$0x1] %vm248, 0.0
      %392 = vst.msk [vmem:[#allocation3 + $0x221] sm:$0x1] %vm248, 0.0
      %393 = vst.msk [vmem:[#allocation3 + $0x239] sm:$0x1] %vm248, 0.0
      %394 = vst.msk [vmem:[#allocation3 + $0x251] sm:$0x1] %vm248, 0.0
      %395 = vst.msk [vmem:[#allocation3 + $0x269] sm:$0x1] %vm248, 0.0
      %396 = vst.msk [vmem:[#allocation3 + $0x281] sm:$0x1] %vm248, 0.0
      %397 = vst.msk [vmem:[#allocation3 + $0x299] sm:$0x1] %vm248, 0.0
      %398 = vst.msk [vmem:[#allocation3 + $0x2b1] sm:$0x1] %vm248, 0.0
      %399 = vst.msk [vmem:[#allocation3 + $0x2c9] sm:$0x1] %vm248, 0.0
      %400 = vst.msk [vmem:[#allocation3 + $0x2e1] sm:$0x1] %vm248, 0.0
      %401 = vst.msk [vmem:[#allocation3 + $0x2f9] sm:$0x1] %vm248, 0.0
      %402 = vst.msk [vmem:[#allocation3 + $0x311] sm:$0x1] %vm248, 0.0
      %403 = vst.msk [vmem:[#allocation3 + $0x329] sm:$0x1] %vm248, 0.0
      %404 = vst.msk [vmem:[#allocation3 + $0x341] sm:$0x1] %vm248, 0.0
      %405 = vst.msk [vmem:[#allocation3 + $0x359] sm:$0x1] %vm248, 0.0
      %v406 = vld [vmem:[%s224] sm:$0xff]
      %v407 = vld [vmem:[%s224 + $0x8] sm:$0xff]
      %v408 = vld [vmem:[%s224 + $0x10] sm:$0xff]
      %v409 = vld [vmem:[%s224 + $0x18] sm:$0xff]
      %v410 = vld [vmem:[%s224 + $0x20] sm:$0xff]
      %v411 = vld [vmem:[%s224 + $0x28] sm:$0xff]
      %v412 = vld [vmem:[%s224 + $0x30] sm:$0xff]
      %v413 = vld [vmem:[%s224 + $0x38] sm:$0xff]
      %v414 = vld [vmem:[%s224 + $0x40] sm:$0xff]
      %v415 = vld [vmem:[%s224 + $0x48] sm:$0xff]
      %v416 = vld [vmem:[%s224 + $0x50] sm:$0xff]
      %v417 = vld [vmem:[%s224 + $0x58] sm:$0xff]
      %v418 = vld [vmem:[%s224 + $0x60] sm:$0xff]
      %v419 = vld [vmem:[%s224 + $0x68] sm:$0xff]
      %v420 = vld [vmem:[%s224 + $0x70] sm:$0xff]
      %v421 = vld [vmem:[%s224 + $0x78] sm:$0xff]
      %v422 = vld [vmem:[%s224 + $0x80] sm:$0xff]
      %v423 = vld [vmem:[%s224 + $0x88] sm:$0xff]
      %v424 = vld [vmem:[%s224 + $0x90] sm:$0xff]
      %v425 = vld [vmem:[%s224 + $0x98] sm:$0xff]
      %v426 = vld [vmem:[%s224 + $0xa0] sm:$0xff]
      %v427 = vld [vmem:[%s224 + $0xa8] sm:$0xff]
      %v428 = vld [vmem:[%s224 + $0xb0] sm:$0xff]
      %v429 = vld [vmem:[%s224 + $0xb8] sm:$0xff]
      %v430 = vld [vmem:[%s224 + $0xc0] sm:$0xff]
      %v431 = vld [vmem:[%s224 + $0xc8] sm:$0xff]
      %v432 = vld [vmem:[%s224 + $0xd0] sm:$0xff]
      %v433 = vld [vmem:[%s224 + $0xd8] sm:$0xff]
      %v434 = vld [vmem:[%s224 + $0xe0] sm:$0xff]
      %v435 = vld [vmem:[%s224 + $0xe8] sm:$0xff]
      %v436 = vld [vmem:[%s224 + $0xf0] sm:$0xff]
      %v437 = vld [vmem:[%s224 + $0xf8] sm:$0xff]
      %v438 = vld [vmem:[%s224 + $0x100] sm:$0xff]
      %v439 = vld [vmem:[%s224 + $0x108] sm:$0xff]
      %v440 = vld [vmem:[%s224 + $0x110] sm:$0xff]
      %v441 = vld [vmem:[%s224 + $0x118] sm:$0xff]
      %v442 = vld [vmem:[%s224 + $0x120] sm:$0xff]
      %v443 = vld [vmem:[%s224 + $0x128] sm:$0xff]
      %v444 = vld [vmem:[%s224 + $0x130] sm:$0xff]
      %v445 = vld [vmem:[%s224 + $0x138] sm:$0xff]
      %v446 = vld [vmem:[%s224 + $0x140] sm:$0xff]
      %v447 = vld [vmem:[%s224 + $0x148] sm:$0xff]
      %v448 = vld [vmem:[%s224 + $0x150] sm:$0xff]
      %v449 = vld [vmem:[%s224 + $0x158] sm:$0xff]
      %v450 = vld [vmem:[%s224 + $0x160] sm:$0xff]
      %v451 = vld [vmem:[%s224 + $0x168] sm:$0xff]
      %v452 = vld [vmem:[%s224 + $0x170] sm:$0xff]
      %v453 = vld [vmem:[%s224 + $0x178] sm:$0xff]
      %v454 = vld [vmem:[%s224 + $0x180] sm:$0xff]
      %v455 = vld [vmem:[%s224 + $0x188] sm:$0xff]
      %v456 = vld [vmem:[%s224 + $0x190] sm:$0xff]
      %v457 = vld [vmem:[%s224 + $0x198] sm:$0xff]
      %v458 = vld [vmem:[%s224 + $0x1a0] sm:$0xff]
      %v459 = vld [vmem:[%s224 + $0x1a8] sm:$0xff]
      %v460 = vld [vmem:[%s224 + $0x1b0] sm:$0xff]
      %v461 = vld [vmem:[%s224 + $0x1b8] sm:$0xff]
      %v462 = vld [vmem:[%s224 + $0x1c0] sm:$0xff]
      %v463 = vld [vmem:[%s224 + $0x1c8] sm:$0xff]
      %v464 = vld [vmem:[%s224 + $0x1d0] sm:$0xff]
      %v465 = vld [vmem:[%s224 + $0x1d8] sm:$0xff]
      %v466 = vld [vmem:[%s224 + $0x1e0] sm:$0xff]
      %v467 = vld [vmem:[%s224 + $0x1e8] sm:$0xff]
      %v468 = vld [vmem:[%s224 + $0x1f0] sm:$0xff]
      %v469 = vld [vmem:[%s224 + $0x1f8] sm:$0xff]
      %s470 = scalar_lea.vmem [#allocation2], 24
      %471 = vst.msk [vmem:[%s470 + $0x1] sm:$0xff] %vm233, %v406
      %472 = vst.msk [vmem:[%s470 + $0x9] sm:$0xff] %vm233, %v407
      %473 = vst.msk [vmem:[%s470 + $0x19] sm:$0xff] %vm233, %v408
      %474 = vst.msk [vmem:[%s470 + $0x21] sm:$0xff] %vm233, %v409
      %475 = vst.msk [vmem:[%s470 + $0x31] sm:$0xff] %vm233, %v410
      %476 = vst.msk [vmem:[%s470 + $0x39] sm:$0xff] %vm233, %v411
      %477 = vst.msk [vmem:[%s470 + $0x49] sm:$0xff] %vm233, %v412
      %478 = vst.msk [vmem:[%s470 + $0x51] sm:$0xff] %vm233, %v413
      %479 = vst.msk [vmem:[%s470 + $0x61] sm:$0xff] %vm233, %v414
      %480 = vst.msk [vmem:[%s470 + $0x69] sm:$0xff] %vm233, %v415
      %481 = vst.msk [vmem:[%s470 + $0x79] sm:$0xff] %vm233, %v416
      %482 = vst.msk [vmem:[%s470 + $0x81] sm:$0xff] %vm233, %v417
      %483 = vst.msk [vmem:[%s470 + $0x91] sm:$0xff] %vm233, %v418
      %484 = vst.msk [vmem:[%s470 + $0x99] sm:$0xff] %vm233, %v419
      %485 = vst.msk [vmem:[%s470 + $0xa9] sm:$0xff] %vm233, %v420
      %486 = vst.msk [vmem:[%s470 + $0xb1] sm:$0xff] %vm233, %v421
      %487 = vst.msk [vmem:[%s470 + $0xc1] sm:$0xff] %vm233, %v422
      %488 = vst.msk [vmem:[%s470 + $0xc9] sm:$0xff] %vm233, %v423
      %489 = vst.msk [vmem:[%s470 + $0xd9] sm:$0xff] %vm233, %v424
      %490 = vst.msk [vmem:[%s470 + $0xe1] sm:$0xff] %vm233, %v425
      %491 = vst.msk [vmem:[%s470 + $0xf1] sm:$0xff] %vm233, %v426
      %492 = vst.msk [vmem:[%s470 + $0xf9] sm:$0xff] %vm233, %v427
      %493 = vst.msk [vmem:[%s470 + $0x109] sm:$0xff] %vm233, %v428
      %494 = vst.msk [vmem:[%s470 + $0x111] sm:$0xff] %vm233, %v429
      %495 = vst.msk [vmem:[%s470 + $0x121] sm:$0xff] %vm233, %v430
      %496 = vst.msk [vmem:[%s470 + $0x129] sm:$0xff] %vm233, %v431
      %497 = vst.msk [vmem:[%s470 + $0x139] sm:$0xff] %vm233, %v432
      %498 = vst.msk [vmem:[%s470 + $0x141] sm:$0xff] %vm233, %v433
      %499 = vst.msk [vmem:[%s470 + $0x151] sm:$0xff] %vm233, %v434
      %500 = vst.msk [vmem:[%s470 + $0x159] sm:$0xff] %vm233, %v435
      %501 = vst.msk [vmem:[%s470 + $0x169] sm:$0xff] %vm233, %v436
      %502 = vst.msk [vmem:[%s470 + $0x171] sm:$0xff] %vm233, %v437
      %503 = vst.msk [vmem:[%s470 + $0x1b1] sm:$0xff] %vm233, %v438
      %504 = vst.msk [vmem:[%s470 + $0x1b9] sm:$0xff] %vm233, %v439
      %505 = vst.msk [vmem:[%s470 + $0x1c9] sm:$0xff] %vm233, %v440
      %506 = vst.msk [vmem:[%s470 + $0x1d1] sm:$0xff] %vm233, %v441
      %507 = vst.msk [vmem:[%s470 + $0x1e1] sm:$0xff] %vm233, %v442
      %508 = vst.msk [vmem:[%s470 + $0x1e9] sm:$0xff] %vm233, %v443
      %509 = vst.msk [vmem:[%s470 + $0x1f9] sm:$0xff] %vm233, %v444
      %510 = vst.msk [vmem:[%s470 + $0x201] sm:$0xff] %vm233, %v445
      %511 = vst.msk [vmem:[%s470 + $0x211] sm:$0xff] %vm233, %v446
      %512 = vst.msk [vmem:[%s470 + $0x219] sm:$0xff] %vm233, %v447
      %513 = vst.msk [vmem:[%s470 + $0x229] sm:$0xff] %vm233, %v448
      %514 = vst.msk [vmem:[%s470 + $0x231] sm:$0xff] %vm233, %v449
      %515 = vst.msk [vmem:[%s470 + $0x241] sm:$0xff] %vm233, %v450
      %516 = vst.msk [vmem:[%s470 + $0x249] sm:$0xff] %vm233, %v451
      %517 = vst.msk [vmem:[%s470 + $0x259] sm:$0xff] %vm233, %v452
      %518 = vst.msk [vmem:[%s470 + $0x261] sm:$0xff] %vm233, %v453
      %519 = vst.msk [vmem:[%s470 + $0x271] sm:$0xff] %vm233, %v454
      %520 = vst.msk [vmem:[%s470 + $0x279] sm:$0xff] %vm233, %v455
      %521 = vst.msk [vmem:[%s470 + $0x289] sm:$0xff] %vm233, %v456
      %522 = vst.msk [vmem:[%s470 + $0x291] sm:$0xff] %vm233, %v457
      %523 = vst.msk [vmem:[%s470 + $0x2a1] sm:$0xff] %vm233, %v458
      %524 = vst.msk [vmem:[%s470 + $0x2a9] sm:$0xff] %vm233, %v459
      %525 = vst.msk [vmem:[%s470 + $0x2b9] sm:$0xff] %vm233, %v460
      %526 = vst.msk [vmem:[%s470 + $0x2c1] sm:$0xff] %vm233, %v461
      %527 = vst.msk [vmem:[%s470 + $0x2d1] sm:$0xff] %vm233, %v462
      %528 = vst.msk [vmem:[%s470 + $0x2d9] sm:$0xff] %vm233, %v463
      %529 = vst.msk [vmem:[%s470 + $0x2e9] sm:$0xff] %vm233, %v464
      %530 = vst.msk [vmem:[%s470 + $0x2f1] sm:$0xff] %vm233, %v465
      %531 = vst.msk [vmem:[%s470 + $0x301] sm:$0xff] %vm233, %v466
      %532 = vst.msk [vmem:[%s470 + $0x309] sm:$0xff] %vm233, %v467
      %533 = vst.msk [vmem:[%s470 + $0x319] sm:$0xff] %vm233, %v468
      %534 = vst.msk [vmem:[%s470 + $0x321] sm:$0xff] %vm233, %v469
      %v535 = vld [vmem:[#allocation2] sm:$0xff]
      %v536 = vld [vmem:[#allocation2 + $0x8] sm:$0xff]
      %v537 = vld [vmem:[#allocation2 + $0x18] sm:$0xff]
      %v538 = vld [vmem:[#allocation2 + $0x20] sm:$0xff]
      %v539 = vld [vmem:[#allocation2 + $0x30] sm:$0xff]
      %v540 = vld [vmem:[#allocation2 + $0x38] sm:$0xff]
      %v541 = vld [vmem:[#allocation2 + $0x48] sm:$0xff]
      %v542 = vld [vmem:[#allocation2 + $0x50] sm:$0xff]
      %v543 = vld [vmem:[#allocation2 + $0x60] sm:$0xff]
      %v544 = vld [vmem:[#allocation2 + $0x68] sm:$0xff]
      %v545 = vld [vmem:[#allocation2 + $0x78] sm:$0xff]
      %v546 = vld [vmem:[#allocation2 + $0x80] sm:$0xff]
      %v547 = vld [vmem:[#allocation2 + $0x90] sm:$0xff]
      %v548 = vld [vmem:[#allocation2 + $0x98] sm:$0xff]
      %v549 = vld [vmem:[#allocation2 + $0xa8] sm:$0xff]
      %v550 = vld [vmem:[#allocation2 + $0xb0] sm:$0xff]
      %v551 = vld [vmem:[#allocation2 + $0xc0] sm:$0xff]
      %v552 = vld [vmem:[#allocation2 + $0xc8] sm:$0xff]
      %v553 = vld [vmem:[#allocation2 + $0xd8] sm:$0xff]
      %v554 = vld [vmem:[#allocation2 + $0xe0] sm:$0xff]
      %v555 = vld [vmem:[#allocation2 + $0xf0] sm:$0xff]
      %v556 = vld [vmem:[#allocation2 + $0xf8] sm:$0xff]
      %v557 = vld [vmem:[#allocation2 + $0x108] sm:$0xff]
      %v558 = vld [vmem:[#allocation2 + $0x110] sm:$0xff]
      %v559 = vld [vmem:[#allocation2 + $0x120] sm:$0xff]
      %v560 = vld [vmem:[#allocation2 + $0x128] sm:$0xff]
      %v561 = vld [vmem:[#allocation2 + $0x138] sm:$0xff]
      %v562 = vld [vmem:[#allocation2 + $0x140] sm:$0xff]
      %v563 = vld [vmem:[#allocation2 + $0x150] sm:$0xff]
      %v564 = vld [vmem:[#allocation2 + $0x158] sm:$0xff]
      %v565 = vld [vmem:[#allocation2 + $0x168] sm:$0xff]
      %v566 = vld [vmem:[#allocation2 + $0x170] sm:$0xff]
      %v567 = vld [vmem:[#allocation2 + $0x1b0] sm:$0xff]
      %v568 = vld [vmem:[#allocation2 + $0x1b8] sm:$0xff]
      %v569 = vld [vmem:[#allocation2 + $0x1c8] sm:$0xff]
      %v570 = vld [vmem:[#allocation2 + $0x1d0] sm:$0xff]
      %v571 = vld [vmem:[#allocation2 + $0x1e0] sm:$0xff]
      %v572 = vld [vmem:[#allocation2 + $0x1e8] sm:$0xff]
      %v573 = vld [vmem:[#allocation2 + $0x1f8] sm:$0xff]
      %v574 = vld [vmem:[#allocation2 + $0x200] sm:$0xff]
      %v575 = vld [vmem:[#allocation2 + $0x210] sm:$0xff]
      %v576 = vld [vmem:[#allocation2 + $0x218] sm:$0xff]
      %v577 = vld [vmem:[#allocation2 + $0x228] sm:$0xff]
      %v578 = vld [vmem:[#allocation2 + $0x230] sm:$0xff]
      %v579 = vld [vmem:[#allocation2 + $0x240] sm:$0xff]
      %v580 = vld [vmem:[#allocation2 + $0x248] sm:$0xff]
      %v581 = vld [vmem:[#allocation2 + $0x258] sm:$0xff]
      %v582 = vld [vmem:[#allocation2 + $0x260] sm:$0xff]
      %v583 = vld [vmem:[#allocation2 + $0x270] sm:$0xff]
      %v584 = vld [vmem:[#allocation2 + $0x278] sm:$0xff]
      %v585 = vld [vmem:[#allocation2 + $0x288] sm:$0xff]
      %v586 = vld [vmem:[#allocation2 + $0x290] sm:$0xff]
      %v587 = vld [vmem:[#allocation2 + $0x2a0] sm:$0xff]
      %v588 = vld [vmem:[#allocation2 + $0x2a8] sm:$0xff]
      %v589 = vld [vmem:[#allocation2 + $0x2b8] sm:$0xff]
      %v590 = vld [vmem:[#allocation2 + $0x2c0] sm:$0xff]
      %v591 = vld [vmem:[#allocation2 + $0x2d0] sm:$0xff]
      %v592 = vld [vmem:[#allocation2 + $0x2d8] sm:$0xff]
      %v593 = vld [vmem:[#allocation2 + $0x2e8] sm:$0xff]
      %v594 = vld [vmem:[#allocation2 + $0x2f0] sm:$0xff]
      %v595 = vld [vmem:[#allocation2 + $0x300] sm:$0xff]
      %v596 = vld [vmem:[#allocation2 + $0x308] sm:$0xff]
      %v597 = vld [vmem:[#allocation2 + $0x318] sm:$0xff]
      %v598 = vld [vmem:[#allocation2 + $0x320] sm:$0xff]
      %599 = vst.msk [vmem:[#allocation4] sm:$0xff] %vm233, %v535
      %600 = vst.msk [vmem:[#allocation4 + $0x8] sm:$0xff] %vm233, %v536
      %601 = vst.msk [vmem:[#allocation4 + $0x10] sm:$0xff] %vm233, %v537
      %602 = vst.msk [vmem:[#allocation4 + $0x18] sm:$0xff] %vm233, %v538
      %603 = vst.msk [vmem:[#allocation4 + $0x20] sm:$0xff] %vm233, %v539
      %604 = vst.msk [vmem:[#allocation4 + $0x28] sm:$0xff] %vm233, %v540
      %605 = vst.msk [vmem:[#allocation4 + $0x30] sm:$0xff] %vm233, %v541
      %606 = vst.msk [vmem:[#allocation4 + $0x38] sm:$0xff] %vm233, %v542
      %607 = vst.msk [vmem:[#allocation4 + $0x40] sm:$0xff] %vm233, %v543
      %608 = vst.msk [vmem:[#allocation4 + $0x48] sm:$0xff] %vm233, %v544
      %609 = vst.msk [vmem:[#allocation4 + $0x50] sm:$0xff] %vm233, %v545
      %610 = vst.msk [vmem:[#allocation4 + $0x58] sm:$0xff] %vm233, %v546
      %611 = vst.msk [vmem:[#allocation4 + $0x60] sm:$0xff] %vm233, %v547
      %612 = vst.msk [vmem:[#allocation4 + $0x68] sm:$0xff] %vm233, %v548
      %613 = vst.msk [vmem:[#allocation4 + $0x70] sm:$0xff] %vm233, %v549
      %614 = vst.msk [vmem:[#allocation4 + $0x78] sm:$0xff] %vm233, %v550
      %615 = vst.msk [vmem:[#allocation4 + $0x80] sm:$0xff] %vm233, %v551
      %616 = vst.msk [vmem:[#allocation4 + $0x88] sm:$0xff] %vm233, %v552
      %617 = vst.msk [vmem:[#allocation4 + $0x90] sm:$0xff] %vm233, %v553
      %618 = vst.msk [vmem:[#allocation4 + $0x98] sm:$0xff] %vm233, %v554
      %619 = vst.msk [vmem:[#allocation4 + $0xa0] sm:$0xff] %vm233, %v555
      %620 = vst.msk [vmem:[#allocation4 + $0xa8] sm:$0xff] %vm233, %v556
      %621 = vst.msk [vmem:[#allocation4 + $0xb0] sm:$0xff] %vm233, %v557
      %622 = vst.msk [vmem:[#allocation4 + $0xb8] sm:$0xff] %vm233, %v558
      %623 = vst.msk [vmem:[#allocation4 + $0xc0] sm:$0xff] %vm233, %v559
      %624 = vst.msk [vmem:[#allocation4 + $0xc8] sm:$0xff] %vm233, %v560
      %625 = vst.msk [vmem:[#allocation4 + $0xd0] sm:$0xff] %vm233, %v561
      %626 = vst.msk [vmem:[#allocation4 + $0xd8] sm:$0xff] %vm233, %v562
      %627 = vst.msk [vmem:[#allocation4 + $0xe0] sm:$0xff] %vm233, %v563
      %628 = vst.msk [vmem:[#allocation4 + $0xe8] sm:$0xff] %vm233, %v564
      %629 = vst.msk [vmem:[#allocation4 + $0xf0] sm:$0xff] %vm233, %v565
      %630 = vst.msk [vmem:[#allocation4 + $0xf8] sm:$0xff] %vm233, %v566
      %631 = vst.msk [vmem:[#allocation4 + $0x100] sm:$0xff] %vm233, %v567
      %632 = vst.msk [vmem:[#allocation4 + $0x108] sm:$0xff] %vm233, %v568
      %633 = vst.msk [vmem:[#allocation4 + $0x110] sm:$0xff] %vm233, %v569
      %634 = vst.msk [vmem:[#allocation4 + $0x118] sm:$0xff] %vm233, %v570
      %635 = vst.msk [vmem:[#allocation4 + $0x120] sm:$0xff] %vm233, %v571
      %636 = vst.msk [vmem:[#allocation4 + $0x128] sm:$0xff] %vm233, %v572
      %637 = vst.msk [vmem:[#allocation4 + $0x130] sm:$0xff] %vm233, %v573
      %638 = vst.msk [vmem:[#allocation4 + $0x138] sm:$0xff] %vm233, %v574
      %639 = vst.msk [vmem:[#allocation4 + $0x140] sm:$0xff] %vm233, %v575
      %640 = vst.msk [vmem:[#allocation4 + $0x148] sm:$0xff] %vm233, %v576
      %641 = vst.msk [vmem:[#allocation4 + $0x150] sm:$0xff] %vm233, %v577
      %642 = vst.msk [vmem:[#allocation4 + $0x158] sm:$0xff] %vm233, %v578
      %643 = vst.msk [vmem:[#allocation4 + $0x160] sm:$0xff] %vm233, %v579
      %644 = vst.msk [vmem:[#allocation4 + $0x168] sm:$0xff] %vm233, %v580
      %645 = vst.msk [vmem:[#allocation4 + $0x170] sm:$0xff] %vm233, %v581
      %646 = vst.msk [vmem:[#allocation4 + $0x178] sm:$0xff] %vm233, %v582
      %647 = vst.msk [vmem:[#allocation4 + $0x180] sm:$0xff] %vm233, %v583
      %648 = vst.msk [vmem:[#allocation4 + $0x188] sm:$0xff] %vm233, %v584
      %649 = vst.msk [vmem:[#allocation4 + $0x190] sm:$0xff] %vm233, %v585
      %650 = vst.msk [vmem:[#allocation4 + $0x198] sm:$0xff] %vm233, %v586
      %651 = vst.msk [vmem:[#allocation4 + $0x1a0] sm:$0xff] %vm233, %v587
      %652 = vst.msk [vmem:[#allocation4 + $0x1a8] sm:$0xff] %vm233, %v588
      %653 = vst.msk [vmem:[#allocation4 + $0x1b0] sm:$0xff] %vm233, %v589
      %654 = vst.msk [vmem:[#allocation4 + $0x1b8] sm:$0xff] %vm233, %v590
      %655 = vst.msk [vmem:[#allocation4 + $0x1c0] sm:$0xff] %vm233, %v591
      %656 = vst.msk [vmem:[#allocation4 + $0x1c8] sm:$0xff] %vm233, %v592
      %657 = vst.msk [vmem:[#allocation4 + $0x1d0] sm:$0xff] %vm233, %v593
      %658 = vst.msk [vmem:[#allocation4 + $0x1d8] sm:$0xff] %vm233, %v594
      %659 = vst.msk [vmem:[#allocation4 + $0x1e0] sm:$0xff] %vm233, %v595
      %660 = vst.msk [vmem:[#allocation4 + $0x1e8] sm:$0xff] %vm233, %v596
      %661 = vst.msk [vmem:[#allocation4 + $0x1f0] sm:$0xff] %vm233, %v597
      %662 = vst.msk [vmem:[#allocation4 + $0x1f8] sm:$0xff] %vm233, %v598
      %v663 = vld [vmem:[#allocation2 + $0x1] sm:$0xff]
      %v664 = vld [vmem:[#allocation2 + $0x9] sm:$0xff]
      %v665 = vld [vmem:[#allocation2 + $0x19] sm:$0xff]
      %v666 = vld [vmem:[#allocation2 + $0x21] sm:$0xff]
      %v667 = vld [vmem:[#allocation2 + $0x31] sm:$0xff]
      %v668 = vld [vmem:[#allocation2 + $0x39] sm:$0xff]
      %v669 = vld [vmem:[#allocation2 + $0x49] sm:$0xff]
      %v670 = vld [vmem:[#allocation2 + $0x51] sm:$0xff]
      %v671 = vld [vmem:[#allocation2 + $0x61] sm:$0xff]
      %v672 = vld [vmem:[#allocation2 + $0x69] sm:$0xff]
      %v673 = vld [vmem:[#allocation2 + $0x79] sm:$0xff]
      %v674 = vld [vmem:[#allocation2 + $0x81] sm:$0xff]
      %v675 = vld [vmem:[#allocation2 + $0x91] sm:$0xff]
      %v676 = vld [vmem:[#allocation2 + $0x99] sm:$0xff]
      %v677 = vld [vmem:[#allocation2 + $0xa9] sm:$0xff]
      %v678 = vld [vmem:[#allocation2 + $0xb1] sm:$0xff]
      %v679 = vld [vmem:[#allocation2 + $0xc1] sm:$0xff]
      %v680 = vld [vmem:[#allocation2 + $0xc9] sm:$0xff]
      %v681 = vld [vmem:[#allocation2 + $0xd9] sm:$0xff]
      %v682 = vld [vmem:[#allocation2 + $0xe1] sm:$0xff]
      %v683 = vld [vmem:[#allocation2 + $0xf1] sm:$0xff]
      %v684 = vld [vmem:[#allocation2 + $0xf9] sm:$0xff]
      %v685 = vld [vmem:[#allocation2 + $0x109] sm:$0xff]
      %v686 = vld [vmem:[#allocation2 + $0x111] sm:$0xff]
      %v687 = vld [vmem:[#allocation2 + $0x121] sm:$0xff]
      %v688 = vld [vmem:[#allocation2 + $0x129] sm:$0xff]
      %v689 = vld [vmem:[#allocation2 + $0x139] sm:$0xff]
      %v690 = vld [vmem:[#allocation2 + $0x141] sm:$0xff]
      %v691 = vld [vmem:[#allocation2 + $0x151] sm:$0xff]
      %v692 = vld [vmem:[#allocation2 + $0x159] sm:$0xff]
      %v693 = vld [vmem:[#allocation2 + $0x169] sm:$0xff]
      %v694 = vld [vmem:[#allocation2 + $0x171] sm:$0xff]
      %v695 = vld [vmem:[#allocation2 + $0x1b1] sm:$0xff]
      %v696 = vld [vmem:[#allocation2 + $0x1b9] sm:$0xff]
      %v697 = vld [vmem:[#allocation2 + $0x1c9] sm:$0xff]
      %v698 = vld [vmem:[#allocation2 + $0x1d1] sm:$0xff]
      %v699 = vld [vmem:[#allocation2 + $0x1e1] sm:$0xff]
      %v700 = vld [vmem:[#allocation2 + $0x1e9] sm:$0xff]
      %v701 = vld [vmem:[#allocation2 + $0x1f9] sm:$0xff]
      %v702 = vld [vmem:[#allocation2 + $0x201] sm:$0xff]
      %v703 = vld [vmem:[#allocation2 + $0x211] sm:$0xff]
      %v704 = vld [vmem:[#allocation2 + $0x219] sm:$0xff]
      %v705 = vld [vmem:[#allocation2 + $0x229] sm:$0xff]
      %v706 = vld [vmem:[#allocation2 + $0x231] sm:$0xff]
      %v707 = vld [vmem:[#allocation2 + $0x241] sm:$0xff]
      %v708 = vld [vmem:[#allocation2 + $0x249] sm:$0xff]
      %v709 = vld [vmem:[#allocation2 + $0x259] sm:$0xff]
      %v710 = vld [vmem:[#allocation2 + $0x261] sm:$0xff]
      %v711 = vld [vmem:[#allocation2 + $0x271] sm:$0xff]
      %v712 = vld [vmem:[#allocation2 + $0x279] sm:$0xff]
      %v713 = vld [vmem:[#allocation2 + $0x289] sm:$0xff]
      %v714 = vld [vmem:[#allocation2 + $0x291] sm:$0xff]
      %v715 = vld [vmem:[#allocation2 + $0x2a1] sm:$0xff]
      %v716 = vld [vmem:[#allocation2 + $0x2a9] sm:$0xff]
      %v717 = vld [vmem:[#allocation2 + $0x2b9] sm:$0xff]
      %v718 = vld [vmem:[#allocation2 + $0x2c1] sm:$0xff]
      %v719 = vld [vmem:[#allocation2 + $0x2d1] sm:$0xff]
      %v720 = vld [vmem:[#allocation2 + $0x2d9] sm:$0xff]
      %v721 = vld [vmem:[#allocation2 + $0x2e9] sm:$0xff]
      %v722 = vld [vmem:[#allocation2 + $0x2f1] sm:$0xff]
      %v723 = vld [vmem:[#allocation2 + $0x301] sm:$0xff]
      %v724 = vld [vmem:[#allocation2 + $0x309] sm:$0xff]
      %v725 = vld [vmem:[#allocation2 + $0x319] sm:$0xff]
      %v726 = vld [vmem:[#allocation2 + $0x321] sm:$0xff]
      %791 = vrot.lane.b32.xlu0 %v663, 8
      %v792 = vpop.permute.xlu0 %791
      %793 = vrot.lane.b32.xlu0 %v664, 8
      %v794 = vpop.permute.xlu0 %793
      %795 = vrot.lane.b32.xlu0 %v665, 8
      %v796 = vpop.permute.xlu0 %795
      %797 = vrot.lane.b32.xlu0 %v666, 8
      %v798 = vpop.permute.xlu0 %797
      %799 = vrot.lane.b32.xlu0 %v667, 8
      %v800 = vpop.permute.xlu0 %799
      %801 = vrot.lane.b32.xlu0 %v668, 8
      %v802 = vpop.permute.xlu0 %801
      %803 = vrot.lane.b32.xlu0 %v669, 8
      %v804 = vpop.permute.xlu0 %803
      %805 = vrot.lane.b32.xlu0 %v670, 8
      %v806 = vpop.permute.xlu0 %805
      %807 = vrot.lane.b32.xlu0 %v671, 8
      %v808 = vpop.permute.xlu0 %807
      %809 = vrot.lane.b32.xlu0 %v672, 8
      %v810 = vpop.permute.xlu0 %809
      %811 = vrot.lane.b32.xlu0 %v673, 8
      %v812 = vpop.permute.xlu0 %811
      %813 = vrot.lane.b32.xlu0 %v674, 8
      %v814 = vpop.permute.xlu0 %813
      %815 = vrot.lane.b32.xlu0 %v675, 8
      %v816 = vpop.permute.xlu0 %815
      %817 = vrot.lane.b32.xlu0 %v676, 8
      %v818 = vpop.permute.xlu0 %817
      %819 = vrot.lane.b32.xlu0 %v677, 8
      %v820 = vpop.permute.xlu0 %819
      %821 = vrot.lane.b32.xlu0 %v678, 8
      %v822 = vpop.permute.xlu0 %821
      %823 = vrot.lane.b32.xlu0 %v679, 8
      %v824 = vpop.permute.xlu0 %823
      %825 = vrot.lane.b32.xlu0 %v680, 8
      %v826 = vpop.permute.xlu0 %825
      %827 = vrot.lane.b32.xlu0 %v681, 8
      %v828 = vpop.permute.xlu0 %827
      %829 = vrot.lane.b32.xlu0 %v682, 8
      %v830 = vpop.permute.xlu0 %829
      %831 = vrot.lane.b32.xlu0 %v683, 8
      %v832 = vpop.permute.xlu0 %831
      %833 = vrot.lane.b32.xlu0 %v684, 8
      %v834 = vpop.permute.xlu0 %833
      %835 = vrot.lane.b32.xlu0 %v685, 8
      %v836 = vpop.permute.xlu0 %835
      %837 = vrot.lane.b32.xlu0 %v686, 8
      %v838 = vpop.permute.xlu0 %837
      %839 = vrot.lane.b32.xlu0 %v687, 8
      %v840 = vpop.permute.xlu0 %839
      %841 = vrot.lane.b32.xlu0 %v688, 8
      %v842 = vpop.permute.xlu0 %841
      %843 = vrot.lane.b32.xlu0 %v689, 8
      %v844 = vpop.permute.xlu0 %843
      %845 = vrot.lane.b32.xlu0 %v690, 8
      %v846 = vpop.permute.xlu0 %845
      %847 = vrot.lane.b32.xlu0 %v691, 8
      %v848 = vpop.permute.xlu0 %847
      %849 = vrot.lane.b32.xlu0 %v692, 8
      %v850 = vpop.permute.xlu0 %849
      %851 = vrot.lane.b32.xlu0 %v693, 8
      %v852 = vpop.permute.xlu0 %851
      %853 = vrot.lane.b32.xlu0 %v694, 8
      %v854 = vpop.permute.xlu0 %853
      %855 = vrot.lane.b32.xlu0 %v695, 8
      %v856 = vpop.permute.xlu0 %855
      %857 = vrot.lane.b32.xlu0 %v696, 8
      %v858 = vpop.permute.xlu0 %857
      %859 = vrot.lane.b32.xlu0 %v697, 8
      %v860 = vpop.permute.xlu0 %859
      %861 = vrot.lane.b32.xlu0 %v698, 8
      %v862 = vpop.permute.xlu0 %861
      %863 = vrot.lane.b32.xlu0 %v699, 8
      %v864 = vpop.permute.xlu0 %863
      %865 = vrot.lane.b32.xlu0 %v700, 8
      %v866 = vpop.permute.xlu0 %865
      %867 = vrot.lane.b32.xlu0 %v701, 8
      %v868 = vpop.permute.xlu0 %867
      %869 = vrot.lane.b32.xlu0 %v702, 8
      %v870 = vpop.permute.xlu0 %869
      %871 = vrot.lane.b32.xlu0 %v703, 8
      %v872 = vpop.permute.xlu0 %871
      %873 = vrot.lane.b32.xlu0 %v704, 8
      %v874 = vpop.permute.xlu0 %873
      %875 = vrot.lane.b32.xlu0 %v705, 8
      %v876 = vpop.permute.xlu0 %875
      %877 = vrot.lane.b32.xlu0 %v706, 8
      %v878 = vpop.permute.xlu0 %877
      %879 = vrot.lane.b32.xlu0 %v707, 8
      %v880 = vpop.permute.xlu0 %879
      %881 = vrot.lane.b32.xlu0 %v708, 8
      %v882 = vpop.permute.xlu0 %881
      %883 = vrot.lane.b32.xlu0 %v709, 8
      %v884 = vpop.permute.xlu0 %883
      %885 = vrot.lane.b32.xlu0 %v710, 8
      %v886 = vpop.permute.xlu0 %885
      %887 = vrot.lane.b32.xlu0 %v711, 8
      %v888 = vpop.permute.xlu0 %887
      %889 = vrot.lane.b32.xlu0 %v712, 8
      %v890 = vpop.permute.xlu0 %889
      %891 = vrot.lane.b32.xlu0 %v713, 8
      %v892 = vpop.permute.xlu0 %891
      %893 = vrot.lane.b32.xlu0 %v714, 8
      %v894 = vpop.permute.xlu0 %893
      %895 = vrot.lane.b32.xlu0 %v715, 8
      %v896 = vpop.permute.xlu0 %895
      %897 = vrot.lane.b32.xlu0 %v716, 8
      %v898 = vpop.permute.xlu0 %897
      %899 = vrot.lane.b32.xlu0 %v717, 8
      %v900 = vpop.permute.xlu0 %899
      %901 = vrot.lane.b32.xlu0 %v718, 8
      %v902 = vpop.permute.xlu0 %901
      %903 = vrot.lane.b32.xlu0 %v719, 8
      %v904 = vpop.permute.xlu0 %903
      %905 = vrot.lane.b32.xlu0 %v720, 8
      %v906 = vpop.permute.xlu0 %905
      %907 = vrot.lane.b32.xlu0 %v721, 8
      %v908 = vpop.permute.xlu0 %907
      %909 = vrot.lane.b32.xlu0 %v722, 8
      %v910 = vpop.permute.xlu0 %909
      %911 = vrot.lane.b32.xlu0 %v723, 8
      %v912 = vpop.permute.xlu0 %911
      %913 = vrot.lane.b32.xlu0 %v724, 8
      %v914 = vpop.permute.xlu0 %913
      %915 = vrot.lane.b32.xlu0 %v725, 8
      %v916 = vpop.permute.xlu0 %915
      %917 = vrot.lane.b32.xlu0 %v726, 8
      %v918 = vpop.permute.xlu0 %917
      %vm983 = vcmask 130112
      %984 = vst.msk [vmem:[#allocation4] sm:$0xff] %vm983, %v792
      %985 = vst.msk [vmem:[#allocation4 + $0x8] sm:$0xff] %vm983, %v794
      %986 = vst.msk [vmem:[#allocation4 + $0x10] sm:$0xff] %vm983, %v796
      %987 = vst.msk [vmem:[#allocation4 + $0x18] sm:$0xff] %vm983, %v798
      %988 = vst.msk [vmem:[#allocation4 + $0x20] sm:$0xff] %vm983, %v800
      %989 = vst.msk [vmem:[#allocation4 + $0x28] sm:$0xff] %vm983, %v802
      %990 = vst.msk [vmem:[#allocation4 + $0x30] sm:$0xff] %vm983, %v804
      %991 = vst.msk [vmem:[#allocation4 + $0x38] sm:$0xff] %vm983, %v806
      %992 = vst.msk [vmem:[#allocation4 + $0x40] sm:$0xff] %vm983, %v808
      %993 = vst.msk [vmem:[#allocation4 + $0x48] sm:$0xff] %vm983, %v810
      %994 = vst.msk [vmem:[#allocation4 + $0x50] sm:$0xff] %vm983, %v812
      %995 = vst.msk [vmem:[#allocation4 + $0x58] sm:$0xff] %vm983, %v814
      %996 = vst.msk [vmem:[#allocation4 + $0x60] sm:$0xff] %vm983, %v816
      %997 = vst.msk [vmem:[#allocation4 + $0x68] sm:$0xff] %vm983, %v818
      %998 = vst.msk [vmem:[#allocation4 + $0x70] sm:$0xff] %vm983, %v820
      %999 = vst.msk [vmem:[#allocation4 + $0x78] sm:$0xff] %vm983, %v822
      %1000 = vst.msk [vmem:[#allocation4 + $0x80] sm:$0xff] %vm983, %v824
      %1001 = vst.msk [vmem:[#allocation4 + $0x88] sm:$0xff] %vm983, %v826
      %1002 = vst.msk [vmem:[#allocation4 + $0x90] sm:$0xff] %vm983, %v828
      %1003 = vst.msk [vmem:[#allocation4 + $0x98] sm:$0xff] %vm983, %v830
      %1004 = vst.msk [vmem:[#allocation4 + $0xa0] sm:$0xff] %vm983, %v832
      %1005 = vst.msk [vmem:[#allocation4 + $0xa8] sm:$0xff] %vm983, %v834
      %1006 = vst.msk [vmem:[#allocation4 + $0xb0] sm:$0xff] %vm983, %v836
      %1007 = vst.msk [vmem:[#allocation4 + $0xb8] sm:$0xff] %vm983, %v838
      %1008 = vst.msk [vmem:[#allocation4 + $0xc0] sm:$0xff] %vm983, %v840
      %1009 = vst.msk [vmem:[#allocation4 + $0xc8] sm:$0xff] %vm983, %v842
      %1010 = vst.msk [vmem:[#allocation4 + $0xd0] sm:$0xff] %vm983, %v844
      %1011 = vst.msk [vmem:[#allocation4 + $0xd8] sm:$0xff] %vm983, %v846
      %1012 = vst.msk [vmem:[#allocation4 + $0xe0] sm:$0xff] %vm983, %v848
      %1013 = vst.msk [vmem:[#allocation4 + $0xe8] sm:$0xff] %vm983, %v850
      %1014 = vst.msk [vmem:[#allocation4 + $0xf0] sm:$0xff] %vm983, %v852
      %1015 = vst.msk [vmem:[#allocation4 + $0xf8] sm:$0xff] %vm983, %v854
      %1016 = vst.msk [vmem:[#allocation4 + $0x100] sm:$0xff] %vm983, %v856
      %1017 = vst.msk [vmem:[#allocation4 + $0x108] sm:$0xff] %vm983, %v858
      %1018 = vst.msk [vmem:[#allocation4 + $0x110] sm:$0xff] %vm983, %v860
      %1019 = vst.msk [vmem:[#allocation4 + $0x118] sm:$0xff] %vm983, %v862
      %1020 = vst.msk [vmem:[#allocation4 + $0x120] sm:$0xff] %vm983, %v864
      %1021 = vst.msk [vmem:[#allocation4 + $0x128] sm:$0xff] %vm983, %v866
      %1022 = vst.msk [vmem:[#allocation4 + $0x130] sm:$0xff] %vm983, %v868
      %1023 = vst.msk [vmem:[#allocation4 + $0x138] sm:$0xff] %vm983, %v870
      %1024 = vst.msk [vmem:[#allocation4 + $0x140] sm:$0xff] %vm983, %v872
      %1025 = vst.msk [vmem:[#allocation4 + $0x148] sm:$0xff] %vm983, %v874
      %1026 = vst.msk [vmem:[#allocation4 + $0x150] sm:$0xff] %vm983, %v876
      %1027 = vst.msk [vmem:[#allocation4 + $0x158] sm:$0xff] %vm983, %v878
      %1028 = vst.msk [vmem:[#allocation4 + $0x160] sm:$0xff] %vm983, %v880
      %1029 = vst.msk [vmem:[#allocation4 + $0x168] sm:$0xff] %vm983, %v882
      %1030 = vst.msk [vmem:[#allocation4 + $0x170] sm:$0xff] %vm983, %v884
      %1031 = vst.msk [vmem:[#allocation4 + $0x178] sm:$0xff] %vm983, %v886
      %1032 = vst.msk [vmem:[#allocation4 + $0x180] sm:$0xff] %vm983, %v888
      %1033 = vst.msk [vmem:[#allocation4 + $0x188] sm:$0xff] %vm983, %v890
      %1034 = vst.msk [vmem:[#allocation4 + $0x190] sm:$0xff] %vm983, %v892
      %1035 = vst.msk [vmem:[#allocation4 + $0x198] sm:$0xff] %vm983, %v894
      %1036 = vst.msk [vmem:[#allocation4 + $0x1a0] sm:$0xff] %vm983, %v896
      %1037 = vst.msk [vmem:[#allocation4 + $0x1a8] sm:$0xff] %vm983, %v898
      %1038 = vst.msk [vmem:[#allocation4 + $0x1b0] sm:$0xff] %vm983, %v900
      %1039 = vst.msk [vmem:[#allocation4 + $0x1b8] sm:$0xff] %vm983, %v902
      %1040 = vst.msk [vmem:[#allocation4 + $0x1c0] sm:$0xff] %vm983, %v904
      %1041 = vst.msk [vmem:[#allocation4 + $0x1c8] sm:$0xff] %vm983, %v906
      %1042 = vst.msk [vmem:[#allocation4 + $0x1d0] sm:$0xff] %vm983, %v908
      %1043 = vst.msk [vmem:[#allocation4 + $0x1d8] sm:$0xff] %vm983, %v910
      %1044 = vst.msk [vmem:[#allocation4 + $0x1e0] sm:$0xff] %vm983, %v912
      %1045 = vst.msk [vmem:[#allocation4 + $0x1e8] sm:$0xff] %vm983, %v914
      %1046 = vst.msk [vmem:[#allocation4 + $0x1f0] sm:$0xff] %vm983, %v916
      %1047 = vst.msk [vmem:[#allocation4 + $0x1f8] sm:$0xff] %vm983, %v918
      %v1048 = vld [vmem:[#allocation2 + $0x2] sm:$0xff]
      %v1049 = vld [vmem:[#allocation2 + $0xa] sm:$0xff]
      %v1050 = vld [vmem:[#allocation2 + $0x1a] sm:$0xff]
      %v1051 = vld [vmem:[#allocation2 + $0x22] sm:$0xff]
      %v1052 = vld [vmem:[#allocation2 + $0x32] sm:$0xff]
      %v1053 = vld [vmem:[#allocation2 + $0x3a] sm:$0xff]
      %v1054 = vld [vmem:[#allocation2 + $0x4a] sm:$0xff]
      %v1055 = vld [vmem:[#allocation2 + $0x52] sm:$0xff]
      %v1056 = vld [vmem:[#allocation2 + $0x62] sm:$0xff]
      %v1057 = vld [vmem:[#allocation2 + $0x6a] sm:$0xff]
      %v1058 = vld [vmem:[#allocation2 + $0x7a] sm:$0xff]
      %v1059 = vld [vmem:[#allocation2 + $0x82] sm:$0xff]
      %v1060 = vld [vmem:[#allocation2 + $0x92] sm:$0xff]
      %v1061 = vld [vmem:[#allocation2 + $0x9a] sm:$0xff]
      %v1062 = vld [vmem:[#allocation2 + $0xaa] sm:$0xff]
      %v1063 = vld [vmem:[#allocation2 + $0xb2] sm:$0xff]
      %v1064 = vld [vmem:[#allocation2 + $0xc2] sm:$0xff]
      %v1065 = vld [vmem:[#allocation2 + $0xca] sm:$0xff]
      %v1066 = vld [vmem:[#allocation2 + $0xda] sm:$0xff]
      %v1067 = vld [vmem:[#allocation2 + $0xe2] sm:$0xff]
      %v1068 = vld [vmem:[#allocation2 + $0xf2] sm:$0xff]
      %v1069 = vld [vmem:[#allocation2 + $0xfa] sm:$0xff]
      %v1070 = vld [vmem:[#allocation2 + $0x10a] sm:$0xff]
      %v1071 = vld [vmem:[#allocation2 + $0x112] sm:$0xff]
      %v1072 = vld [vmem:[#allocation2 + $0x122] sm:$0xff]
      %v1073 = vld [vmem:[#allocation2 + $0x12a] sm:$0xff]
      %v1074 = vld [vmem:[#allocation2 + $0x13a] sm:$0xff]
      %v1075 = vld [vmem:[#allocation2 + $0x142] sm:$0xff]
      %v1076 = vld [vmem:[#allocation2 + $0x152] sm:$0xff]
      %v1077 = vld [vmem:[#allocation2 + $0x15a] sm:$0xff]
      %v1078 = vld [vmem:[#allocation2 + $0x16a] sm:$0xff]
      %v1079 = vld [vmem:[#allocation2 + $0x172] sm:$0xff]
      %v1080 = vld [vmem:[#allocation2 + $0x1b2] sm:$0xff]
      %v1081 = vld [vmem:[#allocation2 + $0x1ba] sm:$0xff]
      %v1082 = vld [vmem:[#allocation2 + $0x1ca] sm:$0xff]
      %v1083 = vld [vmem:[#allocation2 + $0x1d2] sm:$0xff]
      %v1084 = vld [vmem:[#allocation2 + $0x1e2] sm:$0xff]
      %v1085 = vld [vmem:[#allocation2 + $0x1ea] sm:$0xff]
      %v1086 = vld [vmem:[#allocation2 + $0x1fa] sm:$0xff]
      %v1087 = vld [vmem:[#allocation2 + $0x202] sm:$0xff]
      %v1088 = vld [vmem:[#allocation2 + $0x212] sm:$0xff]
      %v1089 = vld [vmem:[#allocation2 + $0x21a] sm:$0xff]
      %v1090 = vld [vmem:[#allocation2 + $0x22a] sm:$0xff]
      %v1091 = vld [vmem:[#allocation2 + $0x232] sm:$0xff]
      %v1092 = vld [vmem:[#allocation2 + $0x242] sm:$0xff]
      %v1093 = vld [vmem:[#allocation2 + $0x24a] sm:$0xff]
      %v1094 = vld [vmem:[#allocation2 + $0x25a] sm:$0xff]
      %v1095 = vld [vmem:[#allocation2 + $0x262] sm:$0xff]
      %v1096 = vld [vmem:[#allocation2 + $0x272] sm:$0xff]
      %v1097 = vld [vmem:[#allocation2 + $0x27a] sm:$0xff]
      %v1098 = vld [vmem:[#allocation2 + $0x28a] sm:$0xff]
      %v1099 = vld [vmem:[#allocation2 + $0x292] sm:$0xff]
      %v1100 = vld [vmem:[#allocation2 + $0x2a2] sm:$0xff]
      %v1101 = vld [vmem:[#allocation2 + $0x2aa] sm:$0xff]
      %v1102 = vld [vmem:[#allocation2 + $0x2ba] sm:$0xff]
      %v1103 = vld [vmem:[#allocation2 + $0x2c2] sm:$0xff]
      %v1104 = vld [vmem:[#allocation2 + $0x2d2] sm:$0xff]
      %v1105 = vld [vmem:[#allocation2 + $0x2da] sm:$0xff]
      %v1106 = vld [vmem:[#allocation2 + $0x2ea] sm:$0xff]
      %v1107 = vld [vmem:[#allocation2 + $0x2f2] sm:$0xff]
      %v1108 = vld [vmem:[#allocation2 + $0x302] sm:$0xff]
      %v1109 = vld [vmem:[#allocation2 + $0x30a] sm:$0xff]
      %v1110 = vld [vmem:[#allocation2 + $0x31a] sm:$0xff]
      %v1111 = vld [vmem:[#allocation2 + $0x322] sm:$0xff]
      %1176 = vrot.lane.b32.xlu0 %v1048, 16
      %v1177 = vpop.permute.xlu0 %1176
      %1178 = vrot.lane.b32.xlu0 %v1049, 16
      %v1179 = vpop.permute.xlu0 %1178
      %1180 = vrot.lane.b32.xlu0 %v1050, 16
      %v1181 = vpop.permute.xlu0 %1180
      %1182 = vrot.lane.b32.xlu0 %v1051, 16
      %v1183 = vpop.permute.xlu0 %1182
      %1184 = vrot.lane.b32.xlu0 %v1052, 16
      %v1185 = vpop.permute.xlu0 %1184
      %1186 = vrot.lane.b32.xlu0 %v1053, 16
      %v1187 = vpop.permute.xlu0 %1186
      %1188 = vrot.lane.b32.xlu0 %v1054, 16
      %v1189 = vpop.permute.xlu0 %1188
      %1190 = vrot.lane.b32.xlu0 %v1055, 16
      %v1191 = vpop.permute.xlu0 %1190
      %1192 = vrot.lane.b32.xlu0 %v1056, 16
      %v1193 = vpop.permute.xlu0 %1192
      %1194 = vrot.lane.b32.xlu0 %v1057, 16
      %v1195 = vpop.permute.xlu0 %1194
      %1196 = vrot.lane.b32.xlu0 %v1058, 16
      %v1197 = vpop.permute.xlu0 %1196
      %1198 = vrot.lane.b32.xlu0 %v1059, 16
      %v1199 = vpop.permute.xlu0 %1198
      %1200 = vrot.lane.b32.xlu0 %v1060, 16
      %v1201 = vpop.permute.xlu0 %1200
      %1202 = vrot.lane.b32.xlu0 %v1061, 16
      %v1203 = vpop.permute.xlu0 %1202
      %1204 = vrot.lane.b32.xlu0 %v1062, 16
      %v1205 = vpop.permute.xlu0 %1204
      %1206 = vrot.lane.b32.xlu0 %v1063, 16
      %v1207 = vpop.permute.xlu0 %1206
      %1208 = vrot.lane.b32.xlu0 %v1064, 16
      %v1209 = vpop.permute.xlu0 %1208
      %1210 = vrot.lane.b32.xlu0 %v1065, 16
      %v1211 = vpop.permute.xlu0 %1210
      %1212 = vrot.lane.b32.xlu0 %v1066, 16
      %v1213 = vpop.permute.xlu0 %1212
      %1214 = vrot.lane.b32.xlu0 %v1067, 16
      %v1215 = vpop.permute.xlu0 %1214
      %1216 = vrot.lane.b32.xlu0 %v1068, 16
      %v1217 = vpop.permute.xlu0 %1216
      %1218 = vrot.lane.b32.xlu0 %v1069, 16
      %v1219 = vpop.permute.xlu0 %1218
      %1220 = vrot.lane.b32.xlu0 %v1070, 16
      %v1221 = vpop.permute.xlu0 %1220
      %1222 = vrot.lane.b32.xlu0 %v1071, 16
      %v1223 = vpop.permute.xlu0 %1222
      %1224 = vrot.lane.b32.xlu0 %v1072, 16
      %v1225 = vpop.permute.xlu0 %1224
      %1226 = vrot.lane.b32.xlu0 %v1073, 16
      %v1227 = vpop.permute.xlu0 %1226
      %1228 = vrot.lane.b32.xlu0 %v1074, 16
      %v1229 = vpop.permute.xlu0 %1228
      %1230 = vrot.lane.b32.xlu0 %v1075, 16
      %v1231 = vpop.permute.xlu0 %1230
      %1232 = vrot.lane.b32.xlu0 %v1076, 16
      %v1233 = vpop.permute.xlu0 %1232
      %1234 = vrot.lane.b32.xlu0 %v1077, 16
      %v1235 = vpop.permute.xlu0 %1234
      %1236 = vrot.lane.b32.xlu0 %v1078, 16
      %v1237 = vpop.permute.xlu0 %1236
      %1238 = vrot.lane.b32.xlu0 %v1079, 16
      %v1239 = vpop.permute.xlu0 %1238
      %1240 = vrot.lane.b32.xlu0 %v1080, 16
      %v1241 = vpop.permute.xlu0 %1240
      %1242 = vrot.lane.b32.xlu0 %v1081, 16
      %v1243 = vpop.permute.xlu0 %1242
      %1244 = vrot.lane.b32.xlu0 %v1082, 16
      %v1245 = vpop.permute.xlu0 %1244
      %1246 = vrot.lane.b32.xlu0 %v1083, 16
      %v1247 = vpop.permute.xlu0 %1246
      %1248 = vrot.lane.b32.xlu0 %v1084, 16
      %v1249 = vpop.permute.xlu0 %1248
      %1250 = vrot.lane.b32.xlu0 %v1085, 16
      %v1251 = vpop.permute.xlu0 %1250
      %1252 = vrot.lane.b32.xlu0 %v1086, 16
      %v1253 = vpop.permute.xlu0 %1252
      %1254 = vrot.lane.b32.xlu0 %v1087, 16
      %v1255 = vpop.permute.xlu0 %1254
      %1256 = vrot.lane.b32.xlu0 %v1088, 16
      %v1257 = vpop.permute.xlu0 %1256
      %1258 = vrot.lane.b32.xlu0 %v1089, 16
      %v1259 = vpop.permute.xlu0 %1258
      %1260 = vrot.lane.b32.xlu0 %v1090, 16
      %v1261 = vpop.permute.xlu0 %1260
      %1262 = vrot.lane.b32.xlu0 %v1091, 16
      %v1263 = vpop.permute.xlu0 %1262
      %1264 = vrot.lane.b32.xlu0 %v1092, 16
      %v1265 = vpop.permute.xlu0 %1264
      %1266 = vrot.lane.b32.xlu0 %v1093, 16
      %v1267 = vpop.permute.xlu0 %1266
      %1268 = vrot.lane.b32.xlu0 %v1094, 16
      %v1269 = vpop.permute.xlu0 %1268
      %1270 = vrot.lane.b32.xlu0 %v1095, 16
      %v1271 = vpop.permute.xlu0 %1270
      %1272 = vrot.lane.b32.xlu0 %v1096, 16
      %v1273 = vpop.permute.xlu0 %1272
      %1274 = vrot.lane.b32.xlu0 %v1097, 16
      %v1275 = vpop.permute.xlu0 %1274
      %1276 = vrot.lane.b32.xlu0 %v1098, 16
      %v1277 = vpop.permute.xlu0 %1276
      %1278 = vrot.lane.b32.xlu0 %v1099, 16
      %v1279 = vpop.permute.xlu0 %1278
      %1280 = vrot.lane.b32.xlu0 %v1100, 16
      %v1281 = vpop.permute.xlu0 %1280
      %1282 = vrot.lane.b32.xlu0 %v1101, 16
      %v1283 = vpop.permute.xlu0 %1282
      %1284 = vrot.lane.b32.xlu0 %v1102, 16
      %v1285 = vpop.permute.xlu0 %1284
      %1286 = vrot.lane.b32.xlu0 %v1103, 16
      %v1287 = vpop.permute.xlu0 %1286
      %1288 = vrot.lane.b32.xlu0 %v1104, 16
      %v1289 = vpop.permute.xlu0 %1288
      %1290 = vrot.lane.b32.xlu0 %v1105, 16
      %v1291 = vpop.permute.xlu0 %1290
      %1292 = vrot.lane.b32.xlu0 %v1106, 16
      %v1293 = vpop.permute.xlu0 %1292
      %1294 = vrot.lane.b32.xlu0 %v1107, 16
      %v1295 = vpop.permute.xlu0 %1294
      %1296 = vrot.lane.b32.xlu0 %v1108, 16
      %v1297 = vpop.permute.xlu0 %1296
      %1298 = vrot.lane.b32.xlu0 %v1109, 16
      %v1299 = vpop.permute.xlu0 %1298
      %1300 = vrot.lane.b32.xlu0 %v1110, 16
      %v1301 = vpop.permute.xlu0 %1300
      %1302 = vrot.lane.b32.xlu0 %v1111, 16
      %v1303 = vpop.permute.xlu0 %1302
      %vm1368 = vcmask 195712
      %1369 = vst.msk [vmem:[#allocation4] sm:$0xff] %vm1368, %v1177
      %1370 = vst.msk [vmem:[#allocation4 + $0x8] sm:$0xff] %vm1368, %v1179
      %1371 = vst.msk [vmem:[#allocation4 + $0x10] sm:$0xff] %vm1368, %v1181
      %1372 = vst.msk [vmem:[#allocation4 + $0x18] sm:$0xff] %vm1368, %v1183
      %1373 = vst.msk [vmem:[#allocation4 + $0x20] sm:$0xff] %vm1368, %v1185
      %1374 = vst.msk [vmem:[#allocation4 + $0x28] sm:$0xff] %vm1368, %v1187
      %1375 = vst.msk [vmem:[#allocation4 + $0x30] sm:$0xff] %vm1368, %v1189
      %1376 = vst.msk [vmem:[#allocation4 + $0x38] sm:$0xff] %vm1368, %v1191
      %1377 = vst.msk [vmem:[#allocation4 + $0x40] sm:$0xff] %vm1368, %v1193
      %1378 = vst.msk [vmem:[#allocation4 + $0x48] sm:$0xff] %vm1368, %v1195
      %1379 = vst.msk [vmem:[#allocation4 + $0x50] sm:$0xff] %vm1368, %v1197
      %1380 = vst.msk [vmem:[#allocation4 + $0x58] sm:$0xff] %vm1368, %v1199
      %1381 = vst.msk [vmem:[#allocation4 + $0x60] sm:$0xff] %vm1368, %v1201
      %1382 = vst.msk [vmem:[#allocation4 + $0x68] sm:$0xff] %vm1368, %v1203
      %1383 = vst.msk [vmem:[#allocation4 + $0x70] sm:$0xff] %vm1368, %v1205
      %1384 = vst.msk [vmem:[#allocation4 + $0x78] sm:$0xff] %vm1368, %v1207
      %1385 = vst.msk [vmem:[#allocation4 + $0x80] sm:$0xff] %vm1368, %v1209
      %1386 = vst.msk [vmem:[#allocation4 + $0x88] sm:$0xff] %vm1368, %v1211
      %1387 = vst.msk [vmem:[#allocation4 + $0x90] sm:$0xff] %vm1368, %v1213
      %1388 = vst.msk [vmem:[#allocation4 + $0x98] sm:$0xff] %vm1368, %v1215
      %1389 = vst.msk [vmem:[#allocation4 + $0xa0] sm:$0xff] %vm1368, %v1217
      %1390 = vst.msk [vmem:[#allocation4 + $0xa8] sm:$0xff] %vm1368, %v1219
      %1391 = vst.msk [vmem:[#allocation4 + $0xb0] sm:$0xff] %vm1368, %v1221
      %1392 = vst.msk [vmem:[#allocation4 + $0xb8] sm:$0xff] %vm1368, %v1223
      %1393 = vst.msk [vmem:[#allocation4 + $0xc0] sm:$0xff] %vm1368, %v1225
      %1394 = vst.msk [vmem:[#allocation4 + $0xc8] sm:$0xff] %vm1368, %v1227
      %1395 = vst.msk [vmem:[#allocation4 + $0xd0] sm:$0xff] %vm1368, %v1229
      %1396 = vst.msk [vmem:[#allocation4 + $0xd8] sm:$0xff] %vm1368, %v1231
      %1397 = vst.msk [vmem:[#allocation4 + $0xe0] sm:$0xff] %vm1368, %v1233
      %1398 = vst.msk [vmem:[#allocation4 + $0xe8] sm:$0xff] %vm1368, %v1235
      %1399 = vst.msk [vmem:[#allocation4 + $0xf0] sm:$0xff] %vm1368, %v1237
      %1400 = vst.msk [vmem:[#allocation4 + $0xf8] sm:$0xff] %vm1368, %v1239
      %1401 = vst.msk [vmem:[#allocation4 + $0x100] sm:$0xff] %vm1368, %v1241
      %1402 = vst.msk [vmem:[#allocation4 + $0x108] sm:$0xff] %vm1368, %v1243
      %1403 = vst.msk [vmem:[#allocation4 + $0x110] sm:$0xff] %vm1368, %v1245
      %1404 = vst.msk [vmem:[#allocation4 + $0x118] sm:$0xff] %vm1368, %v1247
      %1405 = vst.msk [vmem:[#allocation4 + $0x120] sm:$0xff] %vm1368, %v1249
      %1406 = vst.msk [vmem:[#allocation4 + $0x128] sm:$0xff] %vm1368, %v1251
      %1407 = vst.msk [vmem:[#allocation4 + $0x130] sm:$0xff] %vm1368, %v1253
      %1408 = vst.msk [vmem:[#allocation4 + $0x138] sm:$0xff] %vm1368, %v1255
      %1409 = vst.msk [vmem:[#allocation4 + $0x140] sm:$0xff] %vm1368, %v1257
      %1410 = vst.msk [vmem:[#allocation4 + $0x148] sm:$0xff] %vm1368, %v1259
      %1411 = vst.msk [vmem:[#allocation4 + $0x150] sm:$0xff] %vm1368, %v1261
      %1412 = vst.msk [vmem:[#allocation4 + $0x158] sm:$0xff] %vm1368, %v1263
      %1413 = vst.msk [vmem:[#allocation4 + $0x160] sm:$0xff] %vm1368, %v1265
      %1414 = vst.msk [vmem:[#allocation4 + $0x168] sm:$0xff] %vm1368, %v1267
      %1415 = vst.msk [vmem:[#allocation4 + $0x170] sm:$0xff] %vm1368, %v1269
      %1416 = vst.msk [vmem:[#allocation4 + $0x178] sm:$0xff] %vm1368, %v1271
      %1417 = vst.msk [vmem:[#allocation4 + $0x180] sm:$0xff] %vm1368, %v1273
      %1418 = vst.msk [vmem:[#allocation4 + $0x188] sm:$0xff] %vm1368, %v1275
      %1419 = vst.msk [vmem:[#allocation4 + $0x190] sm:$0xff] %vm1368, %v1277
      %1420 = vst.msk [vmem:[#allocation4 + $0x198] sm:$0xff] %vm1368, %v1279
      %1421 = vst.msk [vmem:[#allocation4 + $0x1a0] sm:$0xff] %vm1368, %v1281
      %1422 = vst.msk [vmem:[#allocation4 + $0x1a8] sm:$0xff] %vm1368, %v1283
      %1423 = vst.msk [vmem:[#allocation4 + $0x1b0] sm:$0xff] %vm1368, %v1285
      %1424 = vst.msk [vmem:[#allocation4 + $0x1b8] sm:$0xff] %vm1368, %v1287
      %1425 = vst.msk [vmem:[#allocation4 + $0x1c0] sm:$0xff] %vm1368, %v1289
      %1426 = vst.msk [vmem:[#allocation4 + $0x1c8] sm:$0xff] %vm1368, %v1291
      %1427 = vst.msk [vmem:[#allocation4 + $0x1d0] sm:$0xff] %vm1368, %v1293
      %1428 = vst.msk [vmem:[#allocation4 + $0x1d8] sm:$0xff] %vm1368, %v1295
      %1429 = vst.msk [vmem:[#allocation4 + $0x1e0] sm:$0xff] %vm1368, %v1297
      %1430 = vst.msk [vmem:[#allocation4 + $0x1e8] sm:$0xff] %vm1368, %v1299
      %1431 = vst.msk [vmem:[#allocation4 + $0x1f0] sm:$0xff] %vm1368, %v1301
      %1432 = vst.msk [vmem:[#allocation4 + $0x1f8] sm:$0xff] %vm1368, %v1303
      %v1433 = vld [vmem:[%s470] sm:$0xff]
      %v1434 = vld [vmem:[%s470 + $0x8] sm:$0xff]
      %v1435 = vld [vmem:[%s470 + $0x18] sm:$0xff]
      %v1436 = vld [vmem:[%s470 + $0x20] sm:$0xff]
      %v1437 = vld [vmem:[%s470 + $0x30] sm:$0xff]
      %v1438 = vld [vmem:[%s470 + $0x38] sm:$0xff]
      %v1439 = vld [vmem:[%s470 + $0x48] sm:$0xff]
      %v1440 = vld [vmem:[%s470 + $0x50] sm:$0xff]
      %v1441 = vld [vmem:[%s470 + $0x60] sm:$0xff]
      %v1442 = vld [vmem:[%s470 + $0x68] sm:$0xff]
      %v1443 = vld [vmem:[%s470 + $0x78] sm:$0xff]
      %v1444 = vld [vmem:[%s470 + $0x80] sm:$0xff]
      %v1445 = vld [vmem:[%s470 + $0x90] sm:$0xff]
      %v1446 = vld [vmem:[%s470 + $0x98] sm:$0xff]
      %v1447 = vld [vmem:[%s470 + $0xa8] sm:$0xff]
      %v1448 = vld [vmem:[%s470 + $0xb0] sm:$0xff]
      %v1449 = vld [vmem:[%s470 + $0xc0] sm:$0xff]
      %v1450 = vld [vmem:[%s470 + $0xc8] sm:$0xff]
      %v1451 = vld [vmem:[%s470 + $0xd8] sm:$0xff]
      %v1452 = vld [vmem:[%s470 + $0xe0] sm:$0xff]
      %v1453 = vld [vmem:[%s470 + $0xf0] sm:$0xff]
      %v1454 = vld [vmem:[%s470 + $0xf8] sm:$0xff]
      %v1455 = vld [vmem:[%s470 + $0x108] sm:$0xff]
      %v1456 = vld [vmem:[%s470 + $0x110] sm:$0xff]
      %v1457 = vld [vmem:[%s470 + $0x120] sm:$0xff]
      %v1458 = vld [vmem:[%s470 + $0x128] sm:$0xff]
      %v1459 = vld [vmem:[%s470 + $0x138] sm:$0xff]
      %v1460 = vld [vmem:[%s470 + $0x140] sm:$0xff]
      %v1461 = vld [vmem:[%s470 + $0x150] sm:$0xff]
      %v1462 = vld [vmem:[%s470 + $0x158] sm:$0xff]
      %v1463 = vld [vmem:[%s470 + $0x168] sm:$0xff]
      %v1464 = vld [vmem:[%s470 + $0x170] sm:$0xff]
      %v1465 = vld [vmem:[%s470 + $0x1b0] sm:$0xff]
      %v1466 = vld [vmem:[%s470 + $0x1b8] sm:$0xff]
      %v1467 = vld [vmem:[%s470 + $0x1c8] sm:$0xff]
      %v1468 = vld [vmem:[%s470 + $0x1d0] sm:$0xff]
      %v1469 = vld [vmem:[%s470 + $0x1e0] sm:$0xff]
      %v1470 = vld [vmem:[%s470 + $0x1e8] sm:$0xff]
      %v1471 = vld [vmem:[%s470 + $0x1f8] sm:$0xff]
      %v1472 = vld [vmem:[%s470 + $0x200] sm:$0xff]
      %v1473 = vld [vmem:[%s470 + $0x210] sm:$0xff]
      %v1474 = vld [vmem:[%s470 + $0x218] sm:$0xff]
      %v1475 = vld [vmem:[%s470 + $0x228] sm:$0xff]
      %v1476 = vld [vmem:[%s470 + $0x230] sm:$0xff]
      %v1477 = vld [vmem:[%s470 + $0x240] sm:$0xff]
      %v1478 = vld [vmem:[%s470 + $0x248] sm:$0xff]
      %v1479 = vld [vmem:[%s470 + $0x258] sm:$0xff]
      %v1480 = vld [vmem:[%s470 + $0x260] sm:$0xff]
      %v1481 = vld [vmem:[%s470 + $0x270] sm:$0xff]
      %v1482 = vld [vmem:[%s470 + $0x278] sm:$0xff]
      %v1483 = vld [vmem:[%s470 + $0x288] sm:$0xff]
      %v1484 = vld [vmem:[%s470 + $0x290] sm:$0xff]
      %v1485 = vld [vmem:[%s470 + $0x2a0] sm:$0xff]
      %v1486 = vld [vmem:[%s470 + $0x2a8] sm:$0xff]
      %v1487 = vld [vmem:[%s470 + $0x2b8] sm:$0xff]
      %v1488 = vld [vmem:[%s470 + $0x2c0] sm:$0xff]
      %v1489 = vld [vmem:[%s470 + $0x2d0] sm:$0xff]
      %v1490 = vld [vmem:[%s470 + $0x2d8] sm:$0xff]
      %v1491 = vld [vmem:[%s470 + $0x2e8] sm:$0xff]
      %v1492 = vld [vmem:[%s470 + $0x2f0] sm:$0xff]
      %v1493 = vld [vmem:[%s470 + $0x300] sm:$0xff]
      %v1494 = vld [vmem:[%s470 + $0x308] sm:$0xff]
      %v1495 = vld [vmem:[%s470 + $0x318] sm:$0xff]
      %v1496 = vld [vmem:[%s470 + $0x320] sm:$0xff]
      %1561 = vrot.lane.b32.xlu0 %v1433, 24
      %v1562 = vpop.permute.xlu0 %1561
      %1563 = vrot.lane.b32.xlu0 %v1434, 24
      %v1564 = vpop.permute.xlu0 %1563
      %1565 = vrot.lane.b32.xlu0 %v1435, 24
      %v1566 = vpop.permute.xlu0 %1565
      %1567 = vrot.lane.b32.xlu0 %v1436, 24
      %v1568 = vpop.permute.xlu0 %1567
      %1569 = vrot.lane.b32.xlu0 %v1437, 24
      %v1570 = vpop.permute.xlu0 %1569
      %1571 = vrot.lane.b32.xlu0 %v1438, 24
      %v1572 = vpop.permute.xlu0 %1571
      %1573 = vrot.lane.b32.xlu0 %v1439, 24
      %v1574 = vpop.permute.xlu0 %1573
      %1575 = vrot.lane.b32.xlu0 %v1440, 24
      %v1576 = vpop.permute.xlu0 %1575
      %1577 = vrot.lane.b32.xlu0 %v1441, 24
      %v1578 = vpop.permute.xlu0 %1577
      %1579 = vrot.lane.b32.xlu0 %v1442, 24
      %v1580 = vpop.permute.xlu0 %1579
      %1581 = vrot.lane.b32.xlu0 %v1443, 24
      %v1582 = vpop.permute.xlu0 %1581
      %1583 = vrot.lane.b32.xlu0 %v1444, 24
      %v1584 = vpop.permute.xlu0 %1583
      %1585 = vrot.lane.b32.xlu0 %v1445, 24
      %v1586 = vpop.permute.xlu0 %1585
      %1587 = vrot.lane.b32.xlu0 %v1446, 24
      %v1588 = vpop.permute.xlu0 %1587
      %1589 = vrot.lane.b32.xlu0 %v1447, 24
      %v1590 = vpop.permute.xlu0 %1589
      %1591 = vrot.lane.b32.xlu0 %v1448, 24
      %v1592 = vpop.permute.xlu0 %1591
      %1593 = vrot.lane.b32.xlu0 %v1449, 24
      %v1594 = vpop.permute.xlu0 %1593
      %1595 = vrot.lane.b32.xlu0 %v1450, 24
      %v1596 = vpop.permute.xlu0 %1595
      %1597 = vrot.lane.b32.xlu0 %v1451, 24
      %v1598 = vpop.permute.xlu0 %1597
      %1599 = vrot.lane.b32.xlu0 %v1452, 24
      %v1600 = vpop.permute.xlu0 %1599
      %1601 = vrot.lane.b32.xlu0 %v1453, 24
      %v1602 = vpop.permute.xlu0 %1601
      %1603 = vrot.lane.b32.xlu0 %v1454, 24
      %v1604 = vpop.permute.xlu0 %1603
      %1605 = vrot.lane.b32.xlu0 %v1455, 24
      %v1606 = vpop.permute.xlu0 %1605
      %1607 = vrot.lane.b32.xlu0 %v1456, 24
      %v1608 = vpop.permute.xlu0 %1607
      %1609 = vrot.lane.b32.xlu0 %v1457, 24
      %v1610 = vpop.permute.xlu0 %1609
      %1611 = vrot.lane.b32.xlu0 %v1458, 24
      %v1612 = vpop.permute.xlu0 %1611
      %1613 = vrot.lane.b32.xlu0 %v1459, 24
      %v1614 = vpop.permute.xlu0 %1613
      %1615 = vrot.lane.b32.xlu0 %v1460, 24
      %v1616 = vpop.permute.xlu0 %1615
      %1617 = vrot.lane.b32.xlu0 %v1461, 24
      %v1618 = vpop.permute.xlu0 %1617
      %1619 = vrot.lane.b32.xlu0 %v1462, 24
      %v1620 = vpop.permute.xlu0 %1619
      %1621 = vrot.lane.b32.xlu0 %v1463, 24
      %v1622 = vpop.permute.xlu0 %1621
      %1623 = vrot.lane.b32.xlu0 %v1464, 24
      %v1624 = vpop.permute.xlu0 %1623
      %1625 = vrot.lane.b32.xlu0 %v1465, 24
      %v1626 = vpop.permute.xlu0 %1625
      %1627 = vrot.lane.b32.xlu0 %v1466, 24
      %v1628 = vpop.permute.xlu0 %1627
      %1629 = vrot.lane.b32.xlu0 %v1467, 24
      %v1630 = vpop.permute.xlu0 %1629
      %1631 = vrot.lane.b32.xlu0 %v1468, 24
      %v1632 = vpop.permute.xlu0 %1631
      %1633 = vrot.lane.b32.xlu0 %v1469, 24
      %v1634 = vpop.permute.xlu0 %1633
      %1635 = vrot.lane.b32.xlu0 %v1470, 24
      %v1636 = vpop.permute.xlu0 %1635
      %1637 = vrot.lane.b32.xlu0 %v1471, 24
      %v1638 = vpop.permute.xlu0 %1637
      %1639 = vrot.lane.b32.xlu0 %v1472, 24
      %v1640 = vpop.permute.xlu0 %1639
      %1641 = vrot.lane.b32.xlu0 %v1473, 24
      %v1642 = vpop.permute.xlu0 %1641
      %1643 = vrot.lane.b32.xlu0 %v1474, 24
      %v1644 = vpop.permute.xlu0 %1643
      %1645 = vrot.lane.b32.xlu0 %v1475, 24
      %v1646 = vpop.permute.xlu0 %1645
      %1647 = vrot.lane.b32.xlu0 %v1476, 24
      %v1648 = vpop.permute.xlu0 %1647
      %1649 = vrot.lane.b32.xlu0 %v1477, 24
      %v1650 = vpop.permute.xlu0 %1649
      %1651 = vrot.lane.b32.xlu0 %v1478, 24
      %v1652 = vpop.permute.xlu0 %1651
      %1653 = vrot.lane.b32.xlu0 %v1479, 24
      %v1654 = vpop.permute.xlu0 %1653
      %1655 = vrot.lane.b32.xlu0 %v1480, 24
      %v1656 = vpop.permute.xlu0 %1655
      %1657 = vrot.lane.b32.xlu0 %v1481, 24
      %v1658 = vpop.permute.xlu0 %1657
      %1659 = vrot.lane.b32.xlu0 %v1482, 24
      %v1660 = vpop.permute.xlu0 %1659
      %1661 = vrot.lane.b32.xlu0 %v1483, 24
      %v1662 = vpop.permute.xlu0 %1661
      %1663 = vrot.lane.b32.xlu0 %v1484, 24
      %v1664 = vpop.permute.xlu0 %1663
      %1665 = vrot.lane.b32.xlu0 %v1485, 24
      %v1666 = vpop.permute.xlu0 %1665
      %1667 = vrot.lane.b32.xlu0 %v1486, 24
      %v1668 = vpop.permute.xlu0 %1667
      %1669 = vrot.lane.b32.xlu0 %v1487, 24
      %v1670 = vpop.permute.xlu0 %1669
      %1671 = vrot.lane.b32.xlu0 %v1488, 24
      %v1672 = vpop.permute.xlu0 %1671
      %1673 = vrot.lane.b32.xlu0 %v1489, 24
      %v1674 = vpop.permute.xlu0 %1673
      %1675 = vrot.lane.b32.xlu0 %v1490, 24
      %v1676 = vpop.permute.xlu0 %1675
      %1677 = vrot.lane.b32.xlu0 %v1491, 24
      %v1678 = vpop.permute.xlu0 %1677
      %1679 = vrot.lane.b32.xlu0 %v1492, 24
      %v1680 = vpop.permute.xlu0 %1679
      %1681 = vrot.lane.b32.xlu0 %v1493, 24
      %v1682 = vpop.permute.xlu0 %1681
      %1683 = vrot.lane.b32.xlu0 %v1494, 24
      %v1684 = vpop.permute.xlu0 %1683
      %1685 = vrot.lane.b32.xlu0 %v1495, 24
      %v1686 = vpop.permute.xlu0 %1685
      %1687 = vrot.lane.b32.xlu0 %v1496, 24
      %v1688 = vpop.permute.xlu0 %1687
      %vm1753 = vcmask 261312
      %1754 = vst.msk [vmem:[#allocation4] sm:$0xff] %vm1753, %v1562
      %1755 = vst.msk [vmem:[#allocation4 + $0x8] sm:$0xff] %vm1753, %v1564
      %1756 = vst.msk [vmem:[#allocation4 + $0x10] sm:$0xff] %vm1753, %v1566
      %1757 = vst.msk [vmem:[#allocation4 + $0x18] sm:$0xff] %vm1753, %v1568
      %1758 = vst.msk [vmem:[#allocation4 + $0x20] sm:$0xff] %vm1753, %v1570
      %1759 = vst.msk [vmem:[#allocation4 + $0x28] sm:$0xff] %vm1753, %v1572
      %1760 = vst.msk [vmem:[#allocation4 + $0x30] sm:$0xff] %vm1753, %v1574
      %1761 = vst.msk [vmem:[#allocation4 + $0x38] sm:$0xff] %vm1753, %v1576
      %1762 = vst.msk [vmem:[#allocation4 + $0x40] sm:$0xff] %vm1753, %v1578
      %1763 = vst.msk [vmem:[#allocation4 + $0x48] sm:$0xff] %vm1753, %v1580
      %1764 = vst.msk [vmem:[#allocation4 + $0x50] sm:$0xff] %vm1753, %v1582
      %1765 = vst.msk [vmem:[#allocation4 + $0x58] sm:$0xff] %vm1753, %v1584
      %1766 = vst.msk [vmem:[#allocation4 + $0x60] sm:$0xff] %vm1753, %v1586
      %1767 = vst.msk [vmem:[#allocation4 + $0x68] sm:$0xff] %vm1753, %v1588
      %1768 = vst.msk [vmem:[#allocation4 + $0x70] sm:$0xff] %vm1753, %v1590
      %1769 = vst.msk [vmem:[#allocation4 + $0x78] sm:$0xff] %vm1753, %v1592
      %1770 = vst.msk [vmem:[#allocation4 + $0x80] sm:$0xff] %vm1753, %v1594
      %1771 = vst.msk [vmem:[#allocation4 + $0x88] sm:$0xff] %vm1753, %v1596
      %1772 = vst.msk [vmem:[#allocation4 + $0x90] sm:$0xff] %vm1753, %v1598
      %1773 = vst.msk [vmem:[#allocation4 + $0x98] sm:$0xff] %vm1753, %v1600
      %1774 = vst.msk [vmem:[#allocation4 + $0xa0] sm:$0xff] %vm1753, %v1602
      %1775 = vst.msk [vmem:[#allocation4 + $0xa8] sm:$0xff] %vm1753, %v1604
      %1776 = vst.msk [vmem:[#allocation4 + $0xb0] sm:$0xff] %vm1753, %v1606
      %1777 = vst.msk [vmem:[#allocation4 + $0xb8] sm:$0xff] %vm1753, %v1608
      %1778 = vst.msk [vmem:[#allocation4 + $0xc0] sm:$0xff] %vm1753, %v1610
      %1779 = vst.msk [vmem:[#allocation4 + $0xc8] sm:$0xff] %vm1753, %v1612
      %1780 = vst.msk [vmem:[#allocation4 + $0xd0] sm:$0xff] %vm1753, %v1614
      %1781 = vst.msk [vmem:[#allocation4 + $0xd8] sm:$0xff] %vm1753, %v1616
      %1782 = vst.msk [vmem:[#allocation4 + $0xe0] sm:$0xff] %vm1753, %v1618
      %1783 = vst.msk [vmem:[#allocation4 + $0xe8] sm:$0xff] %vm1753, %v1620
      %1784 = vst.msk [vmem:[#allocation4 + $0xf0] sm:$0xff] %vm1753, %v1622
      %1785 = vst.msk [vmem:[#allocation4 + $0xf8] sm:$0xff] %vm1753, %v1624
      %1786 = vst.msk [vmem:[#allocation4 + $0x100] sm:$0xff] %vm1753, %v1626
      %1787 = vst.msk [vmem:[#allocation4 + $0x108] sm:$0xff] %vm1753, %v1628
      %1788 = vst.msk [vmem:[#allocation4 + $0x110] sm:$0xff] %vm1753, %v1630
      %1789 = vst.msk [vmem:[#allocation4 + $0x118] sm:$0xff] %vm1753, %v1632
      %1790 = vst.msk [vmem:[#allocation4 + $0x120] sm:$0xff] %vm1753, %v1634
      %1791 = vst.msk [vmem:[#allocation4 + $0x128] sm:$0xff] %vm1753, %v1636
      %1792 = vst.msk [vmem:[#allocation4 + $0x130] sm:$0xff] %vm1753, %v1638
      %1793 = vst.msk [vmem:[#allocation4 + $0x138] sm:$0xff] %vm1753, %v1640
      %1794 = vst.msk [vmem:[#allocation4 + $0x140] sm:$0xff] %vm1753, %v1642
      %1795 = vst.msk [vmem:[#allocation4 + $0x148] sm:$0xff] %vm1753, %v1644
      %1796 = vst.msk [vmem:[#allocation4 + $0x150] sm:$0xff] %vm1753, %v1646
      %1797 = vst.msk [vmem:[#allocation4 + $0x158] sm:$0xff] %vm1753, %v1648
      %1798 = vst.msk [vmem:[#allocation4 + $0x160] sm:$0xff] %vm1753, %v1650
      %1799 = vst.msk [vmem:[#allocation4 + $0x168] sm:$0xff] %vm1753, %v1652
      %1800 = vst.msk [vmem:[#allocation4 + $0x170] sm:$0xff] %vm1753, %v1654
      %1801 = vst.msk [vmem:[#allocation4 + $0x178] sm:$0xff] %vm1753, %v1656
      %1802 = vst.msk [vmem:[#allocation4 + $0x180] sm:$0xff] %vm1753, %v1658
      %1803 = vst.msk [vmem:[#allocation4 + $0x188] sm:$0xff] %vm1753, %v1660
      %1804 = vst.msk [vmem:[#allocation4 + $0x190] sm:$0xff] %vm1753, %v1662
      %1805 = vst.msk [vmem:[#allocation4 + $0x198] sm:$0xff] %vm1753, %v1664
      %1806 = vst.msk [vmem:[#allocation4 + $0x1a0] sm:$0xff] %vm1753, %v1666
      %1807 = vst.msk [vmem:[#allocation4 + $0x1a8] sm:$0xff] %vm1753, %v1668
      %1808 = vst.msk [vmem:[#allocation4 + $0x1b0] sm:$0xff] %vm1753, %v1670
      %1809 = vst.msk [vmem:[#allocation4 + $0x1b8] sm:$0xff] %vm1753, %v1672
      %1810 = vst.msk [vmem:[#allocation4 + $0x1c0] sm:$0xff] %vm1753, %v1674
      %1811 = vst.msk [vmem:[#allocation4 + $0x1c8] sm:$0xff] %vm1753, %v1676
      %1812 = vst.msk [vmem:[#allocation4 + $0x1d0] sm:$0xff] %vm1753, %v1678
      %1813 = vst.msk [vmem:[#allocation4 + $0x1d8] sm:$0xff] %vm1753, %v1680
      %1814 = vst.msk [vmem:[#allocation4 + $0x1e0] sm:$0xff] %vm1753, %v1682
      %1815 = vst.msk [vmem:[#allocation4 + $0x1e8] sm:$0xff] %vm1753, %v1684
      %1816 = vst.msk [vmem:[#allocation4 + $0x1f0] sm:$0xff] %vm1753, %v1686
      %1817 = vst.msk [vmem:[#allocation4 + $0x1f8] sm:$0xff] %vm1753, %v1688
      %v1818 = vld [vmem:[%s470 + $0x1] sm:$0xff]
      %v1819 = vld [vmem:[%s470 + $0x9] sm:$0xff]
      %v1820 = vld [vmem:[%s470 + $0x19] sm:$0xff]
      %v1821 = vld [vmem:[%s470 + $0x21] sm:$0xff]
      %v1822 = vld [vmem:[%s470 + $0x31] sm:$0xff]
      %v1823 = vld [vmem:[%s470 + $0x39] sm:$0xff]
      %v1824 = vld [vmem:[%s470 + $0x49] sm:$0xff]
      %v1825 = vld [vmem:[%s470 + $0x51] sm:$0xff]
      %v1826 = vld [vmem:[%s470 + $0x61] sm:$0xff]
      %v1827 = vld [vmem:[%s470 + $0x69] sm:$0xff]
      %v1828 = vld [vmem:[%s470 + $0x79] sm:$0xff]
      %v1829 = vld [vmem:[%s470 + $0x81] sm:$0xff]
      %v1830 = vld [vmem:[%s470 + $0x91] sm:$0xff]
      %v1831 = vld [vmem:[%s470 + $0x99] sm:$0xff]
      %v1832 = vld [vmem:[%s470 + $0xa9] sm:$0xff]
      %v1833 = vld [vmem:[%s470 + $0xb1] sm:$0xff]
      %v1834 = vld [vmem:[%s470 + $0xc1] sm:$0xff]
      %v1835 = vld [vmem:[%s470 + $0xc9] sm:$0xff]
      %v1836 = vld [vmem:[%s470 + $0xd9] sm:$0xff]
      %v1837 = vld [vmem:[%s470 + $0xe1] sm:$0xff]
      %v1838 = vld [vmem:[%s470 + $0xf1] sm:$0xff]
      %v1839 = vld [vmem:[%s470 + $0xf9] sm:$0xff]
      %v1840 = vld [vmem:[%s470 + $0x109] sm:$0xff]
      %v1841 = vld [vmem:[%s470 + $0x111] sm:$0xff]
      %v1842 = vld [vmem:[%s470 + $0x121] sm:$0xff]
      %v1843 = vld [vmem:[%s470 + $0x129] sm:$0xff]
      %v1844 = vld [vmem:[%s470 + $0x139] sm:$0xff]
      %v1845 = vld [vmem:[%s470 + $0x141] sm:$0xff]
      %v1846 = vld [vmem:[%s470 + $0x151] sm:$0xff]
      %v1847 = vld [vmem:[%s470 + $0x159] sm:$0xff]
      %v1848 = vld [vmem:[%s470 + $0x169] sm:$0xff]
      %v1849 = vld [vmem:[%s470 + $0x171] sm:$0xff]
      %v1850 = vld [vmem:[%s470 + $0x1b1] sm:$0xff]
      %v1851 = vld [vmem:[%s470 + $0x1b9] sm:$0xff]
      %v1852 = vld [vmem:[%s470 + $0x1c9] sm:$0xff]
      %v1853 = vld [vmem:[%s470 + $0x1d1] sm:$0xff]
      %v1854 = vld [vmem:[%s470 + $0x1e1] sm:$0xff]
      %v1855 = vld [vmem:[%s470 + $0x1e9] sm:$0xff]
      %v1856 = vld [vmem:[%s470 + $0x1f9] sm:$0xff]
      %v1857 = vld [vmem:[%s470 + $0x201] sm:$0xff]
      %v1858 = vld [vmem:[%s470 + $0x211] sm:$0xff]
      %v1859 = vld [vmem:[%s470 + $0x219] sm:$0xff]
      %v1860 = vld [vmem:[%s470 + $0x229] sm:$0xff]
      %v1861 = vld [vmem:[%s470 + $0x231] sm:$0xff]
      %v1862 = vld [vmem:[%s470 + $0x241] sm:$0xff]
      %v1863 = vld [vmem:[%s470 + $0x249] sm:$0xff]
      %v1864 = vld [vmem:[%s470 + $0x259] sm:$0xff]
      %v1865 = vld [vmem:[%s470 + $0x261] sm:$0xff]
      %v1866 = vld [vmem:[%s470 + $0x271] sm:$0xff]
      %v1867 = vld [vmem:[%s470 + $0x279] sm:$0xff]
      %v1868 = vld [vmem:[%s470 + $0x289] sm:$0xff]
      %v1869 = vld [vmem:[%s470 + $0x291] sm:$0xff]
      %v1870 = vld [vmem:[%s470 + $0x2a1] sm:$0xff]
      %v1871 = vld [vmem:[%s470 + $0x2a9] sm:$0xff]
      %v1872 = vld [vmem:[%s470 + $0x2b9] sm:$0xff]
      %v1873 = vld [vmem:[%s470 + $0x2c1] sm:$0xff]
      %v1874 = vld [vmem:[%s470 + $0x2d1] sm:$0xff]
      %v1875 = vld [vmem:[%s470 + $0x2d9] sm:$0xff]
      %v1876 = vld [vmem:[%s470 + $0x2e9] sm:$0xff]
      %v1877 = vld [vmem:[%s470 + $0x2f1] sm:$0xff]
      %v1878 = vld [vmem:[%s470 + $0x301] sm:$0xff]
      %v1879 = vld [vmem:[%s470 + $0x309] sm:$0xff]
      %v1880 = vld [vmem:[%s470 + $0x319] sm:$0xff]
      %v1881 = vld [vmem:[%s470 + $0x321] sm:$0xff]
      %1946 = vrot.lane.b32.xlu0 %v1818, 32
      %v1947 = vpop.permute.xlu0 %1946
      %1948 = vrot.lane.b32.xlu0 %v1819, 32
      %v1949 = vpop.permute.xlu0 %1948
      %1950 = vrot.lane.b32.xlu0 %v1820, 32
      %v1951 = vpop.permute.xlu0 %1950
      %1952 = vrot.lane.b32.xlu0 %v1821, 32
      %v1953 = vpop.permute.xlu0 %1952
      %1954 = vrot.lane.b32.xlu0 %v1822, 32
      %v1955 = vpop.permute.xlu0 %1954
      %1956 = vrot.lane.b32.xlu0 %v1823, 32
      %v1957 = vpop.permute.xlu0 %1956
      %1958 = vrot.lane.b32.xlu0 %v1824, 32
      %v1959 = vpop.permute.xlu0 %1958
      %1960 = vrot.lane.b32.xlu0 %v1825, 32
      %v1961 = vpop.permute.xlu0 %1960
      %1962 = vrot.lane.b32.xlu0 %v1826, 32
      %v1963 = vpop.permute.xlu0 %1962
      %1964 = vrot.lane.b32.xlu0 %v1827, 32
      %v1965 = vpop.permute.xlu0 %1964
      %1966 = vrot.lane.b32.xlu0 %v1828, 32
      %v1967 = vpop.permute.xlu0 %1966
      %1968 = vrot.lane.b32.xlu0 %v1829, 32
      %v1969 = vpop.permute.xlu0 %1968
      %1970 = vrot.lane.b32.xlu0 %v1830, 32
      %v1971 = vpop.permute.xlu0 %1970
      %1972 = vrot.lane.b32.xlu0 %v1831, 32
      %v1973 = vpop.permute.xlu0 %1972
      %1974 = vrot.lane.b32.xlu0 %v1832, 32
      %v1975 = vpop.permute.xlu0 %1974
      %1976 = vrot.lane.b32.xlu0 %v1833, 32
      %v1977 = vpop.permute.xlu0 %1976
      %1978 = vrot.lane.b32.xlu0 %v1834, 32
      %v1979 = vpop.permute.xlu0 %1978
      %1980 = vrot.lane.b32.xlu0 %v1835, 32
      %v1981 = vpop.permute.xlu0 %1980
      %1982 = vrot.lane.b32.xlu0 %v1836, 32
      %v1983 = vpop.permute.xlu0 %1982
      %1984 = vrot.lane.b32.xlu0 %v1837, 32
      %v1985 = vpop.permute.xlu0 %1984
      %1986 = vrot.lane.b32.xlu0 %v1838, 32
      %v1987 = vpop.permute.xlu0 %1986
      %1988 = vrot.lane.b32.xlu0 %v1839, 32
      %v1989 = vpop.permute.xlu0 %1988
      %1990 = vrot.lane.b32.xlu0 %v1840, 32
      %v1991 = vpop.permute.xlu0 %1990
      %1992 = vrot.lane.b32.xlu0 %v1841, 32
      %v1993 = vpop.permute.xlu0 %1992
      %1994 = vrot.lane.b32.xlu0 %v1842, 32
      %v1995 = vpop.permute.xlu0 %1994
      %1996 = vrot.lane.b32.xlu0 %v1843, 32
      %v1997 = vpop.permute.xlu0 %1996
      %1998 = vrot.lane.b32.xlu0 %v1844, 32
      %v1999 = vpop.permute.xlu0 %1998
      %2000 = vrot.lane.b32.xlu0 %v1845, 32
      %v2001 = vpop.permute.xlu0 %2000
      %2002 = vrot.lane.b32.xlu0 %v1846, 32
      %v2003 = vpop.permute.xlu0 %2002
      %2004 = vrot.lane.b32.xlu0 %v1847, 32
      %v2005 = vpop.permute.xlu0 %2004
      %2006 = vrot.lane.b32.xlu0 %v1848, 32
      %v2007 = vpop.permute.xlu0 %2006
      %2008 = vrot.lane.b32.xlu0 %v1849, 32
      %v2009 = vpop.permute.xlu0 %2008
      %2010 = vrot.lane.b32.xlu0 %v1850, 32
      %v2011 = vpop.permute.xlu0 %2010
      %2012 = vrot.lane.b32.xlu0 %v1851, 32
      %v2013 = vpop.permute.xlu0 %2012
      %2014 = vrot.lane.b32.xlu0 %v1852, 32
      %v2015 = vpop.permute.xlu0 %2014
      %2016 = vrot.lane.b32.xlu0 %v1853, 32
      %v2017 = vpop.permute.xlu0 %2016
      %2018 = vrot.lane.b32.xlu0 %v1854, 32
      %v2019 = vpop.permute.xlu0 %2018
      %2020 = vrot.lane.b32.xlu0 %v1855, 32
      %v2021 = vpop.permute.xlu0 %2020
      %2022 = vrot.lane.b32.xlu0 %v1856, 32
      %v2023 = vpop.permute.xlu0 %2022
      %2024 = vrot.lane.b32.xlu0 %v1857, 32
      %v2025 = vpop.permute.xlu0 %2024
      %2026 = vrot.lane.b32.xlu0 %v1858, 32
      %v2027 = vpop.permute.xlu0 %2026
      %2028 = vrot.lane.b32.xlu0 %v1859, 32
      %v2029 = vpop.permute.xlu0 %2028
      %2030 = vrot.lane.b32.xlu0 %v1860, 32
      %v2031 = vpop.permute.xlu0 %2030
      %2032 = vrot.lane.b32.xlu0 %v1861, 32
      %v2033 = vpop.permute.xlu0 %2032
      %2034 = vrot.lane.b32.xlu0 %v1862, 32
      %v2035 = vpop.permute.xlu0 %2034
      %2036 = vrot.lane.b32.xlu0 %v1863, 32
      %v2037 = vpop.permute.xlu0 %2036
      %2038 = vrot.lane.b32.xlu0 %v1864, 32
      %v2039 = vpop.permute.xlu0 %2038
      %2040 = vrot.lane.b32.xlu0 %v1865, 32
      %v2041 = vpop.permute.xlu0 %2040
      %2042 = vrot.lane.b32.xlu0 %v1866, 32
      %v2043 = vpop.permute.xlu0 %2042
      %2044 = vrot.lane.b32.xlu0 %v1867, 32
      %v2045 = vpop.permute.xlu0 %2044
      %2046 = vrot.lane.b32.xlu0 %v1868, 32
      %v2047 = vpop.permute.xlu0 %2046
      %2048 = vrot.lane.b32.xlu0 %v1869, 32
      %v2049 = vpop.permute.xlu0 %2048
      %2050 = vrot.lane.b32.xlu0 %v1870, 32
      %v2051 = vpop.permute.xlu0 %2050
      %2052 = vrot.lane.b32.xlu0 %v1871, 32
      %v2053 = vpop.permute.xlu0 %2052
      %2054 = vrot.lane.b32.xlu0 %v1872, 32
      %v2055 = vpop.permute.xlu0 %2054
      %2056 = vrot.lane.b32.xlu0 %v1873, 32
      %v2057 = vpop.permute.xlu0 %2056
      %2058 = vrot.lane.b32.xlu0 %v1874, 32
      %v2059 = vpop.permute.xlu0 %2058
      %2060 = vrot.lane.b32.xlu0 %v1875, 32
      %v2061 = vpop.permute.xlu0 %2060
      %2062 = vrot.lane.b32.xlu0 %v1876, 32
      %v2063 = vpop.permute.xlu0 %2062
      %2064 = vrot.lane.b32.xlu0 %v1877, 32
      %v2065 = vpop.permute.xlu0 %2064
      %2066 = vrot.lane.b32.xlu0 %v1878, 32
      %v2067 = vpop.permute.xlu0 %2066
      %2068 = vrot.lane.b32.xlu0 %v1879, 32
      %v2069 = vpop.permute.xlu0 %2068
      %2070 = vrot.lane.b32.xlu0 %v1880, 32
      %v2071 = vpop.permute.xlu0 %2070
      %2072 = vrot.lane.b32.xlu0 %v1881, 32
      %v2073 = vpop.permute.xlu0 %2072
      %vm2138 = vcmask 326912
      %2139 = vst.msk [vmem:[#allocation4] sm:$0xff] %vm2138, %v1947
      %2140 = vst.msk [vmem:[#allocation4 + $0x8] sm:$0xff] %vm2138, %v1949
      %2141 = vst.msk [vmem:[#allocation4 + $0x10] sm:$0xff] %vm2138, %v1951
      %2142 = vst.msk [vmem:[#allocation4 + $0x18] sm:$0xff] %vm2138, %v1953
      %2143 = vst.msk [vmem:[#allocation4 + $0x20] sm:$0xff] %vm2138, %v1955
      %2144 = vst.msk [vmem:[#allocation4 + $0x28] sm:$0xff] %vm2138, %v1957
      %2145 = vst.msk [vmem:[#allocation4 + $0x30] sm:$0xff] %vm2138, %v1959
      %2146 = vst.msk [vmem:[#allocation4 + $0x38] sm:$0xff] %vm2138, %v1961
      %2147 = vst.msk [vmem:[#allocation4 + $0x40] sm:$0xff] %vm2138, %v1963
      %2148 = vst.msk [vmem:[#allocation4 + $0x48] sm:$0xff] %vm2138, %v1965
      %2149 = vst.msk [vmem:[#allocation4 + $0x50] sm:$0xff] %vm2138, %v1967
      %2150 = vst.msk [vmem:[#allocation4 + $0x58] sm:$0xff] %vm2138, %v1969
      %2151 = vst.msk [vmem:[#allocation4 + $0x60] sm:$0xff] %vm2138, %v1971
      %2152 = vst.msk [vmem:[#allocation4 + $0x68] sm:$0xff] %vm2138, %v1973
      %2153 = vst.msk [vmem:[#allocation4 + $0x70] sm:$0xff] %vm2138, %v1975
      %2154 = vst.msk [vmem:[#allocation4 + $0x78] sm:$0xff] %vm2138, %v1977
      %2155 = vst.msk [vmem:[#allocation4 + $0x80] sm:$0xff] %vm2138, %v1979
      %2156 = vst.msk [vmem:[#allocation4 + $0x88] sm:$0xff] %vm2138, %v1981
      %2157 = vst.msk [vmem:[#allocation4 + $0x90] sm:$0xff] %vm2138, %v1983
      %2158 = vst.msk [vmem:[#allocation4 + $0x98] sm:$0xff] %vm2138, %v1985
      %2159 = vst.msk [vmem:[#allocation4 + $0xa0] sm:$0xff] %vm2138, %v1987
      %2160 = vst.msk [vmem:[#allocation4 + $0xa8] sm:$0xff] %vm2138, %v1989
      %2161 = vst.msk [vmem:[#allocation4 + $0xb0] sm:$0xff] %vm2138, %v1991
      %2162 = vst.msk [vmem:[#allocation4 + $0xb8] sm:$0xff] %vm2138, %v1993
      %2163 = vst.msk [vmem:[#allocation4 + $0xc0] sm:$0xff] %vm2138, %v1995
      %2164 = vst.msk [vmem:[#allocation4 + $0xc8] sm:$0xff] %vm2138, %v1997
      %2165 = vst.msk [vmem:[#allocation4 + $0xd0] sm:$0xff] %vm2138, %v1999
      %2166 = vst.msk [vmem:[#allocation4 + $0xd8] sm:$0xff] %vm2138, %v2001
      %2167 = vst.msk [vmem:[#allocation4 + $0xe0] sm:$0xff] %vm2138, %v2003
      %2168 = vst.msk [vmem:[#allocation4 + $0xe8] sm:$0xff] %vm2138, %v2005
      %2169 = vst.msk [vmem:[#allocation4 + $0xf0] sm:$0xff] %vm2138, %v2007
      %2170 = vst.msk [vmem:[#allocation4 + $0xf8] sm:$0xff] %vm2138, %v2009
      %2171 = vst.msk [vmem:[#allocation4 + $0x100] sm:$0xff] %vm2138, %v2011
      %2172 = vst.msk [vmem:[#allocation4 + $0x108] sm:$0xff] %vm2138, %v2013
      %2173 = vst.msk [vmem:[#allocation4 + $0x110] sm:$0xff] %vm2138, %v2015
      %2174 = vst.msk [vmem:[#allocation4 + $0x118] sm:$0xff] %vm2138, %v2017
      %2175 = vst.msk [vmem:[#allocation4 + $0x120] sm:$0xff] %vm2138, %v2019
      %2176 = vst.msk [vmem:[#allocation4 + $0x128] sm:$0xff] %vm2138, %v2021
      %2177 = vst.msk [vmem:[#allocation4 + $0x130] sm:$0xff] %vm2138, %v2023
      %2178 = vst.msk [vmem:[#allocation4 + $0x138] sm:$0xff] %vm2138, %v2025
      %2179 = vst.msk [vmem:[#allocation4 + $0x140] sm:$0xff] %vm2138, %v2027
      %2180 = vst.msk [vmem:[#allocation4 + $0x148] sm:$0xff] %vm2138, %v2029
      %2181 = vst.msk [vmem:[#allocation4 + $0x150] sm:$0xff] %vm2138, %v2031
      %2182 = vst.msk [vmem:[#allocation4 + $0x158] sm:$0xff] %vm2138, %v2033
      %2183 = vst.msk [vmem:[#allocation4 + $0x160] sm:$0xff] %vm2138, %v2035
      %2184 = vst.msk [vmem:[#allocation4 + $0x168] sm:$0xff] %vm2138, %v2037
      %2185 = vst.msk [vmem:[#allocation4 + $0x170] sm:$0xff] %vm2138, %v2039
      %2186 = vst.msk [vmem:[#allocation4 + $0x178] sm:$0xff] %vm2138, %v2041
      %2187 = vst.msk [vmem:[#allocation4 + $0x180] sm:$0xff] %vm2138, %v2043
      %2188 = vst.msk [vmem:[#allocation4 + $0x188] sm:$0xff] %vm2138, %v2045
      %2189 = vst.msk [vmem:[#allocation4 + $0x190] sm:$0xff] %vm2138, %v2047
      %2190 = vst.msk [vmem:[#allocation4 + $0x198] sm:$0xff] %vm2138, %v2049
      %2191 = vst.msk [vmem:[#allocation4 + $0x1a0] sm:$0xff] %vm2138, %v2051
      %2192 = vst.msk [vmem:[#allocation4 + $0x1a8] sm:$0xff] %vm2138, %v2053
      %2193 = vst.msk [vmem:[#allocation4 + $0x1b0] sm:$0xff] %vm2138, %v2055
      %2194 = vst.msk [vmem:[#allocation4 + $0x1b8] sm:$0xff] %vm2138, %v2057
      %2195 = vst.msk [vmem:[#allocation4 + $0x1c0] sm:$0xff] %vm2138, %v2059
      %2196 = vst.msk [vmem:[#allocation4 + $0x1c8] sm:$0xff] %vm2138, %v2061
      %2197 = vst.msk [vmem:[#allocation4 + $0x1d0] sm:$0xff] %vm2138, %v2063
      %2198 = vst.msk [vmem:[#allocation4 + $0x1d8] sm:$0xff] %vm2138, %v2065
      %2199 = vst.msk [vmem:[#allocation4 + $0x1e0] sm:$0xff] %vm2138, %v2067
      %2200 = vst.msk [vmem:[#allocation4 + $0x1e8] sm:$0xff] %vm2138, %v2069
      %2201 = vst.msk [vmem:[#allocation4 + $0x1f0] sm:$0xff] %vm2138, %v2071
      %2202 = vst.msk [vmem:[#allocation4 + $0x1f8] sm:$0xff] %vm2138, %v2073
      %v2203 = vld [vmem:[%s470 + $0x2] sm:$0xff]
      %v2204 = vld [vmem:[%s470 + $0xa] sm:$0xff]
      %v2205 = vld [vmem:[%s470 + $0x1a] sm:$0xff]
      %v2206 = vld [vmem:[%s470 + $0x22] sm:$0xff]
      %v2207 = vld [vmem:[%s470 + $0x32] sm:$0xff]
      %v2208 = vld [vmem:[%s470 + $0x3a] sm:$0xff]
      %v2209 = vld [vmem:[%s470 + $0x4a] sm:$0xff]
      %v2210 = vld [vmem:[%s470 + $0x52] sm:$0xff]
      %v2211 = vld [vmem:[%s470 + $0x62] sm:$0xff]
      %v2212 = vld [vmem:[%s470 + $0x6a] sm:$0xff]
      %v2213 = vld [vmem:[%s470 + $0x7a] sm:$0xff]
      %v2214 = vld [vmem:[%s470 + $0x82] sm:$0xff]
      %v2215 = vld [vmem:[%s470 + $0x92] sm:$0xff]
      %v2216 = vld [vmem:[%s470 + $0x9a] sm:$0xff]
      %v2217 = vld [vmem:[%s470 + $0xaa] sm:$0xff]
      %v2218 = vld [vmem:[%s470 + $0xb2] sm:$0xff]
      %v2219 = vld [vmem:[%s470 + $0xc2] sm:$0xff]
      %v2220 = vld [vmem:[%s470 + $0xca] sm:$0xff]
      %v2221 = vld [vmem:[%s470 + $0xda] sm:$0xff]
      %v2222 = vld [vmem:[%s470 + $0xe2] sm:$0xff]
      %v2223 = vld [vmem:[%s470 + $0xf2] sm:$0xff]
      %v2224 = vld [vmem:[%s470 + $0xfa] sm:$0xff]
      %v2225 = vld [vmem:[%s470 + $0x10a] sm:$0xff]
      %v2226 = vld [vmem:[%s470 + $0x112] sm:$0xff]
      %v2227 = vld [vmem:[%s470 + $0x122] sm:$0xff]
      %v2228 = vld [vmem:[%s470 + $0x12a] sm:$0xff]
      %v2229 = vld [vmem:[%s470 + $0x13a] sm:$0xff]
      %v2230 = vld [vmem:[%s470 + $0x142] sm:$0xff]
      %v2231 = vld [vmem:[%s470 + $0x152] sm:$0xff]
      %v2232 = vld [vmem:[%s470 + $0x15a] sm:$0xff]
      %v2233 = vld [vmem:[%s470 + $0x16a] sm:$0xff]
      %v2234 = vld [vmem:[%s470 + $0x172] sm:$0xff]
      %v2235 = vld [vmem:[%s470 + $0x1b2] sm:$0xff]
      %v2236 = vld [vmem:[%s470 + $0x1ba] sm:$0xff]
      %v2237 = vld [vmem:[%s470 + $0x1ca] sm:$0xff]
      %v2238 = vld [vmem:[%s470 + $0x1d2] sm:$0xff]
      %v2239 = vld [vmem:[%s470 + $0x1e2] sm:$0xff]
      %v2240 = vld [vmem:[%s470 + $0x1ea] sm:$0xff]
      %v2241 = vld [vmem:[%s470 + $0x1fa] sm:$0xff]
      %v2242 = vld [vmem:[%s470 + $0x202] sm:$0xff]
      %v2243 = vld [vmem:[%s470 + $0x212] sm:$0xff]
      %v2244 = vld [vmem:[%s470 + $0x21a] sm:$0xff]
      %v2245 = vld [vmem:[%s470 + $0x22a] sm:$0xff]
      %v2246 = vld [vmem:[%s470 + $0x232] sm:$0xff]
      %v2247 = vld [vmem:[%s470 + $0x242] sm:$0xff]
      %v2248 = vld [vmem:[%s470 + $0x24a] sm:$0xff]
      %v2249 = vld [vmem:[%s470 + $0x25a] sm:$0xff]
      %v2250 = vld [vmem:[%s470 + $0x262] sm:$0xff]
      %v2251 = vld [vmem:[%s470 + $0x272] sm:$0xff]
      %v2252 = vld [vmem:[%s470 + $0x27a] sm:$0xff]
      %v2253 = vld [vmem:[%s470 + $0x28a] sm:$0xff]
      %v2254 = vld [vmem:[%s470 + $0x292] sm:$0xff]
      %v2255 = vld [vmem:[%s470 + $0x2a2] sm:$0xff]
      %v2256 = vld [vmem:[%s470 + $0x2aa] sm:$0xff]
      %v2257 = vld [vmem:[%s470 + $0x2ba] sm:$0xff]
      %v2258 = vld [vmem:[%s470 + $0x2c2] sm:$0xff]
      %v2259 = vld [vmem:[%s470 + $0x2d2] sm:$0xff]
      %v2260 = vld [vmem:[%s470 + $0x2da] sm:$0xff]
      %v2261 = vld [vmem:[%s470 + $0x2ea] sm:$0xff]
      %v2262 = vld [vmem:[%s470 + $0x2f2] sm:$0xff]
      %v2263 = vld [vmem:[%s470 + $0x302] sm:$0xff]
      %v2264 = vld [vmem:[%s470 + $0x30a] sm:$0xff]
      %v2265 = vld [vmem:[%s470 + $0x31a] sm:$0xff]
      %v2266 = vld [vmem:[%s470 + $0x322] sm:$0xff]
      %2331 = vrot.lane.b32.xlu0 %v2203, 40
      %v2332 = vpop.permute.xlu0 %2331
      %2333 = vrot.lane.b32.xlu0 %v2204, 40
      %v2334 = vpop.permute.xlu0 %2333
      %2335 = vrot.lane.b32.xlu0 %v2205, 40
      %v2336 = vpop.permute.xlu0 %2335
      %2337 = vrot.lane.b32.xlu0 %v2206, 40
      %v2338 = vpop.permute.xlu0 %2337
      %2339 = vrot.lane.b32.xlu0 %v2207, 40
      %v2340 = vpop.permute.xlu0 %2339
      %2341 = vrot.lane.b32.xlu0 %v2208, 40
      %v2342 = vpop.permute.xlu0 %2341
      %2343 = vrot.lane.b32.xlu0 %v2209, 40
      %v2344 = vpop.permute.xlu0 %2343
      %2345 = vrot.lane.b32.xlu0 %v2210, 40
      %v2346 = vpop.permute.xlu0 %2345
      %2347 = vrot.lane.b32.xlu0 %v2211, 40
      %v2348 = vpop.permute.xlu0 %2347
      %2349 = vrot.lane.b32.xlu0 %v2212, 40
      %v2350 = vpop.permute.xlu0 %2349
      %2351 = vrot.lane.b32.xlu0 %v2213, 40
      %v2352 = vpop.permute.xlu0 %2351
      %2353 = vrot.lane.b32.xlu0 %v2214, 40
      %v2354 = vpop.permute.xlu0 %2353
      %2355 = vrot.lane.b32.xlu0 %v2215, 40
      %v2356 = vpop.permute.xlu0 %2355
      %2357 = vrot.lane.b32.xlu0 %v2216, 40
      %v2358 = vpop.permute.xlu0 %2357
      %2359 = vrot.lane.b32.xlu0 %v2217, 40
      %v2360 = vpop.permute.xlu0 %2359
      %2361 = vrot.lane.b32.xlu0 %v2218, 40
      %v2362 = vpop.permute.xlu0 %2361
      %2363 = vrot.lane.b32.xlu0 %v2219, 40
      %v2364 = vpop.permute.xlu0 %2363
      %2365 = vrot.lane.b32.xlu0 %v2220, 40
      %v2366 = vpop.permute.xlu0 %2365
      %2367 = vrot.lane.b32.xlu0 %v2221, 40
      %v2368 = vpop.permute.xlu0 %2367
      %2369 = vrot.lane.b32.xlu0 %v2222, 40
      %v2370 = vpop.permute.xlu0 %2369
      %2371 = vrot.lane.b32.xlu0 %v2223, 40
      %v2372 = vpop.permute.xlu0 %2371
      %2373 = vrot.lane.b32.xlu0 %v2224, 40
      %v2374 = vpop.permute.xlu0 %2373
      %2375 = vrot.lane.b32.xlu0 %v2225, 40
      %v2376 = vpop.permute.xlu0 %2375
      %2377 = vrot.lane.b32.xlu0 %v2226, 40
      %v2378 = vpop.permute.xlu0 %2377
      %2379 = vrot.lane.b32.xlu0 %v2227, 40
      %v2380 = vpop.permute.xlu0 %2379
      %2381 = vrot.lane.b32.xlu0 %v2228, 40
      %v2382 = vpop.permute.xlu0 %2381
      %2383 = vrot.lane.b32.xlu0 %v2229, 40
      %v2384 = vpop.permute.xlu0 %2383
      %2385 = vrot.lane.b32.xlu0 %v2230, 40
      %v2386 = vpop.permute.xlu0 %2385
      %2387 = vrot.lane.b32.xlu0 %v2231, 40
      %v2388 = vpop.permute.xlu0 %2387
      %2389 = vrot.lane.b32.xlu0 %v2232, 40
      %v2390 = vpop.permute.xlu0 %2389
      %2391 = vrot.lane.b32.xlu0 %v2233, 40
      %v2392 = vpop.permute.xlu0 %2391
      %2393 = vrot.lane.b32.xlu0 %v2234, 40
      %v2394 = vpop.permute.xlu0 %2393
      %2395 = vrot.lane.b32.xlu0 %v2235, 40
      %v2396 = vpop.permute.xlu0 %2395
      %2397 = vrot.lane.b32.xlu0 %v2236, 40
      %v2398 = vpop.permute.xlu0 %2397
      %2399 = vrot.lane.b32.xlu0 %v2237, 40
      %v2400 = vpop.permute.xlu0 %2399
      %2401 = vrot.lane.b32.xlu0 %v2238, 40
      %v2402 = vpop.permute.xlu0 %2401
      %2403 = vrot.lane.b32.xlu0 %v2239, 40
      %v2404 = vpop.permute.xlu0 %2403
      %2405 = vrot.lane.b32.xlu0 %v2240, 40
      %v2406 = vpop.permute.xlu0 %2405
      %2407 = vrot.lane.b32.xlu0 %v2241, 40
      %v2408 = vpop.permute.xlu0 %2407
      %2409 = vrot.lane.b32.xlu0 %v2242, 40
      %v2410 = vpop.permute.xlu0 %2409
      %2411 = vrot.lane.b32.xlu0 %v2243, 40
      %v2412 = vpop.permute.xlu0 %2411
      %2413 = vrot.lane.b32.xlu0 %v2244, 40
      %v2414 = vpop.permute.xlu0 %2413
      %2415 = vrot.lane.b32.xlu0 %v2245, 40
      %v2416 = vpop.permute.xlu0 %2415
      %2417 = vrot.lane.b32.xlu0 %v2246, 40
      %v2418 = vpop.permute.xlu0 %2417
      %2419 = vrot.lane.b32.xlu0 %v2247, 40
      %v2420 = vpop.permute.xlu0 %2419
      %2421 = vrot.lane.b32.xlu0 %v2248, 40
      %v2422 = vpop.permute.xlu0 %2421
      %2423 = vrot.lane.b32.xlu0 %v2249, 40
      %v2424 = vpop.permute.xlu0 %2423
      %2425 = vrot.lane.b32.xlu0 %v2250, 40
      %v2426 = vpop.permute.xlu0 %2425
      %2427 = vrot.lane.b32.xlu0 %v2251, 40
      %v2428 = vpop.permute.xlu0 %2427
      %2429 = vrot.lane.b32.xlu0 %v2252, 40
      %v2430 = vpop.permute.xlu0 %2429
      %2431 = vrot.lane.b32.xlu0 %v2253, 40
      %v2432 = vpop.permute.xlu0 %2431
      %2433 = vrot.lane.b32.xlu0 %v2254, 40
      %v2434 = vpop.permute.xlu0 %2433
      %2435 = vrot.lane.b32.xlu0 %v2255, 40
      %v2436 = vpop.permute.xlu0 %2435
      %2437 = vrot.lane.b32.xlu0 %v2256, 40
      %v2438 = vpop.permute.xlu0 %2437
      %2439 = vrot.lane.b32.xlu0 %v2257, 40
      %v2440 = vpop.permute.xlu0 %2439
      %2441 = vrot.lane.b32.xlu0 %v2258, 40
      %v2442 = vpop.permute.xlu0 %2441
      %2443 = vrot.lane.b32.xlu0 %v2259, 40
      %v2444 = vpop.permute.xlu0 %2443
      %2445 = vrot.lane.b32.xlu0 %v2260, 40
      %v2446 = vpop.permute.xlu0 %2445
      %2447 = vrot.lane.b32.xlu0 %v2261, 40
      %v2448 = vpop.permute.xlu0 %2447
      %2449 = vrot.lane.b32.xlu0 %v2262, 40
      %v2450 = vpop.permute.xlu0 %2449
      %2451 = vrot.lane.b32.xlu0 %v2263, 40
      %v2452 = vpop.permute.xlu0 %2451
      %2453 = vrot.lane.b32.xlu0 %v2264, 40
      %v2454 = vpop.permute.xlu0 %2453
      %2455 = vrot.lane.b32.xlu0 %v2265, 40
      %v2456 = vpop.permute.xlu0 %2455
      %2457 = vrot.lane.b32.xlu0 %v2266, 40
      %v2458 = vpop.permute.xlu0 %2457
      %vm2523 = vcmask 392512
      %2524 = vst.msk [vmem:[#allocation4] sm:$0xff] %vm2523, %v2332
      %2525 = vst.msk [vmem:[#allocation4 + $0x8] sm:$0xff] %vm2523, %v2334
      %2526 = vst.msk [vmem:[#allocation4 + $0x10] sm:$0xff] %vm2523, %v2336
      %2527 = vst.msk [vmem:[#allocation4 + $0x18] sm:$0xff] %vm2523, %v2338
      %2528 = vst.msk [vmem:[#allocation4 + $0x20] sm:$0xff] %vm2523, %v2340
      %2529 = vst.msk [vmem:[#allocation4 + $0x28] sm:$0xff] %vm2523, %v2342
      %2530 = vst.msk [vmem:[#allocation4 + $0x30] sm:$0xff] %vm2523, %v2344
      %2531 = vst.msk [vmem:[#allocation4 + $0x38] sm:$0xff] %vm2523, %v2346
      %2532 = vst.msk [vmem:[#allocation4 + $0x40] sm:$0xff] %vm2523, %v2348
      %2533 = vst.msk [vmem:[#allocation4 + $0x48] sm:$0xff] %vm2523, %v2350
      %2534 = vst.msk [vmem:[#allocation4 + $0x50] sm:$0xff] %vm2523, %v2352
      %2535 = vst.msk [vmem:[#allocation4 + $0x58] sm:$0xff] %vm2523, %v2354
      %2536 = vst.msk [vmem:[#allocation4 + $0x60] sm:$0xff] %vm2523, %v2356
      %2537 = vst.msk [vmem:[#allocation4 + $0x68] sm:$0xff] %vm2523, %v2358
      %2538 = vst.msk [vmem:[#allocation4 + $0x70] sm:$0xff] %vm2523, %v2360
      %2539 = vst.msk [vmem:[#allocation4 + $0x78] sm:$0xff] %vm2523, %v2362
      %2540 = vst.msk [vmem:[#allocation4 + $0x80] sm:$0xff] %vm2523, %v2364
      %2541 = vst.msk [vmem:[#allocation4 + $0x88] sm:$0xff] %vm2523, %v2366
      %2542 = vst.msk [vmem:[#allocation4 + $0x90] sm:$0xff] %vm2523, %v2368
      %2543 = vst.msk [vmem:[#allocation4 + $0x98] sm:$0xff] %vm2523, %v2370
      %2544 = vst.msk [vmem:[#allocation4 + $0xa0] sm:$0xff] %vm2523, %v2372
      %2545 = vst.msk [vmem:[#allocation4 + $0xa8] sm:$0xff] %vm2523, %v2374
      %2546 = vst.msk [vmem:[#allocation4 + $0xb0] sm:$0xff] %vm2523, %v2376
      %2547 = vst.msk [vmem:[#allocation4 + $0xb8] sm:$0xff] %vm2523, %v2378
      %2548 = vst.msk [vmem:[#allocation4 + $0xc0] sm:$0xff] %vm2523, %v2380
      %2549 = vst.msk [vmem:[#allocation4 + $0xc8] sm:$0xff] %vm2523, %v2382
      %2550 = vst.msk [vmem:[#allocation4 + $0xd0] sm:$0xff] %vm2523, %v2384
      %2551 = vst.msk [vmem:[#allocation4 + $0xd8] sm:$0xff] %vm2523, %v2386
      %2552 = vst.msk [vmem:[#allocation4 + $0xe0] sm:$0xff] %vm2523, %v2388
      %2553 = vst.msk [vmem:[#allocation4 + $0xe8] sm:$0xff] %vm2523, %v2390
      %2554 = vst.msk [vmem:[#allocation4 + $0xf0] sm:$0xff] %vm2523, %v2392
      %2555 = vst.msk [vmem:[#allocation4 + $0xf8] sm:$0xff] %vm2523, %v2394
      %2556 = vst.msk [vmem:[#allocation4 + $0x100] sm:$0xff] %vm2523, %v2396
      %2557 = vst.msk [vmem:[#allocation4 + $0x108] sm:$0xff] %vm2523, %v2398
      %2558 = vst.msk [vmem:[#allocation4 + $0x110] sm:$0xff] %vm2523, %v2400
      %2559 = vst.msk [vmem:[#allocation4 + $0x118] sm:$0xff] %vm2523, %v2402
      %2560 = vst.msk [vmem:[#allocation4 + $0x120] sm:$0xff] %vm2523, %v2404
      %2561 = vst.msk [vmem:[#allocation4 + $0x128] sm:$0xff] %vm2523, %v2406
      %2562 = vst.msk [vmem:[#allocation4 + $0x130] sm:$0xff] %vm2523, %v2408
      %2563 = vst.msk [vmem:[#allocation4 + $0x138] sm:$0xff] %vm2523, %v2410
      %2564 = vst.msk [vmem:[#allocation4 + $0x140] sm:$0xff] %vm2523, %v2412
      %2565 = vst.msk [vmem:[#allocation4 + $0x148] sm:$0xff] %vm2523, %v2414
      %2566 = vst.msk [vmem:[#allocation4 + $0x150] sm:$0xff] %vm2523, %v2416
      %2567 = vst.msk [vmem:[#allocation4 + $0x158] sm:$0xff] %vm2523, %v2418
      %2568 = vst.msk [vmem:[#allocation4 + $0x160] sm:$0xff] %vm2523, %v2420
      %2569 = vst.msk [vmem:[#allocation4 + $0x168] sm:$0xff] %vm2523, %v2422
      %2570 = vst.msk [vmem:[#allocation4 + $0x170] sm:$0xff] %vm2523, %v2424
      %2571 = vst.msk [vmem:[#allocation4 + $0x178] sm:$0xff] %vm2523, %v2426
      %2572 = vst.msk [vmem:[#allocation4 + $0x180] sm:$0xff] %vm2523, %v2428
      %2573 = vst.msk [vmem:[#allocation4 + $0x188] sm:$0xff] %vm2523, %v2430
      %2574 = vst.msk [vmem:[#allocation4 + $0x190] sm:$0xff] %vm2523, %v2432
      %2575 = vst.msk [vmem:[#allocation4 + $0x198] sm:$0xff] %vm2523, %v2434
      %2576 = vst.msk [vmem:[#allocation4 + $0x1a0] sm:$0xff] %vm2523, %v2436
      %2577 = vst.msk [vmem:[#allocation4 + $0x1a8] sm:$0xff] %vm2523, %v2438
      %2578 = vst.msk [vmem:[#allocation4 + $0x1b0] sm:$0xff] %vm2523, %v2440
      %2579 = vst.msk [vmem:[#allocation4 + $0x1b8] sm:$0xff] %vm2523, %v2442
      %2580 = vst.msk [vmem:[#allocation4 + $0x1c0] sm:$0xff] %vm2523, %v2444
      %2581 = vst.msk [vmem:[#allocation4 + $0x1c8] sm:$0xff] %vm2523, %v2446
      %2582 = vst.msk [vmem:[#allocation4 + $0x1d0] sm:$0xff] %vm2523, %v2448
      %2583 = vst.msk [vmem:[#allocation4 + $0x1d8] sm:$0xff] %vm2523, %v2450
      %2584 = vst.msk [vmem:[#allocation4 + $0x1e0] sm:$0xff] %vm2523, %v2452
      %2585 = vst.msk [vmem:[#allocation4 + $0x1e8] sm:$0xff] %vm2523, %v2454
      %2586 = vst.msk [vmem:[#allocation4 + $0x1f0] sm:$0xff] %vm2523, %v2456
      %2587 = vst.msk [vmem:[#allocation4 + $0x1f8] sm:$0xff] %vm2523, %v2458
      %s2588 = scalar_lea.vmem [#allocation2], 48
      %v2589 = vld [vmem:[%s2588] sm:$0xff]
      %v2590 = vld [vmem:[%s2588 + $0x8] sm:$0xff]
      %v2591 = vld [vmem:[%s2588 + $0x18] sm:$0xff]
      %v2592 = vld [vmem:[%s2588 + $0x20] sm:$0xff]
      %v2593 = vld [vmem:[%s2588 + $0x30] sm:$0xff]
      %v2594 = vld [vmem:[%s2588 + $0x38] sm:$0xff]
      %v2595 = vld [vmem:[%s2588 + $0x48] sm:$0xff]
      %v2596 = vld [vmem:[%s2588 + $0x50] sm:$0xff]
      %v2597 = vld [vmem:[%s2588 + $0x60] sm:$0xff]
      %v2598 = vld [vmem:[%s2588 + $0x68] sm:$0xff]
      %v2599 = vld [vmem:[%s2588 + $0x78] sm:$0xff]
      %v2600 = vld [vmem:[%s2588 + $0x80] sm:$0xff]
      %v2601 = vld [vmem:[%s2588 + $0x90] sm:$0xff]
      %v2602 = vld [vmem:[%s2588 + $0x98] sm:$0xff]
      %v2603 = vld [vmem:[%s2588 + $0xa8] sm:$0xff]
      %v2604 = vld [vmem:[%s2588 + $0xb0] sm:$0xff]
      %v2605 = vld [vmem:[%s2588 + $0xc0] sm:$0xff]
      %v2606 = vld [vmem:[%s2588 + $0xc8] sm:$0xff]
      %v2607 = vld [vmem:[%s2588 + $0xd8] sm:$0xff]
      %v2608 = vld [vmem:[%s2588 + $0xe0] sm:$0xff]
      %v2609 = vld [vmem:[%s2588 + $0xf0] sm:$0xff]
      %v2610 = vld [vmem:[%s2588 + $0xf8] sm:$0xff]
      %v2611 = vld [vmem:[%s2588 + $0x108] sm:$0xff]
      %v2612 = vld [vmem:[%s2588 + $0x110] sm:$0xff]
      %v2613 = vld [vmem:[%s2588 + $0x120] sm:$0xff]
      %v2614 = vld [vmem:[%s2588 + $0x128] sm:$0xff]
      %v2615 = vld [vmem:[%s2588 + $0x138] sm:$0xff]
      %v2616 = vld [vmem:[%s2588 + $0x140] sm:$0xff]
      %v2617 = vld [vmem:[%s2588 + $0x150] sm:$0xff]
      %v2618 = vld [vmem:[%s2588 + $0x158] sm:$0xff]
      %v2619 = vld [vmem:[%s2588 + $0x168] sm:$0xff]
      %v2620 = vld [vmem:[%s2588 + $0x170] sm:$0xff]
      %v2621 = vld [vmem:[%s2588 + $0x1b0] sm:$0xff]
      %v2622 = vld [vmem:[%s2588 + $0x1b8] sm:$0xff]
      %v2623 = vld [vmem:[%s2588 + $0x1c8] sm:$0xff]
      %v2624 = vld [vmem:[%s2588 + $0x1d0] sm:$0xff]
      %v2625 = vld [vmem:[%s2588 + $0x1e0] sm:$0xff]
      %v2626 = vld [vmem:[%s2588 + $0x1e8] sm:$0xff]
      %v2627 = vld [vmem:[%s2588 + $0x1f8] sm:$0xff]
      %v2628 = vld [vmem:[%s2588 + $0x200] sm:$0xff]
      %v2629 = vld [vmem:[%s2588 + $0x210] sm:$0xff]
      %v2630 = vld [vmem:[%s2588 + $0x218] sm:$0xff]
      %v2631 = vld [vmem:[%s2588 + $0x228] sm:$0xff]
      %v2632 = vld [vmem:[%s2588 + $0x230] sm:$0xff]
      %v2633 = vld [vmem:[%s2588 + $0x240] sm:$0xff]
      %v2634 = vld [vmem:[%s2588 + $0x248] sm:$0xff]
      %v2635 = vld [vmem:[%s2588 + $0x258] sm:$0xff]
      %v2636 = vld [vmem:[%s2588 + $0x260] sm:$0xff]
      %v2637 = vld [vmem:[%s2588 + $0x270] sm:$0xff]
      %v2638 = vld [vmem:[%s2588 + $0x278] sm:$0xff]
      %v2639 = vld [vmem:[%s2588 + $0x288] sm:$0xff]
      %v2640 = vld [vmem:[%s2588 + $0x290] sm:$0xff]
      %v2641 = vld [vmem:[%s2588 + $0x2a0] sm:$0xff]
      %v2642 = vld [vmem:[%s2588 + $0x2a8] sm:$0xff]
      %v2643 = vld [vmem:[%s2588 + $0x2b8] sm:$0xff]
      %v2644 = vld [vmem:[%s2588 + $0x2c0] sm:$0xff]
      %v2645 = vld [vmem:[%s2588 + $0x2d0] sm:$0xff]
      %v2646 = vld [vmem:[%s2588 + $0x2d8] sm:$0xff]
      %v2647 = vld [vmem:[%s2588 + $0x2e8] sm:$0xff]
      %v2648 = vld [vmem:[%s2588 + $0x2f0] sm:$0xff]
      %v2649 = vld [vmem:[%s2588 + $0x300] sm:$0xff]
      %v2650 = vld [vmem:[%s2588 + $0x308] sm:$0xff]
      %v2651 = vld [vmem:[%s2588 + $0x318] sm:$0xff]
      %v2652 = vld [vmem:[%s2588 + $0x320] sm:$0xff]
      %2717 = vrot.lane.b32.xlu0 %v2589, 48
      %v2718 = vpop.permute.xlu0 %2717
      %2719 = vrot.lane.b32.xlu0 %v2590, 48
      %v2720 = vpop.permute.xlu0 %2719
      %2721 = vrot.lane.b32.xlu0 %v2591, 48
      %v2722 = vpop.permute.xlu0 %2721
      %2723 = vrot.lane.b32.xlu0 %v2592, 48
      %v2724 = vpop.permute.xlu0 %2723
      %2725 = vrot.lane.b32.xlu0 %v2593, 48
      %v2726 = vpop.permute.xlu0 %2725
      %2727 = vrot.lane.b32.xlu0 %v2594, 48
      %v2728 = vpop.permute.xlu0 %2727
      %2729 = vrot.lane.b32.xlu0 %v2595, 48
      %v2730 = vpop.permute.xlu0 %2729
      %2731 = vrot.lane.b32.xlu0 %v2596, 48
      %v2732 = vpop.permute.xlu0 %2731
      %2733 = vrot.lane.b32.xlu0 %v2597, 48
      %v2734 = vpop.permute.xlu0 %2733
      %2735 = vrot.lane.b32.xlu0 %v2598, 48
      %v2736 = vpop.permute.xlu0 %2735
      %2737 = vrot.lane.b32.xlu0 %v2599, 48
      %v2738 = vpop.permute.xlu0 %2737
      %2739 = vrot.lane.b32.xlu0 %v2600, 48
      %v2740 = vpop.permute.xlu0 %2739
      %2741 = vrot.lane.b32.xlu0 %v2601, 48
      %v2742 = vpop.permute.xlu0 %2741
      %2743 = vrot.lane.b32.xlu0 %v2602, 48
      %v2744 = vpop.permute.xlu0 %2743
      %2745 = vrot.lane.b32.xlu0 %v2603, 48
      %v2746 = vpop.permute.xlu0 %2745
      %2747 = vrot.lane.b32.xlu0 %v2604, 48
      %v2748 = vpop.permute.xlu0 %2747
      %2749 = vrot.lane.b32.xlu0 %v2605, 48
      %v2750 = vpop.permute.xlu0 %2749
      %2751 = vrot.lane.b32.xlu0 %v2606, 48
      %v2752 = vpop.permute.xlu0 %2751
      %2753 = vrot.lane.b32.xlu0 %v2607, 48
      %v2754 = vpop.permute.xlu0 %2753
      %2755 = vrot.lane.b32.xlu0 %v2608, 48
      %v2756 = vpop.permute.xlu0 %2755
      %2757 = vrot.lane.b32.xlu0 %v2609, 48
      %v2758 = vpop.permute.xlu0 %2757
      %2759 = vrot.lane.b32.xlu0 %v2610, 48
      %v2760 = vpop.permute.xlu0 %2759
      %2761 = vrot.lane.b32.xlu0 %v2611, 48
      %v2762 = vpop.permute.xlu0 %2761
      %2763 = vrot.lane.b32.xlu0 %v2612, 48
      %v2764 = vpop.permute.xlu0 %2763
      %2765 = vrot.lane.b32.xlu0 %v2613, 48
      %v2766 = vpop.permute.xlu0 %2765
      %2767 = vrot.lane.b32.xlu0 %v2614, 48
      %v2768 = vpop.permute.xlu0 %2767
      %2769 = vrot.lane.b32.xlu0 %v2615, 48
      %v2770 = vpop.permute.xlu0 %2769
      %2771 = vrot.lane.b32.xlu0 %v2616, 48
      %v2772 = vpop.permute.xlu0 %2771
      %2773 = vrot.lane.b32.xlu0 %v2617, 48
      %v2774 = vpop.permute.xlu0 %2773
      %2775 = vrot.lane.b32.xlu0 %v2618, 48
      %v2776 = vpop.permute.xlu0 %2775
      %2777 = vrot.lane.b32.xlu0 %v2619, 48
      %v2778 = vpop.permute.xlu0 %2777
      %2779 = vrot.lane.b32.xlu0 %v2620, 48
      %v2780 = vpop.permute.xlu0 %2779
      %2781 = vrot.lane.b32.xlu0 %v2621, 48
      %v2782 = vpop.permute.xlu0 %2781
      %2783 = vrot.lane.b32.xlu0 %v2622, 48
      %v2784 = vpop.permute.xlu0 %2783
      %2785 = vrot.lane.b32.xlu0 %v2623, 48
      %v2786 = vpop.permute.xlu0 %2785
      %2787 = vrot.lane.b32.xlu0 %v2624, 48
      %v2788 = vpop.permute.xlu0 %2787
      %2789 = vrot.lane.b32.xlu0 %v2625, 48
      %v2790 = vpop.permute.xlu0 %2789
      %2791 = vrot.lane.b32.xlu0 %v2626, 48
      %v2792 = vpop.permute.xlu0 %2791
      %2793 = vrot.lane.b32.xlu0 %v2627, 48
      %v2794 = vpop.permute.xlu0 %2793
      %2795 = vrot.lane.b32.xlu0 %v2628, 48
      %v2796 = vpop.permute.xlu0 %2795
      %2797 = vrot.lane.b32.xlu0 %v2629, 48
      %v2798 = vpop.permute.xlu0 %2797
      %2799 = vrot.lane.b32.xlu0 %v2630, 48
      %v2800 = vpop.permute.xlu0 %2799
      %2801 = vrot.lane.b32.xlu0 %v2631, 48
      %v2802 = vpop.permute.xlu0 %2801
      %2803 = vrot.lane.b32.xlu0 %v2632, 48
      %v2804 = vpop.permute.xlu0 %2803
      %2805 = vrot.lane.b32.xlu0 %v2633, 48
      %v2806 = vpop.permute.xlu0 %2805
      %2807 = vrot.lane.b32.xlu0 %v2634, 48
      %v2808 = vpop.permute.xlu0 %2807
      %2809 = vrot.lane.b32.xlu0 %v2635, 48
      %v2810 = vpop.permute.xlu0 %2809
      %2811 = vrot.lane.b32.xlu0 %v2636, 48
      %v2812 = vpop.permute.xlu0 %2811
      %2813 = vrot.lane.b32.xlu0 %v2637, 48
      %v2814 = vpop.permute.xlu0 %2813
      %2815 = vrot.lane.b32.xlu0 %v2638, 48
      %v2816 = vpop.permute.xlu0 %2815
      %2817 = vrot.lane.b32.xlu0 %v2639, 48
      %v2818 = vpop.permute.xlu0 %2817
      %2819 = vrot.lane.b32.xlu0 %v2640, 48
      %v2820 = vpop.permute.xlu0 %2819
      %2821 = vrot.lane.b32.xlu0 %v2641, 48
      %v2822 = vpop.permute.xlu0 %2821
      %2823 = vrot.lane.b32.xlu0 %v2642, 48
      %v2824 = vpop.permute.xlu0 %2823
      %2825 = vrot.lane.b32.xlu0 %v2643, 48
      %v2826 = vpop.permute.xlu0 %2825
      %2827 = vrot.lane.b32.xlu0 %v2644, 48
      %v2828 = vpop.permute.xlu0 %2827
      %2829 = vrot.lane.b32.xlu0 %v2645, 48
      %v2830 = vpop.permute.xlu0 %2829
      %2831 = vrot.lane.b32.xlu0 %v2646, 48
      %v2832 = vpop.permute.xlu0 %2831
      %2833 = vrot.lane.b32.xlu0 %v2647, 48
      %v2834 = vpop.permute.xlu0 %2833
      %2835 = vrot.lane.b32.xlu0 %v2648, 48
      %v2836 = vpop.permute.xlu0 %2835
      %2837 = vrot.lane.b32.xlu0 %v2649, 48
      %v2838 = vpop.permute.xlu0 %2837
      %2839 = vrot.lane.b32.xlu0 %v2650, 48
      %v2840 = vpop.permute.xlu0 %2839
      %2841 = vrot.lane.b32.xlu0 %v2651, 48
      %v2842 = vpop.permute.xlu0 %2841
      %2843 = vrot.lane.b32.xlu0 %v2652, 48
      %v2844 = vpop.permute.xlu0 %2843
      %vm2909 = vcmask 458112
      %2910 = vst.msk [vmem:[#allocation4] sm:$0xff] %vm2909, %v2718
      %2911 = vst.msk [vmem:[#allocation4 + $0x8] sm:$0xff] %vm2909, %v2720
      %2912 = vst.msk [vmem:[#allocation4 + $0x10] sm:$0xff] %vm2909, %v2722
      %2913 = vst.msk [vmem:[#allocation4 + $0x18] sm:$0xff] %vm2909, %v2724
      %2914 = vst.msk [vmem:[#allocation4 + $0x20] sm:$0xff] %vm2909, %v2726
      %2915 = vst.msk [vmem:[#allocation4 + $0x28] sm:$0xff] %vm2909, %v2728
      %2916 = vst.msk [vmem:[#allocation4 + $0x30] sm:$0xff] %vm2909, %v2730
      %2917 = vst.msk [vmem:[#allocation4 + $0x38] sm:$0xff] %vm2909, %v2732
      %2918 = vst.msk [vmem:[#allocation4 + $0x40] sm:$0xff] %vm2909, %v2734
      %2919 = vst.msk [vmem:[#allocation4 + $0x48] sm:$0xff] %vm2909, %v2736
      %2920 = vst.msk [vmem:[#allocation4 + $0x50] sm:$0xff] %vm2909, %v2738
      %2921 = vst.msk [vmem:[#allocation4 + $0x58] sm:$0xff] %vm2909, %v2740
      %2922 = vst.msk [vmem:[#allocation4 + $0x60] sm:$0xff] %vm2909, %v2742
      %2923 = vst.msk [vmem:[#allocation4 + $0x68] sm:$0xff] %vm2909, %v2744
      %2924 = vst.msk [vmem:[#allocation4 + $0x70] sm:$0xff] %vm2909, %v2746
      %2925 = vst.msk [vmem:[#allocation4 + $0x78] sm:$0xff] %vm2909, %v2748
      %2926 = vst.msk [vmem:[#allocation4 + $0x80] sm:$0xff] %vm2909, %v2750
      %2927 = vst.msk [vmem:[#allocation4 + $0x88] sm:$0xff] %vm2909, %v2752
      %2928 = vst.msk [vmem:[#allocation4 + $0x90] sm:$0xff] %vm2909, %v2754
      %2929 = vst.msk [vmem:[#allocation4 + $0x98] sm:$0xff] %vm2909, %v2756
      %2930 = vst.msk [vmem:[#allocation4 + $0xa0] sm:$0xff] %vm2909, %v2758
      %2931 = vst.msk [vmem:[#allocation4 + $0xa8] sm:$0xff] %vm2909, %v2760
      %2932 = vst.msk [vmem:[#allocation4 + $0xb0] sm:$0xff] %vm2909, %v2762
      %2933 = vst.msk [vmem:[#allocation4 + $0xb8] sm:$0xff] %vm2909, %v2764
      %2934 = vst.msk [vmem:[#allocation4 + $0xc0] sm:$0xff] %vm2909, %v2766
      %2935 = vst.msk [vmem:[#allocation4 + $0xc8] sm:$0xff] %vm2909, %v2768
      %2936 = vst.msk [vmem:[#allocation4 + $0xd0] sm:$0xff] %vm2909, %v2770
      %2937 = vst.msk [vmem:[#allocation4 + $0xd8] sm:$0xff] %vm2909, %v2772
      %2938 = vst.msk [vmem:[#allocation4 + $0xe0] sm:$0xff] %vm2909, %v2774
      %2939 = vst.msk [vmem:[#allocation4 + $0xe8] sm:$0xff] %vm2909, %v2776
      %2940 = vst.msk [vmem:[#allocation4 + $0xf0] sm:$0xff] %vm2909, %v2778
      %2941 = vst.msk [vmem:[#allocation4 + $0xf8] sm:$0xff] %vm2909, %v2780
      %2942 = vst.msk [vmem:[#allocation4 + $0x100] sm:$0xff] %vm2909, %v2782
      %2943 = vst.msk [vmem:[#allocation4 + $0x108] sm:$0xff] %vm2909, %v2784
      %2944 = vst.msk [vmem:[#allocation4 + $0x110] sm:$0xff] %vm2909, %v2786
      %2945 = vst.msk [vmem:[#allocation4 + $0x118] sm:$0xff] %vm2909, %v2788
      %2946 = vst.msk [vmem:[#allocation4 + $0x120] sm:$0xff] %vm2909, %v2790
      %2947 = vst.msk [vmem:[#allocation4 + $0x128] sm:$0xff] %vm2909, %v2792
      %2948 = vst.msk [vmem:[#allocation4 + $0x130] sm:$0xff] %vm2909, %v2794
      %2949 = vst.msk [vmem:[#allocation4 + $0x138] sm:$0xff] %vm2909, %v2796
      %2950 = vst.msk [vmem:[#allocation4 + $0x140] sm:$0xff] %vm2909, %v2798
      %2951 = vst.msk [vmem:[#allocation4 + $0x148] sm:$0xff] %vm2909, %v2800
      %2952 = vst.msk [vmem:[#allocation4 + $0x150] sm:$0xff] %vm2909, %v2802
      %2953 = vst.msk [vmem:[#allocation4 + $0x158] sm:$0xff] %vm2909, %v2804
      %2954 = vst.msk [vmem:[#allocation4 + $0x160] sm:$0xff] %vm2909, %v2806
      %2955 = vst.msk [vmem:[#allocation4 + $0x168] sm:$0xff] %vm2909, %v2808
      %2956 = vst.msk [vmem:[#allocation4 + $0x170] sm:$0xff] %vm2909, %v2810
      %2957 = vst.msk [vmem:[#allocation4 + $0x178] sm:$0xff] %vm2909, %v2812
      %2958 = vst.msk [vmem:[#allocation4 + $0x180] sm:$0xff] %vm2909, %v2814
      %2959 = vst.msk [vmem:[#allocation4 + $0x188] sm:$0xff] %vm2909, %v2816
      %2960 = vst.msk [vmem:[#allocation4 + $0x190] sm:$0xff] %vm2909, %v2818
      %2961 = vst.msk [vmem:[#allocation4 + $0x198] sm:$0xff] %vm2909, %v2820
      %2962 = vst.msk [vmem:[#allocation4 + $0x1a0] sm:$0xff] %vm2909, %v2822
      %2963 = vst.msk [vmem:[#allocation4 + $0x1a8] sm:$0xff] %vm2909, %v2824
      %2964 = vst.msk [vmem:[#allocation4 + $0x1b0] sm:$0xff] %vm2909, %v2826
      %2965 = vst.msk [vmem:[#allocation4 + $0x1b8] sm:$0xff] %vm2909, %v2828
      %2966 = vst.msk [vmem:[#allocation4 + $0x1c0] sm:$0xff] %vm2909, %v2830
      %2967 = vst.msk [vmem:[#allocation4 + $0x1c8] sm:$0xff] %vm2909, %v2832
      %2968 = vst.msk [vmem:[#allocation4 + $0x1d0] sm:$0xff] %vm2909, %v2834
      %2969 = vst.msk [vmem:[#allocation4 + $0x1d8] sm:$0xff] %vm2909, %v2836
      %2970 = vst.msk [vmem:[#allocation4 + $0x1e0] sm:$0xff] %vm2909, %v2838
      %2971 = vst.msk [vmem:[#allocation4 + $0x1e8] sm:$0xff] %vm2909, %v2840
      %2972 = vst.msk [vmem:[#allocation4 + $0x1f0] sm:$0xff] %vm2909, %v2842
      %2973 = vst.msk [vmem:[#allocation4 + $0x1f8] sm:$0xff] %vm2909, %v2844
      %v2974 = vld [vmem:[%s2588 + $0x1] sm:$0xff]
      %v2975 = vld [vmem:[%s2588 + $0x9] sm:$0xff]
      %v2976 = vld [vmem:[%s2588 + $0x19] sm:$0xff]
      %v2977 = vld [vmem:[%s2588 + $0x21] sm:$0xff]
      %v2978 = vld [vmem:[%s2588 + $0x31] sm:$0xff]
      %v2979 = vld [vmem:[%s2588 + $0x39] sm:$0xff]
      %v2980 = vld [vmem:[%s2588 + $0x49] sm:$0xff]
      %v2981 = vld [vmem:[%s2588 + $0x51] sm:$0xff]
      %v2982 = vld [vmem:[%s2588 + $0x61] sm:$0xff]
      %v2983 = vld [vmem:[%s2588 + $0x69] sm:$0xff]
      %v2984 = vld [vmem:[%s2588 + $0x79] sm:$0xff]
      %v2985 = vld [vmem:[%s2588 + $0x81] sm:$0xff]
      %v2986 = vld [vmem:[%s2588 + $0x91] sm:$0xff]
      %v2987 = vld [vmem:[%s2588 + $0x99] sm:$0xff]
      %v2988 = vld [vmem:[%s2588 + $0xa9] sm:$0xff]
      %v2989 = vld [vmem:[%s2588 + $0xb1] sm:$0xff]
      %v2990 = vld [vmem:[%s2588 + $0xc1] sm:$0xff]
      %v2991 = vld [vmem:[%s2588 + $0xc9] sm:$0xff]
      %v2992 = vld [vmem:[%s2588 + $0xd9] sm:$0xff]
      %v2993 = vld [vmem:[%s2588 + $0xe1] sm:$0xff]
      %v2994 = vld [vmem:[%s2588 + $0xf1] sm:$0xff]
      %v2995 = vld [vmem:[%s2588 + $0xf9] sm:$0xff]
      %v2996 = vld [vmem:[%s2588 + $0x109] sm:$0xff]
      %v2997 = vld [vmem:[%s2588 + $0x111] sm:$0xff]
      %v2998 = vld [vmem:[%s2588 + $0x121] sm:$0xff]
      %v2999 = vld [vmem:[%s2588 + $0x129] sm:$0xff]
      %v3000 = vld [vmem:[%s2588 + $0x139] sm:$0xff]
      %v3001 = vld [vmem:[%s2588 + $0x141] sm:$0xff]
      %v3002 = vld [vmem:[%s2588 + $0x151] sm:$0xff]
      %v3003 = vld [vmem:[%s2588 + $0x159] sm:$0xff]
      %v3004 = vld [vmem:[%s2588 + $0x169] sm:$0xff]
      %v3005 = vld [vmem:[%s2588 + $0x171] sm:$0xff]
      %v3006 = vld [vmem:[%s2588 + $0x1b1] sm:$0xff]
      %v3007 = vld [vmem:[%s2588 + $0x1b9] sm:$0xff]
      %v3008 = vld [vmem:[%s2588 + $0x1c9] sm:$0xff]
      %v3009 = vld [vmem:[%s2588 + $0x1d1] sm:$0xff]
      %v3010 = vld [vmem:[%s2588 + $0x1e1] sm:$0xff]
      %v3011 = vld [vmem:[%s2588 + $0x1e9] sm:$0xff]
      %v3012 = vld [vmem:[%s2588 + $0x1f9] sm:$0xff]
      %v3013 = vld [vmem:[%s2588 + $0x201] sm:$0xff]
      %v3014 = vld [vmem:[%s2588 + $0x211] sm:$0xff]
      %v3015 = vld [vmem:[%s2588 + $0x219] sm:$0xff]
      %v3016 = vld [vmem:[%s2588 + $0x229] sm:$0xff]
      %v3017 = vld [vmem:[%s2588 + $0x231] sm:$0xff]
      %v3018 = vld [vmem:[%s2588 + $0x241] sm:$0xff]
      %v3019 = vld [vmem:[%s2588 + $0x249] sm:$0xff]
      %v3020 = vld [vmem:[%s2588 + $0x259] sm:$0xff]
      %v3021 = vld [vmem:[%s2588 + $0x261] sm:$0xff]
      %v3022 = vld [vmem:[%s2588 + $0x271] sm:$0xff]
      %v3023 = vld [vmem:[%s2588 + $0x279] sm:$0xff]
      %v3024 = vld [vmem:[%s2588 + $0x289] sm:$0xff]
      %v3025 = vld [vmem:[%s2588 + $0x291] sm:$0xff]
      %v3026 = vld [vmem:[%s2588 + $0x2a1] sm:$0xff]
      %v3027 = vld [vmem:[%s2588 + $0x2a9] sm:$0xff]
      %v3028 = vld [vmem:[%s2588 + $0x2b9] sm:$0xff]
      %v3029 = vld [vmem:[%s2588 + $0x2c1] sm:$0xff]
      %v3030 = vld [vmem:[%s2588 + $0x2d1] sm:$0xff]
      %v3031 = vld [vmem:[%s2588 + $0x2d9] sm:$0xff]
      %v3032 = vld [vmem:[%s2588 + $0x2e9] sm:$0xff]
      %v3033 = vld [vmem:[%s2588 + $0x2f1] sm:$0xff]
      %v3034 = vld [vmem:[%s2588 + $0x301] sm:$0xff]
      %v3035 = vld [vmem:[%s2588 + $0x309] sm:$0xff]
      %v3036 = vld [vmem:[%s2588 + $0x319] sm:$0xff]
      %v3037 = vld [vmem:[%s2588 + $0x321] sm:$0xff]
      %3102 = vrot.lane.b32.xlu0 %v2974, 56
      %v3103 = vpop.permute.xlu0 %3102
      %3104 = vrot.lane.b32.xlu0 %v2975, 56
      %v3105 = vpop.permute.xlu0 %3104
      %3106 = vrot.lane.b32.xlu0 %v2976, 56
      %v3107 = vpop.permute.xlu0 %3106
      %3108 = vrot.lane.b32.xlu0 %v2977, 56
      %v3109 = vpop.permute.xlu0 %3108
      %3110 = vrot.lane.b32.xlu0 %v2978, 56
      %v3111 = vpop.permute.xlu0 %3110
      %3112 = vrot.lane.b32.xlu0 %v2979, 56
      %v3113 = vpop.permute.xlu0 %3112
      %3114 = vrot.lane.b32.xlu0 %v2980, 56
      %v3115 = vpop.permute.xlu0 %3114
      %3116 = vrot.lane.b32.xlu0 %v2981, 56
      %v3117 = vpop.permute.xlu0 %3116
      %3118 = vrot.lane.b32.xlu0 %v2982, 56
      %v3119 = vpop.permute.xlu0 %3118
      %3120 = vrot.lane.b32.xlu0 %v2983, 56
      %v3121 = vpop.permute.xlu0 %3120
      %3122 = vrot.lane.b32.xlu0 %v2984, 56
      %v3123 = vpop.permute.xlu0 %3122
      %3124 = vrot.lane.b32.xlu0 %v2985, 56
      %v3125 = vpop.permute.xlu0 %3124
      %3126 = vrot.lane.b32.xlu0 %v2986, 56
      %v3127 = vpop.permute.xlu0 %3126
      %3128 = vrot.lane.b32.xlu0 %v2987, 56
      %v3129 = vpop.permute.xlu0 %3128
      %3130 = vrot.lane.b32.xlu0 %v2988, 56
      %v3131 = vpop.permute.xlu0 %3130
      %3132 = vrot.lane.b32.xlu0 %v2989, 56
      %v3133 = vpop.permute.xlu0 %3132
      %3134 = vrot.lane.b32.xlu0 %v2990, 56
      %v3135 = vpop.permute.xlu0 %3134
      %3136 = vrot.lane.b32.xlu0 %v2991, 56
      %v3137 = vpop.permute.xlu0 %3136
      %3138 = vrot.lane.b32.xlu0 %v2992, 56
      %v3139 = vpop.permute.xlu0 %3138
      %3140 = vrot.lane.b32.xlu0 %v2993, 56
      %v3141 = vpop.permute.xlu0 %3140
      %3142 = vrot.lane.b32.xlu0 %v2994, 56
      %v3143 = vpop.permute.xlu0 %3142
      %3144 = vrot.lane.b32.xlu0 %v2995, 56
      %v3145 = vpop.permute.xlu0 %3144
      %3146 = vrot.lane.b32.xlu0 %v2996, 56
      %v3147 = vpop.permute.xlu0 %3146
      %3148 = vrot.lane.b32.xlu0 %v2997, 56
      %v3149 = vpop.permute.xlu0 %3148
      %3150 = vrot.lane.b32.xlu0 %v2998, 56
      %v3151 = vpop.permute.xlu0 %3150
      %3152 = vrot.lane.b32.xlu0 %v2999, 56
      %v3153 = vpop.permute.xlu0 %3152
      %3154 = vrot.lane.b32.xlu0 %v3000, 56
      %v3155 = vpop.permute.xlu0 %3154
      %3156 = vrot.lane.b32.xlu0 %v3001, 56
      %v3157 = vpop.permute.xlu0 %3156
      %3158 = vrot.lane.b32.xlu0 %v3002, 56
      %v3159 = vpop.permute.xlu0 %3158
      %3160 = vrot.lane.b32.xlu0 %v3003, 56
      %v3161 = vpop.permute.xlu0 %3160
      %3162 = vrot.lane.b32.xlu0 %v3004, 56
      %v3163 = vpop.permute.xlu0 %3162
      %3164 = vrot.lane.b32.xlu0 %v3005, 56
      %v3165 = vpop.permute.xlu0 %3164
      %3166 = vrot.lane.b32.xlu0 %v3006, 56
      %v3167 = vpop.permute.xlu0 %3166
      %3168 = vrot.lane.b32.xlu0 %v3007, 56
      %v3169 = vpop.permute.xlu0 %3168
      %3170 = vrot.lane.b32.xlu0 %v3008, 56
      %v3171 = vpop.permute.xlu0 %3170
      %3172 = vrot.lane.b32.xlu0 %v3009, 56
      %v3173 = vpop.permute.xlu0 %3172
      %3174 = vrot.lane.b32.xlu0 %v3010, 56
      %v3175 = vpop.permute.xlu0 %3174
      %3176 = vrot.lane.b32.xlu0 %v3011, 56
      %v3177 = vpop.permute.xlu0 %3176
      %3178 = vrot.lane.b32.xlu0 %v3012, 56
      %v3179 = vpop.permute.xlu0 %3178
      %3180 = vrot.lane.b32.xlu0 %v3013, 56
      %v3181 = vpop.permute.xlu0 %3180
      %3182 = vrot.lane.b32.xlu0 %v3014, 56
      %v3183 = vpop.permute.xlu0 %3182
      %3184 = vrot.lane.b32.xlu0 %v3015, 56
      %v3185 = vpop.permute.xlu0 %3184
      %3186 = vrot.lane.b32.xlu0 %v3016, 56
      %v3187 = vpop.permute.xlu0 %3186
      %3188 = vrot.lane.b32.xlu0 %v3017, 56
      %v3189 = vpop.permute.xlu0 %3188
      %3190 = vrot.lane.b32.xlu0 %v3018, 56
      %v3191 = vpop.permute.xlu0 %3190
      %3192 = vrot.lane.b32.xlu0 %v3019, 56
      %v3193 = vpop.permute.xlu0 %3192
      %3194 = vrot.lane.b32.xlu0 %v3020, 56
      %v3195 = vpop.permute.xlu0 %3194
      %3196 = vrot.lane.b32.xlu0 %v3021, 56
      %v3197 = vpop.permute.xlu0 %3196
      %3198 = vrot.lane.b32.xlu0 %v3022, 56
      %v3199 = vpop.permute.xlu0 %3198
      %3200 = vrot.lane.b32.xlu0 %v3023, 56
      %v3201 = vpop.permute.xlu0 %3200
      %3202 = vrot.lane.b32.xlu0 %v3024, 56
      %v3203 = vpop.permute.xlu0 %3202
      %3204 = vrot.lane.b32.xlu0 %v3025, 56
      %v3205 = vpop.permute.xlu0 %3204
      %3206 = vrot.lane.b32.xlu0 %v3026, 56
      %v3207 = vpop.permute.xlu0 %3206
      %3208 = vrot.lane.b32.xlu0 %v3027, 56
      %v3209 = vpop.permute.xlu0 %3208
      %3210 = vrot.lane.b32.xlu0 %v3028, 56
      %v3211 = vpop.permute.xlu0 %3210
      %3212 = vrot.lane.b32.xlu0 %v3029, 56
      %v3213 = vpop.permute.xlu0 %3212
      %3214 = vrot.lane.b32.xlu0 %v3030, 56
      %v3215 = vpop.permute.xlu0 %3214
      %3216 = vrot.lane.b32.xlu0 %v3031, 56
      %v3217 = vpop.permute.xlu0 %3216
      %3218 = vrot.lane.b32.xlu0 %v3032, 56
      %v3219 = vpop.permute.xlu0 %3218
      %3220 = vrot.lane.b32.xlu0 %v3033, 56
      %v3221 = vpop.permute.xlu0 %3220
      %3222 = vrot.lane.b32.xlu0 %v3034, 56
      %v3223 = vpop.permute.xlu0 %3222
      %3224 = vrot.lane.b32.xlu0 %v3035, 56
      %v3225 = vpop.permute.xlu0 %3224
      %3226 = vrot.lane.b32.xlu0 %v3036, 56
      %v3227 = vpop.permute.xlu0 %3226
      %3228 = vrot.lane.b32.xlu0 %v3037, 56
      %v3229 = vpop.permute.xlu0 %3228
      %vm3294 = vcmask 523712
      %3295 = vst.msk [vmem:[#allocation4] sm:$0xff] %vm3294, %v3103
      %3296 = vst.msk [vmem:[#allocation4 + $0x8] sm:$0xff] %vm3294, %v3105
      %3297 = vst.msk [vmem:[#allocation4 + $0x10] sm:$0xff] %vm3294, %v3107
      %3298 = vst.msk [vmem:[#allocation4 + $0x18] sm:$0xff] %vm3294, %v3109
      %3299 = vst.msk [vmem:[#allocation4 + $0x20] sm:$0xff] %vm3294, %v3111
      %3300 = vst.msk [vmem:[#allocation4 + $0x28] sm:$0xff] %vm3294, %v3113
      %3301 = vst.msk [vmem:[#allocation4 + $0x30] sm:$0xff] %vm3294, %v3115
      %3302 = vst.msk [vmem:[#allocation4 + $0x38] sm:$0xff] %vm3294, %v3117
      %3303 = vst.msk [vmem:[#allocation4 + $0x40] sm:$0xff] %vm3294, %v3119
      %3304 = vst.msk [vmem:[#allocation4 + $0x48] sm:$0xff] %vm3294, %v3121
      %3305 = vst.msk [vmem:[#allocation4 + $0x50] sm:$0xff] %vm3294, %v3123
      %3306 = vst.msk [vmem:[#allocation4 + $0x58] sm:$0xff] %vm3294, %v3125
      %3307 = vst.msk [vmem:[#allocation4 + $0x60] sm:$0xff] %vm3294, %v3127
      %3308 = vst.msk [vmem:[#allocation4 + $0x68] sm:$0xff] %vm3294, %v3129
      %3309 = vst.msk [vmem:[#allocation4 + $0x70] sm:$0xff] %vm3294, %v3131
      %3310 = vst.msk [vmem:[#allocation4 + $0x78] sm:$0xff] %vm3294, %v3133
      %3311 = vst.msk [vmem:[#allocation4 + $0x80] sm:$0xff] %vm3294, %v3135
      %3312 = vst.msk [vmem:[#allocation4 + $0x88] sm:$0xff] %vm3294, %v3137
      %3313 = vst.msk [vmem:[#allocation4 + $0x90] sm:$0xff] %vm3294, %v3139
      %3314 = vst.msk [vmem:[#allocation4 + $0x98] sm:$0xff] %vm3294, %v3141
      %3315 = vst.msk [vmem:[#allocation4 + $0xa0] sm:$0xff] %vm3294, %v3143
      %3316 = vst.msk [vmem:[#allocation4 + $0xa8] sm:$0xff] %vm3294, %v3145
      %3317 = vst.msk [vmem:[#allocation4 + $0xb0] sm:$0xff] %vm3294, %v3147
      %3318 = vst.msk [vmem:[#allocation4 + $0xb8] sm:$0xff] %vm3294, %v3149
      %3319 = vst.msk [vmem:[#allocation4 + $0xc0] sm:$0xff] %vm3294, %v3151
      %3320 = vst.msk [vmem:[#allocation4 + $0xc8] sm:$0xff] %vm3294, %v3153
      %3321 = vst.msk [vmem:[#allocation4 + $0xd0] sm:$0xff] %vm3294, %v3155
      %3322 = vst.msk [vmem:[#allocation4 + $0xd8] sm:$0xff] %vm3294, %v3157
      %3323 = vst.msk [vmem:[#allocation4 + $0xe0] sm:$0xff] %vm3294, %v3159
      %3324 = vst.msk [vmem:[#allocation4 + $0xe8] sm:$0xff] %vm3294, %v3161
      %3325 = vst.msk [vmem:[#allocation4 + $0xf0] sm:$0xff] %vm3294, %v3163
      %3326 = vst.msk [vmem:[#allocation4 + $0xf8] sm:$0xff] %vm3294, %v3165
      %3327 = vst.msk [vmem:[#allocation4 + $0x100] sm:$0xff] %vm3294, %v3167
      %3328 = vst.msk [vmem:[#allocation4 + $0x108] sm:$0xff] %vm3294, %v3169
      %3329 = vst.msk [vmem:[#allocation4 + $0x110] sm:$0xff] %vm3294, %v3171
      %3330 = vst.msk [vmem:[#allocation4 + $0x118] sm:$0xff] %vm3294, %v3173
      %3331 = vst.msk [vmem:[#allocation4 + $0x120] sm:$0xff] %vm3294, %v3175
      %3332 = vst.msk [vmem:[#allocation4 + $0x128] sm:$0xff] %vm3294, %v3177
      %3333 = vst.msk [vmem:[#allocation4 + $0x130] sm:$0xff] %vm3294, %v3179
      %3334 = vst.msk [vmem:[#allocation4 + $0x138] sm:$0xff] %vm3294, %v3181
      %3335 = vst.msk [vmem:[#allocation4 + $0x140] sm:$0xff] %vm3294, %v3183
      %3336 = vst.msk [vmem:[#allocation4 + $0x148] sm:$0xff] %vm3294, %v3185
      %3337 = vst.msk [vmem:[#allocation4 + $0x150] sm:$0xff] %vm3294, %v3187
      %3338 = vst.msk [vmem:[#allocation4 + $0x158] sm:$0xff] %vm3294, %v3189
      %3339 = vst.msk [vmem:[#allocation4 + $0x160] sm:$0xff] %vm3294, %v3191
      %3340 = vst.msk [vmem:[#allocation4 + $0x168] sm:$0xff] %vm3294, %v3193
      %3341 = vst.msk [vmem:[#allocation4 + $0x170] sm:$0xff] %vm3294, %v3195
      %3342 = vst.msk [vmem:[#allocation4 + $0x178] sm:$0xff] %vm3294, %v3197
      %3343 = vst.msk [vmem:[#allocation4 + $0x180] sm:$0xff] %vm3294, %v3199
      %3344 = vst.msk [vmem:[#allocation4 + $0x188] sm:$0xff] %vm3294, %v3201
      %3345 = vst.msk [vmem:[#allocation4 + $0x190] sm:$0xff] %vm3294, %v3203
      %3346 = vst.msk [vmem:[#allocation4 + $0x198] sm:$0xff] %vm3294, %v3205
      %3347 = vst.msk [vmem:[#allocation4 + $0x1a0] sm:$0xff] %vm3294, %v3207
      %3348 = vst.msk [vmem:[#allocation4 + $0x1a8] sm:$0xff] %vm3294, %v3209
      %3349 = vst.msk [vmem:[#allocation4 + $0x1b0] sm:$0xff] %vm3294, %v3211
      %3350 = vst.msk [vmem:[#allocation4 + $0x1b8] sm:$0xff] %vm3294, %v3213
      %3351 = vst.msk [vmem:[#allocation4 + $0x1c0] sm:$0xff] %vm3294, %v3215
      %3352 = vst.msk [vmem:[#allocation4 + $0x1c8] sm:$0xff] %vm3294, %v3217
      %3353 = vst.msk [vmem:[#allocation4 + $0x1d0] sm:$0xff] %vm3294, %v3219
      %3354 = vst.msk [vmem:[#allocation4 + $0x1d8] sm:$0xff] %vm3294, %v3221
      %3355 = vst.msk [vmem:[#allocation4 + $0x1e0] sm:$0xff] %vm3294, %v3223
      %3356 = vst.msk [vmem:[#allocation4 + $0x1e8] sm:$0xff] %vm3294, %v3225
      %3357 = vst.msk [vmem:[#allocation4 + $0x1f0] sm:$0xff] %vm3294, %v3227
      %3358 = vst.msk [vmem:[#allocation4 + $0x1f8] sm:$0xff] %vm3294, %v3229
      %v3359 = vld [vmem:[%s2588 + $0x2] sm:$0xff]
      %v3360 = vld [vmem:[%s2588 + $0xa] sm:$0xff]
      %v3361 = vld [vmem:[%s2588 + $0x1a] sm:$0xff]
      %v3362 = vld [vmem:[%s2588 + $0x22] sm:$0xff]
      %v3363 = vld [vmem:[%s2588 + $0x32] sm:$0xff]
      %v3364 = vld [vmem:[%s2588 + $0x3a] sm:$0xff]
      %v3365 = vld [vmem:[%s2588 + $0x4a] sm:$0xff]
      %v3366 = vld [vmem:[%s2588 + $0x52] sm:$0xff]
      %v3367 = vld [vmem:[%s2588 + $0x62] sm:$0xff]
      %v3368 = vld [vmem:[%s2588 + $0x6a] sm:$0xff]
      %v3369 = vld [vmem:[%s2588 + $0x7a] sm:$0xff]
      %v3370 = vld [vmem:[%s2588 + $0x82] sm:$0xff]
      %v3371 = vld [vmem:[%s2588 + $0x92] sm:$0xff]
      %v3372 = vld [vmem:[%s2588 + $0x9a] sm:$0xff]
      %v3373 = vld [vmem:[%s2588 + $0xaa] sm:$0xff]
      %v3374 = vld [vmem:[%s2588 + $0xb2] sm:$0xff]
      %v3375 = vld [vmem:[%s2588 + $0xc2] sm:$0xff]
      %v3376 = vld [vmem:[%s2588 + $0xca] sm:$0xff]
      %v3377 = vld [vmem:[%s2588 + $0xda] sm:$0xff]
      %v3378 = vld [vmem:[%s2588 + $0xe2] sm:$0xff]
      %v3379 = vld [vmem:[%s2588 + $0xf2] sm:$0xff]
      %v3380 = vld [vmem:[%s2588 + $0xfa] sm:$0xff]
      %v3381 = vld [vmem:[%s2588 + $0x10a] sm:$0xff]
      %v3382 = vld [vmem:[%s2588 + $0x112] sm:$0xff]
      %v3383 = vld [vmem:[%s2588 + $0x122] sm:$0xff]
      %v3384 = vld [vmem:[%s2588 + $0x12a] sm:$0xff]
      %v3385 = vld [vmem:[%s2588 + $0x13a] sm:$0xff]
      %v3386 = vld [vmem:[%s2588 + $0x142] sm:$0xff]
      %v3387 = vld [vmem:[%s2588 + $0x152] sm:$0xff]
      %v3388 = vld [vmem:[%s2588 + $0x15a] sm:$0xff]
      %v3389 = vld [vmem:[%s2588 + $0x16a] sm:$0xff]
      %v3390 = vld [vmem:[%s2588 + $0x172] sm:$0xff]
      %v3391 = vld [vmem:[%s2588 + $0x1b2] sm:$0xff]
      %v3392 = vld [vmem:[%s2588 + $0x1ba] sm:$0xff]
      %v3393 = vld [vmem:[%s2588 + $0x1ca] sm:$0xff]
      %v3394 = vld [vmem:[%s2588 + $0x1d2] sm:$0xff]
      %v3395 = vld [vmem:[%s2588 + $0x1e2] sm:$0xff]
      %v3396 = vld [vmem:[%s2588 + $0x1ea] sm:$0xff]
      %v3397 = vld [vmem:[%s2588 + $0x1fa] sm:$0xff]
      %v3398 = vld [vmem:[%s2588 + $0x202] sm:$0xff]
      %v3399 = vld [vmem:[%s2588 + $0x212] sm:$0xff]
      %v3400 = vld [vmem:[%s2588 + $0x21a] sm:$0xff]
      %v3401 = vld [vmem:[%s2588 + $0x22a] sm:$0xff]
      %v3402 = vld [vmem:[%s2588 + $0x232] sm:$0xff]
      %v3403 = vld [vmem:[%s2588 + $0x242] sm:$0xff]
      %v3404 = vld [vmem:[%s2588 + $0x24a] sm:$0xff]
      %v3405 = vld [vmem:[%s2588 + $0x25a] sm:$0xff]
      %v3406 = vld [vmem:[%s2588 + $0x262] sm:$0xff]
      %v3407 = vld [vmem:[%s2588 + $0x272] sm:$0xff]
      %v3408 = vld [vmem:[%s2588 + $0x27a] sm:$0xff]
      %v3409 = vld [vmem:[%s2588 + $0x28a] sm:$0xff]
      %v3410 = vld [vmem:[%s2588 + $0x292] sm:$0xff]
      %v3411 = vld [vmem:[%s2588 + $0x2a2] sm:$0xff]
      %v3412 = vld [vmem:[%s2588 + $0x2aa] sm:$0xff]
      %v3413 = vld [vmem:[%s2588 + $0x2ba] sm:$0xff]
      %v3414 = vld [vmem:[%s2588 + $0x2c2] sm:$0xff]
      %v3415 = vld [vmem:[%s2588 + $0x2d2] sm:$0xff]
      %v3416 = vld [vmem:[%s2588 + $0x2da] sm:$0xff]
      %v3417 = vld [vmem:[%s2588 + $0x2ea] sm:$0xff]
      %v3418 = vld [vmem:[%s2588 + $0x2f2] sm:$0xff]
      %v3419 = vld [vmem:[%s2588 + $0x302] sm:$0xff]
      %v3420 = vld [vmem:[%s2588 + $0x30a] sm:$0xff]
      %v3421 = vld [vmem:[%s2588 + $0x31a] sm:$0xff]
      %v3422 = vld [vmem:[%s2588 + $0x322] sm:$0xff]
      %3487 = vrot.lane.b32.xlu0 %v3359, 64
      %v3488 = vpop.permute.xlu0 %3487
      %3489 = vrot.lane.b32.xlu0 %v3360, 64
      %v3490 = vpop.permute.xlu0 %3489
      %3491 = vrot.lane.b32.xlu0 %v3361, 64
      %v3492 = vpop.permute.xlu0 %3491
      %3493 = vrot.lane.b32.xlu0 %v3362, 64
      %v3494 = vpop.permute.xlu0 %3493
      %3495 = vrot.lane.b32.xlu0 %v3363, 64
      %v3496 = vpop.permute.xlu0 %3495
      %3497 = vrot.lane.b32.xlu0 %v3364, 64
      %v3498 = vpop.permute.xlu0 %3497
      %3499 = vrot.lane.b32.xlu0 %v3365, 64
      %v3500 = vpop.permute.xlu0 %3499
      %3501 = vrot.lane.b32.xlu0 %v3366, 64
      %v3502 = vpop.permute.xlu0 %3501
      %3503 = vrot.lane.b32.xlu0 %v3367, 64
      %v3504 = vpop.permute.xlu0 %3503
      %3505 = vrot.lane.b32.xlu0 %v3368, 64
      %v3506 = vpop.permute.xlu0 %3505
      %3507 = vrot.lane.b32.xlu0 %v3369, 64
      %v3508 = vpop.permute.xlu0 %3507
      %3509 = vrot.lane.b32.xlu0 %v3370, 64
      %v3510 = vpop.permute.xlu0 %3509
      %3511 = vrot.lane.b32.xlu0 %v3371, 64
      %v3512 = vpop.permute.xlu0 %3511
      %3513 = vrot.lane.b32.xlu0 %v3372, 64
      %v3514 = vpop.permute.xlu0 %3513
      %3515 = vrot.lane.b32.xlu0 %v3373, 64
      %v3516 = vpop.permute.xlu0 %3515
      %3517 = vrot.lane.b32.xlu0 %v3374, 64
      %v3518 = vpop.permute.xlu0 %3517
      %3519 = vrot.lane.b32.xlu0 %v3375, 64
      %v3520 = vpop.permute.xlu0 %3519
      %3521 = vrot.lane.b32.xlu0 %v3376, 64
      %v3522 = vpop.permute.xlu0 %3521
      %3523 = vrot.lane.b32.xlu0 %v3377, 64
      %v3524 = vpop.permute.xlu0 %3523
      %3525 = vrot.lane.b32.xlu0 %v3378, 64
      %v3526 = vpop.permute.xlu0 %3525
      %3527 = vrot.lane.b32.xlu0 %v3379, 64
      %v3528 = vpop.permute.xlu0 %3527
      %3529 = vrot.lane.b32.xlu0 %v3380, 64
      %v3530 = vpop.permute.xlu0 %3529
      %3531 = vrot.lane.b32.xlu0 %v3381, 64
      %v3532 = vpop.permute.xlu0 %3531
      %3533 = vrot.lane.b32.xlu0 %v3382, 64
      %v3534 = vpop.permute.xlu0 %3533
      %3535 = vrot.lane.b32.xlu0 %v3383, 64
      %v3536 = vpop.permute.xlu0 %3535
      %3537 = vrot.lane.b32.xlu0 %v3384, 64
      %v3538 = vpop.permute.xlu0 %3537
      %3539 = vrot.lane.b32.xlu0 %v3385, 64
      %v3540 = vpop.permute.xlu0 %3539
      %3541 = vrot.lane.b32.xlu0 %v3386, 64
      %v3542 = vpop.permute.xlu0 %3541
      %3543 = vrot.lane.b32.xlu0 %v3387, 64
      %v3544 = vpop.permute.xlu0 %3543
      %3545 = vrot.lane.b32.xlu0 %v3388, 64
      %v3546 = vpop.permute.xlu0 %3545
      %3547 = vrot.lane.b32.xlu0 %v3389, 64
      %v3548 = vpop.permute.xlu0 %3547
      %3549 = vrot.lane.b32.xlu0 %v3390, 64
      %v3550 = vpop.permute.xlu0 %3549
      %3551 = vrot.lane.b32.xlu0 %v3391, 64
      %v3552 = vpop.permute.xlu0 %3551
      %3553 = vrot.lane.b32.xlu0 %v3392, 64
      %v3554 = vpop.permute.xlu0 %3553
      %3555 = vrot.lane.b32.xlu0 %v3393, 64
      %v3556 = vpop.permute.xlu0 %3555
      %3557 = vrot.lane.b32.xlu0 %v3394, 64
      %v3558 = vpop.permute.xlu0 %3557
      %3559 = vrot.lane.b32.xlu0 %v3395, 64
      %v3560 = vpop.permute.xlu0 %3559
      %3561 = vrot.lane.b32.xlu0 %v3396, 64
      %v3562 = vpop.permute.xlu0 %3561
      %3563 = vrot.lane.b32.xlu0 %v3397, 64
      %v3564 = vpop.permute.xlu0 %3563
      %3565 = vrot.lane.b32.xlu0 %v3398, 64
      %v3566 = vpop.permute.xlu0 %3565
      %3567 = vrot.lane.b32.xlu0 %v3399, 64
      %v3568 = vpop.permute.xlu0 %3567
      %3569 = vrot.lane.b32.xlu0 %v3400, 64
      %v3570 = vpop.permute.xlu0 %3569
      %3571 = vrot.lane.b32.xlu0 %v3401, 64
      %v3572 = vpop.permute.xlu0 %3571
      %3573 = vrot.lane.b32.xlu0 %v3402, 64
      %v3574 = vpop.permute.xlu0 %3573
      %3575 = vrot.lane.b32.xlu0 %v3403, 64
      %v3576 = vpop.permute.xlu0 %3575
      %3577 = vrot.lane.b32.xlu0 %v3404, 64
      %v3578 = vpop.permute.xlu0 %3577
      %3579 = vrot.lane.b32.xlu0 %v3405, 64
      %v3580 = vpop.permute.xlu0 %3579
      %3581 = vrot.lane.b32.xlu0 %v3406, 64
      %v3582 = vpop.permute.xlu0 %3581
      %3583 = vrot.lane.b32.xlu0 %v3407, 64
      %v3584 = vpop.permute.xlu0 %3583
      %3585 = vrot.lane.b32.xlu0 %v3408, 64
      %v3586 = vpop.permute.xlu0 %3585
      %3587 = vrot.lane.b32.xlu0 %v3409, 64
      %v3588 = vpop.permute.xlu0 %3587
      %3589 = vrot.lane.b32.xlu0 %v3410, 64
      %v3590 = vpop.permute.xlu0 %3589
      %3591 = vrot.lane.b32.xlu0 %v3411, 64
      %v3592 = vpop.permute.xlu0 %3591
      %3593 = vrot.lane.b32.xlu0 %v3412, 64
      %v3594 = vpop.permute.xlu0 %3593
      %3595 = vrot.lane.b32.xlu0 %v3413, 64
      %v3596 = vpop.permute.xlu0 %3595
      %3597 = vrot.lane.b32.xlu0 %v3414, 64
      %v3598 = vpop.permute.xlu0 %3597
      %3599 = vrot.lane.b32.xlu0 %v3415, 64
      %v3600 = vpop.permute.xlu0 %3599
      %3601 = vrot.lane.b32.xlu0 %v3416, 64
      %v3602 = vpop.permute.xlu0 %3601
      %3603 = vrot.lane.b32.xlu0 %v3417, 64
      %v3604 = vpop.permute.xlu0 %3603
      %3605 = vrot.lane.b32.xlu0 %v3418, 64
      %v3606 = vpop.permute.xlu0 %3605
      %3607 = vrot.lane.b32.xlu0 %v3419, 64
      %v3608 = vpop.permute.xlu0 %3607
      %3609 = vrot.lane.b32.xlu0 %v3420, 64
      %v3610 = vpop.permute.xlu0 %3609
      %3611 = vrot.lane.b32.xlu0 %v3421, 64
      %v3612 = vpop.permute.xlu0 %3611
      %3613 = vrot.lane.b32.xlu0 %v3422, 64
      %v3614 = vpop.permute.xlu0 %3613
      %vm3679 = vcmask 589312
      %3680 = vst.msk [vmem:[#allocation4] sm:$0xff] %vm3679, %v3488
      %3681 = vst.msk [vmem:[#allocation4 + $0x8] sm:$0xff] %vm3679, %v3490
      %3682 = vst.msk [vmem:[#allocation4 + $0x10] sm:$0xff] %vm3679, %v3492
      %3683 = vst.msk [vmem:[#allocation4 + $0x18] sm:$0xff] %vm3679, %v3494
      %3684 = vst.msk [vmem:[#allocation4 + $0x20] sm:$0xff] %vm3679, %v3496
      %3685 = vst.msk [vmem:[#allocation4 + $0x28] sm:$0xff] %vm3679, %v3498
      %3686 = vst.msk [vmem:[#allocation4 + $0x30] sm:$0xff] %vm3679, %v3500
      %3687 = vst.msk [vmem:[#allocation4 + $0x38] sm:$0xff] %vm3679, %v3502
      %3688 = vst.msk [vmem:[#allocation4 + $0x40] sm:$0xff] %vm3679, %v3504
      %3689 = vst.msk [vmem:[#allocation4 + $0x48] sm:$0xff] %vm3679, %v3506
      %3690 = vst.msk [vmem:[#allocation4 + $0x50] sm:$0xff] %vm3679, %v3508
      %3691 = vst.msk [vmem:[#allocation4 + $0x58] sm:$0xff] %vm3679, %v3510
      %3692 = vst.msk [vmem:[#allocation4 + $0x60] sm:$0xff] %vm3679, %v3512
      %3693 = vst.msk [vmem:[#allocation4 + $0x68] sm:$0xff] %vm3679, %v3514
      %3694 = vst.msk [vmem:[#allocation4 + $0x70] sm:$0xff] %vm3679, %v3516
      %3695 = vst.msk [vmem:[#allocation4 + $0x78] sm:$0xff] %vm3679, %v3518
      %3696 = vst.msk [vmem:[#allocation4 + $0x80] sm:$0xff] %vm3679, %v3520
      %3697 = vst.msk [vmem:[#allocation4 + $0x88] sm:$0xff] %vm3679, %v3522
      %3698 = vst.msk [vmem:[#allocation4 + $0x90] sm:$0xff] %vm3679, %v3524
      %3699 = vst.msk [vmem:[#allocation4 + $0x98] sm:$0xff] %vm3679, %v3526
      %3700 = vst.msk [vmem:[#allocation4 + $0xa0] sm:$0xff] %vm3679, %v3528
      %3701 = vst.msk [vmem:[#allocation4 + $0xa8] sm:$0xff] %vm3679, %v3530
      %3702 = vst.msk [vmem:[#allocation4 + $0xb0] sm:$0xff] %vm3679, %v3532
      %3703 = vst.msk [vmem:[#allocation4 + $0xb8] sm:$0xff] %vm3679, %v3534
      %3704 = vst.msk [vmem:[#allocation4 + $0xc0] sm:$0xff] %vm3679, %v3536
      %3705 = vst.msk [vmem:[#allocation4 + $0xc8] sm:$0xff] %vm3679, %v3538
      %3706 = vst.msk [vmem:[#allocation4 + $0xd0] sm:$0xff] %vm3679, %v3540
      %3707 = vst.msk [vmem:[#allocation4 + $0xd8] sm:$0xff] %vm3679, %v3542
      %3708 = vst.msk [vmem:[#allocation4 + $0xe0] sm:$0xff] %vm3679, %v3544
      %3709 = vst.msk [vmem:[#allocation4 + $0xe8] sm:$0xff] %vm3679, %v3546
      %3710 = vst.msk [vmem:[#allocation4 + $0xf0] sm:$0xff] %vm3679, %v3548
      %3711 = vst.msk [vmem:[#allocation4 + $0xf8] sm:$0xff] %vm3679, %v3550
      %3712 = vst.msk [vmem:[#allocation4 + $0x100] sm:$0xff] %vm3679, %v3552
      %3713 = vst.msk [vmem:[#allocation4 + $0x108] sm:$0xff] %vm3679, %v3554
      %3714 = vst.msk [vmem:[#allocation4 + $0x110] sm:$0xff] %vm3679, %v3556
      %3715 = vst.msk [vmem:[#allocation4 + $0x118] sm:$0xff] %vm3679, %v3558
      %3716 = vst.msk [vmem:[#allocation4 + $0x120] sm:$0xff] %vm3679, %v3560
      %3717 = vst.msk [vmem:[#allocation4 + $0x128] sm:$0xff] %vm3679, %v3562
      %3718 = vst.msk [vmem:[#allocation4 + $0x130] sm:$0xff] %vm3679, %v3564
      %3719 = vst.msk [vmem:[#allocation4 + $0x138] sm:$0xff] %vm3679, %v3566
      %3720 = vst.msk [vmem:[#allocation4 + $0x140] sm:$0xff] %vm3679, %v3568
      %3721 = vst.msk [vmem:[#allocation4 + $0x148] sm:$0xff] %vm3679, %v3570
      %3722 = vst.msk [vmem:[#allocation4 + $0x150] sm:$0xff] %vm3679, %v3572
      %3723 = vst.msk [vmem:[#allocation4 + $0x158] sm:$0xff] %vm3679, %v3574
      %3724 = vst.msk [vmem:[#allocation4 + $0x160] sm:$0xff] %vm3679, %v3576
      %3725 = vst.msk [vmem:[#allocation4 + $0x168] sm:$0xff] %vm3679, %v3578
      %3726 = vst.msk [vmem:[#allocation4 + $0x170] sm:$0xff] %vm3679, %v3580
      %3727 = vst.msk [vmem:[#allocation4 + $0x178] sm:$0xff] %vm3679, %v3582
      %3728 = vst.msk [vmem:[#allocation4 + $0x180] sm:$0xff] %vm3679, %v3584
      %3729 = vst.msk [vmem:[#allocation4 + $0x188] sm:$0xff] %vm3679, %v3586
      %3730 = vst.msk [vmem:[#allocation4 + $0x190] sm:$0xff] %vm3679, %v3588
      %3731 = vst.msk [vmem:[#allocation4 + $0x198] sm:$0xff] %vm3679, %v3590
      %3732 = vst.msk [vmem:[#allocation4 + $0x1a0] sm:$0xff] %vm3679, %v3592
      %3733 = vst.msk [vmem:[#allocation4 + $0x1a8] sm:$0xff] %vm3679, %v3594
      %3734 = vst.msk [vmem:[#allocation4 + $0x1b0] sm:$0xff] %vm3679, %v3596
      %3735 = vst.msk [vmem:[#allocation4 + $0x1b8] sm:$0xff] %vm3679, %v3598
      %3736 = vst.msk [vmem:[#allocation4 + $0x1c0] sm:$0xff] %vm3679, %v3600
      %3737 = vst.msk [vmem:[#allocation4 + $0x1c8] sm:$0xff] %vm3679, %v3602
      %3738 = vst.msk [vmem:[#allocation4 + $0x1d0] sm:$0xff] %vm3679, %v3604
      %3739 = vst.msk [vmem:[#allocation4 + $0x1d8] sm:$0xff] %vm3679, %v3606
      %3740 = vst.msk [vmem:[#allocation4 + $0x1e0] sm:$0xff] %vm3679, %v3608
      %3741 = vst.msk [vmem:[#allocation4 + $0x1e8] sm:$0xff] %vm3679, %v3610
      %3742 = vst.msk [vmem:[#allocation4 + $0x1f0] sm:$0xff] %vm3679, %v3612
      %3743 = vst.msk [vmem:[#allocation4 + $0x1f8] sm:$0xff] %vm3679, %v3614
      %v3744 = vld [vmem:[#allocation4] sm:$0xff]
      %v3745 = vld [vmem:[#allocation4 + $0x8] sm:$0xff]
      %v3746 = vld [vmem:[#allocation4 + $0x10] sm:$0xff]
      %v3747 = vld [vmem:[#allocation4 + $0x18] sm:$0xff]
      %v3748 = vld [vmem:[#allocation4 + $0x20] sm:$0xff]
      %v3749 = vld [vmem:[#allocation4 + $0x28] sm:$0xff]
      %v3750 = vld [vmem:[#allocation4 + $0x30] sm:$0xff]
      %v3751 = vld [vmem:[#allocation4 + $0x38] sm:$0xff]
      %v3752 = vld [vmem:[#allocation4 + $0x40] sm:$0xff]
      %v3753 = vld [vmem:[#allocation4 + $0x48] sm:$0xff]
      %v3754 = vld [vmem:[#allocation4 + $0x50] sm:$0xff]
      %v3755 = vld [vmem:[#allocation4 + $0x58] sm:$0xff]
      %v3756 = vld [vmem:[#allocation4 + $0x60] sm:$0xff]
      %v3757 = vld [vmem:[#allocation4 + $0x68] sm:$0xff]
      %v3758 = vld [vmem:[#allocation4 + $0x70] sm:$0xff]
      %v3759 = vld [vmem:[#allocation4 + $0x78] sm:$0xff]
      %v3760 = vld [vmem:[#allocation4 + $0x80] sm:$0xff]
      %v3761 = vld [vmem:[#allocation4 + $0x88] sm:$0xff]
      %v3762 = vld [vmem:[#allocation4 + $0x90] sm:$0xff]
      %v3763 = vld [vmem:[#allocation4 + $0x98] sm:$0xff]
      %v3764 = vld [vmem:[#allocation4 + $0xa0] sm:$0xff]
      %v3765 = vld [vmem:[#allocation4 + $0xa8] sm:$0xff]
      %v3766 = vld [vmem:[#allocation4 + $0xb0] sm:$0xff]
      %v3767 = vld [vmem:[#allocation4 + $0xb8] sm:$0xff]
      %v3768 = vld [vmem:[#allocation4 + $0xc0] sm:$0xff]
      %v3769 = vld [vmem:[#allocation4 + $0xc8] sm:$0xff]
      %v3770 = vld [vmem:[#allocation4 + $0xd0] sm:$0xff]
      %v3771 = vld [vmem:[#allocation4 + $0xd8] sm:$0xff]
      %v3772 = vld [vmem:[#allocation4 + $0xe0] sm:$0xff]
      %v3773 = vld [vmem:[#allocation4 + $0xe8] sm:$0xff]
      %v3774 = vld [vmem:[#allocation4 + $0xf0] sm:$0xff]
      %v3775 = vld [vmem:[#allocation4 + $0xf8] sm:$0xff]
      %v3776 = vld [vmem:[#allocation4 + $0x100] sm:$0xff]
      %v3777 = vld [vmem:[#allocation4 + $0x108] sm:$0xff]
      %v3778 = vld [vmem:[#allocation4 + $0x110] sm:$0xff]
      %v3779 = vld [vmem:[#allocation4 + $0x118] sm:$0xff]
      %v3780 = vld [vmem:[#allocation4 + $0x120] sm:$0xff]
      %v3781 = vld [vmem:[#allocation4 + $0x128] sm:$0xff]
      %v3782 = vld [vmem:[#allocation4 + $0x130] sm:$0xff]
      %v3783 = vld [vmem:[#allocation4 + $0x138] sm:$0xff]
      %v3784 = vld [vmem:[#allocation4 + $0x140] sm:$0xff]
      %v3785 = vld [vmem:[#allocation4 + $0x148] sm:$0xff]
      %v3786 = vld [vmem:[#allocation4 + $0x150] sm:$0xff]
      %v3787 = vld [vmem:[#allocation4 + $0x158] sm:$0xff]
      %v3788 = vld [vmem:[#allocation4 + $0x160] sm:$0xff]
      %v3789 = vld [vmem:[#allocation4 + $0x168] sm:$0xff]
      %v3790 = vld [vmem:[#allocation4 + $0x170] sm:$0xff]
      %v3791 = vld [vmem:[#allocation4 + $0x178] sm:$0xff]
      %v3792 = vld [vmem:[#allocation4 + $0x180] sm:$0xff]
      %v3793 = vld [vmem:[#allocation4 + $0x188] sm:$0xff]
      %v3794 = vld [vmem:[#allocation4 + $0x190] sm:$0xff]
      %v3795 = vld [vmem:[#allocation4 + $0x198] sm:$0xff]
      %v3796 = vld [vmem:[#allocation4 + $0x1a0] sm:$0xff]
      %v3797 = vld [vmem:[#allocation4 + $0x1a8] sm:$0xff]
      %v3798 = vld [vmem:[#allocation4 + $0x1b0] sm:$0xff]
      %v3799 = vld [vmem:[#allocation4 + $0x1b8] sm:$0xff]
      %v3800 = vld [vmem:[#allocation4 + $0x1c0] sm:$0xff]
      %v3801 = vld [vmem:[#allocation4 + $0x1c8] sm:$0xff]
      %v3802 = vld [vmem:[#allocation4 + $0x1d0] sm:$0xff]
      %v3803 = vld [vmem:[#allocation4 + $0x1d8] sm:$0xff]
      %v3804 = vld [vmem:[#allocation4 + $0x1e0] sm:$0xff]
      %v3805 = vld [vmem:[#allocation4 + $0x1e8] sm:$0xff]
      %v3806 = vld [vmem:[#allocation4 + $0x1f0] sm:$0xff]
      %v3807 = vld [vmem:[#allocation4 + $0x1f8] sm:$0xff]
      %v3808 = vld [vmem:[%s1] sm:$0xff]
      %v3809 = vld [vmem:[%s1 + $0x8] sm:$0xff]
      %v3810 = vld [vmem:[%s1 + $0x10] sm:$0xff]
      %v3811 = vld [vmem:[%s1 + $0x18] sm:$0xff]
      %v3812 = vld [vmem:[%s1 + $0x20] sm:$0xff]
      %v3813 = vld [vmem:[%s1 + $0x28] sm:$0xff]
      %v3814 = vld [vmem:[%s1 + $0x30] sm:$0xff]
      %v3815 = vld [vmem:[%s1 + $0x38] sm:$0xff]
      %v3816 = vld [vmem:[%s1 + $0x40] sm:$0xff]
      %v3817 = vld [vmem:[%s2] sm:$0x1]
      %v3819 = vlaneseq
      %v3820 = vshrl.u32 %v3819, 7
      %v3821 = vsub.s32 0, %v3820
      %v3822 = vrot.slane %v3817, %v3821
      %vm3824 = vcmask 588800
      %v3826 = vsel %vm3824, %v3744, 0
      %v3829 = vsel %vm3824, %v3745, 0
      %v3832 = vsel %vm3824, %v3746, 0
      %v3835 = vsel %vm3824, %v3747, 0
      %v3838 = vsel %vm3824, %v3748, 0
      %v3841 = vsel %vm3824, %v3749, 0
      %v3844 = vsel %vm3824, %v3750, 0
      %v3847 = vsel %vm3824, %v3751, 0
      %v3850 = vsel %vm3824, %v3752, 0
      %v3853 = vsel %vm3824, %v3753, 0
      %v3856 = vsel %vm3824, %v3754, 0
      %v3859 = vsel %vm3824, %v3755, 0
      %v3862 = vsel %vm3824, %v3756, 0
      %v3865 = vsel %vm3824, %v3757, 0
      %v3868 = vsel %vm3824, %v3758, 0
      %v3871 = vsel %vm3824, %v3759, 0
      %v3874 = vsel %vm3824, %v3760, 0
      %v3877 = vsel %vm3824, %v3761, 0
      %v3880 = vsel %vm3824, %v3762, 0
      %v3883 = vsel %vm3824, %v3763, 0
      %v3886 = vsel %vm3824, %v3764, 0
      %v3889 = vsel %vm3824, %v3765, 0
      %v3892 = vsel %vm3824, %v3766, 0
      %v3895 = vsel %vm3824, %v3767, 0
      %v3898 = vsel %vm3824, %v3768, 0
      %v3901 = vsel %vm3824, %v3769, 0
      %v3904 = vsel %vm3824, %v3770, 0
      %v3907 = vsel %vm3824, %v3771, 0
      %v3910 = vsel %vm3824, %v3772, 0
      %v3913 = vsel %vm3824, %v3773, 0
      %v3916 = vsel %vm3824, %v3774, 0
      %v3919 = vsel %vm3824, %v3775, 0
      %v3922 = vsel %vm3824, %v3776, 0
      %v3925 = vsel %vm3824, %v3777, 0
      %v3928 = vsel %vm3824, %v3778, 0
      %v3931 = vsel %vm3824, %v3779, 0
      %v3934 = vsel %vm3824, %v3780, 0
      %v3937 = vsel %vm3824, %v3781, 0
      %v3940 = vsel %vm3824, %v3782, 0
      %v3943 = vsel %vm3824, %v3783, 0
      %v3946 = vsel %vm3824, %v3784, 0
      %v3949 = vsel %vm3824, %v3785, 0
      %v3952 = vsel %vm3824, %v3786, 0
      %v3955 = vsel %vm3824, %v3787, 0
      %v3958 = vsel %vm3824, %v3788, 0
      %v3961 = vsel %vm3824, %v3789, 0
      %v3964 = vsel %vm3824, %v3790, 0
      %v3967 = vsel %vm3824, %v3791, 0
      %v3970 = vsel %vm3824, %v3792, 0
      %v3973 = vsel %vm3824, %v3793, 0
      %v3976 = vsel %vm3824, %v3794, 0
      %v3979 = vsel %vm3824, %v3795, 0
      %v3982 = vsel %vm3824, %v3796, 0
      %v3985 = vsel %vm3824, %v3797, 0
      %v3988 = vsel %vm3824, %v3798, 0
      %v3991 = vsel %vm3824, %v3799, 0
      %v3994 = vsel %vm3824, %v3800, 0
      %v3997 = vsel %vm3824, %v3801, 0
      %v4000 = vsel %vm3824, %v3802, 0
      %v4003 = vsel %vm3824, %v3803, 0
      %v4006 = vsel %vm3824, %v3804, 0
      %v4009 = vsel %vm3824, %v3805, 0
      %v4012 = vsel %vm3824, %v3806, 0
      %v4015 = vsel %vm3824, %v3807, 0
      %4017 = vmatprep.subr.mxu0 0.0
      %4018 = vmatpush1.msra.mxu0 %v3808
      %4019 = vmatprep.subr.mxu0 0.0
      %4020 = vmatpush1.msra.mxu0 %v3809
      %4021 = vmatprep.subr.mxu0 0.0
      %4022 = vmatpush1.msra.mxu0 %v3810
      %4023 = vmatprep.subr.mxu0 0.0
      %4024 = vmatpush1.msra.mxu0 %v3811
      %4025 = vmatprep.subr.mxu0 0.0
      %4026 = vmatpush1.msra.mxu0 %v3812
      %4027 = vmatprep.subr.mxu0 0.0
      %4028 = vmatpush1.msra.mxu0 %v3813
      %4029 = vmatprep.subr.mxu0 0.0
      %4030 = vmatpush1.msra.mxu0 %v3814
      %4031 = vmatprep.subr.mxu0 0.0
      %4032 = vmatpush1.msra.mxu0 %v3815
      %4033 = vmatprep.subr.mxu0 0.0
      %4034 = vmatpush1.msra.mxu0 %v3816
      %4035 = vmatprep.subr.mxu0 0.0
      %4036 = vmatpush1.msra.mxu0 0.0
      %4037 = vmatprep.subr.mxu0 0.0
      %4038 = vmatpush1.msra.mxu0 0.0
      %4039 = vmatprep.subr.mxu0 0.0
      %4040 = vmatpush1.msra.mxu0 0.0
      %4041 = vmatprep.subr.mxu0 0.0
      %4042 = vmatpush1.msra.mxu0 0.0
      %4043 = vmatprep.subr.mxu0 0.0
      %4044 = vmatpush1.msra.mxu0 0.0
      %4045 = vmatprep.subr.mxu0 0.0
      %4046 = vmatpush1.msra.mxu0 0.0
      %4047 = vmatprep.subr.mxu0 0.0
      %4048 = vmatpush1.msra.mxu0 0.0
      %4049 = vmatprep.subr.mxu0 0.0
      %4050 = vmatpush1.msra.mxu0 0.0
      %4051 = vmatprep.subr.mxu0 0.0
      %4052 = vmatpush1.msra.mxu0 0.0
      %4053 = vmatprep.subr.mxu0 0.0
      %4054 = vmatpush1.msra.mxu0 0.0
      %4055 = vmatprep.subr.mxu0 0.0
      %4056 = vmatpush1.msra.mxu0 0.0
      %4057 = vmatprep.subr.mxu0 0.0
      %4058 = vmatpush1.msra.mxu0 0.0
      %4059 = vmatprep.subr.mxu0 0.0
      %4060 = vmatpush1.msra.mxu0 0.0
      %4061 = vmatprep.subr.mxu0 0.0
      %4062 = vmatpush1.msra.mxu0 0.0
      %4063 = vmatprep.subr.mxu0 0.0
      %4064 = vmatpush1.msra.mxu0 0.0
      %4065 = vmatprep.subr.mxu0 0.0
      %4066 = vmatpush1.msra.mxu0 0.0
      %4067 = vmatprep.subr.mxu0 0.0
      %4068 = vmatpush1.msra.mxu0 0.0
      %4069 = vmatprep.subr.mxu0 0.0
      %4070 = vmatpush1.msra.mxu0 0.0
      %4071 = vmatprep.subr.mxu0 0.0
      %4072 = vmatpush1.msra.mxu0 0.0
      %4073 = vmatprep.subr.mxu0 0.0
      %4074 = vmatpush1.msra.mxu0 0.0
      %4075 = vmatprep.subr.mxu0 0.0
      %4076 = vmatpush1.msra.mxu0 0.0
      %4077 = vmatprep.subr.mxu0 0.0
      %4078 = vmatpush1.msra.mxu0 0.0
      %4079 = vmatprep.subr.mxu0 0.0
      %4080 = vmatpush1.msra.mxu0 0.0
      %4081 = vmatprep.mubr.f32.mxu0 0.0
      %4082 = vmatmul.mubr.f32.gmra.mrb[0].mxu0 %v3826
      %v4083 = vpop.f32.mrb[0].mxu0
      %v4084 = vadd.f32 %v3822, %v4083
      %v4085 = vpop.f32.mrb[0].mxu0
      %4086 = vmatprep.mubr.f32.mxu0 0.0
      %4087 = vmatmul.mubr.f32.gmra.mrb[0].mxu0 %v3829
      %v4088 = vpop.f32.mrb[0].mxu0
      %v4089 = vadd.f32 %v3822, %v4088
      %v4090 = vpop.f32.mrb[0].mxu0
      %4091 = vmatprep.mubr.f32.mxu0 0.0
      %4092 = vmatmul.mubr.f32.gmra.mrb[0].mxu0 %v3832
      %v4093 = vpop.f32.mrb[0].mxu0
      %v4094 = vadd.f32 %v3822, %v4093
      %v4095 = vpop.f32.mrb[0].mxu0
      %4096 = vmatprep.mubr.f32.mxu0 0.0
      %4097 = vmatmul.mubr.f32.gmra.mrb[0].mxu0 %v3835
      %v4098 = vpop.f32.mrb[0].mxu0
      %v4099 = vadd.f32 %v3822, %v4098
      %v4100 = vpop.f32.mrb[0].mxu0
      %4101 = vmatprep.mubr.f32.mxu0 0.0
      %4102 = vmatmul.mubr.f32.gmra.mrb[0].mxu0 %v3838
      %v4103 = vpop.f32.mrb[0].mxu0
      %v4104 = vadd.f32 %v3822, %v4103
      %v4105 = vpop.f32.mrb[0].mxu0
      %4106 = vmatprep.mubr.f32.mxu0 0.0
      %4107 = vmatmul.mubr.f32.gmra.mrb[0].mxu0 %v3841
      %v4108 = vpop.f32.mrb[0].mxu0
      %v4109 = vadd.f32 %v3822, %v4108
      %v4110 = vpop.f32.mrb[0].mxu0
      %4111 = vmatprep.mubr.f32.mxu0 0.0
      %4112 = vmatmul.mubr.f32.gmra.mrb[0].mxu0 %v3844
      %v4113 = vpop.f32.mrb[0].mxu0
      %v4114 = vadd.f32 %v3822, %v4113
      %v4115 = vpop.f32.mrb[0].mxu0
      %4116 = vmatprep.mubr.f32.mxu0 0.0
      %4117 = vmatmul.mubr.f32.gmra.mrb[0].mxu0 %v3847
      %v4118 = vpop.f32.mrb[0].mxu0
      %v4119 = vadd.f32 %v3822, %v4118
      %v4120 = vpop.f32.mrb[0].mxu0
      %4121 = vmatprep.mubr.f32.mxu0 0.0
      %4122 = vmatmul.mubr.f32.gmra.mrb[0].mxu0 %v3850
      %v4123 = vpop.f32.mrb[0].mxu0
      %v4124 = vadd.f32 %v3822, %v4123
      %v4125 = vpop.f32.mrb[0].mxu0
      %4126 = vmatprep.mubr.f32.mxu0 0.0
      %4127 = vmatmul.mubr.f32.gmra.mrb[0].mxu0 %v3853
      %v4128 = vpop.f32.mrb[0].mxu0
      %v4129 = vadd.f32 %v3822, %v4128
      %v4130 = vpop.f32.mrb[0].mxu0
      %4131 = vmatprep.mubr.f32.mxu0 0.0
      %4132 = vmatmul.mubr.f32.gmra.mrb[0].mxu0 %v3856
      %v4133 = vpop.f32.mrb[0].mxu0
      %v4134 = vadd.f32 %v3822, %v4133
      %v4135 = vpop.f32.mrb[0].mxu0
      %4136 = vmatprep.mubr.f32.mxu0 0.0
      %4137 = vmatmul.mubr.f32.gmra.mrb[0].mxu0 %v3859
      %v4138 = vpop.f32.mrb[0].mxu0
      %v4139 = vadd.f32 %v3822, %v4138
      %v4140 = vpop.f32.mrb[0].mxu0
      %4141 = vmatprep.mubr.f32.mxu0 0.0
      %4142 = vmatmul.mubr.f32.gmra.mrb[0].mxu0 %v3862
      %v4143 = vpop.f32.mrb[0].mxu0
      %v4144 = vadd.f32 %v3822, %v4143
      %v4145 = vpop.f32.mrb[0].mxu0
      %4146 = vmatprep.mubr.f32.mxu0 0.0
      %4147 = vmatmul.mubr.f32.gmra.mrb[0].mxu0 %v3865
      %v4148 = vpop.f32.mrb[0].mxu0
      %v4149 = vadd.f32 %v3822, %v4148
      %v4150 = vpop.f32.mrb[0].mxu0
      %4151 = vmatprep.mubr.f32.mxu0 0.0
      %4152 = vmatmul.mubr.f32.gmra.mrb[0].mxu0 %v3868
      %v4153 = vpop.f32.mrb[0].mxu0
      %v4154 = vadd.f32 %v3822, %v4153
      %v4155 = vpop.f32.mrb[0].mxu0
      %4156 = vmatprep.mubr.f32.mxu0 0.0
      %4157 = vmatmul.mubr.f32.gmra.mrb[0].mxu0 %v3871
      %v4158 = vpop.f32.mrb[0].mxu0
      %v4159 = vadd.f32 %v3822, %v4158
      %v4160 = vpop.f32.mrb[0].mxu0
      %4161 = vmatprep.mubr.f32.mxu0 0.0
      %4162 = vmatmul.mubr.f32.gmra.mrb[0].mxu0 %v3874
      %v4163 = vpop.f32.mrb[0].mxu0
      %v4164 = vadd.f32 %v3822, %v4163
      %v4165 = vpop.f32.mrb[0].mxu0
      %4166 = vmatprep.mubr.f32.mxu0 0.0
      %4167 = vmatmul.mubr.f32.gmra.mrb[0].mxu0 %v3877
      %v4168 = vpop.f32.mrb[0].mxu0
      %v4169 = vadd.f32 %v3822, %v4168
      %v4170 = vpop.f32.mrb[0].mxu0
      %4171 = vmatprep.mubr.f32.mxu0 0.0
      %4172 = vmatmul.mubr.f32.gmra.mrb[0].mxu0 %v3880
      %v4173 = vpop.f32.mrb[0].mxu0
      %v4174 = vadd.f32 %v3822, %v4173
      %v4175 = vpop.f32.mrb[0].mxu0
      %4176 = vmatprep.mubr.f32.mxu0 0.0
      %4177 = vmatmul.mubr.f32.gmra.mrb[0].mxu0 %v3883
      %v4178 = vpop.f32.mrb[0].mxu0
      %v4179 = vadd.f32 %v3822, %v4178
      %v4180 = vpop.f32.mrb[0].mxu0
      %4181 = vmatprep.mubr.f32.mxu0 0.0
      %4182 = vmatmul.mubr.f32.gmra.mrb[0].mxu0 %v3886
      %v4183 = vpop.f32.mrb[0].mxu0
      %v4184 = vadd.f32 %v3822, %v4183
      %v4185 = vpop.f32.mrb[0].mxu0
      %4186 = vmatprep.mubr.f32.mxu0 0.0
      %4187 = vmatmul.mubr.f32.gmra.mrb[0].mxu0 %v3889
      %v4188 = vpop.f32.mrb[0].mxu0
      %v4189 = vadd.f32 %v3822, %v4188
      %v4190 = vpop.f32.mrb[0].mxu0
      %4191 = vmatprep.mubr.f32.mxu0 0.0
      %4192 = vmatmul.mubr.f32.gmra.mrb[0].mxu0 %v3892
      %v4193 = vpop.f32.mrb[0].mxu0
      %v4194 = vadd.f32 %v3822, %v4193
      %v4195 = vpop.f32.mrb[0].mxu0
      %4196 = vmatprep.mubr.f32.mxu0 0.0
      %4197 = vmatmul.mubr.f32.gmra.mrb[0].mxu0 %v3895
      %v4198 = vpop.f32.mrb[0].mxu0
      %v4199 = vadd.f32 %v3822, %v4198
      %v4200 = vpop.f32.mrb[0].mxu0
      %4201 = vmatprep.mubr.f32.mxu0 0.0
      %4202 = vmatmul.mubr.f32.gmra.mrb[0].mxu0 %v3898
      %v4203 = vpop.f32.mrb[0].mxu0
      %v4204 = vadd.f32 %v3822, %v4203
      %v4205 = vpop.f32.mrb[0].mxu0
      %4206 = vmatprep.mubr.f32.mxu0 0.0
      %4207 = vmatmul.mubr.f32.gmra.mrb[0].mxu0 %v3901
      %v4208 = vpop.f32.mrb[0].mxu0
      %v4209 = vadd.f32 %v3822, %v4208
      %v4210 = vpop.f32.mrb[0].mxu0
      %4211 = vmatprep.mubr.f32.mxu0 0.0
      %4212 = vmatmul.mubr.f32.gmra.mrb[0].mxu0 %v3904
      %v4213 = vpop.f32.mrb[0].mxu0
      %v4214 = vadd.f32 %v3822, %v4213
      %v4215 = vpop.f32.mrb[0].mxu0
      %4216 = vmatprep.mubr.f32.mxu0 0.0
      %4217 = vmatmul.mubr.f32.gmra.mrb[0].mxu0 %v3907
      %v4218 = vpop.f32.mrb[0].mxu0
      %v4219 = vadd.f32 %v3822, %v4218
      %v4220 = vpop.f32.mrb[0].mxu0
      %4221 = vmatprep.mubr.f32.mxu0 0.0
      %4222 = vmatmul.mubr.f32.gmra.mrb[0].mxu0 %v3910
      %v4223 = vpop.f32.mrb[0].mxu0
      %v4224 = vadd.f32 %v3822, %v4223
      %v4225 = vpop.f32.mrb[0].mxu0
      %4226 = vmatprep.mubr.f32.mxu0 0.0
      %4227 = vmatmul.mubr.f32.gmra.mrb[0].mxu0 %v3913
      %v4228 = vpop.f32.mrb[0].mxu0
      %v4229 = vadd.f32 %v3822, %v4228
      %v4230 = vpop.f32.mrb[0].mxu0
      %4231 = vmatprep.mubr.f32.mxu0 0.0
      %4232 = vmatmul.mubr.f32.gmra.mrb[0].mxu0 %v3916
      %v4233 = vpop.f32.mrb[0].mxu0
      %v4234 = vadd.f32 %v3822, %v4233
      %v4235 = vpop.f32.mrb[0].mxu0
      %4236 = vmatprep.mubr.f32.mxu0 0.0
      %4237 = vmatmul.mubr.f32.gmra.mrb[0].mxu0 %v3919
      %v4238 = vpop.f32.mrb[0].mxu0
      %v4239 = vadd.f32 %v3822, %v4238
      %v4240 = vpop.f32.mrb[0].mxu0
      %4241 = vmatprep.mubr.f32.mxu0 0.0
      %4242 = vmatmul.mubr.f32.gmra.mrb[0].mxu0 %v3922
      %v4243 = vpop.f32.mrb[0].mxu0
      %v4244 = vadd.f32 %v3822, %v4243
      %v4245 = vpop.f32.mrb[0].mxu0
      %4246 = vmatprep.mubr.f32.mxu0 0.0
      %4247 = vmatmul.mubr.f32.gmra.mrb[0].mxu0 %v3925
      %v4248 = vpop.f32.mrb[0].mxu0
      %v4249 = vadd.f32 %v3822, %v4248
      %v4250 = vpop.f32.mrb[0].mxu0
      %4251 = vmatprep.mubr.f32.mxu0 0.0
      %4252 = vmatmul.mubr.f32.gmra.mrb[0].mxu0 %v3928
      %v4253 = vpop.f32.mrb[0].mxu0
      %v4254 = vadd.f32 %v3822, %v4253
      %v4255 = vpop.f32.mrb[0].mxu0
      %4256 = vmatprep.mubr.f32.mxu0 0.0
      %4257 = vmatmul.mubr.f32.gmra.mrb[0].mxu0 %v3931
      %v4258 = vpop.f32.mrb[0].mxu0
      %v4259 = vadd.f32 %v3822, %v4258
      %v4260 = vpop.f32.mrb[0].mxu0
      %4261 = vmatprep.mubr.f32.mxu0 0.0
      %4262 = vmatmul.mubr.f32.gmra.mrb[0].mxu0 %v3934
      %v4263 = vpop.f32.mrb[0].mxu0
      %v4264 = vadd.f32 %v3822, %v4263
      %v4265 = vpop.f32.mrb[0].mxu0
      %4266 = vmatprep.mubr.f32.mxu0 0.0
      %4267 = vmatmul.mubr.f32.gmra.mrb[0].mxu0 %v3937
      %v4268 = vpop.f32.mrb[0].mxu0
      %v4269 = vadd.f32 %v3822, %v4268
      %v4270 = vpop.f32.mrb[0].mxu0
      %4271 = vmatprep.mubr.f32.mxu0 0.0
      %4272 = vmatmul.mubr.f32.gmra.mrb[0].mxu0 %v3940
      %v4273 = vpop.f32.mrb[0].mxu0
      %v4274 = vadd.f32 %v3822, %v4273
      %v4275 = vpop.f32.mrb[0].mxu0
      %4276 = vmatprep.mubr.f32.mxu0 0.0
      %4277 = vmatmul.mubr.f32.gmra.mrb[0].mxu0 %v3943
      %v4278 = vpop.f32.mrb[0].mxu0
      %v4279 = vadd.f32 %v3822, %v4278
      %v4280 = vpop.f32.mrb[0].mxu0
      %4281 = vmatprep.mubr.f32.mxu0 0.0
      %4282 = vmatmul.mubr.f32.gmra.mrb[0].mxu0 %v3946
      %v4283 = vpop.f32.mrb[0].mxu0
      %v4284 = vadd.f32 %v3822, %v4283
      %v4285 = vpop.f32.mrb[0].mxu0
      %4286 = vmatprep.mubr.f32.mxu0 0.0
      %4287 = vmatmul.mubr.f32.gmra.mrb[0].mxu0 %v3949
      %v4288 = vpop.f32.mrb[0].mxu0
      %v4289 = vadd.f32 %v3822, %v4288
      %v4290 = vpop.f32.mrb[0].mxu0
      %4291 = vmatprep.mubr.f32.mxu0 0.0
      %4292 = vmatmul.mubr.f32.gmra.mrb[0].mxu0 %v3952
      %v4293 = vpop.f32.mrb[0].mxu0
      %v4294 = vadd.f32 %v3822, %v4293
      %v4295 = vpop.f32.mrb[0].mxu0
      %4296 = vmatprep.mubr.f32.mxu0 0.0
      %4297 = vmatmul.mubr.f32.gmra.mrb[0].mxu0 %v3955
      %v4298 = vpop.f32.mrb[0].mxu0
      %v4299 = vadd.f32 %v3822, %v4298
      %v4300 = vpop.f32.mrb[0].mxu0
      %4301 = vmatprep.mubr.f32.mxu0 0.0
      %4302 = vmatmul.mubr.f32.gmra.mrb[0].mxu0 %v3958
      %v4303 = vpop.f32.mrb[0].mxu0
      %v4304 = vadd.f32 %v3822, %v4303
      %v4305 = vpop.f32.mrb[0].mxu0
      %4306 = vmatprep.mubr.f32.mxu0 0.0
      %4307 = vmatmul.mubr.f32.gmra.mrb[0].mxu0 %v3961
      %v4308 = vpop.f32.mrb[0].mxu0
      %v4309 = vadd.f32 %v3822, %v4308
      %v4310 = vpop.f32.mrb[0].mxu0
      %4311 = vmatprep.mubr.f32.mxu0 0.0
      %4312 = vmatmul.mubr.f32.gmra.mrb[0].mxu0 %v3964
      %v4313 = vpop.f32.mrb[0].mxu0
      %v4314 = vadd.f32 %v3822, %v4313
      %v4315 = vpop.f32.mrb[0].mxu0
      %4316 = vmatprep.mubr.f32.mxu0 0.0
      %4317 = vmatmul.mubr.f32.gmra.mrb[0].mxu0 %v3967
      %v4318 = vpop.f32.mrb[0].mxu0
      %v4319 = vadd.f32 %v3822, %v4318
      %v4320 = vpop.f32.mrb[0].mxu0
      %4321 = vmatprep.mubr.f32.mxu0 0.0
      %4322 = vmatmul.mubr.f32.gmra.mrb[0].mxu0 %v3970
      %v4323 = vpop.f32.mrb[0].mxu0
      %v4324 = vadd.f32 %v3822, %v4323
      %v4325 = vpop.f32.mrb[0].mxu0
      %4326 = vmatprep.mubr.f32.mxu0 0.0
      %4327 = vmatmul.mubr.f32.gmra.mrb[0].mxu0 %v3973
      %v4328 = vpop.f32.mrb[0].mxu0
      %v4329 = vadd.f32 %v3822, %v4328
      %v4330 = vpop.f32.mrb[0].mxu0
      %4331 = vmatprep.mubr.f32.mxu0 0.0
      %4332 = vmatmul.mubr.f32.gmra.mrb[0].mxu0 %v3976
      %v4333 = vpop.f32.mrb[0].mxu0
      %v4334 = vadd.f32 %v3822, %v4333
      %v4335 = vpop.f32.mrb[0].mxu0
      %4336 = vmatprep.mubr.f32.mxu0 0.0
      %4337 = vmatmul.mubr.f32.gmra.mrb[0].mxu0 %v3979
      %v4338 = vpop.f32.mrb[0].mxu0
      %v4339 = vadd.f32 %v3822, %v4338
      %v4340 = vpop.f32.mrb[0].mxu0
      %4341 = vmatprep.mubr.f32.mxu0 0.0
      %4342 = vmatmul.mubr.f32.gmra.mrb[0].mxu0 %v3982
      %v4343 = vpop.f32.mrb[0].mxu0
      %v4344 = vadd.f32 %v3822, %v4343
      %v4345 = vpop.f32.mrb[0].mxu0
      %4346 = vmatprep.mubr.f32.mxu0 0.0
      %4347 = vmatmul.mubr.f32.gmra.mrb[0].mxu0 %v3985
      %v4348 = vpop.f32.mrb[0].mxu0
      %v4349 = vadd.f32 %v3822, %v4348
      %v4350 = vpop.f32.mrb[0].mxu0
      %4351 = vmatprep.mubr.f32.mxu0 0.0
      %4352 = vmatmul.mubr.f32.gmra.mrb[0].mxu0 %v3988
      %v4353 = vpop.f32.mrb[0].mxu0
      %v4354 = vadd.f32 %v3822, %v4353
      %v4355 = vpop.f32.mrb[0].mxu0
      %4356 = vmatprep.mubr.f32.mxu0 0.0
      %4357 = vmatmul.mubr.f32.gmra.mrb[0].mxu0 %v3991
      %v4358 = vpop.f32.mrb[0].mxu0
      %v4359 = vadd.f32 %v3822, %v4358
      %v4360 = vpop.f32.mrb[0].mxu0
      %4361 = vmatprep.mubr.f32.mxu0 0.0
      %4362 = vmatmul.mubr.f32.gmra.mrb[0].mxu0 %v3994
      %v4363 = vpop.f32.mrb[0].mxu0
      %v4364 = vadd.f32 %v3822, %v4363
      %v4365 = vpop.f32.mrb[0].mxu0
      %4366 = vmatprep.mubr.f32.mxu0 0.0
      %4367 = vmatmul.mubr.f32.gmra.mrb[0].mxu0 %v3997
      %v4368 = vpop.f32.mrb[0].mxu0
      %v4369 = vadd.f32 %v3822, %v4368
      %v4370 = vpop.f32.mrb[0].mxu0
      %4371 = vmatprep.mubr.f32.mxu0 0.0
      %4372 = vmatmul.mubr.f32.gmra.mrb[0].mxu0 %v4000
      %v4373 = vpop.f32.mrb[0].mxu0
      %v4374 = vadd.f32 %v3822, %v4373
      %v4375 = vpop.f32.mrb[0].mxu0
      %4376 = vmatprep.mubr.f32.mxu0 0.0
      %4377 = vmatmul.mubr.f32.gmra.mrb[0].mxu0 %v4003
      %v4378 = vpop.f32.mrb[0].mxu0
      %v4379 = vadd.f32 %v3822, %v4378
      %v4380 = vpop.f32.mrb[0].mxu0
      %4381 = vmatprep.mubr.f32.mxu0 0.0
      %4382 = vmatmul.mubr.f32.gmra.mrb[0].mxu0 %v4006
      %v4383 = vpop.f32.mrb[0].mxu0
      %v4384 = vadd.f32 %v3822, %v4383
      %v4385 = vpop.f32.mrb[0].mxu0
      %4386 = vmatprep.mubr.f32.mxu0 0.0
      %4387 = vmatmul.mubr.f32.gmra.mrb[0].mxu0 %v4009
      %v4388 = vpop.f32.mrb[0].mxu0
      %v4389 = vadd.f32 %v3822, %v4388
      %v4390 = vpop.f32.mrb[0].mxu0
      %4391 = vmatprep.mubr.f32.mxu0 0.0
      %4392 = vmatmul.mubr.f32.gmra.mrb[0].mxu0 %v4012
      %v4393 = vpop.f32.mrb[0].mxu0
      %v4394 = vadd.f32 %v3822, %v4393
      %v4395 = vpop.f32.mrb[0].mxu0
      %4396 = vmatprep.mubr.f32.mxu0 0.0
      %4397 = vmatmul.mubr.f32.gmra.mrb[0].mxu0 %v4015
      %v4398 = vpop.f32.mrb[0].mxu0
      %v4399 = vadd.f32 %v3822, %v4398
      %v4400 = vpop.f32.mrb[0].mxu0
      %4401 = vdwg.mxu0
      %vm4402 = vcmp.gt.f32.partialorder %v4084, 0.0
      %vm4403 = vcmp.gt.f32.partialorder %v4089, 0.0
      %vm4404 = vcmp.gt.f32.partialorder %v4094, 0.0
      %vm4405 = vcmp.gt.f32.partialorder %v4099, 0.0
      %vm4406 = vcmp.gt.f32.partialorder %v4104, 0.0
      %vm4407 = vcmp.gt.f32.partialorder %v4109, 0.0
      %vm4408 = vcmp.gt.f32.partialorder %v4114, 0.0
      %vm4409 = vcmp.gt.f32.partialorder %v4119, 0.0
      %vm4410 = vcmp.gt.f32.partialorder %v4124, 0.0
      %vm4411 = vcmp.gt.f32.partialorder %v4129, 0.0
      %vm4412 = vcmp.gt.f32.partialorder %v4134, 0.0
      %vm4413 = vcmp.gt.f32.partialorder %v4139, 0.0
      %vm4414 = vcmp.gt.f32.partialorder %v4144, 0.0
      %vm4415 = vcmp.gt.f32.partialorder %v4149, 0.0
      %vm4416 = vcmp.gt.f32.partialorder %v4154, 0.0
      %vm4417 = vcmp.gt.f32.partialorder %v4159, 0.0
      %vm4418 = vcmp.gt.f32.partialorder %v4164, 0.0
      %vm4419 = vcmp.gt.f32.partialorder %v4169, 0.0
      %vm4420 = vcmp.gt.f32.partialorder %v4174, 0.0
      %vm4421 = vcmp.gt.f32.partialorder %v4179, 0.0
      %vm4422 = vcmp.gt.f32.partialorder %v4184, 0.0
      %vm4423 = vcmp.gt.f32.partialorder %v4189, 0.0
      %vm4424 = vcmp.gt.f32.partialorder %v4194, 0.0
      %vm4425 = vcmp.gt.f32.partialorder %v4199, 0.0
      %vm4426 = vcmp.gt.f32.partialorder %v4204, 0.0
      %vm4427 = vcmp.gt.f32.partialorder %v4209, 0.0
      %vm4428 = vcmp.gt.f32.partialorder %v4214, 0.0
      %vm4429 = vcmp.gt.f32.partialorder %v4219, 0.0
      %vm4430 = vcmp.gt.f32.partialorder %v4224, 0.0
      %vm4431 = vcmp.gt.f32.partialorder %v4229, 0.0
      %vm4432 = vcmp.gt.f32.partialorder %v4234, 0.0
      %vm4433 = vcmp.gt.f32.partialorder %v4239, 0.0
      %vm4434 = vcmp.gt.f32.partialorder %v4244, 0.0
      %vm4435 = vcmp.gt.f32.partialorder %v4249, 0.0
      %vm4436 = vcmp.gt.f32.partialorder %v4254, 0.0
      %vm4437 = vcmp.gt.f32.partialorder %v4259, 0.0
      %vm4438 = vcmp.gt.f32.partialorder %v4264, 0.0
      %vm4439 = vcmp.gt.f32.partialorder %v4269, 0.0
      %vm4440 = vcmp.gt.f32.partialorder %v4274, 0.0
      %vm4441 = vcmp.gt.f32.partialorder %v4279, 0.0
      %vm4442 = vcmp.gt.f32.partialorder %v4284, 0.0
      %vm4443 = vcmp.gt.f32.partialorder %v4289, 0.0
      %vm4444 = vcmp.gt.f32.partialorder %v4294, 0.0
      %vm4445 = vcmp.gt.f32.partialorder %v4299, 0.0
      %vm4446 = vcmp.gt.f32.partialorder %v4304, 0.0
      %vm4447 = vcmp.gt.f32.partialorder %v4309, 0.0
      %vm4448 = vcmp.gt.f32.partialorder %v4314, 0.0
      %vm4449 = vcmp.gt.f32.partialorder %v4319, 0.0
      %vm4450 = vcmp.gt.f32.partialorder %v4324, 0.0
      %vm4451 = vcmp.gt.f32.partialorder %v4329, 0.0
      %vm4452 = vcmp.gt.f32.partialorder %v4334, 0.0
      %vm4453 = vcmp.gt.f32.partialorder %v4339, 0.0
      %vm4454 = vcmp.gt.f32.partialorder %v4344, 0.0
      %vm4455 = vcmp.gt.f32.partialorder %v4349, 0.0
      %vm4456 = vcmp.gt.f32.partialorder %v4354, 0.0
      %vm4457 = vcmp.gt.f32.partialorder %v4359, 0.0
      %vm4458 = vcmp.gt.f32.partialorder %v4364, 0.0
      %vm4459 = vcmp.gt.f32.partialorder %v4369, 0.0
      %vm4460 = vcmp.gt.f32.partialorder %v4374, 0.0
      %vm4461 = vcmp.gt.f32.partialorder %v4379, 0.0
      %vm4462 = vcmp.gt.f32.partialorder %v4384, 0.0
      %vm4463 = vcmp.gt.f32.partialorder %v4389, 0.0
      %vm4464 = vcmp.gt.f32.partialorder %v4394, 0.0
      %vm4465 = vcmp.gt.f32.partialorder %v4399, 0.0
      %v4466 = vmul.f32 %v4084, 0.01
      %v4467 = vmul.f32 %v4089, 0.01
      %v4468 = vmul.f32 %v4094, 0.01
      %v4469 = vmul.f32 %v4099, 0.01
      %v4470 = vmul.f32 %v4104, 0.01
      %v4471 = vmul.f32 %v4109, 0.01
      %v4472 = vmul.f32 %v4114, 0.01
      %v4473 = vmul.f32 %v4119, 0.01
      %v4474 = vmul.f32 %v4124, 0.01
      %v4475 = vmul.f32 %v4129, 0.01
      %v4476 = vmul.f32 %v4134, 0.01
      %v4477 = vmul.f32 %v4139, 0.01
      %v4478 = vmul.f32 %v4144, 0.01
      %v4479 = vmul.f32 %v4149, 0.01
      %v4480 = vmul.f32 %v4154, 0.01
      %v4481 = vmul.f32 %v4159, 0.01
      %v4482 = vmul.f32 %v4164, 0.01
      %v4483 = vmul.f32 %v4169, 0.01
      %v4484 = vmul.f32 %v4174, 0.01
      %v4485 = vmul.f32 %v4179, 0.01
      %v4486 = vmul.f32 %v4184, 0.01
      %v4487 = vmul.f32 %v4189, 0.01
      %v4488 = vmul.f32 %v4194, 0.01
      %v4489 = vmul.f32 %v4199, 0.01
      %v4490 = vmul.f32 %v4204, 0.01
      %v4491 = vmul.f32 %v4209, 0.01
      %v4492 = vmul.f32 %v4214, 0.01
      %v4493 = vmul.f32 %v4219, 0.01
      %v4494 = vmul.f32 %v4224, 0.01
      %v4495 = vmul.f32 %v4229, 0.01
      %v4496 = vmul.f32 %v4234, 0.01
      %v4497 = vmul.f32 %v4239, 0.01
      %v4498 = vmul.f32 %v4244, 0.01
      %v4499 = vmul.f32 %v4249, 0.01
      %v4500 = vmul.f32 %v4254, 0.01
      %v4501 = vmul.f32 %v4259, 0.01
      %v4502 = vmul.f32 %v4264, 0.01
      %v4503 = vmul.f32 %v4269, 0.01
      %v4504 = vmul.f32 %v4274, 0.01
      %v4505 = vmul.f32 %v4279, 0.01
      %v4506 = vmul.f32 %v4284, 0.01
      %v4507 = vmul.f32 %v4289, 0.01
      %v4508 = vmul.f32 %v4294, 0.01
      %v4509 = vmul.f32 %v4299, 0.01
      %v4510 = vmul.f32 %v4304, 0.01
      %v4511 = vmul.f32 %v4309, 0.01
      %v4512 = vmul.f32 %v4314, 0.01
      %v4513 = vmul.f32 %v4319, 0.01
      %v4514 = vmul.f32 %v4324, 0.01
      %v4515 = vmul.f32 %v4329, 0.01
      %v4516 = vmul.f32 %v4334, 0.01
      %v4517 = vmul.f32 %v4339, 0.01
      %v4518 = vmul.f32 %v4344, 0.01
      %v4519 = vmul.f32 %v4349, 0.01
      %v4520 = vmul.f32 %v4354, 0.01
      %v4521 = vmul.f32 %v4359, 0.01
      %v4522 = vmul.f32 %v4364, 0.01
      %v4523 = vmul.f32 %v4369, 0.01
      %v4524 = vmul.f32 %v4374, 0.01
      %v4525 = vmul.f32 %v4379, 0.01
      %v4526 = vmul.f32 %v4384, 0.01
      %v4527 = vmul.f32 %v4389, 0.01
      %v4528 = vmul.f32 %v4394, 0.01
      %v4529 = vmul.f32 %v4399, 0.01
      %v4530 = vsel %vm4402, %v4084, %v4466
      %v4531 = vsel %vm4403, %v4089, %v4467
      %v4532 = vsel %vm4404, %v4094, %v4468
      %v4533 = vsel %vm4405, %v4099, %v4469
      %v4534 = vsel %vm4406, %v4104, %v4470
      %v4535 = vsel %vm4407, %v4109, %v4471
      %v4536 = vsel %vm4408, %v4114, %v4472
      %v4537 = vsel %vm4409, %v4119, %v4473
      %v4538 = vsel %vm4410, %v4124, %v4474
      %v4539 = vsel %vm4411, %v4129, %v4475
      %v4540 = vsel %vm4412, %v4134, %v4476
      %v4541 = vsel %vm4413, %v4139, %v4477
      %v4542 = vsel %vm4414, %v4144, %v4478
      %v4543 = vsel %vm4415, %v4149, %v4479
      %v4544 = vsel %vm4416, %v4154, %v4480
      %v4545 = vsel %vm4417, %v4159, %v4481
      %v4546 = vsel %vm4418, %v4164, %v4482
      %v4547 = vsel %vm4419, %v4169, %v4483
      %v4548 = vsel %vm4420, %v4174, %v4484
      %v4549 = vsel %vm4421, %v4179, %v4485
      %v4550 = vsel %vm4422, %v4184, %v4486
      %v4551 = vsel %vm4423, %v4189, %v4487
      %v4552 = vsel %vm4424, %v4194, %v4488
      %v4553 = vsel %vm4425, %v4199, %v4489
      %v4554 = vsel %vm4426, %v4204, %v4490
      %v4555 = vsel %vm4427, %v4209, %v4491
      %v4556 = vsel %vm4428, %v4214, %v4492
      %v4557 = vsel %vm4429, %v4219, %v4493
      %v4558 = vsel %vm4430, %v4224, %v4494
      %v4559 = vsel %vm4431, %v4229, %v4495
      %v4560 = vsel %vm4432, %v4234, %v4496
      %v4561 = vsel %vm4433, %v4239, %v4497
      %v4562 = vsel %vm4434, %v4244, %v4498
      %v4563 = vsel %vm4435, %v4249, %v4499
      %v4564 = vsel %vm4436, %v4254, %v4500
      %v4565 = vsel %vm4437, %v4259, %v4501
      %v4566 = vsel %vm4438, %v4264, %v4502
      %v4567 = vsel %vm4439, %v4269, %v4503
      %v4568 = vsel %vm4440, %v4274, %v4504
      %v4569 = vsel %vm4441, %v4279, %v4505
      %v4570 = vsel %vm4442, %v4284, %v4506
      %v4571 = vsel %vm4443, %v4289, %v4507
      %v4572 = vsel %vm4444, %v4294, %v4508
      %v4573 = vsel %vm4445, %v4299, %v4509
      %v4574 = vsel %vm4446, %v4304, %v4510
      %v4575 = vsel %vm4447, %v4309, %v4511
      %v4576 = vsel %vm4448, %v4314, %v4512
      %v4577 = vsel %vm4449, %v4319, %v4513
      %v4578 = vsel %vm4450, %v4324, %v4514
      %v4579 = vsel %vm4451, %v4329, %v4515
      %v4580 = vsel %vm4452, %v4334, %v4516
      %v4581 = vsel %vm4453, %v4339, %v4517
      %v4582 = vsel %vm4454, %v4344, %v4518
      %v4583 = vsel %vm4455, %v4349, %v4519
      %v4584 = vsel %vm4456, %v4354, %v4520
      %v4585 = vsel %vm4457, %v4359, %v4521
      %v4586 = vsel %vm4458, %v4364, %v4522
      %v4587 = vsel %vm4459, %v4369, %v4523
      %v4588 = vsel %vm4460, %v4374, %v4524
      %v4589 = vsel %vm4461, %v4379, %v4525
      %v4590 = vsel %vm4462, %v4384, %v4526
      %v4591 = vsel %vm4463, %v4389, %v4527
      %v4592 = vsel %vm4464, %v4394, %v4528
      %v4593 = vsel %vm4465, %v4399, %v4529
      %s4594 = scalar_lea.vmem [#allocation3], 24
      %4595 = vst.msk [vmem:[%s4594 + $0x1] sm:$0xff] %vm233, %v4530
      %4596 = vst.msk [vmem:[%s4594 + $0x9] sm:$0xff] %vm233, %v4531
      %4597 = vst.msk [vmem:[%s4594 + $0x19] sm:$0xff] %vm233, %v4532
      %4598 = vst.msk [vmem:[%s4594 + $0x21] sm:$0xff] %vm233, %v4533
      %4599 = vst.msk [vmem:[%s4594 + $0x31] sm:$0xff] %vm233, %v4534
      %4600 = vst.msk [vmem:[%s4594 + $0x39] sm:$0xff] %vm233, %v4535
      %4601 = vst.msk [vmem:[%s4594 + $0x49] sm:$0xff] %vm233, %v4536
      %4602 = vst.msk [vmem:[%s4594 + $0x51] sm:$0xff] %vm233, %v4537
      %4603 = vst.msk [vmem:[%s4594 + $0x61] sm:$0xff] %vm233, %v4538
      %4604 = vst.msk [vmem:[%s4594 + $0x69] sm:$0xff] %vm233, %v4539
      %4605 = vst.msk [vmem:[%s4594 + $0x79] sm:$0xff] %vm233, %v4540
      %4606 = vst.msk [vmem:[%s4594 + $0x81] sm:$0xff] %vm233, %v4541
      %4607 = vst.msk [vmem:[%s4594 + $0x91] sm:$0xff] %vm233, %v4542
      %4608 = vst.msk [vmem:[%s4594 + $0x99] sm:$0xff] %vm233, %v4543
      %4609 = vst.msk [vmem:[%s4594 + $0xa9] sm:$0xff] %vm233, %v4544
      %4610 = vst.msk [vmem:[%s4594 + $0xb1] sm:$0xff] %vm233, %v4545
      %4611 = vst.msk [vmem:[%s4594 + $0xc1] sm:$0xff] %vm233, %v4546
      %4612 = vst.msk [vmem:[%s4594 + $0xc9] sm:$0xff] %vm233, %v4547
      %4613 = vst.msk [vmem:[%s4594 + $0xd9] sm:$0xff] %vm233, %v4548
      %4614 = vst.msk [vmem:[%s4594 + $0xe1] sm:$0xff] %vm233, %v4549
      %4615 = vst.msk [vmem:[%s4594 + $0xf1] sm:$0xff] %vm233, %v4550
      %4616 = vst.msk [vmem:[%s4594 + $0xf9] sm:$0xff] %vm233, %v4551
      %4617 = vst.msk [vmem:[%s4594 + $0x109] sm:$0xff] %vm233, %v4552
      %4618 = vst.msk [vmem:[%s4594 + $0x111] sm:$0xff] %vm233, %v4553
      %4619 = vst.msk [vmem:[%s4594 + $0x121] sm:$0xff] %vm233, %v4554
      %4620 = vst.msk [vmem:[%s4594 + $0x129] sm:$0xff] %vm233, %v4555
      %4621 = vst.msk [vmem:[%s4594 + $0x139] sm:$0xff] %vm233, %v4556
      %4622 = vst.msk [vmem:[%s4594 + $0x141] sm:$0xff] %vm233, %v4557
      %4623 = vst.msk [vmem:[%s4594 + $0x151] sm:$0xff] %vm233, %v4558
      %4624 = vst.msk [vmem:[%s4594 + $0x159] sm:$0xff] %vm233, %v4559
      %4625 = vst.msk [vmem:[%s4594 + $0x169] sm:$0xff] %vm233, %v4560
      %4626 = vst.msk [vmem:[%s4594 + $0x171] sm:$0xff] %vm233, %v4561
      %4627 = vst.msk [vmem:[%s4594 + $0x1b1] sm:$0xff] %vm233, %v4562
      %4628 = vst.msk [vmem:[%s4594 + $0x1b9] sm:$0xff] %vm233, %v4563
      %4629 = vst.msk [vmem:[%s4594 + $0x1c9] sm:$0xff] %vm233, %v4564
      %4630 = vst.msk [vmem:[%s4594 + $0x1d1] sm:$0xff] %vm233, %v4565
      %4631 = vst.msk [vmem:[%s4594 + $0x1e1] sm:$0xff] %vm233, %v4566
      %4632 = vst.msk [vmem:[%s4594 + $0x1e9] sm:$0xff] %vm233, %v4567
      %4633 = vst.msk [vmem:[%s4594 + $0x1f9] sm:$0xff] %vm233, %v4568
      %4634 = vst.msk [vmem:[%s4594 + $0x201] sm:$0xff] %vm233, %v4569
      %4635 = vst.msk [vmem:[%s4594 + $0x211] sm:$0xff] %vm233, %v4570
      %4636 = vst.msk [vmem:[%s4594 + $0x219] sm:$0xff] %vm233, %v4571
      %4637 = vst.msk [vmem:[%s4594 + $0x229] sm:$0xff] %vm233, %v4572
      %4638 = vst.msk [vmem:[%s4594 + $0x231] sm:$0xff] %vm233, %v4573
      %4639 = vst.msk [vmem:[%s4594 + $0x241] sm:$0xff] %vm233, %v4574
      %4640 = vst.msk [vmem:[%s4594 + $0x249] sm:$0xff] %vm233, %v4575
      %4641 = vst.msk [vmem:[%s4594 + $0x259] sm:$0xff] %vm233, %v4576
      %4642 = vst.msk [vmem:[%s4594 + $0x261] sm:$0xff] %vm233, %v4577
      %4643 = vst.msk [vmem:[%s4594 + $0x271] sm:$0xff] %vm233, %v4578
      %4644 = vst.msk [vmem:[%s4594 + $0x279] sm:$0xff] %vm233, %v4579
      %4645 = vst.msk [vmem:[%s4594 + $0x289] sm:$0xff] %vm233, %v4580
      %4646 = vst.msk [vmem:[%s4594 + $0x291] sm:$0xff] %vm233, %v4581
      %4647 = vst.msk [vmem:[%s4594 + $0x2a1] sm:$0xff] %vm233, %v4582
      %4648 = vst.msk [vmem:[%s4594 + $0x2a9] sm:$0xff] %vm233, %v4583
      %4649 = vst.msk [vmem:[%s4594 + $0x2b9] sm:$0xff] %vm233, %v4584
      %4650 = vst.msk [vmem:[%s4594 + $0x2c1] sm:$0xff] %vm233, %v4585
      %4651 = vst.msk [vmem:[%s4594 + $0x2d1] sm:$0xff] %vm233, %v4586
      %4652 = vst.msk [vmem:[%s4594 + $0x2d9] sm:$0xff] %vm233, %v4587
      %4653 = vst.msk [vmem:[%s4594 + $0x2e9] sm:$0xff] %vm233, %v4588
      %4654 = vst.msk [vmem:[%s4594 + $0x2f1] sm:$0xff] %vm233, %v4589
      %4655 = vst.msk [vmem:[%s4594 + $0x301] sm:$0xff] %vm233, %v4590
      %4656 = vst.msk [vmem:[%s4594 + $0x309] sm:$0xff] %vm233, %v4591
      %4657 = vst.msk [vmem:[%s4594 + $0x319] sm:$0xff] %vm233, %v4592
      %4658 = vst.msk [vmem:[%s4594 + $0x321] sm:$0xff] %vm233, %v4593
      %v4659 = vld [vmem:[#allocation3] sm:$0xff]
      %v4660 = vld [vmem:[#allocation3 + $0x8] sm:$0xff]
      %v4661 = vld [vmem:[#allocation3 + $0x18] sm:$0xff]
      %v4662 = vld [vmem:[#allocation3 + $0x20] sm:$0xff]
      %v4663 = vld [vmem:[#allocation3 + $0x30] sm:$0xff]
      %v4664 = vld [vmem:[#allocation3 + $0x38] sm:$0xff]
      %v4665 = vld [vmem:[#allocation3 + $0x48] sm:$0xff]
      %v4666 = vld [vmem:[#allocation3 + $0x50] sm:$0xff]
      %v4667 = vld [vmem:[#allocation3 + $0x60] sm:$0xff]
      %v4668 = vld [vmem:[#allocation3 + $0x68] sm:$0xff]
      %v4669 = vld [vmem:[#allocation3 + $0x78] sm:$0xff]
      %v4670 = vld [vmem:[#allocation3 + $0x80] sm:$0xff]
      %v4671 = vld [vmem:[#allocation3 + $0x90] sm:$0xff]
      %v4672 = vld [vmem:[#allocation3 + $0x98] sm:$0xff]
      %v4673 = vld [vmem:[#allocation3 + $0xa8] sm:$0xff]
      %v4674 = vld [vmem:[#allocation3 + $0xb0] sm:$0xff]
      %v4675 = vld [vmem:[#allocation3 + $0xc0] sm:$0xff]
      %v4676 = vld [vmem:[#allocation3 + $0xc8] sm:$0xff]
      %v4677 = vld [vmem:[#allocation3 + $0xd8] sm:$0xff]
      %v4678 = vld [vmem:[#allocation3 + $0xe0] sm:$0xff]
      %v4679 = vld [vmem:[#allocation3 + $0xf0] sm:$0xff]
      %v4680 = vld [vmem:[#allocation3 + $0xf8] sm:$0xff]
      %v4681 = vld [vmem:[#allocation3 + $0x108] sm:$0xff]
      %v4682 = vld [vmem:[#allocation3 + $0x110] sm:$0xff]
      %v4683 = vld [vmem:[#allocation3 + $0x120] sm:$0xff]
      %v4684 = vld [vmem:[#allocation3 + $0x128] sm:$0xff]
      %v4685 = vld [vmem:[#allocation3 + $0x138] sm:$0xff]
      %v4686 = vld [vmem:[#allocation3 + $0x140] sm:$0xff]
      %v4687 = vld [vmem:[#allocation3 + $0x150] sm:$0xff]
      %v4688 = vld [vmem:[#allocation3 + $0x158] sm:$0xff]
      %v4689 = vld [vmem:[#allocation3 + $0x168] sm:$0xff]
      %v4690 = vld [vmem:[#allocation3 + $0x170] sm:$0xff]
      %v4691 = vld [vmem:[#allocation3 + $0x1b0] sm:$0xff]
      %v4692 = vld [vmem:[#allocation3 + $0x1b8] sm:$0xff]
      %v4693 = vld [vmem:[#allocation3 + $0x1c8] sm:$0xff]
      %v4694 = vld [vmem:[#allocation3 + $0x1d0] sm:$0xff]
      %v4695 = vld [vmem:[#allocation3 + $0x1e0] sm:$0xff]
      %v4696 = vld [vmem:[#allocation3 + $0x1e8] sm:$0xff]
      %v4697 = vld [vmem:[#allocation3 + $0x1f8] sm:$0xff]
      %v4698 = vld [vmem:[#allocation3 + $0x200] sm:$0xff]
      %v4699 = vld [vmem:[#allocation3 + $0x210] sm:$0xff]
      %v4700 = vld [vmem:[#allocation3 + $0x218] sm:$0xff]
      %v4701 = vld [vmem:[#allocation3 + $0x228] sm:$0xff]
      %v4702 = vld [vmem:[#allocation3 + $0x230] sm:$0xff]
      %v4703 = vld [vmem:[#allocation3 + $0x240] sm:$0xff]
      %v4704 = vld [vmem:[#allocation3 + $0x248] sm:$0xff]
      %v4705 = vld [vmem:[#allocation3 + $0x258] sm:$0xff]
      %v4706 = vld [vmem:[#allocation3 + $0x260] sm:$0xff]
      %v4707 = vld [vmem:[#allocation3 + $0x270] sm:$0xff]
      %v4708 = vld [vmem:[#allocation3 + $0x278] sm:$0xff]
      %v4709 = vld [vmem:[#allocation3 + $0x288] sm:$0xff]
      %v4710 = vld [vmem:[#allocation3 + $0x290] sm:$0xff]
      %v4711 = vld [vmem:[#allocation3 + $0x2a0] sm:$0xff]
      %v4712 = vld [vmem:[#allocation3 + $0x2a8] sm:$0xff]
      %v4713 = vld [vmem:[#allocation3 + $0x2b8] sm:$0xff]
      %v4714 = vld [vmem:[#allocation3 + $0x2c0] sm:$0xff]
      %v4715 = vld [vmem:[#allocation3 + $0x2d0] sm:$0xff]
      %v4716 = vld [vmem:[#allocation3 + $0x2d8] sm:$0xff]
      %v4717 = vld [vmem:[#allocation3 + $0x2e8] sm:$0xff]
      %v4718 = vld [vmem:[#allocation3 + $0x2f0] sm:$0xff]
      %v4719 = vld [vmem:[#allocation3 + $0x300] sm:$0xff]
      %v4720 = vld [vmem:[#allocation3 + $0x308] sm:$0xff]
      %v4721 = vld [vmem:[#allocation3 + $0x318] sm:$0xff]
      %v4722 = vld [vmem:[#allocation3 + $0x320] sm:$0xff]
      %4723 = vst.msk [vmem:[#allocation4] sm:$0xff] %vm233, %v4659
      %4724 = vst.msk [vmem:[#allocation4 + $0x8] sm:$0xff] %vm233, %v4660
      %4725 = vst.msk [vmem:[#allocation4 + $0x10] sm:$0xff] %vm233, %v4661
      %4726 = vst.msk [vmem:[#allocation4 + $0x18] sm:$0xff] %vm233, %v4662
      %4727 = vst.msk [vmem:[#allocation4 + $0x20] sm:$0xff] %vm233, %v4663
      %4728 = vst.msk [vmem:[#allocation4 + $0x28] sm:$0xff] %vm233, %v4664
      %4729 = vst.msk [vmem:[#allocation4 + $0x30] sm:$0xff] %vm233, %v4665
      %4730 = vst.msk [vmem:[#allocation4 + $0x38] sm:$0xff] %vm233, %v4666
      %4731 = vst.msk [vmem:[#allocation4 + $0x40] sm:$0xff] %vm233, %v4667
      %4732 = vst.msk [vmem:[#allocation4 + $0x48] sm:$0xff] %vm233, %v4668
      %4733 = vst.msk [vmem:[#allocation4 + $0x50] sm:$0xff] %vm233, %v4669
      %4734 = vst.msk [vmem:[#allocation4 + $0x58] sm:$0xff] %vm233, %v4670
      %4735 = vst.msk [vmem:[#allocation4 + $0x60] sm:$0xff] %vm233, %v4671
      %4736 = vst.msk [vmem:[#allocation4 + $0x68] sm:$0xff] %vm233, %v4672
      %4737 = vst.msk [vmem:[#allocation4 + $0x70] sm:$0xff] %vm233, %v4673
      %4738 = vst.msk [vmem:[#allocation4 + $0x78] sm:$0xff] %vm233, %v4674
      %4739 = vst.msk [vmem:[#allocation4 + $0x80] sm:$0xff] %vm233, %v4675
      %4740 = vst.msk [vmem:[#allocation4 + $0x88] sm:$0xff] %vm233, %v4676
      %4741 = vst.msk [vmem:[#allocation4 + $0x90] sm:$0xff] %vm233, %v4677
      %4742 = vst.msk [vmem:[#allocation4 + $0x98] sm:$0xff] %vm233, %v4678
      %4743 = vst.msk [vmem:[#allocation4 + $0xa0] sm:$0xff] %vm233, %v4679
      %4744 = vst.msk [vmem:[#allocation4 + $0xa8] sm:$0xff] %vm233, %v4680
      %4745 = vst.msk [vmem:[#allocation4 + $0xb0] sm:$0xff] %vm233, %v4681
      %4746 = vst.msk [vmem:[#allocation4 + $0xb8] sm:$0xff] %vm233, %v4682
      %4747 = vst.msk [vmem:[#allocation4 + $0xc0] sm:$0xff] %vm233, %v4683
      %4748 = vst.msk [vmem:[#allocation4 + $0xc8] sm:$0xff] %vm233, %v4684
      %4749 = vst.msk [vmem:[#allocation4 + $0xd0] sm:$0xff] %vm233, %v4685
      %4750 = vst.msk [vmem:[#allocation4 + $0xd8] sm:$0xff] %vm233, %v4686
      %4751 = vst.msk [vmem:[#allocation4 + $0xe0] sm:$0xff] %vm233, %v4687
      %4752 = vst.msk [vmem:[#allocation4 + $0xe8] sm:$0xff] %vm233, %v4688
      %4753 = vst.msk [vmem:[#allocation4 + $0xf0] sm:$0xff] %vm233, %v4689
      %4754 = vst.msk [vmem:[#allocation4 + $0xf8] sm:$0xff] %vm233, %v4690
      %4755 = vst.msk [vmem:[#allocation4 + $0x100] sm:$0xff] %vm233, %v4691
      %4756 = vst.msk [vmem:[#allocation4 + $0x108] sm:$0xff] %vm233, %v4692
      %4757 = vst.msk [vmem:[#allocation4 + $0x110] sm:$0xff] %vm233, %v4693
      %4758 = vst.msk [vmem:[#allocation4 + $0x118] sm:$0xff] %vm233, %v4694
      %4759 = vst.msk [vmem:[#allocation4 + $0x120] sm:$0xff] %vm233, %v4695
      %4760 = vst.msk [vmem:[#allocation4 + $0x128] sm:$0xff] %vm233, %v4696
      %4761 = vst.msk [vmem:[#allocation4 + $0x130] sm:$0xff] %vm233, %v4697
      %4762 = vst.msk [vmem:[#allocation4 + $0x138] sm:$0xff] %vm233, %v4698
      %4763 = vst.msk [vmem:[#allocation4 + $0x140] sm:$0xff] %vm233, %v4699
      %4764 = vst.msk [vmem:[#allocation4 + $0x148] sm:$0xff] %vm233, %v4700
      %4765 = vst.msk [vmem:[#allocation4 + $0x150] sm:$0xff] %vm233, %v4701
      %4766 = vst.msk [vmem:[#allocation4 + $0x158] sm:$0xff] %vm233, %v4702
      %4767 = vst.msk [vmem:[#allocation4 + $0x160] sm:$0xff] %vm233, %v4703
      %4768 = vst.msk [vmem:[#allocation4 + $0x168] sm:$0xff] %vm233, %v4704
      %4769 = vst.msk [vmem:[#allocation4 + $0x170] sm:$0xff] %vm233, %v4705
      %4770 = vst.msk [vmem:[#allocation4 + $0x178] sm:$0xff] %vm233, %v4706
      %4771 = vst.msk [vmem:[#allocation4 + $0x180] sm:$0xff] %vm233, %v4707
      %4772 = vst.msk [vmem:[#allocation4 + $0x188] sm:$0xff] %vm233, %v4708
      %4773 = vst.msk [vmem:[#allocation4 + $0x190] sm:$0xff] %vm233, %v4709
      %4774 = vst.msk [vmem:[#allocation4 + $0x198] sm:$0xff] %vm233, %v4710
      %4775 = vst.msk [vmem:[#allocation4 + $0x1a0] sm:$0xff] %vm233, %v4711
      %4776 = vst.msk [vmem:[#allocation4 + $0x1a8] sm:$0xff] %vm233, %v4712
      %4777 = vst.msk [vmem:[#allocation4 + $0x1b0] sm:$0xff] %vm233, %v4713
      %4778 = vst.msk [vmem:[#allocation4 + $0x1b8] sm:$0xff] %vm233, %v4714
      %4779 = vst.msk [vmem:[#allocation4 + $0x1c0] sm:$0xff] %vm233, %v4715
      %4780 = vst.msk [vmem:[#allocation4 + $0x1c8] sm:$0xff] %vm233, %v4716
      %4781 = vst.msk [vmem:[#allocation4 + $0x1d0] sm:$0xff] %vm233, %v4717
      %4782 = vst.msk [vmem:[#allocation4 + $0x1d8] sm:$0xff] %vm233, %v4718
      %4783 = vst.msk [vmem:[#allocation4 + $0x1e0] sm:$0xff] %vm233, %v4719
      %4784 = vst.msk [vmem:[#allocation4 + $0x1e8] sm:$0xff] %vm233, %v4720
      %4785 = vst.msk [vmem:[#allocation4 + $0x1f0] sm:$0xff] %vm233, %v4721
      %4786 = vst.msk [vmem:[#allocation4 + $0x1f8] sm:$0xff] %vm233, %v4722
      %v4787 = vld [vmem:[#allocation3 + $0x1] sm:$0xff]
      %v4788 = vld [vmem:[#allocation3 + $0x9] sm:$0xff]
      %v4789 = vld [vmem:[#allocation3 + $0x19] sm:$0xff]
      %v4790 = vld [vmem:[#allocation3 + $0x21] sm:$0xff]
      %v4791 = vld [vmem:[#allocation3 + $0x31] sm:$0xff]
      %v4792 = vld [vmem:[#allocation3 + $0x39] sm:$0xff]
      %v4793 = vld [vmem:[#allocation3 + $0x49] sm:$0xff]
      %v4794 = vld [vmem:[#allocation3 + $0x51] sm:$0xff]
      %v4795 = vld [vmem:[#allocation3 + $0x61] sm:$0xff]
      %v4796 = vld [vmem:[#allocation3 + $0x69] sm:$0xff]
      %v4797 = vld [vmem:[#allocation3 + $0x79] sm:$0xff]
      %v4798 = vld [vmem:[#allocation3 + $0x81] sm:$0xff]
      %v4799 = vld [vmem:[#allocation3 + $0x91] sm:$0xff]
      %v4800 = vld [vmem:[#allocation3 + $0x99] sm:$0xff]
      %v4801 = vld [vmem:[#allocation3 + $0xa9] sm:$0xff]
      %v4802 = vld [vmem:[#allocation3 + $0xb1] sm:$0xff]
      %v4803 = vld [vmem:[#allocation3 + $0xc1] sm:$0xff]
      %v4804 = vld [vmem:[#allocation3 + $0xc9] sm:$0xff]
      %v4805 = vld [vmem:[#allocation3 + $0xd9] sm:$0xff]
      %v4806 = vld [vmem:[#allocation3 + $0xe1] sm:$0xff]
      %v4807 = vld [vmem:[#allocation3 + $0xf1] sm:$0xff]
      %v4808 = vld [vmem:[#allocation3 + $0xf9] sm:$0xff]
      %v4809 = vld [vmem:[#allocation3 + $0x109] sm:$0xff]
      %v4810 = vld [vmem:[#allocation3 + $0x111] sm:$0xff]
      %v4811 = vld [vmem:[#allocation3 + $0x121] sm:$0xff]
      %v4812 = vld [vmem:[#allocation3 + $0x129] sm:$0xff]
      %v4813 = vld [vmem:[#allocation3 + $0x139] sm:$0xff]
      %v4814 = vld [vmem:[#allocation3 + $0x141] sm:$0xff]
      %v4815 = vld [vmem:[#allocation3 + $0x151] sm:$0xff]
      %v4816 = vld [vmem:[#allocation3 + $0x159] sm:$0xff]
      %v4817 = vld [vmem:[#allocation3 + $0x169] sm:$0xff]
      %v4818 = vld [vmem:[#allocation3 + $0x171] sm:$0xff]
      %v4819 = vld [vmem:[#allocation3 + $0x1b1] sm:$0xff]
      %v4820 = vld [vmem:[#allocation3 + $0x1b9] sm:$0xff]
      %v4821 = vld [vmem:[#allocation3 + $0x1c9] sm:$0xff]
      %v4822 = vld [vmem:[#allocation3 + $0x1d1] sm:$0xff]
      %v4823 = vld [vmem:[#allocation3 + $0x1e1] sm:$0xff]
      %v4824 = vld [vmem:[#allocation3 + $0x1e9] sm:$0xff]
      %v4825 = vld [vmem:[#allocation3 + $0x1f9] sm:$0xff]
      %v4826 = vld [vmem:[#allocation3 + $0x201] sm:$0xff]
      %v4827 = vld [vmem:[#allocation3 + $0x211] sm:$0xff]
      %v4828 = vld [vmem:[#allocation3 + $0x219] sm:$0xff]
      %v4829 = vld [vmem:[#allocation3 + $0x229] sm:$0xff]
      %v4830 = vld [vmem:[#allocation3 + $0x231] sm:$0xff]
      %v4831 = vld [vmem:[#allocation3 + $0x241] sm:$0xff]
      %v4832 = vld [vmem:[#allocation3 + $0x249] sm:$0xff]
      %v4833 = vld [vmem:[#allocation3 + $0x259] sm:$0xff]
      %v4834 = vld [vmem:[#allocation3 + $0x261] sm:$0xff]
      %v4835 = vld [vmem:[#allocation3 + $0x271] sm:$0xff]
      %v4836 = vld [vmem:[#allocation3 + $0x279] sm:$0xff]
      %v4837 = vld [vmem:[#allocation3 + $0x289] sm:$0xff]
      %v4838 = vld [vmem:[#allocation3 + $0x291] sm:$0xff]
      %v4839 = vld [vmem:[#allocation3 + $0x2a1] sm:$0xff]
      %v4840 = vld [vmem:[#allocation3 + $0x2a9] sm:$0xff]
      %v4841 = vld [vmem:[#allocation3 + $0x2b9] sm:$0xff]
      %v4842 = vld [vmem:[#allocation3 + $0x2c1] sm:$0xff]
      %v4843 = vld [vmem:[#allocation3 + $0x2d1] sm:$0xff]
      %v4844 = vld [vmem:[#allocation3 + $0x2d9] sm:$0xff]
      %v4845 = vld [vmem:[#allocation3 + $0x2e9] sm:$0xff]
      %v4846 = vld [vmem:[#allocation3 + $0x2f1] sm:$0xff]
      %v4847 = vld [vmem:[#allocation3 + $0x301] sm:$0xff]
      %v4848 = vld [vmem:[#allocation3 + $0x309] sm:$0xff]
      %v4849 = vld [vmem:[#allocation3 + $0x319] sm:$0xff]
      %v4850 = vld [vmem:[#allocation3 + $0x321] sm:$0xff]
      %4915 = vrot.lane.b32.xlu0 %v4787, 8
      %v4916 = vpop.permute.xlu0 %4915
      %4917 = vrot.lane.b32.xlu0 %v4788, 8
      %v4918 = vpop.permute.xlu0 %4917
      %4919 = vrot.lane.b32.xlu0 %v4789, 8
      %v4920 = vpop.permute.xlu0 %4919
      %4921 = vrot.lane.b32.xlu0 %v4790, 8
      %v4922 = vpop.permute.xlu0 %4921
      %4923 = vrot.lane.b32.xlu0 %v4791, 8
      %v4924 = vpop.permute.xlu0 %4923
      %4925 = vrot.lane.b32.xlu0 %v4792, 8
      %v4926 = vpop.permute.xlu0 %4925
      %4927 = vrot.lane.b32.xlu0 %v4793, 8
      %v4928 = vpop.permute.xlu0 %4927
      %4929 = vrot.lane.b32.xlu0 %v4794, 8
      %v4930 = vpop.permute.xlu0 %4929
      %4931 = vrot.lane.b32.xlu0 %v4795, 8
      %v4932 = vpop.permute.xlu0 %4931
      %4933 = vrot.lane.b32.xlu0 %v4796, 8
      %v4934 = vpop.permute.xlu0 %4933
      %4935 = vrot.lane.b32.xlu0 %v4797, 8
      %v4936 = vpop.permute.xlu0 %4935
      %4937 = vrot.lane.b32.xlu0 %v4798, 8
      %v4938 = vpop.permute.xlu0 %4937
      %4939 = vrot.lane.b32.xlu0 %v4799, 8
      %v4940 = vpop.permute.xlu0 %4939
      %4941 = vrot.lane.b32.xlu0 %v4800, 8
      %v4942 = vpop.permute.xlu0 %4941
      %4943 = vrot.lane.b32.xlu0 %v4801, 8
      %v4944 = vpop.permute.xlu0 %4943
      %4945 = vrot.lane.b32.xlu0 %v4802, 8
      %v4946 = vpop.permute.xlu0 %4945
      %4947 = vrot.lane.b32.xlu0 %v4803, 8
      %v4948 = vpop.permute.xlu0 %4947
      %4949 = vrot.lane.b32.xlu0 %v4804, 8
      %v4950 = vpop.permute.xlu0 %4949
      %4951 = vrot.lane.b32.xlu0 %v4805, 8
      %v4952 = vpop.permute.xlu0 %4951
      %4953 = vrot.lane.b32.xlu0 %v4806, 8
      %v4954 = vpop.permute.xlu0 %4953
      %4955 = vrot.lane.b32.xlu0 %v4807, 8
      %v4956 = vpop.permute.xlu0 %4955
      %4957 = vrot.lane.b32.xlu0 %v4808, 8
      %v4958 = vpop.permute.xlu0 %4957
      %4959 = vrot.lane.b32.xlu0 %v4809, 8
      %v4960 = vpop.permute.xlu0 %4959
      %4961 = vrot.lane.b32.xlu0 %v4810, 8
      %v4962 = vpop.permute.xlu0 %4961
      %4963 = vrot.lane.b32.xlu0 %v4811, 8
      %v4964 = vpop.permute.xlu0 %4963
      %4965 = vrot.lane.b32.xlu0 %v4812, 8
      %v4966 = vpop.permute.xlu0 %4965
      %4967 = vrot.lane.b32.xlu0 %v4813, 8
      %v4968 = vpop.permute.xlu0 %4967
      %4969 = vrot.lane.b32.xlu0 %v4814, 8
      %v4970 = vpop.permute.xlu0 %4969
      %4971 = vrot.lane.b32.xlu0 %v4815, 8
      %v4972 = vpop.permute.xlu0 %4971
      %4973 = vrot.lane.b32.xlu0 %v4816, 8
      %v4974 = vpop.permute.xlu0 %4973
      %4975 = vrot.lane.b32.xlu0 %v4817, 8
      %v4976 = vpop.permute.xlu0 %4975
      %4977 = vrot.lane.b32.xlu0 %v4818, 8
      %v4978 = vpop.permute.xlu0 %4977
      %4979 = vrot.lane.b32.xlu0 %v4819, 8
      %v4980 = vpop.permute.xlu0 %4979
      %4981 = vrot.lane.b32.xlu0 %v4820, 8
      %v4982 = vpop.permute.xlu0 %4981
      %4983 = vrot.lane.b32.xlu0 %v4821, 8
      %v4984 = vpop.permute.xlu0 %4983
      %4985 = vrot.lane.b32.xlu0 %v4822, 8
      %v4986 = vpop.permute.xlu0 %4985
      %4987 = vrot.lane.b32.xlu0 %v4823, 8
      %v4988 = vpop.permute.xlu0 %4987
      %4989 = vrot.lane.b32.xlu0 %v4824, 8
      %v4990 = vpop.permute.xlu0 %4989
      %4991 = vrot.lane.b32.xlu0 %v4825, 8
      %v4992 = vpop.permute.xlu0 %4991
      %4993 = vrot.lane.b32.xlu0 %v4826, 8
      %v4994 = vpop.permute.xlu0 %4993
      %4995 = vrot.lane.b32.xlu0 %v4827, 8
      %v4996 = vpop.permute.xlu0 %4995
      %4997 = vrot.lane.b32.xlu0 %v4828, 8
      %v4998 = vpop.permute.xlu0 %4997
      %4999 = vrot.lane.b32.xlu0 %v4829, 8
      %v5000 = vpop.permute.xlu0 %4999
      %5001 = vrot.lane.b32.xlu0 %v4830, 8
      %v5002 = vpop.permute.xlu0 %5001
      %5003 = vrot.lane.b32.xlu0 %v4831, 8
      %v5004 = vpop.permute.xlu0 %5003
      %5005 = vrot.lane.b32.xlu0 %v4832, 8
      %v5006 = vpop.permute.xlu0 %5005
      %5007 = vrot.lane.b32.xlu0 %v4833, 8
      %v5008 = vpop.permute.xlu0 %5007
      %5009 = vrot.lane.b32.xlu0 %v4834, 8
      %v5010 = vpop.permute.xlu0 %5009
      %5011 = vrot.lane.b32.xlu0 %v4835, 8
      %v5012 = vpop.permute.xlu0 %5011
      %5013 = vrot.lane.b32.xlu0 %v4836, 8
      %v5014 = vpop.permute.xlu0 %5013
      %5015 = vrot.lane.b32.xlu0 %v4837, 8
      %v5016 = vpop.permute.xlu0 %5015
      %5017 = vrot.lane.b32.xlu0 %v4838, 8
      %v5018 = vpop.permute.xlu0 %5017
      %5019 = vrot.lane.b32.xlu0 %v4839, 8
      %v5020 = vpop.permute.xlu0 %5019
      %5021 = vrot.lane.b32.xlu0 %v4840, 8
      %v5022 = vpop.permute.xlu0 %5021
      %5023 = vrot.lane.b32.xlu0 %v4841, 8
      %v5024 = vpop.permute.xlu0 %5023
      %5025 = vrot.lane.b32.xlu0 %v4842, 8
      %v5026 = vpop.permute.xlu0 %5025
      %5027 = vrot.lane.b32.xlu0 %v4843, 8
      %v5028 = vpop.permute.xlu0 %5027
      %5029 = vrot.lane.b32.xlu0 %v4844, 8
      %v5030 = vpop.permute.xlu0 %5029
      %5031 = vrot.lane.b32.xlu0 %v4845, 8
      %v5032 = vpop.permute.xlu0 %5031
      %5033 = vrot.lane.b32.xlu0 %v4846, 8
      %v5034 = vpop.permute.xlu0 %5033
      %5035 = vrot.lane.b32.xlu0 %v4847, 8
      %v5036 = vpop.permute.xlu0 %5035
      %5037 = vrot.lane.b32.xlu0 %v4848, 8
      %v5038 = vpop.permute.xlu0 %5037
      %5039 = vrot.lane.b32.xlu0 %v4849, 8
      %v5040 = vpop.permute.xlu0 %5039
      %5041 = vrot.lane.b32.xlu0 %v4850, 8
      %v5042 = vpop.permute.xlu0 %5041
      %5107 = vst.msk [vmem:[#allocation4] sm:$0xff] %vm983, %v4916
      %5108 = vst.msk [vmem:[#allocation4 + $0x8] sm:$0xff] %vm983, %v4918
      %5109 = vst.msk [vmem:[#allocation4 + $0x10] sm:$0xff] %vm983, %v4920
      %5110 = vst.msk [vmem:[#allocation4 + $0x18] sm:$0xff] %vm983, %v4922
      %5111 = vst.msk [vmem:[#allocation4 + $0x20] sm:$0xff] %vm983, %v4924
      %5112 = vst.msk [vmem:[#allocation4 + $0x28] sm:$0xff] %vm983, %v4926
      %5113 = vst.msk [vmem:[#allocation4 + $0x30] sm:$0xff] %vm983, %v4928
      %5114 = vst.msk [vmem:[#allocation4 + $0x38] sm:$0xff] %vm983, %v4930
      %5115 = vst.msk [vmem:[#allocation4 + $0x40] sm:$0xff] %vm983, %v4932
      %5116 = vst.msk [vmem:[#allocation4 + $0x48] sm:$0xff] %vm983, %v4934
      %5117 = vst.msk [vmem:[#allocation4 + $0x50] sm:$0xff] %vm983, %v4936
      %5118 = vst.msk [vmem:[#allocation4 + $0x58] sm:$0xff] %vm983, %v4938
      %5119 = vst.msk [vmem:[#allocation4 + $0x60] sm:$0xff] %vm983, %v4940
      %5120 = vst.msk [vmem:[#allocation4 + $0x68] sm:$0xff] %vm983, %v4942
      %5121 = vst.msk [vmem:[#allocation4 + $0x70] sm:$0xff] %vm983, %v4944
      %5122 = vst.msk [vmem:[#allocation4 + $0x78] sm:$0xff] %vm983, %v4946
      %5123 = vst.msk [vmem:[#allocation4 + $0x80] sm:$0xff] %vm983, %v4948
      %5124 = vst.msk [vmem:[#allocation4 + $0x88] sm:$0xff] %vm983, %v4950
      %5125 = vst.msk [vmem:[#allocation4 + $0x90] sm:$0xff] %vm983, %v4952
      %5126 = vst.msk [vmem:[#allocation4 + $0x98] sm:$0xff] %vm983, %v4954
      %5127 = vst.msk [vmem:[#allocation4 + $0xa0] sm:$0xff] %vm983, %v4956
      %5128 = vst.msk [vmem:[#allocation4 + $0xa8] sm:$0xff] %vm983, %v4958
      %5129 = vst.msk [vmem:[#allocation4 + $0xb0] sm:$0xff] %vm983, %v4960
      %5130 = vst.msk [vmem:[#allocation4 + $0xb8] sm:$0xff] %vm983, %v4962
      %5131 = vst.msk [vmem:[#allocation4 + $0xc0] sm:$0xff] %vm983, %v4964
      %5132 = vst.msk [vmem:[#allocation4 + $0xc8] sm:$0xff] %vm983, %v4966
      %5133 = vst.msk [vmem:[#allocation4 + $0xd0] sm:$0xff] %vm983, %v4968
      %5134 = vst.msk [vmem:[#allocation4 + $0xd8] sm:$0xff] %vm983, %v4970
      %5135 = vst.msk [vmem:[#allocation4 + $0xe0] sm:$0xff] %vm983, %v4972
      %5136 = vst.msk [vmem:[#allocation4 + $0xe8] sm:$0xff] %vm983, %v4974
      %5137 = vst.msk [vmem:[#allocation4 + $0xf0] sm:$0xff] %vm983, %v4976
      %5138 = vst.msk [vmem:[#allocation4 + $0xf8] sm:$0xff] %vm983, %v4978
      %5139 = vst.msk [vmem:[#allocation4 + $0x100] sm:$0xff] %vm983, %v4980
      %5140 = vst.msk [vmem:[#allocation4 + $0x108] sm:$0xff] %vm983, %v4982
      %5141 = vst.msk [vmem:[#allocation4 + $0x110] sm:$0xff] %vm983, %v4984
      %5142 = vst.msk [vmem:[#allocation4 + $0x118] sm:$0xff] %vm983, %v4986
      %5143 = vst.msk [vmem:[#allocation4 + $0x120] sm:$0xff] %vm983, %v4988
      %5144 = vst.msk [vmem:[#allocation4 + $0x128] sm:$0xff] %vm983, %v4990
      %5145 = vst.msk [vmem:[#allocation4 + $0x130] sm:$0xff] %vm983, %v4992
      %5146 = vst.msk [vmem:[#allocation4 + $0x138] sm:$0xff] %vm983, %v4994
      %5147 = vst.msk [vmem:[#allocation4 + $0x140] sm:$0xff] %vm983, %v4996
      %5148 = vst.msk [vmem:[#allocation4 + $0x148] sm:$0xff] %vm983, %v4998
      %5149 = vst.msk [vmem:[#allocation4 + $0x150] sm:$0xff] %vm983, %v5000
      %5150 = vst.msk [vmem:[#allocation4 + $0x158] sm:$0xff] %vm983, %v5002
      %5151 = vst.msk [vmem:[#allocation4 + $0x160] sm:$0xff] %vm983, %v5004
      %5152 = vst.msk [vmem:[#allocation4 + $0x168] sm:$0xff] %vm983, %v5006
      %5153 = vst.msk [vmem:[#allocation4 + $0x170] sm:$0xff] %vm983, %v5008
      %5154 = vst.msk [vmem:[#allocation4 + $0x178] sm:$0xff] %vm983, %v5010
      %5155 = vst.msk [vmem:[#allocation4 + $0x180] sm:$0xff] %vm983, %v5012
      %5156 = vst.msk [vmem:[#allocation4 + $0x188] sm:$0xff] %vm983, %v5014
      %5157 = vst.msk [vmem:[#allocation4 + $0x190] sm:$0xff] %vm983, %v5016
      %5158 = vst.msk [vmem:[#allocation4 + $0x198] sm:$0xff] %vm983, %v5018
      %5159 = vst.msk [vmem:[#allocation4 + $0x1a0] sm:$0xff] %vm983, %v5020
      %5160 = vst.msk [vmem:[#allocation4 + $0x1a8] sm:$0xff] %vm983, %v5022
      %5161 = vst.msk [vmem:[#allocation4 + $0x1b0] sm:$0xff] %vm983, %v5024
      %5162 = vst.msk [vmem:[#allocation4 + $0x1b8] sm:$0xff] %vm983, %v5026
      %5163 = vst.msk [vmem:[#allocation4 + $0x1c0] sm:$0xff] %vm983, %v5028
      %5164 = vst.msk [vmem:[#allocation4 + $0x1c8] sm:$0xff] %vm983, %v5030
      %5165 = vst.msk [vmem:[#allocation4 + $0x1d0] sm:$0xff] %vm983, %v5032
      %5166 = vst.msk [vmem:[#allocation4 + $0x1d8] sm:$0xff] %vm983, %v5034
      %5167 = vst.msk [vmem:[#allocation4 + $0x1e0] sm:$0xff] %vm983, %v5036
      %5168 = vst.msk [vmem:[#allocation4 + $0x1e8] sm:$0xff] %vm983, %v5038
      %5169 = vst.msk [vmem:[#allocation4 + $0x1f0] sm:$0xff] %vm983, %v5040
      %5170 = vst.msk [vmem:[#allocation4 + $0x1f8] sm:$0xff] %vm983, %v5042
      %v5171 = vld [vmem:[#allocation3 + $0x2] sm:$0xff]
      %v5172 = vld [vmem:[#allocation3 + $0xa] sm:$0xff]
      %v5173 = vld [vmem:[#allocation3 + $0x1a] sm:$0xff]
      %v5174 = vld [vmem:[#allocation3 + $0x22] sm:$0xff]
      %v5175 = vld [vmem:[#allocation3 + $0x32] sm:$0xff]
      %v5176 = vld [vmem:[#allocation3 + $0x3a] sm:$0xff]
      %v5177 = vld [vmem:[#allocation3 + $0x4a] sm:$0xff]
      %v5178 = vld [vmem:[#allocation3 + $0x52] sm:$0xff]
      %v5179 = vld [vmem:[#allocation3 + $0x62] sm:$0xff]
      %v5180 = vld [vmem:[#allocation3 + $0x6a] sm:$0xff]
      %v5181 = vld [vmem:[#allocation3 + $0x7a] sm:$0xff]
      %v5182 = vld [vmem:[#allocation3 + $0x82] sm:$0xff]
      %v5183 = vld [vmem:[#allocation3 + $0x92] sm:$0xff]
      %v5184 = vld [vmem:[#allocation3 + $0x9a] sm:$0xff]
      %v5185 = vld [vmem:[#allocation3 + $0xaa] sm:$0xff]
      %v5186 = vld [vmem:[#allocation3 + $0xb2] sm:$0xff]
      %v5187 = vld [vmem:[#allocation3 + $0xc2] sm:$0xff]
      %v5188 = vld [vmem:[#allocation3 + $0xca] sm:$0xff]
      %v5189 = vld [vmem:[#allocation3 + $0xda] sm:$0xff]
      %v5190 = vld [vmem:[#allocation3 + $0xe2] sm:$0xff]
      %v5191 = vld [vmem:[#allocation3 + $0xf2] sm:$0xff]
      %v5192 = vld [vmem:[#allocation3 + $0xfa] sm:$0xff]
      %v5193 = vld [vmem:[#allocation3 + $0x10a] sm:$0xff]
      %v5194 = vld [vmem:[#allocation3 + $0x112] sm:$0xff]
      %v5195 = vld [vmem:[#allocation3 + $0x122] sm:$0xff]
      %v5196 = vld [vmem:[#allocation3 + $0x12a] sm:$0xff]
      %v5197 = vld [vmem:[#allocation3 + $0x13a] sm:$0xff]
      %v5198 = vld [vmem:[#allocation3 + $0x142] sm:$0xff]
      %v5199 = vld [vmem:[#allocation3 + $0x152] sm:$0xff]
      %v5200 = vld [vmem:[#allocation3 + $0x15a] sm:$0xff]
      %v5201 = vld [vmem:[#allocation3 + $0x16a] sm:$0xff]
      %v5202 = vld [vmem:[#allocation3 + $0x172] sm:$0xff]
      %v5203 = vld [vmem:[#allocation3 + $0x1b2] sm:$0xff]
      %v5204 = vld [vmem:[#allocation3 + $0x1ba] sm:$0xff]
      %v5205 = vld [vmem:[#allocation3 + $0x1ca] sm:$0xff]
      %v5206 = vld [vmem:[#allocation3 + $0x1d2] sm:$0xff]
      %v5207 = vld [vmem:[#allocation3 + $0x1e2] sm:$0xff]
      %v5208 = vld [vmem:[#allocation3 + $0x1ea] sm:$0xff]
      %v5209 = vld [vmem:[#allocation3 + $0x1fa] sm:$0xff]
      %v5210 = vld [vmem:[#allocation3 + $0x202] sm:$0xff]
      %v5211 = vld [vmem:[#allocation3 + $0x212] sm:$0xff]
      %v5212 = vld [vmem:[#allocation3 + $0x21a] sm:$0xff]
      %v5213 = vld [vmem:[#allocation3 + $0x22a] sm:$0xff]
      %v5214 = vld [vmem:[#allocation3 + $0x232] sm:$0xff]
      %v5215 = vld [vmem:[#allocation3 + $0x242] sm:$0xff]
      %v5216 = vld [vmem:[#allocation3 + $0x24a] sm:$0xff]
      %v5217 = vld [vmem:[#allocation3 + $0x25a] sm:$0xff]
      %v5218 = vld [vmem:[#allocation3 + $0x262] sm:$0xff]
      %v5219 = vld [vmem:[#allocation3 + $0x272] sm:$0xff]
      %v5220 = vld [vmem:[#allocation3 + $0x27a] sm:$0xff]
      %v5221 = vld [vmem:[#allocation3 + $0x28a] sm:$0xff]
      %v5222 = vld [vmem:[#allocation3 + $0x292] sm:$0xff]
      %v5223 = vld [vmem:[#allocation3 + $0x2a2] sm:$0xff]
      %v5224 = vld [vmem:[#allocation3 + $0x2aa] sm:$0xff]
      %v5225 = vld [vmem:[#allocation3 + $0x2ba] sm:$0xff]
      %v5226 = vld [vmem:[#allocation3 + $0x2c2] sm:$0xff]
      %v5227 = vld [vmem:[#allocation3 + $0x2d2] sm:$0xff]
      %v5228 = vld [vmem:[#allocation3 + $0x2da] sm:$0xff]
      %v5229 = vld [vmem:[#allocation3 + $0x2ea] sm:$0xff]
      %v5230 = vld [vmem:[#allocation3 + $0x2f2] sm:$0xff]
      %v5231 = vld [vmem:[#allocation3 + $0x302] sm:$0xff]
      %v5232 = vld [vmem:[#allocation3 + $0x30a] sm:$0xff]
      %v5233 = vld [vmem:[#allocation3 + $0x31a] sm:$0xff]
      %v5234 = vld [vmem:[#allocation3 + $0x322] sm:$0xff]
      %5299 = vrot.lane.b32.xlu0 %v5171, 16
      %v5300 = vpop.permute.xlu0 %5299
      %5301 = vrot.lane.b32.xlu0 %v5172, 16
      %v5302 = vpop.permute.xlu0 %5301
      %5303 = vrot.lane.b32.xlu0 %v5173, 16
      %v5304 = vpop.permute.xlu0 %5303
      %5305 = vrot.lane.b32.xlu0 %v5174, 16
      %v5306 = vpop.permute.xlu0 %5305
      %5307 = vrot.lane.b32.xlu0 %v5175, 16
      %v5308 = vpop.permute.xlu0 %5307
      %5309 = vrot.lane.b32.xlu0 %v5176, 16
      %v5310 = vpop.permute.xlu0 %5309
      %5311 = vrot.lane.b32.xlu0 %v5177, 16
      %v5312 = vpop.permute.xlu0 %5311
      %5313 = vrot.lane.b32.xlu0 %v5178, 16
      %v5314 = vpop.permute.xlu0 %5313
      %5315 = vrot.lane.b32.xlu0 %v5179, 16
      %v5316 = vpop.permute.xlu0 %5315
      %5317 = vrot.lane.b32.xlu0 %v5180, 16
      %v5318 = vpop.permute.xlu0 %5317
      %5319 = vrot.lane.b32.xlu0 %v5181, 16
      %v5320 = vpop.permute.xlu0 %5319
      %5321 = vrot.lane.b32.xlu0 %v5182, 16
      %v5322 = vpop.permute.xlu0 %5321
      %5323 = vrot.lane.b32.xlu0 %v5183, 16
      %v5324 = vpop.permute.xlu0 %5323
      %5325 = vrot.lane.b32.xlu0 %v5184, 16
      %v5326 = vpop.permute.xlu0 %5325
      %5327 = vrot.lane.b32.xlu0 %v5185, 16
      %v5328 = vpop.permute.xlu0 %5327
      %5329 = vrot.lane.b32.xlu0 %v5186, 16
      %v5330 = vpop.permute.xlu0 %5329
      %5331 = vrot.lane.b32.xlu0 %v5187, 16
      %v5332 = vpop.permute.xlu0 %5331
      %5333 = vrot.lane.b32.xlu0 %v5188, 16
      %v5334 = vpop.permute.xlu0 %5333
      %5335 = vrot.lane.b32.xlu0 %v5189, 16
      %v5336 = vpop.permute.xlu0 %5335
      %5337 = vrot.lane.b32.xlu0 %v5190, 16
      %v5338 = vpop.permute.xlu0 %5337
      %5339 = vrot.lane.b32.xlu0 %v5191, 16
      %v5340 = vpop.permute.xlu0 %5339
      %5341 = vrot.lane.b32.xlu0 %v5192, 16
      %v5342 = vpop.permute.xlu0 %5341
      %5343 = vrot.lane.b32.xlu0 %v5193, 16
      %v5344 = vpop.permute.xlu0 %5343
      %5345 = vrot.lane.b32.xlu0 %v5194, 16
      %v5346 = vpop.permute.xlu0 %5345
      %5347 = vrot.lane.b32.xlu0 %v5195, 16
      %v5348 = vpop.permute.xlu0 %5347
      %5349 = vrot.lane.b32.xlu0 %v5196, 16
      %v5350 = vpop.permute.xlu0 %5349
      %5351 = vrot.lane.b32.xlu0 %v5197, 16
      %v5352 = vpop.permute.xlu0 %5351
      %5353 = vrot.lane.b32.xlu0 %v5198, 16
      %v5354 = vpop.permute.xlu0 %5353
      %5355 = vrot.lane.b32.xlu0 %v5199, 16
      %v5356 = vpop.permute.xlu0 %5355
      %5357 = vrot.lane.b32.xlu0 %v5200, 16
      %v5358 = vpop.permute.xlu0 %5357
      %5359 = vrot.lane.b32.xlu0 %v5201, 16
      %v5360 = vpop.permute.xlu0 %5359
      %5361 = vrot.lane.b32.xlu0 %v5202, 16
      %v5362 = vpop.permute.xlu0 %5361
      %5363 = vrot.lane.b32.xlu0 %v5203, 16
      %v5364 = vpop.permute.xlu0 %5363
      %5365 = vrot.lane.b32.xlu0 %v5204, 16
      %v5366 = vpop.permute.xlu0 %5365
      %5367 = vrot.lane.b32.xlu0 %v5205, 16
      %v5368 = vpop.permute.xlu0 %5367
      %5369 = vrot.lane.b32.xlu0 %v5206, 16
      %v5370 = vpop.permute.xlu0 %5369
      %5371 = vrot.lane.b32.xlu0 %v5207, 16
      %v5372 = vpop.permute.xlu0 %5371
      %5373 = vrot.lane.b32.xlu0 %v5208, 16
      %v5374 = vpop.permute.xlu0 %5373
      %5375 = vrot.lane.b32.xlu0 %v5209, 16
      %v5376 = vpop.permute.xlu0 %5375
      %5377 = vrot.lane.b32.xlu0 %v5210, 16
      %v5378 = vpop.permute.xlu0 %5377
      %5379 = vrot.lane.b32.xlu0 %v5211, 16
      %v5380 = vpop.permute.xlu0 %5379
      %5381 = vrot.lane.b32.xlu0 %v5212, 16
      %v5382 = vpop.permute.xlu0 %5381
      %5383 = vrot.lane.b32.xlu0 %v5213, 16
      %v5384 = vpop.permute.xlu0 %5383
      %5385 = vrot.lane.b32.xlu0 %v5214, 16
      %v5386 = vpop.permute.xlu0 %5385
      %5387 = vrot.lane.b32.xlu0 %v5215, 16
      %v5388 = vpop.permute.xlu0 %5387
      %5389 = vrot.lane.b32.xlu0 %v5216, 16
      %v5390 = vpop.permute.xlu0 %5389
      %5391 = vrot.lane.b32.xlu0 %v5217, 16
      %v5392 = vpop.permute.xlu0 %5391
      %5393 = vrot.lane.b32.xlu0 %v5218, 16
      %v5394 = vpop.permute.xlu0 %5393
      %5395 = vrot.lane.b32.xlu0 %v5219, 16
      %v5396 = vpop.permute.xlu0 %5395
      %5397 = vrot.lane.b32.xlu0 %v5220, 16
      %v5398 = vpop.permute.xlu0 %5397
      %5399 = vrot.lane.b32.xlu0 %v5221, 16
      %v5400 = vpop.permute.xlu0 %5399
      %5401 = vrot.lane.b32.xlu0 %v5222, 16
      %v5402 = vpop.permute.xlu0 %5401
      %5403 = vrot.lane.b32.xlu0 %v5223, 16
      %v5404 = vpop.permute.xlu0 %5403
      %5405 = vrot.lane.b32.xlu0 %v5224, 16
      %v5406 = vpop.permute.xlu0 %5405
      %5407 = vrot.lane.b32.xlu0 %v5225, 16
      %v5408 = vpop.permute.xlu0 %5407
      %5409 = vrot.lane.b32.xlu0 %v5226, 16
      %v5410 = vpop.permute.xlu0 %5409
      %5411 = vrot.lane.b32.xlu0 %v5227, 16
      %v5412 = vpop.permute.xlu0 %5411
      %5413 = vrot.lane.b32.xlu0 %v5228, 16
      %v5414 = vpop.permute.xlu0 %5413
      %5415 = vrot.lane.b32.xlu0 %v5229, 16
      %v5416 = vpop.permute.xlu0 %5415
      %5417 = vrot.lane.b32.xlu0 %v5230, 16
      %v5418 = vpop.permute.xlu0 %5417
      %5419 = vrot.lane.b32.xlu0 %v5231, 16
      %v5420 = vpop.permute.xlu0 %5419
      %5421 = vrot.lane.b32.xlu0 %v5232, 16
      %v5422 = vpop.permute.xlu0 %5421
      %5423 = vrot.lane.b32.xlu0 %v5233, 16
      %v5424 = vpop.permute.xlu0 %5423
      %5425 = vrot.lane.b32.xlu0 %v5234, 16
      %v5426 = vpop.permute.xlu0 %5425
      %5491 = vst.msk [vmem:[#allocation4] sm:$0xff] %vm1368, %v5300
      %5492 = vst.msk [vmem:[#allocation4 + $0x8] sm:$0xff] %vm1368, %v5302
      %5493 = vst.msk [vmem:[#allocation4 + $0x10] sm:$0xff] %vm1368, %v5304
      %5494 = vst.msk [vmem:[#allocation4 + $0x18] sm:$0xff] %vm1368, %v5306
      %5495 = vst.msk [vmem:[#allocation4 + $0x20] sm:$0xff] %vm1368, %v5308
      %5496 = vst.msk [vmem:[#allocation4 + $0x28] sm:$0xff] %vm1368, %v5310
      %5497 = vst.msk [vmem:[#allocation4 + $0x30] sm:$0xff] %vm1368, %v5312
      %5498 = vst.msk [vmem:[#allocation4 + $0x38] sm:$0xff] %vm1368, %v5314
      %5499 = vst.msk [vmem:[#allocation4 + $0x40] sm:$0xff] %vm1368, %v5316
      %5500 = vst.msk [vmem:[#allocation4 + $0x48] sm:$0xff] %vm1368, %v5318
      %5501 = vst.msk [vmem:[#allocation4 + $0x50] sm:$0xff] %vm1368, %v5320
      %5502 = vst.msk [vmem:[#allocation4 + $0x58] sm:$0xff] %vm1368, %v5322
      %5503 = vst.msk [vmem:[#allocation4 + $0x60] sm:$0xff] %vm1368, %v5324
      %5504 = vst.msk [vmem:[#allocation4 + $0x68] sm:$0xff] %vm1368, %v5326
      %5505 = vst.msk [vmem:[#allocation4 + $0x70] sm:$0xff] %vm1368, %v5328
      %5506 = vst.msk [vmem:[#allocation4 + $0x78] sm:$0xff] %vm1368, %v5330
      %5507 = vst.msk [vmem:[#allocation4 + $0x80] sm:$0xff] %vm1368, %v5332
      %5508 = vst.msk [vmem:[#allocation4 + $0x88] sm:$0xff] %vm1368, %v5334
      %5509 = vst.msk [vmem:[#allocation4 + $0x90] sm:$0xff] %vm1368, %v5336
      %5510 = vst.msk [vmem:[#allocation4 + $0x98] sm:$0xff] %vm1368, %v5338
      %5511 = vst.msk [vmem:[#allocation4 + $0xa0] sm:$0xff] %vm1368, %v5340
      %5512 = vst.msk [vmem:[#allocation4 + $0xa8] sm:$0xff] %vm1368, %v5342
      %5513 = vst.msk [vmem:[#allocation4 + $0xb0] sm:$0xff] %vm1368, %v5344
      %5514 = vst.msk [vmem:[#allocation4 + $0xb8] sm:$0xff] %vm1368, %v5346
      %5515 = vst.msk [vmem:[#allocation4 + $0xc0] sm:$0xff] %vm1368, %v5348
      %5516 = vst.msk [vmem:[#allocation4 + $0xc8] sm:$0xff] %vm1368, %v5350
      %5517 = vst.msk [vmem:[#allocation4 + $0xd0] sm:$0xff] %vm1368, %v5352
      %5518 = vst.msk [vmem:[#allocation4 + $0xd8] sm:$0xff] %vm1368, %v5354
      %5519 = vst.msk [vmem:[#allocation4 + $0xe0] sm:$0xff] %vm1368, %v5356
      %5520 = vst.msk [vmem:[#allocation4 + $0xe8] sm:$0xff] %vm1368, %v5358
      %5521 = vst.msk [vmem:[#allocation4 + $0xf0] sm:$0xff] %vm1368, %v5360
      %5522 = vst.msk [vmem:[#allocation4 + $0xf8] sm:$0xff] %vm1368, %v5362
      %5523 = vst.msk [vmem:[#allocation4 + $0x100] sm:$0xff] %vm1368, %v5364
      %5524 = vst.msk [vmem:[#allocation4 + $0x108] sm:$0xff] %vm1368, %v5366
      %5525 = vst.msk [vmem:[#allocation4 + $0x110] sm:$0xff] %vm1368, %v5368
      %5526 = vst.msk [vmem:[#allocation4 + $0x118] sm:$0xff] %vm1368, %v5370
      %5527 = vst.msk [vmem:[#allocation4 + $0x120] sm:$0xff] %vm1368, %v5372
      %5528 = vst.msk [vmem:[#allocation4 + $0x128] sm:$0xff] %vm1368, %v5374
      %5529 = vst.msk [vmem:[#allocation4 + $0x130] sm:$0xff] %vm1368, %v5376
      %5530 = vst.msk [vmem:[#allocation4 + $0x138] sm:$0xff] %vm1368, %v5378
      %5531 = vst.msk [vmem:[#allocation4 + $0x140] sm:$0xff] %vm1368, %v5380
      %5532 = vst.msk [vmem:[#allocation4 + $0x148] sm:$0xff] %vm1368, %v5382
      %5533 = vst.msk [vmem:[#allocation4 + $0x150] sm:$0xff] %vm1368, %v5384
      %5534 = vst.msk [vmem:[#allocation4 + $0x158] sm:$0xff] %vm1368, %v5386
      %5535 = vst.msk [vmem:[#allocation4 + $0x160] sm:$0xff] %vm1368, %v5388
      %5536 = vst.msk [vmem:[#allocation4 + $0x168] sm:$0xff] %vm1368, %v5390
      %5537 = vst.msk [vmem:[#allocation4 + $0x170] sm:$0xff] %vm1368, %v5392
      %5538 = vst.msk [vmem:[#allocation4 + $0x178] sm:$0xff] %vm1368, %v5394
      %5539 = vst.msk [vmem:[#allocation4 + $0x180] sm:$0xff] %vm1368, %v5396
      %5540 = vst.msk [vmem:[#allocation4 + $0x188] sm:$0xff] %vm1368, %v5398
      %5541 = vst.msk [vmem:[#allocation4 + $0x190] sm:$0xff] %vm1368, %v5400
      %5542 = vst.msk [vmem:[#allocation4 + $0x198] sm:$0xff] %vm1368, %v5402
      %5543 = vst.msk [vmem:[#allocation4 + $0x1a0] sm:$0xff] %vm1368, %v5404
      %5544 = vst.msk [vmem:[#allocation4 + $0x1a8] sm:$0xff] %vm1368, %v5406
      %5545 = vst.msk [vmem:[#allocation4 + $0x1b0] sm:$0xff] %vm1368, %v5408
      %5546 = vst.msk [vmem:[#allocation4 + $0x1b8] sm:$0xff] %vm1368, %v5410
      %5547 = vst.msk [vmem:[#allocation4 + $0x1c0] sm:$0xff] %vm1368, %v5412
      %5548 = vst.msk [vmem:[#allocation4 + $0x1c8] sm:$0xff] %vm1368, %v5414
      %5549 = vst.msk [vmem:[#allocation4 + $0x1d0] sm:$0xff] %vm1368, %v5416
      %5550 = vst.msk [vmem:[#allocation4 + $0x1d8] sm:$0xff] %vm1368, %v5418
      %5551 = vst.msk [vmem:[#allocation4 + $0x1e0] sm:$0xff] %vm1368, %v5420
      %5552 = vst.msk [vmem:[#allocation4 + $0x1e8] sm:$0xff] %vm1368, %v5422
      %5553 = vst.msk [vmem:[#allocation4 + $0x1f0] sm:$0xff] %vm1368, %v5424
      %5554 = vst.msk [vmem:[#allocation4 + $0x1f8] sm:$0xff] %vm1368, %v5426
      %v5555 = vld [vmem:[%s4594] sm:$0xff]
      %v5556 = vld [vmem:[%s4594 + $0x8] sm:$0xff]
      %v5557 = vld [vmem:[%s4594 + $0x18] sm:$0xff]
      %v5558 = vld [vmem:[%s4594 + $0x20] sm:$0xff]
      %v5559 = vld [vmem:[%s4594 + $0x30] sm:$0xff]
      %v5560 = vld [vmem:[%s4594 + $0x38] sm:$0xff]
      %v5561 = vld [vmem:[%s4594 + $0x48] sm:$0xff]
      %v5562 = vld [vmem:[%s4594 + $0x50] sm:$0xff]
      %v5563 = vld [vmem:[%s4594 + $0x60] sm:$0xff]
      %v5564 = vld [vmem:[%s4594 + $0x68] sm:$0xff]
      %v5565 = vld [vmem:[%s4594 + $0x78] sm:$0xff]
      %v5566 = vld [vmem:[%s4594 + $0x80] sm:$0xff]
      %v5567 = vld [vmem:[%s4594 + $0x90] sm:$0xff]
      %v5568 = vld [vmem:[%s4594 + $0x98] sm:$0xff]
      %v5569 = vld [vmem:[%s4594 + $0xa8] sm:$0xff]
      %v5570 = vld [vmem:[%s4594 + $0xb0] sm:$0xff]
      %v5571 = vld [vmem:[%s4594 + $0xc0] sm:$0xff]
      %v5572 = vld [vmem:[%s4594 + $0xc8] sm:$0xff]
      %v5573 = vld [vmem:[%s4594 + $0xd8] sm:$0xff]
      %v5574 = vld [vmem:[%s4594 + $0xe0] sm:$0xff]
      %v5575 = vld [vmem:[%s4594 + $0xf0] sm:$0xff]
      %v5576 = vld [vmem:[%s4594 + $0xf8] sm:$0xff]
      %v5577 = vld [vmem:[%s4594 + $0x108] sm:$0xff]
      %v5578 = vld [vmem:[%s4594 + $0x110] sm:$0xff]
      %v5579 = vld [vmem:[%s4594 + $0x120] sm:$0xff]
      %v5580 = vld [vmem:[%s4594 + $0x128] sm:$0xff]
      %v5581 = vld [vmem:[%s4594 + $0x138] sm:$0xff]
      %v5582 = vld [vmem:[%s4594 + $0x140] sm:$0xff]
      %v5583 = vld [vmem:[%s4594 + $0x150] sm:$0xff]
      %v5584 = vld [vmem:[%s4594 + $0x158] sm:$0xff]
      %v5585 = vld [vmem:[%s4594 + $0x168] sm:$0xff]
      %v5586 = vld [vmem:[%s4594 + $0x170] sm:$0xff]
      %v5587 = vld [vmem:[%s4594 + $0x1b0] sm:$0xff]
      %v5588 = vld [vmem:[%s4594 + $0x1b8] sm:$0xff]
      %v5589 = vld [vmem:[%s4594 + $0x1c8] sm:$0xff]
      %v5590 = vld [vmem:[%s4594 + $0x1d0] sm:$0xff]
      %v5591 = vld [vmem:[%s4594 + $0x1e0] sm:$0xff]
      %v5592 = vld [vmem:[%s4594 + $0x1e8] sm:$0xff]
      %v5593 = vld [vmem:[%s4594 + $0x1f8] sm:$0xff]
      %v5594 = vld [vmem:[%s4594 + $0x200] sm:$0xff]
      %v5595 = vld [vmem:[%s4594 + $0x210] sm:$0xff]
      %v5596 = vld [vmem:[%s4594 + $0x218] sm:$0xff]
      %v5597 = vld [vmem:[%s4594 + $0x228] sm:$0xff]
      %v5598 = vld [vmem:[%s4594 + $0x230] sm:$0xff]
      %v5599 = vld [vmem:[%s4594 + $0x240] sm:$0xff]
      %v5600 = vld [vmem:[%s4594 + $0x248] sm:$0xff]
      %v5601 = vld [vmem:[%s4594 + $0x258] sm:$0xff]
      %v5602 = vld [vmem:[%s4594 + $0x260] sm:$0xff]
      %v5603 = vld [vmem:[%s4594 + $0x270] sm:$0xff]
      %v5604 = vld [vmem:[%s4594 + $0x278] sm:$0xff]
      %v5605 = vld [vmem:[%s4594 + $0x288] sm:$0xff]
      %v5606 = vld [vmem:[%s4594 + $0x290] sm:$0xff]
      %v5607 = vld [vmem:[%s4594 + $0x2a0] sm:$0xff]
      %v5608 = vld [vmem:[%s4594 + $0x2a8] sm:$0xff]
      %v5609 = vld [vmem:[%s4594 + $0x2b8] sm:$0xff]
      %v5610 = vld [vmem:[%s4594 + $0x2c0] sm:$0xff]
      %v5611 = vld [vmem:[%s4594 + $0x2d0] sm:$0xff]
      %v5612 = vld [vmem:[%s4594 + $0x2d8] sm:$0xff]
      %v5613 = vld [vmem:[%s4594 + $0x2e8] sm:$0xff]
      %v5614 = vld [vmem:[%s4594 + $0x2f0] sm:$0xff]
      %v5615 = vld [vmem:[%s4594 + $0x300] sm:$0xff]
      %v5616 = vld [vmem:[%s4594 + $0x308] sm:$0xff]
      %v5617 = vld [vmem:[%s4594 + $0x318] sm:$0xff]
      %v5618 = vld [vmem:[%s4594 + $0x320] sm:$0xff]
      %5683 = vrot.lane.b32.xlu0 %v5555, 24
      %v5684 = vpop.permute.xlu0 %5683
      %5685 = vrot.lane.b32.xlu0 %v5556, 24
      %v5686 = vpop.permute.xlu0 %5685
      %5687 = vrot.lane.b32.xlu0 %v5557, 24
      %v5688 = vpop.permute.xlu0 %5687
      %5689 = vrot.lane.b32.xlu0 %v5558, 24
      %v5690 = vpop.permute.xlu0 %5689
      %5691 = vrot.lane.b32.xlu0 %v5559, 24
      %v5692 = vpop.permute.xlu0 %5691
      %5693 = vrot.lane.b32.xlu0 %v5560, 24
      %v5694 = vpop.permute.xlu0 %5693
      %5695 = vrot.lane.b32.xlu0 %v5561, 24
      %v5696 = vpop.permute.xlu0 %5695
      %5697 = vrot.lane.b32.xlu0 %v5562, 24
      %v5698 = vpop.permute.xlu0 %5697
      %5699 = vrot.lane.b32.xlu0 %v5563, 24
      %v5700 = vpop.permute.xlu0 %5699
      %5701 = vrot.lane.b32.xlu0 %v5564, 24
      %v5702 = vpop.permute.xlu0 %5701
      %5703 = vrot.lane.b32.xlu0 %v5565, 24
      %v5704 = vpop.permute.xlu0 %5703
      %5705 = vrot.lane.b32.xlu0 %v5566, 24
      %v5706 = vpop.permute.xlu0 %5705
      %5707 = vrot.lane.b32.xlu0 %v5567, 24
      %v5708 = vpop.permute.xlu0 %5707
      %5709 = vrot.lane.b32.xlu0 %v5568, 24
      %v5710 = vpop.permute.xlu0 %5709
      %5711 = vrot.lane.b32.xlu0 %v5569, 24
      %v5712 = vpop.permute.xlu0 %5711
      %5713 = vrot.lane.b32.xlu0 %v5570, 24
      %v5714 = vpop.permute.xlu0 %5713
      %5715 = vrot.lane.b32.xlu0 %v5571, 24
      %v5716 = vpop.permute.xlu0 %5715
      %5717 = vrot.lane.b32.xlu0 %v5572, 24
      %v5718 = vpop.permute.xlu0 %5717
      %5719 = vrot.lane.b32.xlu0 %v5573, 24
      %v5720 = vpop.permute.xlu0 %5719
      %5721 = vrot.lane.b32.xlu0 %v5574, 24
      %v5722 = vpop.permute.xlu0 %5721
      %5723 = vrot.lane.b32.xlu0 %v5575, 24
      %v5724 = vpop.permute.xlu0 %5723
      %5725 = vrot.lane.b32.xlu0 %v5576, 24
      %v5726 = vpop.permute.xlu0 %5725
      %5727 = vrot.lane.b32.xlu0 %v5577, 24
      %v5728 = vpop.permute.xlu0 %5727
      %5729 = vrot.lane.b32.xlu0 %v5578, 24
      %v5730 = vpop.permute.xlu0 %5729
      %5731 = vrot.lane.b32.xlu0 %v5579, 24
      %v5732 = vpop.permute.xlu0 %5731
      %5733 = vrot.lane.b32.xlu0 %v5580, 24
      %v5734 = vpop.permute.xlu0 %5733
      %5735 = vrot.lane.b32.xlu0 %v5581, 24
      %v5736 = vpop.permute.xlu0 %5735
      %5737 = vrot.lane.b32.xlu0 %v5582, 24
      %v5738 = vpop.permute.xlu0 %5737
      %5739 = vrot.lane.b32.xlu0 %v5583, 24
      %v5740 = vpop.permute.xlu0 %5739
      %5741 = vrot.lane.b32.xlu0 %v5584, 24
      %v5742 = vpop.permute.xlu0 %5741
      %5743 = vrot.lane.b32.xlu0 %v5585, 24
      %v5744 = vpop.permute.xlu0 %5743
      %5745 = vrot.lane.b32.xlu0 %v5586, 24
      %v5746 = vpop.permute.xlu0 %5745
      %5747 = vrot.lane.b32.xlu0 %v5587, 24
      %v5748 = vpop.permute.xlu0 %5747
      %5749 = vrot.lane.b32.xlu0 %v5588, 24
      %v5750 = vpop.permute.xlu0 %5749
      %5751 = vrot.lane.b32.xlu0 %v5589, 24
      %v5752 = vpop.permute.xlu0 %5751
      %5753 = vrot.lane.b32.xlu0 %v5590, 24
      %v5754 = vpop.permute.xlu0 %5753
      %5755 = vrot.lane.b32.xlu0 %v5591, 24
      %v5756 = vpop.permute.xlu0 %5755
      %5757 = vrot.lane.b32.xlu0 %v5592, 24
      %v5758 = vpop.permute.xlu0 %5757
      %5759 = vrot.lane.b32.xlu0 %v5593, 24
      %v5760 = vpop.permute.xlu0 %5759
      %5761 = vrot.lane.b32.xlu0 %v5594, 24
      %v5762 = vpop.permute.xlu0 %5761
      %5763 = vrot.lane.b32.xlu0 %v5595, 24
      %v5764 = vpop.permute.xlu0 %5763
      %5765 = vrot.lane.b32.xlu0 %v5596, 24
      %v5766 = vpop.permute.xlu0 %5765
      %5767 = vrot.lane.b32.xlu0 %v5597, 24
      %v5768 = vpop.permute.xlu0 %5767
      %5769 = vrot.lane.b32.xlu0 %v5598, 24
      %v5770 = vpop.permute.xlu0 %5769
      %5771 = vrot.lane.b32.xlu0 %v5599, 24
      %v5772 = vpop.permute.xlu0 %5771
      %5773 = vrot.lane.b32.xlu0 %v5600, 24
      %v5774 = vpop.permute.xlu0 %5773
      %5775 = vrot.lane.b32.xlu0 %v5601, 24
      %v5776 = vpop.permute.xlu0 %5775
      %5777 = vrot.lane.b32.xlu0 %v5602, 24
      %v5778 = vpop.permute.xlu0 %5777
      %5779 = vrot.lane.b32.xlu0 %v5603, 24
      %v5780 = vpop.permute.xlu0 %5779
      %5781 = vrot.lane.b32.xlu0 %v5604, 24
      %v5782 = vpop.permute.xlu0 %5781
      %5783 = vrot.lane.b32.xlu0 %v5605, 24
      %v5784 = vpop.permute.xlu0 %5783
      %5785 = vrot.lane.b32.xlu0 %v5606, 24
      %v5786 = vpop.permute.xlu0 %5785
      %5787 = vrot.lane.b32.xlu0 %v5607, 24
      %v5788 = vpop.permute.xlu0 %5787
      %5789 = vrot.lane.b32.xlu0 %v5608, 24
      %v5790 = vpop.permute.xlu0 %5789
      %5791 = vrot.lane.b32.xlu0 %v5609, 24
      %v5792 = vpop.permute.xlu0 %5791
      %5793 = vrot.lane.b32.xlu0 %v5610, 24
      %v5794 = vpop.permute.xlu0 %5793
      %5795 = vrot.lane.b32.xlu0 %v5611, 24
      %v5796 = vpop.permute.xlu0 %5795
      %5797 = vrot.lane.b32.xlu0 %v5612, 24
      %v5798 = vpop.permute.xlu0 %5797
      %5799 = vrot.lane.b32.xlu0 %v5613, 24
      %v5800 = vpop.permute.xlu0 %5799
      %5801 = vrot.lane.b32.xlu0 %v5614, 24
      %v5802 = vpop.permute.xlu0 %5801
      %5803 = vrot.lane.b32.xlu0 %v5615, 24
      %v5804 = vpop.permute.xlu0 %5803
      %5805 = vrot.lane.b32.xlu0 %v5616, 24
      %v5806 = vpop.permute.xlu0 %5805
      %5807 = vrot.lane.b32.xlu0 %v5617, 24
      %v5808 = vpop.permute.xlu0 %5807
      %5809 = vrot.lane.b32.xlu0 %v5618, 24
      %v5810 = vpop.permute.xlu0 %5809
      %5875 = vst.msk [vmem:[#allocation4] sm:$0xff] %vm1753, %v5684
      %5876 = vst.msk [vmem:[#allocation4 + $0x8] sm:$0xff] %vm1753, %v5686
      %5877 = vst.msk [vmem:[#allocation4 + $0x10] sm:$0xff] %vm1753, %v5688
      %5878 = vst.msk [vmem:[#allocation4 + $0x18] sm:$0xff] %vm1753, %v5690
      %5879 = vst.msk [vmem:[#allocation4 + $0x20] sm:$0xff] %vm1753, %v5692
      %5880 = vst.msk [vmem:[#allocation4 + $0x28] sm:$0xff] %vm1753, %v5694
      %5881 = vst.msk [vmem:[#allocation4 + $0x30] sm:$0xff] %vm1753, %v5696
      %5882 = vst.msk [vmem:[#allocation4 + $0x38] sm:$0xff] %vm1753, %v5698
      %5883 = vst.msk [vmem:[#allocation4 + $0x40] sm:$0xff] %vm1753, %v5700
      %5884 = vst.msk [vmem:[#allocation4 + $0x48] sm:$0xff] %vm1753, %v5702
      %5885 = vst.msk [vmem:[#allocation4 + $0x50] sm:$0xff] %vm1753, %v5704
      %5886 = vst.msk [vmem:[#allocation4 + $0x58] sm:$0xff] %vm1753, %v5706
      %5887 = vst.msk [vmem:[#allocation4 + $0x60] sm:$0xff] %vm1753, %v5708
      %5888 = vst.msk [vmem:[#allocation4 + $0x68] sm:$0xff] %vm1753, %v5710
      %5889 = vst.msk [vmem:[#allocation4 + $0x70] sm:$0xff] %vm1753, %v5712
      %5890 = vst.msk [vmem:[#allocation4 + $0x78] sm:$0xff] %vm1753, %v5714
      %5891 = vst.msk [vmem:[#allocation4 + $0x80] sm:$0xff] %vm1753, %v5716
      %5892 = vst.msk [vmem:[#allocation4 + $0x88] sm:$0xff] %vm1753, %v5718
      %5893 = vst.msk [vmem:[#allocation4 + $0x90] sm:$0xff] %vm1753, %v5720
      %5894 = vst.msk [vmem:[#allocation4 + $0x98] sm:$0xff] %vm1753, %v5722
      %5895 = vst.msk [vmem:[#allocation4 + $0xa0] sm:$0xff] %vm1753, %v5724
      %5896 = vst.msk [vmem:[#allocation4 + $0xa8] sm:$0xff] %vm1753, %v5726
      %5897 = vst.msk [vmem:[#allocation4 + $0xb0] sm:$0xff] %vm1753, %v5728
      %5898 = vst.msk [vmem:[#allocation4 + $0xb8] sm:$0xff] %vm1753, %v5730
      %5899 = vst.msk [vmem:[#allocation4 + $0xc0] sm:$0xff] %vm1753, %v5732
      %5900 = vst.msk [vmem:[#allocation4 + $0xc8] sm:$0xff] %vm1753, %v5734
      %5901 = vst.msk [vmem:[#allocation4 + $0xd0] sm:$0xff] %vm1753, %v5736
      %5902 = vst.msk [vmem:[#allocation4 + $0xd8] sm:$0xff] %vm1753, %v5738
      %5903 = vst.msk [vmem:[#allocation4 + $0xe0] sm:$0xff] %vm1753, %v5740
      %5904 = vst.msk [vmem:[#allocation4 + $0xe8] sm:$0xff] %vm1753, %v5742
      %5905 = vst.msk [vmem:[#allocation4 + $0xf0] sm:$0xff] %vm1753, %v5744
      %5906 = vst.msk [vmem:[#allocation4 + $0xf8] sm:$0xff] %vm1753, %v5746
      %5907 = vst.msk [vmem:[#allocation4 + $0x100] sm:$0xff] %vm1753, %v5748
      %5908 = vst.msk [vmem:[#allocation4 + $0x108] sm:$0xff] %vm1753, %v5750
      %5909 = vst.msk [vmem:[#allocation4 + $0x110] sm:$0xff] %vm1753, %v5752
      %5910 = vst.msk [vmem:[#allocation4 + $0x118] sm:$0xff] %vm1753, %v5754
      %5911 = vst.msk [vmem:[#allocation4 + $0x120] sm:$0xff] %vm1753, %v5756
      %5912 = vst.msk [vmem:[#allocation4 + $0x128] sm:$0xff] %vm1753, %v5758
      %5913 = vst.msk [vmem:[#allocation4 + $0x130] sm:$0xff] %vm1753, %v5760
      %5914 = vst.msk [vmem:[#allocation4 + $0x138] sm:$0xff] %vm1753, %v5762
      %5915 = vst.msk [vmem:[#allocation4 + $0x140] sm:$0xff] %vm1753, %v5764
      %5916 = vst.msk [vmem:[#allocation4 + $0x148] sm:$0xff] %vm1753, %v5766
      %5917 = vst.msk [vmem:[#allocation4 + $0x150] sm:$0xff] %vm1753, %v5768
      %5918 = vst.msk [vmem:[#allocation4 + $0x158] sm:$0xff] %vm1753, %v5770
      %5919 = vst.msk [vmem:[#allocation4 + $0x160] sm:$0xff] %vm1753, %v5772
      %5920 = vst.msk [vmem:[#allocation4 + $0x168] sm:$0xff] %vm1753, %v5774
      %5921 = vst.msk [vmem:[#allocation4 + $0x170] sm:$0xff] %vm1753, %v5776
      %5922 = vst.msk [vmem:[#allocation4 + $0x178] sm:$0xff] %vm1753, %v5778
      %5923 = vst.msk [vmem:[#allocation4 + $0x180] sm:$0xff] %vm1753, %v5780
      %5924 = vst.msk [vmem:[#allocation4 + $0x188] sm:$0xff] %vm1753, %v5782
      %5925 = vst.msk [vmem:[#allocation4 + $0x190] sm:$0xff] %vm1753, %v5784
      %5926 = vst.msk [vmem:[#allocation4 + $0x198] sm:$0xff] %vm1753, %v5786
      %5927 = vst.msk [vmem:[#allocation4 + $0x1a0] sm:$0xff] %vm1753, %v5788
      %5928 = vst.msk [vmem:[#allocation4 + $0x1a8] sm:$0xff] %vm1753, %v5790
      %5929 = vst.msk [vmem:[#allocation4 + $0x1b0] sm:$0xff] %vm1753, %v5792
      %5930 = vst.msk [vmem:[#allocation4 + $0x1b8] sm:$0xff] %vm1753, %v5794
      %5931 = vst.msk [vmem:[#allocation4 + $0x1c0] sm:$0xff] %vm1753, %v5796
      %5932 = vst.msk [vmem:[#allocation4 + $0x1c8] sm:$0xff] %vm1753, %v5798
      %5933 = vst.msk [vmem:[#allocation4 + $0x1d0] sm:$0xff] %vm1753, %v5800
      %5934 = vst.msk [vmem:[#allocation4 + $0x1d8] sm:$0xff] %vm1753, %v5802
      %5935 = vst.msk [vmem:[#allocation4 + $0x1e0] sm:$0xff] %vm1753, %v5804
      %5936 = vst.msk [vmem:[#allocation4 + $0x1e8] sm:$0xff] %vm1753, %v5806
      %5937 = vst.msk [vmem:[#allocation4 + $0x1f0] sm:$0xff] %vm1753, %v5808
      %5938 = vst.msk [vmem:[#allocation4 + $0x1f8] sm:$0xff] %vm1753, %v5810
      %v5939 = vld [vmem:[%s4594 + $0x1] sm:$0xff]
      %v5940 = vld [vmem:[%s4594 + $0x9] sm:$0xff]
      %v5941 = vld [vmem:[%s4594 + $0x19] sm:$0xff]
      %v5942 = vld [vmem:[%s4594 + $0x21] sm:$0xff]
      %v5943 = vld [vmem:[%s4594 + $0x31] sm:$0xff]
      %v5944 = vld [vmem:[%s4594 + $0x39] sm:$0xff]
      %v5945 = vld [vmem:[%s4594 + $0x49] sm:$0xff]
      %v5946 = vld [vmem:[%s4594 + $0x51] sm:$0xff]
      %v5947 = vld [vmem:[%s4594 + $0x61] sm:$0xff]
      %v5948 = vld [vmem:[%s4594 + $0x69] sm:$0xff]
      %v5949 = vld [vmem:[%s4594 + $0x79] sm:$0xff]
      %v5950 = vld [vmem:[%s4594 + $0x81] sm:$0xff]
      %v5951 = vld [vmem:[%s4594 + $0x91] sm:$0xff]
      %v5952 = vld [vmem:[%s4594 + $0x99] sm:$0xff]
      %v5953 = vld [vmem:[%s4594 + $0xa9] sm:$0xff]
      %v5954 = vld [vmem:[%s4594 + $0xb1] sm:$0xff]
      %v5955 = vld [vmem:[%s4594 + $0xc1] sm:$0xff]
      %v5956 = vld [vmem:[%s4594 + $0xc9] sm:$0xff]
      %v5957 = vld [vmem:[%s4594 + $0xd9] sm:$0xff]
      %v5958 = vld [vmem:[%s4594 + $0xe1] sm:$0xff]
      %v5959 = vld [vmem:[%s4594 + $0xf1] sm:$0xff]
      %v5960 = vld [vmem:[%s4594 + $0xf9] sm:$0xff]
      %v5961 = vld [vmem:[%s4594 + $0x109] sm:$0xff]
      %v5962 = vld [vmem:[%s4594 + $0x111] sm:$0xff]
      %v5963 = vld [vmem:[%s4594 + $0x121] sm:$0xff]
      %v5964 = vld [vmem:[%s4594 + $0x129] sm:$0xff]
      %v5965 = vld [vmem:[%s4594 + $0x139] sm:$0xff]
      %v5966 = vld [vmem:[%s4594 + $0x141] sm:$0xff]
      %v5967 = vld [vmem:[%s4594 + $0x151] sm:$0xff]
      %v5968 = vld [vmem:[%s4594 + $0x159] sm:$0xff]
      %v5969 = vld [vmem:[%s4594 + $0x169] sm:$0xff]
      %v5970 = vld [vmem:[%s4594 + $0x171] sm:$0xff]
      %v5971 = vld [vmem:[%s4594 + $0x1b1] sm:$0xff]
      %v5972 = vld [vmem:[%s4594 + $0x1b9] sm:$0xff]
      %v5973 = vld [vmem:[%s4594 + $0x1c9] sm:$0xff]
      %v5974 = vld [vmem:[%s4594 + $0x1d1] sm:$0xff]
      %v5975 = vld [vmem:[%s4594 + $0x1e1] sm:$0xff]
      %v5976 = vld [vmem:[%s4594 + $0x1e9] sm:$0xff]
      %v5977 = vld [vmem:[%s4594 + $0x1f9] sm:$0xff]
      %v5978 = vld [vmem:[%s4594 + $0x201] sm:$0xff]
      %v5979 = vld [vmem:[%s4594 + $0x211] sm:$0xff]
      %v5980 = vld [vmem:[%s4594 + $0x219] sm:$0xff]
      %v5981 = vld [vmem:[%s4594 + $0x229] sm:$0xff]
      %v5982 = vld [vmem:[%s4594 + $0x231] sm:$0xff]
      %v5983 = vld [vmem:[%s4594 + $0x241] sm:$0xff]
      %v5984 = vld [vmem:[%s4594 + $0x249] sm:$0xff]
      %v5985 = vld [vmem:[%s4594 + $0x259] sm:$0xff]
      %v5986 = vld [vmem:[%s4594 + $0x261] sm:$0xff]
      %v5987 = vld [vmem:[%s4594 + $0x271] sm:$0xff]
      %v5988 = vld [vmem:[%s4594 + $0x279] sm:$0xff]
      %v5989 = vld [vmem:[%s4594 + $0x289] sm:$0xff]
      %v5990 = vld [vmem:[%s4594 + $0x291] sm:$0xff]
      %v5991 = vld [vmem:[%s4594 + $0x2a1] sm:$0xff]
      %v5992 = vld [vmem:[%s4594 + $0x2a9] sm:$0xff]
      %v5993 = vld [vmem:[%s4594 + $0x2b9] sm:$0xff]
      %v5994 = vld [vmem:[%s4594 + $0x2c1] sm:$0xff]
      %v5995 = vld [vmem:[%s4594 + $0x2d1] sm:$0xff]
      %v5996 = vld [vmem:[%s4594 + $0x2d9] sm:$0xff]
      %v5997 = vld [vmem:[%s4594 + $0x2e9] sm:$0xff]
      %v5998 = vld [vmem:[%s4594 + $0x2f1] sm:$0xff]
      %v5999 = vld [vmem:[%s4594 + $0x301] sm:$0xff]
      %v6000 = vld [vmem:[%s4594 + $0x309] sm:$0xff]
      %v6001 = vld [vmem:[%s4594 + $0x319] sm:$0xff]
      %v6002 = vld [vmem:[%s4594 + $0x321] sm:$0xff]
      %6067 = vrot.lane.b32.xlu0 %v5939, 32
      %v6068 = vpop.permute.xlu0 %6067
      %6069 = vrot.lane.b32.xlu0 %v5940, 32
      %v6070 = vpop.permute.xlu0 %6069
      %6071 = vrot.lane.b32.xlu0 %v5941, 32
      %v6072 = vpop.permute.xlu0 %6071
      %6073 = vrot.lane.b32.xlu0 %v5942, 32
      %v6074 = vpop.permute.xlu0 %6073
      %6075 = vrot.lane.b32.xlu0 %v5943, 32
      %v6076 = vpop.permute.xlu0 %6075
      %6077 = vrot.lane.b32.xlu0 %v5944, 32
      %v6078 = vpop.permute.xlu0 %6077
      %6079 = vrot.lane.b32.xlu0 %v5945, 32
      %v6080 = vpop.permute.xlu0 %6079
      %6081 = vrot.lane.b32.xlu0 %v5946, 32
      %v6082 = vpop.permute.xlu0 %6081
      %6083 = vrot.lane.b32.xlu0 %v5947, 32
      %v6084 = vpop.permute.xlu0 %6083
      %6085 = vrot.lane.b32.xlu0 %v5948, 32
      %v6086 = vpop.permute.xlu0 %6085
      %6087 = vrot.lane.b32.xlu0 %v5949, 32
      %v6088 = vpop.permute.xlu0 %6087
      %6089 = vrot.lane.b32.xlu0 %v5950, 32
      %v6090 = vpop.permute.xlu0 %6089
      %6091 = vrot.lane.b32.xlu0 %v5951, 32
      %v6092 = vpop.permute.xlu0 %6091
      %6093 = vrot.lane.b32.xlu0 %v5952, 32
      %v6094 = vpop.permute.xlu0 %6093
      %6095 = vrot.lane.b32.xlu0 %v5953, 32
      %v6096 = vpop.permute.xlu0 %6095
      %6097 = vrot.lane.b32.xlu0 %v5954, 32
      %v6098 = vpop.permute.xlu0 %6097
      %6099 = vrot.lane.b32.xlu0 %v5955, 32
      %v6100 = vpop.permute.xlu0 %6099
      %6101 = vrot.lane.b32.xlu0 %v5956, 32
      %v6102 = vpop.permute.xlu0 %6101
      %6103 = vrot.lane.b32.xlu0 %v5957, 32
      %v6104 = vpop.permute.xlu0 %6103
      %6105 = vrot.lane.b32.xlu0 %v5958, 32
      %v6106 = vpop.permute.xlu0 %6105
      %6107 = vrot.lane.b32.xlu0 %v5959, 32
      %v6108 = vpop.permute.xlu0 %6107
      %6109 = vrot.lane.b32.xlu0 %v5960, 32
      %v6110 = vpop.permute.xlu0 %6109
      %6111 = vrot.lane.b32.xlu0 %v5961, 32
      %v6112 = vpop.permute.xlu0 %6111
      %6113 = vrot.lane.b32.xlu0 %v5962, 32
      %v6114 = vpop.permute.xlu0 %6113
      %6115 = vrot.lane.b32.xlu0 %v5963, 32
      %v6116 = vpop.permute.xlu0 %6115
      %6117 = vrot.lane.b32.xlu0 %v5964, 32
      %v6118 = vpop.permute.xlu0 %6117
      %6119 = vrot.lane.b32.xlu0 %v5965, 32
      %v6120 = vpop.permute.xlu0 %6119
      %6121 = vrot.lane.b32.xlu0 %v5966, 32
      %v6122 = vpop.permute.xlu0 %6121
      %6123 = vrot.lane.b32.xlu0 %v5967, 32
      %v6124 = vpop.permute.xlu0 %6123
      %6125 = vrot.lane.b32.xlu0 %v5968, 32
      %v6126 = vpop.permute.xlu0 %6125
      %6127 = vrot.lane.b32.xlu0 %v5969, 32
      %v6128 = vpop.permute.xlu0 %6127
      %6129 = vrot.lane.b32.xlu0 %v5970, 32
      %v6130 = vpop.permute.xlu0 %6129
      %6131 = vrot.lane.b32.xlu0 %v5971, 32
      %v6132 = vpop.permute.xlu0 %6131
      %6133 = vrot.lane.b32.xlu0 %v5972, 32
      %v6134 = vpop.permute.xlu0 %6133
      %6135 = vrot.lane.b32.xlu0 %v5973, 32
      %v6136 = vpop.permute.xlu0 %6135
      %6137 = vrot.lane.b32.xlu0 %v5974, 32
      %v6138 = vpop.permute.xlu0 %6137
      %6139 = vrot.lane.b32.xlu0 %v5975, 32
      %v6140 = vpop.permute.xlu0 %6139
      %6141 = vrot.lane.b32.xlu0 %v5976, 32
      %v6142 = vpop.permute.xlu0 %6141
      %6143 = vrot.lane.b32.xlu0 %v5977, 32
      %v6144 = vpop.permute.xlu0 %6143
      %6145 = vrot.lane.b32.xlu0 %v5978, 32
      %v6146 = vpop.permute.xlu0 %6145
      %6147 = vrot.lane.b32.xlu0 %v5979, 32
      %v6148 = vpop.permute.xlu0 %6147
      %6149 = vrot.lane.b32.xlu0 %v5980, 32
      %v6150 = vpop.permute.xlu0 %6149
      %6151 = vrot.lane.b32.xlu0 %v5981, 32
      %v6152 = vpop.permute.xlu0 %6151
      %6153 = vrot.lane.b32.xlu0 %v5982, 32
      %v6154 = vpop.permute.xlu0 %6153
      %6155 = vrot.lane.b32.xlu0 %v5983, 32
      %v6156 = vpop.permute.xlu0 %6155
      %6157 = vrot.lane.b32.xlu0 %v5984, 32
      %v6158 = vpop.permute.xlu0 %6157
      %6159 = vrot.lane.b32.xlu0 %v5985, 32
      %v6160 = vpop.permute.xlu0 %6159
      %6161 = vrot.lane.b32.xlu0 %v5986, 32
      %v6162 = vpop.permute.xlu0 %6161
      %6163 = vrot.lane.b32.xlu0 %v5987, 32
      %v6164 = vpop.permute.xlu0 %6163
      %6165 = vrot.lane.b32.xlu0 %v5988, 32
      %v6166 = vpop.permute.xlu0 %6165
      %6167 = vrot.lane.b32.xlu0 %v5989, 32
      %v6168 = vpop.permute.xlu0 %6167
      %6169 = vrot.lane.b32.xlu0 %v5990, 32
      %v6170 = vpop.permute.xlu0 %6169
      %6171 = vrot.lane.b32.xlu0 %v5991, 32
      %v6172 = vpop.permute.xlu0 %6171
      %6173 = vrot.lane.b32.xlu0 %v5992, 32
      %v6174 = vpop.permute.xlu0 %6173
      %6175 = vrot.lane.b32.xlu0 %v5993, 32
      %v6176 = vpop.permute.xlu0 %6175
      %6177 = vrot.lane.b32.xlu0 %v5994, 32
      %v6178 = vpop.permute.xlu0 %6177
      %6179 = vrot.lane.b32.xlu0 %v5995, 32
      %v6180 = vpop.permute.xlu0 %6179
      %6181 = vrot.lane.b32.xlu0 %v5996, 32
      %v6182 = vpop.permute.xlu0 %6181
      %6183 = vrot.lane.b32.xlu0 %v5997, 32
      %v6184 = vpop.permute.xlu0 %6183
      %6185 = vrot.lane.b32.xlu0 %v5998, 32
      %v6186 = vpop.permute.xlu0 %6185
      %6187 = vrot.lane.b32.xlu0 %v5999, 32
      %v6188 = vpop.permute.xlu0 %6187
      %6189 = vrot.lane.b32.xlu0 %v6000, 32
      %v6190 = vpop.permute.xlu0 %6189
      %6191 = vrot.lane.b32.xlu0 %v6001, 32
      %v6192 = vpop.permute.xlu0 %6191
      %6193 = vrot.lane.b32.xlu0 %v6002, 32
      %v6194 = vpop.permute.xlu0 %6193
      %6259 = vst.msk [vmem:[#allocation4] sm:$0xff] %vm2138, %v6068
      %6260 = vst.msk [vmem:[#allocation4 + $0x8] sm:$0xff] %vm2138, %v6070
      %6261 = vst.msk [vmem:[#allocation4 + $0x10] sm:$0xff] %vm2138, %v6072
      %6262 = vst.msk [vmem:[#allocation4 + $0x18] sm:$0xff] %vm2138, %v6074
      %6263 = vst.msk [vmem:[#allocation4 + $0x20] sm:$0xff] %vm2138, %v6076
      %6264 = vst.msk [vmem:[#allocation4 + $0x28] sm:$0xff] %vm2138, %v6078
      %6265 = vst.msk [vmem:[#allocation4 + $0x30] sm:$0xff] %vm2138, %v6080
      %6266 = vst.msk [vmem:[#allocation4 + $0x38] sm:$0xff] %vm2138, %v6082
      %6267 = vst.msk [vmem:[#allocation4 + $0x40] sm:$0xff] %vm2138, %v6084
      %6268 = vst.msk [vmem:[#allocation4 + $0x48] sm:$0xff] %vm2138, %v6086
      %6269 = vst.msk [vmem:[#allocation4 + $0x50] sm:$0xff] %vm2138, %v6088
      %6270 = vst.msk [vmem:[#allocation4 + $0x58] sm:$0xff] %vm2138, %v6090
      %6271 = vst.msk [vmem:[#allocation4 + $0x60] sm:$0xff] %vm2138, %v6092
      %6272 = vst.msk [vmem:[#allocation4 + $0x68] sm:$0xff] %vm2138, %v6094
      %6273 = vst.msk [vmem:[#allocation4 + $0x70] sm:$0xff] %vm2138, %v6096
      %6274 = vst.msk [vmem:[#allocation4 + $0x78] sm:$0xff] %vm2138, %v6098
      %6275 = vst.msk [vmem:[#allocation4 + $0x80] sm:$0xff] %vm2138, %v6100
      %6276 = vst.msk [vmem:[#allocation4 + $0x88] sm:$0xff] %vm2138, %v6102
      %6277 = vst.msk [vmem:[#allocation4 + $0x90] sm:$0xff] %vm2138, %v6104
      %6278 = vst.msk [vmem:[#allocation4 + $0x98] sm:$0xff] %vm2138, %v6106
      %6279 = vst.msk [vmem:[#allocation4 + $0xa0] sm:$0xff] %vm2138, %v6108
      %6280 = vst.msk [vmem:[#allocation4 + $0xa8] sm:$0xff] %vm2138, %v6110
      %6281 = vst.msk [vmem:[#allocation4 + $0xb0] sm:$0xff] %vm2138, %v6112
      %6282 = vst.msk [vmem:[#allocation4 + $0xb8] sm:$0xff] %vm2138, %v6114
      %6283 = vst.msk [vmem:[#allocation4 + $0xc0] sm:$0xff] %vm2138, %v6116
      %6284 = vst.msk [vmem:[#allocation4 + $0xc8] sm:$0xff] %vm2138, %v6118
      %6285 = vst.msk [vmem:[#allocation4 + $0xd0] sm:$0xff] %vm2138, %v6120
      %6286 = vst.msk [vmem:[#allocation4 + $0xd8] sm:$0xff] %vm2138, %v6122
      %6287 = vst.msk [vmem:[#allocation4 + $0xe0] sm:$0xff] %vm2138, %v6124
      %6288 = vst.msk [vmem:[#allocation4 + $0xe8] sm:$0xff] %vm2138, %v6126
      %6289 = vst.msk [vmem:[#allocation4 + $0xf0] sm:$0xff] %vm2138, %v6128
      %6290 = vst.msk [vmem:[#allocation4 + $0xf8] sm:$0xff] %vm2138, %v6130
      %6291 = vst.msk [vmem:[#allocation4 + $0x100] sm:$0xff] %vm2138, %v6132
      %6292 = vst.msk [vmem:[#allocation4 + $0x108] sm:$0xff] %vm2138, %v6134
      %6293 = vst.msk [vmem:[#allocation4 + $0x110] sm:$0xff] %vm2138, %v6136
      %6294 = vst.msk [vmem:[#allocation4 + $0x118] sm:$0xff] %vm2138, %v6138
      %6295 = vst.msk [vmem:[#allocation4 + $0x120] sm:$0xff] %vm2138, %v6140
      %6296 = vst.msk [vmem:[#allocation4 + $0x128] sm:$0xff] %vm2138, %v6142
      %6297 = vst.msk [vmem:[#allocation4 + $0x130] sm:$0xff] %vm2138, %v6144
      %6298 = vst.msk [vmem:[#allocation4 + $0x138] sm:$0xff] %vm2138, %v6146
      %6299 = vst.msk [vmem:[#allocation4 + $0x140] sm:$0xff] %vm2138, %v6148
      %6300 = vst.msk [vmem:[#allocation4 + $0x148] sm:$0xff] %vm2138, %v6150
      %6301 = vst.msk [vmem:[#allocation4 + $0x150] sm:$0xff] %vm2138, %v6152
      %6302 = vst.msk [vmem:[#allocation4 + $0x158] sm:$0xff] %vm2138, %v6154
      %6303 = vst.msk [vmem:[#allocation4 + $0x160] sm:$0xff] %vm2138, %v6156
      %6304 = vst.msk [vmem:[#allocation4 + $0x168] sm:$0xff] %vm2138, %v6158
      %6305 = vst.msk [vmem:[#allocation4 + $0x170] sm:$0xff] %vm2138, %v6160
      %6306 = vst.msk [vmem:[#allocation4 + $0x178] sm:$0xff] %vm2138, %v6162
      %6307 = vst.msk [vmem:[#allocation4 + $0x180] sm:$0xff] %vm2138, %v6164
      %6308 = vst.msk [vmem:[#allocation4 + $0x188] sm:$0xff] %vm2138, %v6166
      %6309 = vst.msk [vmem:[#allocation4 + $0x190] sm:$0xff] %vm2138, %v6168
      %6310 = vst.msk [vmem:[#allocation4 + $0x198] sm:$0xff] %vm2138, %v6170
      %6311 = vst.msk [vmem:[#allocation4 + $0x1a0] sm:$0xff] %vm2138, %v6172
      %6312 = vst.msk [vmem:[#allocation4 + $0x1a8] sm:$0xff] %vm2138, %v6174
      %6313 = vst.msk [vmem:[#allocation4 + $0x1b0] sm:$0xff] %vm2138, %v6176
      %6314 = vst.msk [vmem:[#allocation4 + $0x1b8] sm:$0xff] %vm2138, %v6178
      %6315 = vst.msk [vmem:[#allocation4 + $0x1c0] sm:$0xff] %vm2138, %v6180
      %6316 = vst.msk [vmem:[#allocation4 + $0x1c8] sm:$0xff] %vm2138, %v6182
      %6317 = vst.msk [vmem:[#allocation4 + $0x1d0] sm:$0xff] %vm2138, %v6184
      %6318 = vst.msk [vmem:[#allocation4 + $0x1d8] sm:$0xff] %vm2138, %v6186
      %6319 = vst.msk [vmem:[#allocation4 + $0x1e0] sm:$0xff] %vm2138, %v6188
      %6320 = vst.msk [vmem:[#allocation4 + $0x1e8] sm:$0xff] %vm2138, %v6190
      %6321 = vst.msk [vmem:[#allocation4 + $0x1f0] sm:$0xff] %vm2138, %v6192
      %6322 = vst.msk [vmem:[#allocation4 + $0x1f8] sm:$0xff] %vm2138, %v6194
      %v6323 = vld [vmem:[%s4594 + $0x2] sm:$0xff]
      %v6324 = vld [vmem:[%s4594 + $0xa] sm:$0xff]
      %v6325 = vld [vmem:[%s4594 + $0x1a] sm:$0xff]
      %v6326 = vld [vmem:[%s4594 + $0x22] sm:$0xff]
      %v6327 = vld [vmem:[%s4594 + $0x32] sm:$0xff]
      %v6328 = vld [vmem:[%s4594 + $0x3a] sm:$0xff]
      %v6329 = vld [vmem:[%s4594 + $0x4a] sm:$0xff]
      %v6330 = vld [vmem:[%s4594 + $0x52] sm:$0xff]
      %v6331 = vld [vmem:[%s4594 + $0x62] sm:$0xff]
      %v6332 = vld [vmem:[%s4594 + $0x6a] sm:$0xff]
      %v6333 = vld [vmem:[%s4594 + $0x7a] sm:$0xff]
      %v6334 = vld [vmem:[%s4594 + $0x82] sm:$0xff]
      %v6335 = vld [vmem:[%s4594 + $0x92] sm:$0xff]
      %v6336 = vld [vmem:[%s4594 + $0x9a] sm:$0xff]
      %v6337 = vld [vmem:[%s4594 + $0xaa] sm:$0xff]
      %v6338 = vld [vmem:[%s4594 + $0xb2] sm:$0xff]
      %v6339 = vld [vmem:[%s4594 + $0xc2] sm:$0xff]
      %v6340 = vld [vmem:[%s4594 + $0xca] sm:$0xff]
      %v6341 = vld [vmem:[%s4594 + $0xda] sm:$0xff]
      %v6342 = vld [vmem:[%s4594 + $0xe2] sm:$0xff]
      %v6343 = vld [vmem:[%s4594 + $0xf2] sm:$0xff]
      %v6344 = vld [vmem:[%s4594 + $0xfa] sm:$0xff]
      %v6345 = vld [vmem:[%s4594 + $0x10a] sm:$0xff]
      %v6346 = vld [vmem:[%s4594 + $0x112] sm:$0xff]
      %v6347 = vld [vmem:[%s4594 + $0x122] sm:$0xff]
      %v6348 = vld [vmem:[%s4594 + $0x12a] sm:$0xff]
      %v6349 = vld [vmem:[%s4594 + $0x13a] sm:$0xff]
      %v6350 = vld [vmem:[%s4594 + $0x142] sm:$0xff]
      %v6351 = vld [vmem:[%s4594 + $0x152] sm:$0xff]
      %v6352 = vld [vmem:[%s4594 + $0x15a] sm:$0xff]
      %v6353 = vld [vmem:[%s4594 + $0x16a] sm:$0xff]
      %v6354 = vld [vmem:[%s4594 + $0x172] sm:$0xff]
      %v6355 = vld [vmem:[%s4594 + $0x1b2] sm:$0xff]
      %v6356 = vld [vmem:[%s4594 + $0x1ba] sm:$0xff]
      %v6357 = vld [vmem:[%s4594 + $0x1ca] sm:$0xff]
      %v6358 = vld [vmem:[%s4594 + $0x1d2] sm:$0xff]
      %v6359 = vld [vmem:[%s4594 + $0x1e2] sm:$0xff]
      %v6360 = vld [vmem:[%s4594 + $0x1ea] sm:$0xff]
      %v6361 = vld [vmem:[%s4594 + $0x1fa] sm:$0xff]
      %v6362 = vld [vmem:[%s4594 + $0x202] sm:$0xff]
      %v6363 = vld [vmem:[%s4594 + $0x212] sm:$0xff]
      %v6364 = vld [vmem:[%s4594 + $0x21a] sm:$0xff]
      %v6365 = vld [vmem:[%s4594 + $0x22a] sm:$0xff]
      %v6366 = vld [vmem:[%s4594 + $0x232] sm:$0xff]
      %v6367 = vld [vmem:[%s4594 + $0x242] sm:$0xff]
      %v6368 = vld [vmem:[%s4594 + $0x24a] sm:$0xff]
      %v6369 = vld [vmem:[%s4594 + $0x25a] sm:$0xff]
      %v6370 = vld [vmem:[%s4594 + $0x262] sm:$0xff]
      %v6371 = vld [vmem:[%s4594 + $0x272] sm:$0xff]
      %v6372 = vld [vmem:[%s4594 + $0x27a] sm:$0xff]
      %v6373 = vld [vmem:[%s4594 + $0x28a] sm:$0xff]
      %v6374 = vld [vmem:[%s4594 + $0x292] sm:$0xff]
      %v6375 = vld [vmem:[%s4594 + $0x2a2] sm:$0xff]
      %v6376 = vld [vmem:[%s4594 + $0x2aa] sm:$0xff]
      %v6377 = vld [vmem:[%s4594 + $0x2ba] sm:$0xff]
      %v6378 = vld [vmem:[%s4594 + $0x2c2] sm:$0xff]
      %v6379 = vld [vmem:[%s4594 + $0x2d2] sm:$0xff]
      %v6380 = vld [vmem:[%s4594 + $0x2da] sm:$0xff]
      %v6381 = vld [vmem:[%s4594 + $0x2ea] sm:$0xff]
      %v6382 = vld [vmem:[%s4594 + $0x2f2] sm:$0xff]
      %v6383 = vld [vmem:[%s4594 + $0x302] sm:$0xff]
      %v6384 = vld [vmem:[%s4594 + $0x30a] sm:$0xff]
      %v6385 = vld [vmem:[%s4594 + $0x31a] sm:$0xff]
      %v6386 = vld [vmem:[%s4594 + $0x322] sm:$0xff]
      %6451 = vrot.lane.b32.xlu0 %v6323, 40
      %v6452 = vpop.permute.xlu0 %6451
      %6453 = vrot.lane.b32.xlu0 %v6324, 40
      %v6454 = vpop.permute.xlu0 %6453
      %6455 = vrot.lane.b32.xlu0 %v6325, 40
      %v6456 = vpop.permute.xlu0 %6455
      %6457 = vrot.lane.b32.xlu0 %v6326, 40
      %v6458 = vpop.permute.xlu0 %6457
      %6459 = vrot.lane.b32.xlu0 %v6327, 40
      %v6460 = vpop.permute.xlu0 %6459
      %6461 = vrot.lane.b32.xlu0 %v6328, 40
      %v6462 = vpop.permute.xlu0 %6461
      %6463 = vrot.lane.b32.xlu0 %v6329, 40
      %v6464 = vpop.permute.xlu0 %6463
      %6465 = vrot.lane.b32.xlu0 %v6330, 40
      %v6466 = vpop.permute.xlu0 %6465
      %6467 = vrot.lane.b32.xlu0 %v6331, 40
      %v6468 = vpop.permute.xlu0 %6467
      %6469 = vrot.lane.b32.xlu0 %v6332, 40
      %v6470 = vpop.permute.xlu0 %6469
      %6471 = vrot.lane.b32.xlu0 %v6333, 40
      %v6472 = vpop.permute.xlu0 %6471
      %6473 = vrot.lane.b32.xlu0 %v6334, 40
      %v6474 = vpop.permute.xlu0 %6473
      %6475 = vrot.lane.b32.xlu0 %v6335, 40
      %v6476 = vpop.permute.xlu0 %6475
      %6477 = vrot.lane.b32.xlu0 %v6336, 40
      %v6478 = vpop.permute.xlu0 %6477
      %6479 = vrot.lane.b32.xlu0 %v6337, 40
      %v6480 = vpop.permute.xlu0 %6479
      %6481 = vrot.lane.b32.xlu0 %v6338, 40
      %v6482 = vpop.permute.xlu0 %6481
      %6483 = vrot.lane.b32.xlu0 %v6339, 40
      %v6484 = vpop.permute.xlu0 %6483
      %6485 = vrot.lane.b32.xlu0 %v6340, 40
      %v6486 = vpop.permute.xlu0 %6485
      %6487 = vrot.lane.b32.xlu0 %v6341, 40
      %v6488 = vpop.permute.xlu0 %6487
      %6489 = vrot.lane.b32.xlu0 %v6342, 40
      %v6490 = vpop.permute.xlu0 %6489
      %6491 = vrot.lane.b32.xlu0 %v6343, 40
      %v6492 = vpop.permute.xlu0 %6491
      %6493 = vrot.lane.b32.xlu0 %v6344, 40
      %v6494 = vpop.permute.xlu0 %6493
      %6495 = vrot.lane.b32.xlu0 %v6345, 40
      %v6496 = vpop.permute.xlu0 %6495
      %6497 = vrot.lane.b32.xlu0 %v6346, 40
      %v6498 = vpop.permute.xlu0 %6497
      %6499 = vrot.lane.b32.xlu0 %v6347, 40
      %v6500 = vpop.permute.xlu0 %6499
      %6501 = vrot.lane.b32.xlu0 %v6348, 40
      %v6502 = vpop.permute.xlu0 %6501
      %6503 = vrot.lane.b32.xlu0 %v6349, 40
      %v6504 = vpop.permute.xlu0 %6503
      %6505 = vrot.lane.b32.xlu0 %v6350, 40
      %v6506 = vpop.permute.xlu0 %6505
      %6507 = vrot.lane.b32.xlu0 %v6351, 40
      %v6508 = vpop.permute.xlu0 %6507
      %6509 = vrot.lane.b32.xlu0 %v6352, 40
      %v6510 = vpop.permute.xlu0 %6509
      %6511 = vrot.lane.b32.xlu0 %v6353, 40
      %v6512 = vpop.permute.xlu0 %6511
      %6513 = vrot.lane.b32.xlu0 %v6354, 40
      %v6514 = vpop.permute.xlu0 %6513
      %6515 = vrot.lane.b32.xlu0 %v6355, 40
      %v6516 = vpop.permute.xlu0 %6515
      %6517 = vrot.lane.b32.xlu0 %v6356, 40
      %v6518 = vpop.permute.xlu0 %6517
      %6519 = vrot.lane.b32.xlu0 %v6357, 40
      %v6520 = vpop.permute.xlu0 %6519
      %6521 = vrot.lane.b32.xlu0 %v6358, 40
      %v6522 = vpop.permute.xlu0 %6521
      %6523 = vrot.lane.b32.xlu0 %v6359, 40
      %v6524 = vpop.permute.xlu0 %6523
      %6525 = vrot.lane.b32.xlu0 %v6360, 40
      %v6526 = vpop.permute.xlu0 %6525
      %6527 = vrot.lane.b32.xlu0 %v6361, 40
      %v6528 = vpop.permute.xlu0 %6527
      %6529 = vrot.lane.b32.xlu0 %v6362, 40
      %v6530 = vpop.permute.xlu0 %6529
      %6531 = vrot.lane.b32.xlu0 %v6363, 40
      %v6532 = vpop.permute.xlu0 %6531
      %6533 = vrot.lane.b32.xlu0 %v6364, 40
      %v6534 = vpop.permute.xlu0 %6533
      %6535 = vrot.lane.b32.xlu0 %v6365, 40
      %v6536 = vpop.permute.xlu0 %6535
      %6537 = vrot.lane.b32.xlu0 %v6366, 40
      %v6538 = vpop.permute.xlu0 %6537
      %6539 = vrot.lane.b32.xlu0 %v6367, 40
      %v6540 = vpop.permute.xlu0 %6539
      %6541 = vrot.lane.b32.xlu0 %v6368, 40
      %v6542 = vpop.permute.xlu0 %6541
      %6543 = vrot.lane.b32.xlu0 %v6369, 40
      %v6544 = vpop.permute.xlu0 %6543
      %6545 = vrot.lane.b32.xlu0 %v6370, 40
      %v6546 = vpop.permute.xlu0 %6545
      %6547 = vrot.lane.b32.xlu0 %v6371, 40
      %v6548 = vpop.permute.xlu0 %6547
      %6549 = vrot.lane.b32.xlu0 %v6372, 40
      %v6550 = vpop.permute.xlu0 %6549
      %6551 = vrot.lane.b32.xlu0 %v6373, 40
      %v6552 = vpop.permute.xlu0 %6551
      %6553 = vrot.lane.b32.xlu0 %v6374, 40
      %v6554 = vpop.permute.xlu0 %6553
      %6555 = vrot.lane.b32.xlu0 %v6375, 40
      %v6556 = vpop.permute.xlu0 %6555
      %6557 = vrot.lane.b32.xlu0 %v6376, 40
      %v6558 = vpop.permute.xlu0 %6557
      %6559 = vrot.lane.b32.xlu0 %v6377, 40
      %v6560 = vpop.permute.xlu0 %6559
      %6561 = vrot.lane.b32.xlu0 %v6378, 40
      %v6562 = vpop.permute.xlu0 %6561
      %6563 = vrot.lane.b32.xlu0 %v6379, 40
      %v6564 = vpop.permute.xlu0 %6563
      %6565 = vrot.lane.b32.xlu0 %v6380, 40
      %v6566 = vpop.permute.xlu0 %6565
      %6567 = vrot.lane.b32.xlu0 %v6381, 40
      %v6568 = vpop.permute.xlu0 %6567
      %6569 = vrot.lane.b32.xlu0 %v6382, 40
      %v6570 = vpop.permute.xlu0 %6569
      %6571 = vrot.lane.b32.xlu0 %v6383, 40
      %v6572 = vpop.permute.xlu0 %6571
      %6573 = vrot.lane.b32.xlu0 %v6384, 40
      %v6574 = vpop.permute.xlu0 %6573
      %6575 = vrot.lane.b32.xlu0 %v6385, 40
      %v6576 = vpop.permute.xlu0 %6575
      %6577 = vrot.lane.b32.xlu0 %v6386, 40
      %v6578 = vpop.permute.xlu0 %6577
      %6643 = vst.msk [vmem:[#allocation4] sm:$0xff] %vm2523, %v6452
      %6644 = vst.msk [vmem:[#allocation4 + $0x8] sm:$0xff] %vm2523, %v6454
      %6645 = vst.msk [vmem:[#allocation4 + $0x10] sm:$0xff] %vm2523, %v6456
      %6646 = vst.msk [vmem:[#allocation4 + $0x18] sm:$0xff] %vm2523, %v6458
      %6647 = vst.msk [vmem:[#allocation4 + $0x20] sm:$0xff] %vm2523, %v6460
      %6648 = vst.msk [vmem:[#allocation4 + $0x28] sm:$0xff] %vm2523, %v6462
      %6649 = vst.msk [vmem:[#allocation4 + $0x30] sm:$0xff] %vm2523, %v6464
      %6650 = vst.msk [vmem:[#allocation4 + $0x38] sm:$0xff] %vm2523, %v6466
      %6651 = vst.msk [vmem:[#allocation4 + $0x40] sm:$0xff] %vm2523, %v6468
      %6652 = vst.msk [vmem:[#allocation4 + $0x48] sm:$0xff] %vm2523, %v6470
      %6653 = vst.msk [vmem:[#allocation4 + $0x50] sm:$0xff] %vm2523, %v6472
      %6654 = vst.msk [vmem:[#allocation4 + $0x58] sm:$0xff] %vm2523, %v6474
      %6655 = vst.msk [vmem:[#allocation4 + $0x60] sm:$0xff] %vm2523, %v6476
      %6656 = vst.msk [vmem:[#allocation4 + $0x68] sm:$0xff] %vm2523, %v6478
      %6657 = vst.msk [vmem:[#allocation4 + $0x70] sm:$0xff] %vm2523, %v6480
      %6658 = vst.msk [vmem:[#allocation4 + $0x78] sm:$0xff] %vm2523, %v6482
      %6659 = vst.msk [vmem:[#allocation4 + $0x80] sm:$0xff] %vm2523, %v6484
      %6660 = vst.msk [vmem:[#allocation4 + $0x88] sm:$0xff] %vm2523, %v6486
      %6661 = vst.msk [vmem:[#allocation4 + $0x90] sm:$0xff] %vm2523, %v6488
      %6662 = vst.msk [vmem:[#allocation4 + $0x98] sm:$0xff] %vm2523, %v6490
      %6663 = vst.msk [vmem:[#allocation4 + $0xa0] sm:$0xff] %vm2523, %v6492
      %6664 = vst.msk [vmem:[#allocation4 + $0xa8] sm:$0xff] %vm2523, %v6494
      %6665 = vst.msk [vmem:[#allocation4 + $0xb0] sm:$0xff] %vm2523, %v6496
      %6666 = vst.msk [vmem:[#allocation4 + $0xb8] sm:$0xff] %vm2523, %v6498
      %6667 = vst.msk [vmem:[#allocation4 + $0xc0] sm:$0xff] %vm2523, %v6500
      %6668 = vst.msk [vmem:[#allocation4 + $0xc8] sm:$0xff] %vm2523, %v6502
      %6669 = vst.msk [vmem:[#allocation4 + $0xd0] sm:$0xff] %vm2523, %v6504
      %6670 = vst.msk [vmem:[#allocation4 + $0xd8] sm:$0xff] %vm2523, %v6506
      %6671 = vst.msk [vmem:[#allocation4 + $0xe0] sm:$0xff] %vm2523, %v6508
      %6672 = vst.msk [vmem:[#allocation4 + $0xe8] sm:$0xff] %vm2523, %v6510
      %6673 = vst.msk [vmem:[#allocation4 + $0xf0] sm:$0xff] %vm2523, %v6512
      %6674 = vst.msk [vmem:[#allocation4 + $0xf8] sm:$0xff] %vm2523, %v6514
      %6675 = vst.msk [vmem:[#allocation4 + $0x100] sm:$0xff] %vm2523, %v6516
      %6676 = vst.msk [vmem:[#allocation4 + $0x108] sm:$0xff] %vm2523, %v6518
      %6677 = vst.msk [vmem:[#allocation4 + $0x110] sm:$0xff] %vm2523, %v6520
      %6678 = vst.msk [vmem:[#allocation4 + $0x118] sm:$0xff] %vm2523, %v6522
      %6679 = vst.msk [vmem:[#allocation4 + $0x120] sm:$0xff] %vm2523, %v6524
      %6680 = vst.msk [vmem:[#allocation4 + $0x128] sm:$0xff] %vm2523, %v6526
      %6681 = vst.msk [vmem:[#allocation4 + $0x130] sm:$0xff] %vm2523, %v6528
      %6682 = vst.msk [vmem:[#allocation4 + $0x138] sm:$0xff] %vm2523, %v6530
      %6683 = vst.msk [vmem:[#allocation4 + $0x140] sm:$0xff] %vm2523, %v6532
      %6684 = vst.msk [vmem:[#allocation4 + $0x148] sm:$0xff] %vm2523, %v6534
      %6685 = vst.msk [vmem:[#allocation4 + $0x150] sm:$0xff] %vm2523, %v6536
      %6686 = vst.msk [vmem:[#allocation4 + $0x158] sm:$0xff] %vm2523, %v6538
      %6687 = vst.msk [vmem:[#allocation4 + $0x160] sm:$0xff] %vm2523, %v6540
      %6688 = vst.msk [vmem:[#allocation4 + $0x168] sm:$0xff] %vm2523, %v6542
      %6689 = vst.msk [vmem:[#allocation4 + $0x170] sm:$0xff] %vm2523, %v6544
      %6690 = vst.msk [vmem:[#allocation4 + $0x178] sm:$0xff] %vm2523, %v6546
      %6691 = vst.msk [vmem:[#allocation4 + $0x180] sm:$0xff] %vm2523, %v6548
      %6692 = vst.msk [vmem:[#allocation4 + $0x188] sm:$0xff] %vm2523, %v6550
      %6693 = vst.msk [vmem:[#allocation4 + $0x190] sm:$0xff] %vm2523, %v6552
      %6694 = vst.msk [vmem:[#allocation4 + $0x198] sm:$0xff] %vm2523, %v6554
      %6695 = vst.msk [vmem:[#allocation4 + $0x1a0] sm:$0xff] %vm2523, %v6556
      %6696 = vst.msk [vmem:[#allocation4 + $0x1a8] sm:$0xff] %vm2523, %v6558
      %6697 = vst.msk [vmem:[#allocation4 + $0x1b0] sm:$0xff] %vm2523, %v6560
      %6698 = vst.msk [vmem:[#allocation4 + $0x1b8] sm:$0xff] %vm2523, %v6562
      %6699 = vst.msk [vmem:[#allocation4 + $0x1c0] sm:$0xff] %vm2523, %v6564
      %6700 = vst.msk [vmem:[#allocation4 + $0x1c8] sm:$0xff] %vm2523, %v6566
      %6701 = vst.msk [vmem:[#allocation4 + $0x1d0] sm:$0xff] %vm2523, %v6568
      %6702 = vst.msk [vmem:[#allocation4 + $0x1d8] sm:$0xff] %vm2523, %v6570
      %6703 = vst.msk [vmem:[#allocation4 + $0x1e0] sm:$0xff] %vm2523, %v6572
      %6704 = vst.msk [vmem:[#allocation4 + $0x1e8] sm:$0xff] %vm2523, %v6574
      %6705 = vst.msk [vmem:[#allocation4 + $0x1f0] sm:$0xff] %vm2523, %v6576
      %6706 = vst.msk [vmem:[#allocation4 + $0x1f8] sm:$0xff] %vm2523, %v6578
      %s6707 = scalar_lea.vmem [#allocation3], 48
      %v6708 = vld [vmem:[%s6707] sm:$0xff]
      %v6709 = vld [vmem:[%s6707 + $0x8] sm:$0xff]
      %v6710 = vld [vmem:[%s6707 + $0x18] sm:$0xff]
      %v6711 = vld [vmem:[%s6707 + $0x20] sm:$0xff]
      %v6712 = vld [vmem:[%s6707 + $0x30] sm:$0xff]
      %v6713 = vld [vmem:[%s6707 + $0x38] sm:$0xff]
      %v6714 = vld [vmem:[%s6707 + $0x48] sm:$0xff]
      %v6715 = vld [vmem:[%s6707 + $0x50] sm:$0xff]
      %v6716 = vld [vmem:[%s6707 + $0x60] sm:$0xff]
      %v6717 = vld [vmem:[%s6707 + $0x68] sm:$0xff]
      %v6718 = vld [vmem:[%s6707 + $0x78] sm:$0xff]
      %v6719 = vld [vmem:[%s6707 + $0x80] sm:$0xff]
      %v6720 = vld [vmem:[%s6707 + $0x90] sm:$0xff]
      %v6721 = vld [vmem:[%s6707 + $0x98] sm:$0xff]
      %v6722 = vld [vmem:[%s6707 + $0xa8] sm:$0xff]
      %v6723 = vld [vmem:[%s6707 + $0xb0] sm:$0xff]
      %v6724 = vld [vmem:[%s6707 + $0xc0] sm:$0xff]
      %v6725 = vld [vmem:[%s6707 + $0xc8] sm:$0xff]
      %v6726 = vld [vmem:[%s6707 + $0xd8] sm:$0xff]
      %v6727 = vld [vmem:[%s6707 + $0xe0] sm:$0xff]
      %v6728 = vld [vmem:[%s6707 + $0xf0] sm:$0xff]
      %v6729 = vld [vmem:[%s6707 + $0xf8] sm:$0xff]
      %v6730 = vld [vmem:[%s6707 + $0x108] sm:$0xff]
      %v6731 = vld [vmem:[%s6707 + $0x110] sm:$0xff]
      %v6732 = vld [vmem:[%s6707 + $0x120] sm:$0xff]
      %v6733 = vld [vmem:[%s6707 + $0x128] sm:$0xff]
      %v6734 = vld [vmem:[%s6707 + $0x138] sm:$0xff]
      %v6735 = vld [vmem:[%s6707 + $0x140] sm:$0xff]
      %v6736 = vld [vmem:[%s6707 + $0x150] sm:$0xff]
      %v6737 = vld [vmem:[%s6707 + $0x158] sm:$0xff]
      %v6738 = vld [vmem:[%s6707 + $0x168] sm:$0xff]
      %v6739 = vld [vmem:[%s6707 + $0x170] sm:$0xff]
      %v6740 = vld [vmem:[%s6707 + $0x1b0] sm:$0xff]
      %v6741 = vld [vmem:[%s6707 + $0x1b8] sm:$0xff]
      %v6742 = vld [vmem:[%s6707 + $0x1c8] sm:$0xff]
      %v6743 = vld [vmem:[%s6707 + $0x1d0] sm:$0xff]
      %v6744 = vld [vmem:[%s6707 + $0x1e0] sm:$0xff]
      %v6745 = vld [vmem:[%s6707 + $0x1e8] sm:$0xff]
      %v6746 = vld [vmem:[%s6707 + $0x1f8] sm:$0xff]
      %v6747 = vld [vmem:[%s6707 + $0x200] sm:$0xff]
      %v6748 = vld [vmem:[%s6707 + $0x210] sm:$0xff]
      %v6749 = vld [vmem:[%s6707 + $0x218] sm:$0xff]
      %v6750 = vld [vmem:[%s6707 + $0x228] sm:$0xff]
      %v6751 = vld [vmem:[%s6707 + $0x230] sm:$0xff]
      %v6752 = vld [vmem:[%s6707 + $0x240] sm:$0xff]
      %v6753 = vld [vmem:[%s6707 + $0x248] sm:$0xff]
      %v6754 = vld [vmem:[%s6707 + $0x258] sm:$0xff]
      %v6755 = vld [vmem:[%s6707 + $0x260] sm:$0xff]
      %v6756 = vld [vmem:[%s6707 + $0x270] sm:$0xff]
      %v6757 = vld [vmem:[%s6707 + $0x278] sm:$0xff]
      %v6758 = vld [vmem:[%s6707 + $0x288] sm:$0xff]
      %v6759 = vld [vmem:[%s6707 + $0x290] sm:$0xff]
      %v6760 = vld [vmem:[%s6707 + $0x2a0] sm:$0xff]
      %v6761 = vld [vmem:[%s6707 + $0x2a8] sm:$0xff]
      %v6762 = vld [vmem:[%s6707 + $0x2b8] sm:$0xff]
      %v6763 = vld [vmem:[%s6707 + $0x2c0] sm:$0xff]
      %v6764 = vld [vmem:[%s6707 + $0x2d0] sm:$0xff]
      %v6765 = vld [vmem:[%s6707 + $0x2d8] sm:$0xff]
      %v6766 = vld [vmem:[%s6707 + $0x2e8] sm:$0xff]
      %v6767 = vld [vmem:[%s6707 + $0x2f0] sm:$0xff]
      %v6768 = vld [vmem:[%s6707 + $0x300] sm:$0xff]
      %v6769 = vld [vmem:[%s6707 + $0x308] sm:$0xff]
      %v6770 = vld [vmem:[%s6707 + $0x318] sm:$0xff]
      %v6771 = vld [vmem:[%s6707 + $0x320] sm:$0xff]
      %6836 = vrot.lane.b32.xlu0 %v6708, 48
      %v6837 = vpop.permute.xlu0 %6836
      %6838 = vrot.lane.b32.xlu0 %v6709, 48
      %v6839 = vpop.permute.xlu0 %6838
      %6840 = vrot.lane.b32.xlu0 %v6710, 48
      %v6841 = vpop.permute.xlu0 %6840
      %6842 = vrot.lane.b32.xlu0 %v6711, 48
      %v6843 = vpop.permute.xlu0 %6842
      %6844 = vrot.lane.b32.xlu0 %v6712, 48
      %v6845 = vpop.permute.xlu0 %6844
      %6846 = vrot.lane.b32.xlu0 %v6713, 48
      %v6847 = vpop.permute.xlu0 %6846
      %6848 = vrot.lane.b32.xlu0 %v6714, 48
      %v6849 = vpop.permute.xlu0 %6848
      %6850 = vrot.lane.b32.xlu0 %v6715, 48
      %v6851 = vpop.permute.xlu0 %6850
      %6852 = vrot.lane.b32.xlu0 %v6716, 48
      %v6853 = vpop.permute.xlu0 %6852
      %6854 = vrot.lane.b32.xlu0 %v6717, 48
      %v6855 = vpop.permute.xlu0 %6854
      %6856 = vrot.lane.b32.xlu0 %v6718, 48
      %v6857 = vpop.permute.xlu0 %6856
      %6858 = vrot.lane.b32.xlu0 %v6719, 48
      %v6859 = vpop.permute.xlu0 %6858
      %6860 = vrot.lane.b32.xlu0 %v6720, 48
      %v6861 = vpop.permute.xlu0 %6860
      %6862 = vrot.lane.b32.xlu0 %v6721, 48
      %v6863 = vpop.permute.xlu0 %6862
      %6864 = vrot.lane.b32.xlu0 %v6722, 48
      %v6865 = vpop.permute.xlu0 %6864
      %6866 = vrot.lane.b32.xlu0 %v6723, 48
      %v6867 = vpop.permute.xlu0 %6866
      %6868 = vrot.lane.b32.xlu0 %v6724, 48
      %v6869 = vpop.permute.xlu0 %6868
      %6870 = vrot.lane.b32.xlu0 %v6725, 48
      %v6871 = vpop.permute.xlu0 %6870
      %6872 = vrot.lane.b32.xlu0 %v6726, 48
      %v6873 = vpop.permute.xlu0 %6872
      %6874 = vrot.lane.b32.xlu0 %v6727, 48
      %v6875 = vpop.permute.xlu0 %6874
      %6876 = vrot.lane.b32.xlu0 %v6728, 48
      %v6877 = vpop.permute.xlu0 %6876
      %6878 = vrot.lane.b32.xlu0 %v6729, 48
      %v6879 = vpop.permute.xlu0 %6878
      %6880 = vrot.lane.b32.xlu0 %v6730, 48
      %v6881 = vpop.permute.xlu0 %6880
      %6882 = vrot.lane.b32.xlu0 %v6731, 48
      %v6883 = vpop.permute.xlu0 %6882
      %6884 = vrot.lane.b32.xlu0 %v6732, 48
      %v6885 = vpop.permute.xlu0 %6884
      %6886 = vrot.lane.b32.xlu0 %v6733, 48
      %v6887 = vpop.permute.xlu0 %6886
      %6888 = vrot.lane.b32.xlu0 %v6734, 48
      %v6889 = vpop.permute.xlu0 %6888
      %6890 = vrot.lane.b32.xlu0 %v6735, 48
      %v6891 = vpop.permute.xlu0 %6890
      %6892 = vrot.lane.b32.xlu0 %v6736, 48
      %v6893 = vpop.permute.xlu0 %6892
      %6894 = vrot.lane.b32.xlu0 %v6737, 48
      %v6895 = vpop.permute.xlu0 %6894
      %6896 = vrot.lane.b32.xlu0 %v6738, 48
      %v6897 = vpop.permute.xlu0 %6896
      %6898 = vrot.lane.b32.xlu0 %v6739, 48
      %v6899 = vpop.permute.xlu0 %6898
      %6900 = vrot.lane.b32.xlu0 %v6740, 48
      %v6901 = vpop.permute.xlu0 %6900
      %6902 = vrot.lane.b32.xlu0 %v6741, 48
      %v6903 = vpop.permute.xlu0 %6902
      %6904 = vrot.lane.b32.xlu0 %v6742, 48
      %v6905 = vpop.permute.xlu0 %6904
      %6906 = vrot.lane.b32.xlu0 %v6743, 48
      %v6907 = vpop.permute.xlu0 %6906
      %6908 = vrot.lane.b32.xlu0 %v6744, 48
      %v6909 = vpop.permute.xlu0 %6908
      %6910 = vrot.lane.b32.xlu0 %v6745, 48
      %v6911 = vpop.permute.xlu0 %6910
      %6912 = vrot.lane.b32.xlu0 %v6746, 48
      %v6913 = vpop.permute.xlu0 %6912
      %6914 = vrot.lane.b32.xlu0 %v6747, 48
      %v6915 = vpop.permute.xlu0 %6914
      %6916 = vrot.lane.b32.xlu0 %v6748, 48
      %v6917 = vpop.permute.xlu0 %6916
      %6918 = vrot.lane.b32.xlu0 %v6749, 48
      %v6919 = vpop.permute.xlu0 %6918
      %6920 = vrot.lane.b32.xlu0 %v6750, 48
      %v6921 = vpop.permute.xlu0 %6920
      %6922 = vrot.lane.b32.xlu0 %v6751, 48
      %v6923 = vpop.permute.xlu0 %6922
      %6924 = vrot.lane.b32.xlu0 %v6752, 48
      %v6925 = vpop.permute.xlu0 %6924
      %6926 = vrot.lane.b32.xlu0 %v6753, 48
      %v6927 = vpop.permute.xlu0 %6926
      %6928 = vrot.lane.b32.xlu0 %v6754, 48
      %v6929 = vpop.permute.xlu0 %6928
      %6930 = vrot.lane.b32.xlu0 %v6755, 48
      %v6931 = vpop.permute.xlu0 %6930
      %6932 = vrot.lane.b32.xlu0 %v6756, 48
      %v6933 = vpop.permute.xlu0 %6932
      %6934 = vrot.lane.b32.xlu0 %v6757, 48
      %v6935 = vpop.permute.xlu0 %6934
      %6936 = vrot.lane.b32.xlu0 %v6758, 48
      %v6937 = vpop.permute.xlu0 %6936
      %6938 = vrot.lane.b32.xlu0 %v6759, 48
      %v6939 = vpop.permute.xlu0 %6938
      %6940 = vrot.lane.b32.xlu0 %v6760, 48
      %v6941 = vpop.permute.xlu0 %6940
      %6942 = vrot.lane.b32.xlu0 %v6761, 48
      %v6943 = vpop.permute.xlu0 %6942
      %6944 = vrot.lane.b32.xlu0 %v6762, 48
      %v6945 = vpop.permute.xlu0 %6944
      %6946 = vrot.lane.b32.xlu0 %v6763, 48
      %v6947 = vpop.permute.xlu0 %6946
      %6948 = vrot.lane.b32.xlu0 %v6764, 48
      %v6949 = vpop.permute.xlu0 %6948
      %6950 = vrot.lane.b32.xlu0 %v6765, 48
      %v6951 = vpop.permute.xlu0 %6950
      %6952 = vrot.lane.b32.xlu0 %v6766, 48
      %v6953 = vpop.permute.xlu0 %6952
      %6954 = vrot.lane.b32.xlu0 %v6767, 48
      %v6955 = vpop.permute.xlu0 %6954
      %6956 = vrot.lane.b32.xlu0 %v6768, 48
      %v6957 = vpop.permute.xlu0 %6956
      %6958 = vrot.lane.b32.xlu0 %v6769, 48
      %v6959 = vpop.permute.xlu0 %6958
      %6960 = vrot.lane.b32.xlu0 %v6770, 48
      %v6961 = vpop.permute.xlu0 %6960
      %6962 = vrot.lane.b32.xlu0 %v6771, 48
      %v6963 = vpop.permute.xlu0 %6962
      %7028 = vst.msk [vmem:[#allocation4] sm:$0xff] %vm2909, %v6837
      %7029 = vst.msk [vmem:[#allocation4 + $0x8] sm:$0xff] %vm2909, %v6839
      %7030 = vst.msk [vmem:[#allocation4 + $0x10] sm:$0xff] %vm2909, %v6841
      %7031 = vst.msk [vmem:[#allocation4 + $0x18] sm:$0xff] %vm2909, %v6843
      %7032 = vst.msk [vmem:[#allocation4 + $0x20] sm:$0xff] %vm2909, %v6845
      %7033 = vst.msk [vmem:[#allocation4 + $0x28] sm:$0xff] %vm2909, %v6847
      %7034 = vst.msk [vmem:[#allocation4 + $0x30] sm:$0xff] %vm2909, %v6849
      %7035 = vst.msk [vmem:[#allocation4 + $0x38] sm:$0xff] %vm2909, %v6851
      %7036 = vst.msk [vmem:[#allocation4 + $0x40] sm:$0xff] %vm2909, %v6853
      %7037 = vst.msk [vmem:[#allocation4 + $0x48] sm:$0xff] %vm2909, %v6855
      %7038 = vst.msk [vmem:[#allocation4 + $0x50] sm:$0xff] %vm2909, %v6857
      %7039 = vst.msk [vmem:[#allocation4 + $0x58] sm:$0xff] %vm2909, %v6859
      %7040 = vst.msk [vmem:[#allocation4 + $0x60] sm:$0xff] %vm2909, %v6861
      %7041 = vst.msk [vmem:[#allocation4 + $0x68] sm:$0xff] %vm2909, %v6863
      %7042 = vst.msk [vmem:[#allocation4 + $0x70] sm:$0xff] %vm2909, %v6865
      %7043 = vst.msk [vmem:[#allocation4 + $0x78] sm:$0xff] %vm2909, %v6867
      %7044 = vst.msk [vmem:[#allocation4 + $0x80] sm:$0xff] %vm2909, %v6869
      %7045 = vst.msk [vmem:[#allocation4 + $0x88] sm:$0xff] %vm2909, %v6871
      %7046 = vst.msk [vmem:[#allocation4 + $0x90] sm:$0xff] %vm2909, %v6873
      %7047 = vst.msk [vmem:[#allocation4 + $0x98] sm:$0xff] %vm2909, %v6875
      %7048 = vst.msk [vmem:[#allocation4 + $0xa0] sm:$0xff] %vm2909, %v6877
      %7049 = vst.msk [vmem:[#allocation4 + $0xa8] sm:$0xff] %vm2909, %v6879
      %7050 = vst.msk [vmem:[#allocation4 + $0xb0] sm:$0xff] %vm2909, %v6881
      %7051 = vst.msk [vmem:[#allocation4 + $0xb8] sm:$0xff] %vm2909, %v6883
      %7052 = vst.msk [vmem:[#allocation4 + $0xc0] sm:$0xff] %vm2909, %v6885
      %7053 = vst.msk [vmem:[#allocation4 + $0xc8] sm:$0xff] %vm2909, %v6887
      %7054 = vst.msk [vmem:[#allocation4 + $0xd0] sm:$0xff] %vm2909, %v6889
      %7055 = vst.msk [vmem:[#allocation4 + $0xd8] sm:$0xff] %vm2909, %v6891
      %7056 = vst.msk [vmem:[#allocation4 + $0xe0] sm:$0xff] %vm2909, %v6893
      %7057 = vst.msk [vmem:[#allocation4 + $0xe8] sm:$0xff] %vm2909, %v6895
      %7058 = vst.msk [vmem:[#allocation4 + $0xf0] sm:$0xff] %vm2909, %v6897
      %7059 = vst.msk [vmem:[#allocation4 + $0xf8] sm:$0xff] %vm2909, %v6899
      %7060 = vst.msk [vmem:[#allocation4 + $0x100] sm:$0xff] %vm2909, %v6901
      %7061 = vst.msk [vmem:[#allocation4 + $0x108] sm:$0xff] %vm2909, %v6903
      %7062 = vst.msk [vmem:[#allocation4 + $0x110] sm:$0xff] %vm2909, %v6905
      %7063 = vst.msk [vmem:[#allocation4 + $0x118] sm:$0xff] %vm2909, %v6907
      %7064 = vst.msk [vmem:[#allocation4 + $0x120] sm:$0xff] %vm2909, %v6909
      %7065 = vst.msk [vmem:[#allocation4 + $0x128] sm:$0xff] %vm2909, %v6911
      %7066 = vst.msk [vmem:[#allocation4 + $0x130] sm:$0xff] %vm2909, %v6913
      %7067 = vst.msk [vmem:[#allocation4 + $0x138] sm:$0xff] %vm2909, %v6915
      %7068 = vst.msk [vmem:[#allocation4 + $0x140] sm:$0xff] %vm2909, %v6917
      %7069 = vst.msk [vmem:[#allocation4 + $0x148] sm:$0xff] %vm2909, %v6919
      %7070 = vst.msk [vmem:[#allocation4 + $0x150] sm:$0xff] %vm2909, %v6921
      %7071 = vst.msk [vmem:[#allocation4 + $0x158] sm:$0xff] %vm2909, %v6923
      %7072 = vst.msk [vmem:[#allocation4 + $0x160] sm:$0xff] %vm2909, %v6925
      %7073 = vst.msk [vmem:[#allocation4 + $0x168] sm:$0xff] %vm2909, %v6927
      %7074 = vst.msk [vmem:[#allocation4 + $0x170] sm:$0xff] %vm2909, %v6929
      %7075 = vst.msk [vmem:[#allocation4 + $0x178] sm:$0xff] %vm2909, %v6931
      %7076 = vst.msk [vmem:[#allocation4 + $0x180] sm:$0xff] %vm2909, %v6933
      %7077 = vst.msk [vmem:[#allocation4 + $0x188] sm:$0xff] %vm2909, %v6935
      %7078 = vst.msk [vmem:[#allocation4 + $0x190] sm:$0xff] %vm2909, %v6937
      %7079 = vst.msk [vmem:[#allocation4 + $0x198] sm:$0xff] %vm2909, %v6939
      %7080 = vst.msk [vmem:[#allocation4 + $0x1a0] sm:$0xff] %vm2909, %v6941
      %7081 = vst.msk [vmem:[#allocation4 + $0x1a8] sm:$0xff] %vm2909, %v6943
      %7082 = vst.msk [vmem:[#allocation4 + $0x1b0] sm:$0xff] %vm2909, %v6945
      %7083 = vst.msk [vmem:[#allocation4 + $0x1b8] sm:$0xff] %vm2909, %v6947
      %7084 = vst.msk [vmem:[#allocation4 + $0x1c0] sm:$0xff] %vm2909, %v6949
      %7085 = vst.msk [vmem:[#allocation4 + $0x1c8] sm:$0xff] %vm2909, %v6951
      %7086 = vst.msk [vmem:[#allocation4 + $0x1d0] sm:$0xff] %vm2909, %v6953
      %7087 = vst.msk [vmem:[#allocation4 + $0x1d8] sm:$0xff] %vm2909, %v6955
      %7088 = vst.msk [vmem:[#allocation4 + $0x1e0] sm:$0xff] %vm2909, %v6957
      %7089 = vst.msk [vmem:[#allocation4 + $0x1e8] sm:$0xff] %vm2909, %v6959
      %7090 = vst.msk [vmem:[#allocation4 + $0x1f0] sm:$0xff] %vm2909, %v6961
      %7091 = vst.msk [vmem:[#allocation4 + $0x1f8] sm:$0xff] %vm2909, %v6963
      %v7092 = vld [vmem:[%s6707 + $0x1] sm:$0xff]
      %v7093 = vld [vmem:[%s6707 + $0x9] sm:$0xff]
      %v7094 = vld [vmem:[%s6707 + $0x19] sm:$0xff]
      %v7095 = vld [vmem:[%s6707 + $0x21] sm:$0xff]
      %v7096 = vld [vmem:[%s6707 + $0x31] sm:$0xff]
      %v7097 = vld [vmem:[%s6707 + $0x39] sm:$0xff]
      %v7098 = vld [vmem:[%s6707 + $0x49] sm:$0xff]
      %v7099 = vld [vmem:[%s6707 + $0x51] sm:$0xff]
      %v7100 = vld [vmem:[%s6707 + $0x61] sm:$0xff]
      %v7101 = vld [vmem:[%s6707 + $0x69] sm:$0xff]
      %v7102 = vld [vmem:[%s6707 + $0x79] sm:$0xff]
      %v7103 = vld [vmem:[%s6707 + $0x81] sm:$0xff]
      %v7104 = vld [vmem:[%s6707 + $0x91] sm:$0xff]
      %v7105 = vld [vmem:[%s6707 + $0x99] sm:$0xff]
      %v7106 = vld [vmem:[%s6707 + $0xa9] sm:$0xff]
      %v7107 = vld [vmem:[%s6707 + $0xb1] sm:$0xff]
      %v7108 = vld [vmem:[%s6707 + $0xc1] sm:$0xff]
      %v7109 = vld [vmem:[%s6707 + $0xc9] sm:$0xff]
      %v7110 = vld [vmem:[%s6707 + $0xd9] sm:$0xff]
      %v7111 = vld [vmem:[%s6707 + $0xe1] sm:$0xff]
      %v7112 = vld [vmem:[%s6707 + $0xf1] sm:$0xff]
      %v7113 = vld [vmem:[%s6707 + $0xf9] sm:$0xff]
      %v7114 = vld [vmem:[%s6707 + $0x109] sm:$0xff]
      %v7115 = vld [vmem:[%s6707 + $0x111] sm:$0xff]
      %v7116 = vld [vmem:[%s6707 + $0x121] sm:$0xff]
      %v7117 = vld [vmem:[%s6707 + $0x129] sm:$0xff]
      %v7118 = vld [vmem:[%s6707 + $0x139] sm:$0xff]
      %v7119 = vld [vmem:[%s6707 + $0x141] sm:$0xff]
      %v7120 = vld [vmem:[%s6707 + $0x151] sm:$0xff]
      %v7121 = vld [vmem:[%s6707 + $0x159] sm:$0xff]
      %v7122 = vld [vmem:[%s6707 + $0x169] sm:$0xff]
      %v7123 = vld [vmem:[%s6707 + $0x171] sm:$0xff]
      %v7124 = vld [vmem:[%s6707 + $0x1b1] sm:$0xff]
      %v7125 = vld [vmem:[%s6707 + $0x1b9] sm:$0xff]
      %v7126 = vld [vmem:[%s6707 + $0x1c9] sm:$0xff]
      %v7127 = vld [vmem:[%s6707 + $0x1d1] sm:$0xff]
      %v7128 = vld [vmem:[%s6707 + $0x1e1] sm:$0xff]
      %v7129 = vld [vmem:[%s6707 + $0x1e9] sm:$0xff]
      %v7130 = vld [vmem:[%s6707 + $0x1f9] sm:$0xff]
      %v7131 = vld [vmem:[%s6707 + $0x201] sm:$0xff]
      %v7132 = vld [vmem:[%s6707 + $0x211] sm:$0xff]
      %v7133 = vld [vmem:[%s6707 + $0x219] sm:$0xff]
      %v7134 = vld [vmem:[%s6707 + $0x229] sm:$0xff]
      %v7135 = vld [vmem:[%s6707 + $0x231] sm:$0xff]
      %v7136 = vld [vmem:[%s6707 + $0x241] sm:$0xff]
      %v7137 = vld [vmem:[%s6707 + $0x249] sm:$0xff]
      %v7138 = vld [vmem:[%s6707 + $0x259] sm:$0xff]
      %v7139 = vld [vmem:[%s6707 + $0x261] sm:$0xff]
      %v7140 = vld [vmem:[%s6707 + $0x271] sm:$0xff]
      %v7141 = vld [vmem:[%s6707 + $0x279] sm:$0xff]
      %v7142 = vld [vmem:[%s6707 + $0x289] sm:$0xff]
      %v7143 = vld [vmem:[%s6707 + $0x291] sm:$0xff]
      %v7144 = vld [vmem:[%s6707 + $0x2a1] sm:$0xff]
      %v7145 = vld [vmem:[%s6707 + $0x2a9] sm:$0xff]
      %v7146 = vld [vmem:[%s6707 + $0x2b9] sm:$0xff]
      %v7147 = vld [vmem:[%s6707 + $0x2c1] sm:$0xff]
      %v7148 = vld [vmem:[%s6707 + $0x2d1] sm:$0xff]
      %v7149 = vld [vmem:[%s6707 + $0x2d9] sm:$0xff]
      %v7150 = vld [vmem:[%s6707 + $0x2e9] sm:$0xff]
      %v7151 = vld [vmem:[%s6707 + $0x2f1] sm:$0xff]
      %v7152 = vld [vmem:[%s6707 + $0x301] sm:$0xff]
      %v7153 = vld [vmem:[%s6707 + $0x309] sm:$0xff]
      %v7154 = vld [vmem:[%s6707 + $0x319] sm:$0xff]
      %v7155 = vld [vmem:[%s6707 + $0x321] sm:$0xff]
      %7220 = vrot.lane.b32.xlu0 %v7092, 56
      %v7221 = vpop.permute.xlu0 %7220
      %7222 = vrot.lane.b32.xlu0 %v7093, 56
      %v7223 = vpop.permute.xlu0 %7222
      %7224 = vrot.lane.b32.xlu0 %v7094, 56
      %v7225 = vpop.permute.xlu0 %7224
      %7226 = vrot.lane.b32.xlu0 %v7095, 56
      %v7227 = vpop.permute.xlu0 %7226
      %7228 = vrot.lane.b32.xlu0 %v7096, 56
      %v7229 = vpop.permute.xlu0 %7228
      %7230 = vrot.lane.b32.xlu0 %v7097, 56
      %v7231 = vpop.permute.xlu0 %7230
      %7232 = vrot.lane.b32.xlu0 %v7098, 56
      %v7233 = vpop.permute.xlu0 %7232
      %7234 = vrot.lane.b32.xlu0 %v7099, 56
      %v7235 = vpop.permute.xlu0 %7234
      %7236 = vrot.lane.b32.xlu0 %v7100, 56
      %v7237 = vpop.permute.xlu0 %7236
      %7238 = vrot.lane.b32.xlu0 %v7101, 56
      %v7239 = vpop.permute.xlu0 %7238
      %7240 = vrot.lane.b32.xlu0 %v7102, 56
      %v7241 = vpop.permute.xlu0 %7240
      %7242 = vrot.lane.b32.xlu0 %v7103, 56
      %v7243 = vpop.permute.xlu0 %7242
      %7244 = vrot.lane.b32.xlu0 %v7104, 56
      %v7245 = vpop.permute.xlu0 %7244
      %7246 = vrot.lane.b32.xlu0 %v7105, 56
      %v7247 = vpop.permute.xlu0 %7246
      %7248 = vrot.lane.b32.xlu0 %v7106, 56
      %v7249 = vpop.permute.xlu0 %7248
      %7250 = vrot.lane.b32.xlu0 %v7107, 56
      %v7251 = vpop.permute.xlu0 %7250
      %7252 = vrot.lane.b32.xlu0 %v7108, 56
      %v7253 = vpop.permute.xlu0 %7252
      %7254 = vrot.lane.b32.xlu0 %v7109, 56
      %v7255 = vpop.permute.xlu0 %7254
      %7256 = vrot.lane.b32.xlu0 %v7110, 56
      %v7257 = vpop.permute.xlu0 %7256
      %7258 = vrot.lane.b32.xlu0 %v7111, 56
      %v7259 = vpop.permute.xlu0 %7258
      %7260 = vrot.lane.b32.xlu0 %v7112, 56
      %v7261 = vpop.permute.xlu0 %7260
      %7262 = vrot.lane.b32.xlu0 %v7113, 56
      %v7263 = vpop.permute.xlu0 %7262
      %7264 = vrot.lane.b32.xlu0 %v7114, 56
      %v7265 = vpop.permute.xlu0 %7264
      %7266 = vrot.lane.b32.xlu0 %v7115, 56
      %v7267 = vpop.permute.xlu0 %7266
      %7268 = vrot.lane.b32.xlu0 %v7116, 56
      %v7269 = vpop.permute.xlu0 %7268
      %7270 = vrot.lane.b32.xlu0 %v7117, 56
      %v7271 = vpop.permute.xlu0 %7270
      %7272 = vrot.lane.b32.xlu0 %v7118, 56
      %v7273 = vpop.permute.xlu0 %7272
      %7274 = vrot.lane.b32.xlu0 %v7119, 56
      %v7275 = vpop.permute.xlu0 %7274
      %7276 = vrot.lane.b32.xlu0 %v7120, 56
      %v7277 = vpop.permute.xlu0 %7276
      %7278 = vrot.lane.b32.xlu0 %v7121, 56
      %v7279 = vpop.permute.xlu0 %7278
      %7280 = vrot.lane.b32.xlu0 %v7122, 56
      %v7281 = vpop.permute.xlu0 %7280
      %7282 = vrot.lane.b32.xlu0 %v7123, 56
      %v7283 = vpop.permute.xlu0 %7282
      %7284 = vrot.lane.b32.xlu0 %v7124, 56
      %v7285 = vpop.permute.xlu0 %7284
      %7286 = vrot.lane.b32.xlu0 %v7125, 56
      %v7287 = vpop.permute.xlu0 %7286
      %7288 = vrot.lane.b32.xlu0 %v7126, 56
      %v7289 = vpop.permute.xlu0 %7288
      %7290 = vrot.lane.b32.xlu0 %v7127, 56
      %v7291 = vpop.permute.xlu0 %7290
      %7292 = vrot.lane.b32.xlu0 %v7128, 56
      %v7293 = vpop.permute.xlu0 %7292
      %7294 = vrot.lane.b32.xlu0 %v7129, 56
      %v7295 = vpop.permute.xlu0 %7294
      %7296 = vrot.lane.b32.xlu0 %v7130, 56
      %v7297 = vpop.permute.xlu0 %7296
      %7298 = vrot.lane.b32.xlu0 %v7131, 56
      %v7299 = vpop.permute.xlu0 %7298
      %7300 = vrot.lane.b32.xlu0 %v7132, 56
      %v7301 = vpop.permute.xlu0 %7300
      %7302 = vrot.lane.b32.xlu0 %v7133, 56
      %v7303 = vpop.permute.xlu0 %7302
      %7304 = vrot.lane.b32.xlu0 %v7134, 56
      %v7305 = vpop.permute.xlu0 %7304
      %7306 = vrot.lane.b32.xlu0 %v7135, 56
      %v7307 = vpop.permute.xlu0 %7306
      %7308 = vrot.lane.b32.xlu0 %v7136, 56
      %v7309 = vpop.permute.xlu0 %7308
      %7310 = vrot.lane.b32.xlu0 %v7137, 56
      %v7311 = vpop.permute.xlu0 %7310
      %7312 = vrot.lane.b32.xlu0 %v7138, 56
      %v7313 = vpop.permute.xlu0 %7312
      %7314 = vrot.lane.b32.xlu0 %v7139, 56
      %v7315 = vpop.permute.xlu0 %7314
      %7316 = vrot.lane.b32.xlu0 %v7140, 56
      %v7317 = vpop.permute.xlu0 %7316
      %7318 = vrot.lane.b32.xlu0 %v7141, 56
      %v7319 = vpop.permute.xlu0 %7318
      %7320 = vrot.lane.b32.xlu0 %v7142, 56
      %v7321 = vpop.permute.xlu0 %7320
      %7322 = vrot.lane.b32.xlu0 %v7143, 56
      %v7323 = vpop.permute.xlu0 %7322
      %7324 = vrot.lane.b32.xlu0 %v7144, 56
      %v7325 = vpop.permute.xlu0 %7324
      %7326 = vrot.lane.b32.xlu0 %v7145, 56
      %v7327 = vpop.permute.xlu0 %7326
      %7328 = vrot.lane.b32.xlu0 %v7146, 56
      %v7329 = vpop.permute.xlu0 %7328
      %7330 = vrot.lane.b32.xlu0 %v7147, 56
      %v7331 = vpop.permute.xlu0 %7330
      %7332 = vrot.lane.b32.xlu0 %v7148, 56
      %v7333 = vpop.permute.xlu0 %7332
      %7334 = vrot.lane.b32.xlu0 %v7149, 56
      %v7335 = vpop.permute.xlu0 %7334
      %7336 = vrot.lane.b32.xlu0 %v7150, 56
      %v7337 = vpop.permute.xlu0 %7336
      %7338 = vrot.lane.b32.xlu0 %v7151, 56
      %v7339 = vpop.permute.xlu0 %7338
      %7340 = vrot.lane.b32.xlu0 %v7152, 56
      %v7341 = vpop.permute.xlu0 %7340
      %7342 = vrot.lane.b32.xlu0 %v7153, 56
      %v7343 = vpop.permute.xlu0 %7342
      %7344 = vrot.lane.b32.xlu0 %v7154, 56
      %v7345 = vpop.permute.xlu0 %7344
      %7346 = vrot.lane.b32.xlu0 %v7155, 56
      %v7347 = vpop.permute.xlu0 %7346
      %7412 = vst.msk [vmem:[#allocation4] sm:$0xff] %vm3294, %v7221
      %7413 = vst.msk [vmem:[#allocation4 + $0x8] sm:$0xff] %vm3294, %v7223
      %7414 = vst.msk [vmem:[#allocation4 + $0x10] sm:$0xff] %vm3294, %v7225
      %7415 = vst.msk [vmem:[#allocation4 + $0x18] sm:$0xff] %vm3294, %v7227
      %7416 = vst.msk [vmem:[#allocation4 + $0x20] sm:$0xff] %vm3294, %v7229
      %7417 = vst.msk [vmem:[#allocation4 + $0x28] sm:$0xff] %vm3294, %v7231
      %7418 = vst.msk [vmem:[#allocation4 + $0x30] sm:$0xff] %vm3294, %v7233
      %7419 = vst.msk [vmem:[#allocation4 + $0x38] sm:$0xff] %vm3294, %v7235
      %7420 = vst.msk [vmem:[#allocation4 + $0x40] sm:$0xff] %vm3294, %v7237
      %7421 = vst.msk [vmem:[#allocation4 + $0x48] sm:$0xff] %vm3294, %v7239
      %7422 = vst.msk [vmem:[#allocation4 + $0x50] sm:$0xff] %vm3294, %v7241
      %7423 = vst.msk [vmem:[#allocation4 + $0x58] sm:$0xff] %vm3294, %v7243
      %7424 = vst.msk [vmem:[#allocation4 + $0x60] sm:$0xff] %vm3294, %v7245
      %7425 = vst.msk [vmem:[#allocation4 + $0x68] sm:$0xff] %vm3294, %v7247
      %7426 = vst.msk [vmem:[#allocation4 + $0x70] sm:$0xff] %vm3294, %v7249
      %7427 = vst.msk [vmem:[#allocation4 + $0x78] sm:$0xff] %vm3294, %v7251
      %7428 = vst.msk [vmem:[#allocation4 + $0x80] sm:$0xff] %vm3294, %v7253
      %7429 = vst.msk [vmem:[#allocation4 + $0x88] sm:$0xff] %vm3294, %v7255
      %7430 = vst.msk [vmem:[#allocation4 + $0x90] sm:$0xff] %vm3294, %v7257
      %7431 = vst.msk [vmem:[#allocation4 + $0x98] sm:$0xff] %vm3294, %v7259
      %7432 = vst.msk [vmem:[#allocation4 + $0xa0] sm:$0xff] %vm3294, %v7261
      %7433 = vst.msk [vmem:[#allocation4 + $0xa8] sm:$0xff] %vm3294, %v7263
      %7434 = vst.msk [vmem:[#allocation4 + $0xb0] sm:$0xff] %vm3294, %v7265
      %7435 = vst.msk [vmem:[#allocation4 + $0xb8] sm:$0xff] %vm3294, %v7267
      %7436 = vst.msk [vmem:[#allocation4 + $0xc0] sm:$0xff] %vm3294, %v7269
      %7437 = vst.msk [vmem:[#allocation4 + $0xc8] sm:$0xff] %vm3294, %v7271
      %7438 = vst.msk [vmem:[#allocation4 + $0xd0] sm:$0xff] %vm3294, %v7273
      %7439 = vst.msk [vmem:[#allocation4 + $0xd8] sm:$0xff] %vm3294, %v7275
      %7440 = vst.msk [vmem:[#allocation4 + $0xe0] sm:$0xff] %vm3294, %v7277
      %7441 = vst.msk [vmem:[#allocation4 + $0xe8] sm:$0xff] %vm3294, %v7279
      %7442 = vst.msk [vmem:[#allocation4 + $0xf0] sm:$0xff] %vm3294, %v7281
      %7443 = vst.msk [vmem:[#allocation4 + $0xf8] sm:$0xff] %vm3294, %v7283
      %7444 = vst.msk [vmem:[#allocation4 + $0x100] sm:$0xff] %vm3294, %v7285
      %7445 = vst.msk [vmem:[#allocation4 + $0x108] sm:$0xff] %vm3294, %v7287
      %7446 = vst.msk [vmem:[#allocation4 + $0x110] sm:$0xff] %vm3294, %v7289
      %7447 = vst.msk [vmem:[#allocation4 + $0x118] sm:$0xff] %vm3294, %v7291
      %7448 = vst.msk [vmem:[#allocation4 + $0x120] sm:$0xff] %vm3294, %v7293
      %7449 = vst.msk [vmem:[#allocation4 + $0x128] sm:$0xff] %vm3294, %v7295
      %7450 = vst.msk [vmem:[#allocation4 + $0x130] sm:$0xff] %vm3294, %v7297
      %7451 = vst.msk [vmem:[#allocation4 + $0x138] sm:$0xff] %vm3294, %v7299
      %7452 = vst.msk [vmem:[#allocation4 + $0x140] sm:$0xff] %vm3294, %v7301
      %7453 = vst.msk [vmem:[#allocation4 + $0x148] sm:$0xff] %vm3294, %v7303
      %7454 = vst.msk [vmem:[#allocation4 + $0x150] sm:$0xff] %vm3294, %v7305
      %7455 = vst.msk [vmem:[#allocation4 + $0x158] sm:$0xff] %vm3294, %v7307
      %7456 = vst.msk [vmem:[#allocation4 + $0x160] sm:$0xff] %vm3294, %v7309
      %7457 = vst.msk [vmem:[#allocation4 + $0x168] sm:$0xff] %vm3294, %v7311
      %7458 = vst.msk [vmem:[#allocation4 + $0x170] sm:$0xff] %vm3294, %v7313
      %7459 = vst.msk [vmem:[#allocation4 + $0x178] sm:$0xff] %vm3294, %v7315
      %7460 = vst.msk [vmem:[#allocation4 + $0x180] sm:$0xff] %vm3294, %v7317
      %7461 = vst.msk [vmem:[#allocation4 + $0x188] sm:$0xff] %vm3294, %v7319
      %7462 = vst.msk [vmem:[#allocation4 + $0x190] sm:$0xff] %vm3294, %v7321
      %7463 = vst.msk [vmem:[#allocation4 + $0x198] sm:$0xff] %vm3294, %v7323
      %7464 = vst.msk [vmem:[#allocation4 + $0x1a0] sm:$0xff] %vm3294, %v7325
      %7465 = vst.msk [vmem:[#allocation4 + $0x1a8] sm:$0xff] %vm3294, %v7327
      %7466 = vst.msk [vmem:[#allocation4 + $0x1b0] sm:$0xff] %vm3294, %v7329
      %7467 = vst.msk [vmem:[#allocation4 + $0x1b8] sm:$0xff] %vm3294, %v7331
      %7468 = vst.msk [vmem:[#allocation4 + $0x1c0] sm:$0xff] %vm3294, %v7333
      %7469 = vst.msk [vmem:[#allocation4 + $0x1c8] sm:$0xff] %vm3294, %v7335
      %7470 = vst.msk [vmem:[#allocation4 + $0x1d0] sm:$0xff] %vm3294, %v7337
      %7471 = vst.msk [vmem:[#allocation4 + $0x1d8] sm:$0xff] %vm3294, %v7339
      %7472 = vst.msk [vmem:[#allocation4 + $0x1e0] sm:$0xff] %vm3294, %v7341
      %7473 = vst.msk [vmem:[#allocation4 + $0x1e8] sm:$0xff] %vm3294, %v7343
      %7474 = vst.msk [vmem:[#allocation4 + $0x1f0] sm:$0xff] %vm3294, %v7345
      %7475 = vst.msk [vmem:[#allocation4 + $0x1f8] sm:$0xff] %vm3294, %v7347
      %v7476 = vld [vmem:[%s6707 + $0x2] sm:$0xff]
      %v7477 = vld [vmem:[%s6707 + $0xa] sm:$0xff]
      %v7478 = vld [vmem:[%s6707 + $0x1a] sm:$0xff]
      %v7479 = vld [vmem:[%s6707 + $0x22] sm:$0xff]
      %v7480 = vld [vmem:[%s6707 + $0x32] sm:$0xff]
      %v7481 = vld [vmem:[%s6707 + $0x3a] sm:$0xff]
      %v7482 = vld [vmem:[%s6707 + $0x4a] sm:$0xff]
      %v7483 = vld [vmem:[%s6707 + $0x52] sm:$0xff]
      %v7484 = vld [vmem:[%s6707 + $0x62] sm:$0xff]
      %v7485 = vld [vmem:[%s6707 + $0x6a] sm:$0xff]
      %v7486 = vld [vmem:[%s6707 + $0x7a] sm:$0xff]
      %v7487 = vld [vmem:[%s6707 + $0x82] sm:$0xff]
      %v7488 = vld [vmem:[%s6707 + $0x92] sm:$0xff]
      %v7489 = vld [vmem:[%s6707 + $0x9a] sm:$0xff]
      %v7490 = vld [vmem:[%s6707 + $0xaa] sm:$0xff]
      %v7491 = vld [vmem:[%s6707 + $0xb2] sm:$0xff]
      %v7492 = vld [vmem:[%s6707 + $0xc2] sm:$0xff]
      %v7493 = vld [vmem:[%s6707 + $0xca] sm:$0xff]
      %v7494 = vld [vmem:[%s6707 + $0xda] sm:$0xff]
      %v7495 = vld [vmem:[%s6707 + $0xe2] sm:$0xff]
      %v7496 = vld [vmem:[%s6707 + $0xf2] sm:$0xff]
      %v7497 = vld [vmem:[%s6707 + $0xfa] sm:$0xff]
      %v7498 = vld [vmem:[%s6707 + $0x10a] sm:$0xff]
      %v7499 = vld [vmem:[%s6707 + $0x112] sm:$0xff]
      %v7500 = vld [vmem:[%s6707 + $0x122] sm:$0xff]
      %v7501 = vld [vmem:[%s6707 + $0x12a] sm:$0xff]
      %v7502 = vld [vmem:[%s6707 + $0x13a] sm:$0xff]
      %v7503 = vld [vmem:[%s6707 + $0x142] sm:$0xff]
      %v7504 = vld [vmem:[%s6707 + $0x152] sm:$0xff]
      %v7505 = vld [vmem:[%s6707 + $0x15a] sm:$0xff]
      %v7506 = vld [vmem:[%s6707 + $0x16a] sm:$0xff]
      %v7507 = vld [vmem:[%s6707 + $0x172] sm:$0xff]
      %v7508 = vld [vmem:[%s6707 + $0x1b2] sm:$0xff]
      %v7509 = vld [vmem:[%s6707 + $0x1ba] sm:$0xff]
      %v7510 = vld [vmem:[%s6707 + $0x1ca] sm:$0xff]
      %v7511 = vld [vmem:[%s6707 + $0x1d2] sm:$0xff]
      %v7512 = vld [vmem:[%s6707 + $0x1e2] sm:$0xff]
      %v7513 = vld [vmem:[%s6707 + $0x1ea] sm:$0xff]
      %v7514 = vld [vmem:[%s6707 + $0x1fa] sm:$0xff]
      %v7515 = vld [vmem:[%s6707 + $0x202] sm:$0xff]
      %v7516 = vld [vmem:[%s6707 + $0x212] sm:$0xff]
      %v7517 = vld [vmem:[%s6707 + $0x21a] sm:$0xff]
      %v7518 = vld [vmem:[%s6707 + $0x22a] sm:$0xff]
      %v7519 = vld [vmem:[%s6707 + $0x232] sm:$0xff]
      %v7520 = vld [vmem:[%s6707 + $0x242] sm:$0xff]
      %v7521 = vld [vmem:[%s6707 + $0x24a] sm:$0xff]
      %v7522 = vld [vmem:[%s6707 + $0x25a] sm:$0xff]
      %v7523 = vld [vmem:[%s6707 + $0x262] sm:$0xff]
      %v7524 = vld [vmem:[%s6707 + $0x272] sm:$0xff]
      %v7525 = vld [vmem:[%s6707 + $0x27a] sm:$0xff]
      %v7526 = vld [vmem:[%s6707 + $0x28a] sm:$0xff]
      %v7527 = vld [vmem:[%s6707 + $0x292] sm:$0xff]
      %v7528 = vld [vmem:[%s6707 + $0x2a2] sm:$0xff]
      %v7529 = vld [vmem:[%s6707 + $0x2aa] sm:$0xff]
      %v7530 = vld [vmem:[%s6707 + $0x2ba] sm:$0xff]
      %v7531 = vld [vmem:[%s6707 + $0x2c2] sm:$0xff]
      %v7532 = vld [vmem:[%s6707 + $0x2d2] sm:$0xff]
      %v7533 = vld [vmem:[%s6707 + $0x2da] sm:$0xff]
      %v7534 = vld [vmem:[%s6707 + $0x2ea] sm:$0xff]
      %v7535 = vld [vmem:[%s6707 + $0x2f2] sm:$0xff]
      %v7536 = vld [vmem:[%s6707 + $0x302] sm:$0xff]
      %v7537 = vld [vmem:[%s6707 + $0x30a] sm:$0xff]
      %v7538 = vld [vmem:[%s6707 + $0x31a] sm:$0xff]
      %v7539 = vld [vmem:[%s6707 + $0x322] sm:$0xff]
      %7604 = vrot.lane.b32.xlu0 %v7476, 64
      %v7605 = vpop.permute.xlu0 %7604
      %7606 = vrot.lane.b32.xlu0 %v7477, 64
      %v7607 = vpop.permute.xlu0 %7606
      %7608 = vrot.lane.b32.xlu0 %v7478, 64
      %v7609 = vpop.permute.xlu0 %7608
      %7610 = vrot.lane.b32.xlu0 %v7479, 64
      %v7611 = vpop.permute.xlu0 %7610
      %7612 = vrot.lane.b32.xlu0 %v7480, 64
      %v7613 = vpop.permute.xlu0 %7612
      %7614 = vrot.lane.b32.xlu0 %v7481, 64
      %v7615 = vpop.permute.xlu0 %7614
      %7616 = vrot.lane.b32.xlu0 %v7482, 64
      %v7617 = vpop.permute.xlu0 %7616
      %7618 = vrot.lane.b32.xlu0 %v7483, 64
      %v7619 = vpop.permute.xlu0 %7618
      %7620 = vrot.lane.b32.xlu0 %v7484, 64
      %v7621 = vpop.permute.xlu0 %7620
      %7622 = vrot.lane.b32.xlu0 %v7485, 64
      %v7623 = vpop.permute.xlu0 %7622
      %7624 = vrot.lane.b32.xlu0 %v7486, 64
      %v7625 = vpop.permute.xlu0 %7624
      %7626 = vrot.lane.b32.xlu0 %v7487, 64
      %v7627 = vpop.permute.xlu0 %7626
      %7628 = vrot.lane.b32.xlu0 %v7488, 64
      %v7629 = vpop.permute.xlu0 %7628
      %7630 = vrot.lane.b32.xlu0 %v7489, 64
      %v7631 = vpop.permute.xlu0 %7630
      %7632 = vrot.lane.b32.xlu0 %v7490, 64
      %v7633 = vpop.permute.xlu0 %7632
      %7634 = vrot.lane.b32.xlu0 %v7491, 64
      %v7635 = vpop.permute.xlu0 %7634
      %7636 = vrot.lane.b32.xlu0 %v7492, 64
      %v7637 = vpop.permute.xlu0 %7636
      %7638 = vrot.lane.b32.xlu0 %v7493, 64
      %v7639 = vpop.permute.xlu0 %7638
      %7640 = vrot.lane.b32.xlu0 %v7494, 64
      %v7641 = vpop.permute.xlu0 %7640
      %7642 = vrot.lane.b32.xlu0 %v7495, 64
      %v7643 = vpop.permute.xlu0 %7642
      %7644 = vrot.lane.b32.xlu0 %v7496, 64
      %v7645 = vpop.permute.xlu0 %7644
      %7646 = vrot.lane.b32.xlu0 %v7497, 64
      %v7647 = vpop.permute.xlu0 %7646
      %7648 = vrot.lane.b32.xlu0 %v7498, 64
      %v7649 = vpop.permute.xlu0 %7648
      %7650 = vrot.lane.b32.xlu0 %v7499, 64
      %v7651 = vpop.permute.xlu0 %7650
      %7652 = vrot.lane.b32.xlu0 %v7500, 64
      %v7653 = vpop.permute.xlu0 %7652
      %7654 = vrot.lane.b32.xlu0 %v7501, 64
      %v7655 = vpop.permute.xlu0 %7654
      %7656 = vrot.lane.b32.xlu0 %v7502, 64
      %v7657 = vpop.permute.xlu0 %7656
      %7658 = vrot.lane.b32.xlu0 %v7503, 64
      %v7659 = vpop.permute.xlu0 %7658
      %7660 = vrot.lane.b32.xlu0 %v7504, 64
      %v7661 = vpop.permute.xlu0 %7660
      %7662 = vrot.lane.b32.xlu0 %v7505, 64
      %v7663 = vpop.permute.xlu0 %7662
      %7664 = vrot.lane.b32.xlu0 %v7506, 64
      %v7665 = vpop.permute.xlu0 %7664
      %7666 = vrot.lane.b32.xlu0 %v7507, 64
      %v7667 = vpop.permute.xlu0 %7666
      %7668 = vrot.lane.b32.xlu0 %v7508, 64
      %v7669 = vpop.permute.xlu0 %7668
      %7670 = vrot.lane.b32.xlu0 %v7509, 64
      %v7671 = vpop.permute.xlu0 %7670
      %7672 = vrot.lane.b32.xlu0 %v7510, 64
      %v7673 = vpop.permute.xlu0 %7672
      %7674 = vrot.lane.b32.xlu0 %v7511, 64
      %v7675 = vpop.permute.xlu0 %7674
      %7676 = vrot.lane.b32.xlu0 %v7512, 64
      %v7677 = vpop.permute.xlu0 %7676
      %7678 = vrot.lane.b32.xlu0 %v7513, 64
      %v7679 = vpop.permute.xlu0 %7678
      %7680 = vrot.lane.b32.xlu0 %v7514, 64
      %v7681 = vpop.permute.xlu0 %7680
      %7682 = vrot.lane.b32.xlu0 %v7515, 64
      %v7683 = vpop.permute.xlu0 %7682
      %7684 = vrot.lane.b32.xlu0 %v7516, 64
      %v7685 = vpop.permute.xlu0 %7684
      %7686 = vrot.lane.b32.xlu0 %v7517, 64
      %v7687 = vpop.permute.xlu0 %7686
      %7688 = vrot.lane.b32.xlu0 %v7518, 64
      %v7689 = vpop.permute.xlu0 %7688
      %7690 = vrot.lane.b32.xlu0 %v7519, 64
      %v7691 = vpop.permute.xlu0 %7690
      %7692 = vrot.lane.b32.xlu0 %v7520, 64
      %v7693 = vpop.permute.xlu0 %7692
      %7694 = vrot.lane.b32.xlu0 %v7521, 64
      %v7695 = vpop.permute.xlu0 %7694
      %7696 = vrot.lane.b32.xlu0 %v7522, 64
      %v7697 = vpop.permute.xlu0 %7696
      %7698 = vrot.lane.b32.xlu0 %v7523, 64
      %v7699 = vpop.permute.xlu0 %7698
      %7700 = vrot.lane.b32.xlu0 %v7524, 64
      %v7701 = vpop.permute.xlu0 %7700
      %7702 = vrot.lane.b32.xlu0 %v7525, 64
      %v7703 = vpop.permute.xlu0 %7702
      %7704 = vrot.lane.b32.xlu0 %v7526, 64
      %v7705 = vpop.permute.xlu0 %7704
      %7706 = vrot.lane.b32.xlu0 %v7527, 64
      %v7707 = vpop.permute.xlu0 %7706
      %7708 = vrot.lane.b32.xlu0 %v7528, 64
      %v7709 = vpop.permute.xlu0 %7708
      %7710 = vrot.lane.b32.xlu0 %v7529, 64
      %v7711 = vpop.permute.xlu0 %7710
      %7712 = vrot.lane.b32.xlu0 %v7530, 64
      %v7713 = vpop.permute.xlu0 %7712
      %7714 = vrot.lane.b32.xlu0 %v7531, 64
      %v7715 = vpop.permute.xlu0 %7714
      %7716 = vrot.lane.b32.xlu0 %v7532, 64
      %v7717 = vpop.permute.xlu0 %7716
      %7718 = vrot.lane.b32.xlu0 %v7533, 64
      %v7719 = vpop.permute.xlu0 %7718
      %7720 = vrot.lane.b32.xlu0 %v7534, 64
      %v7721 = vpop.permute.xlu0 %7720
      %7722 = vrot.lane.b32.xlu0 %v7535, 64
      %v7723 = vpop.permute.xlu0 %7722
      %7724 = vrot.lane.b32.xlu0 %v7536, 64
      %v7725 = vpop.permute.xlu0 %7724
      %7726 = vrot.lane.b32.xlu0 %v7537, 64
      %v7727 = vpop.permute.xlu0 %7726
      %7728 = vrot.lane.b32.xlu0 %v7538, 64
      %v7729 = vpop.permute.xlu0 %7728
      %7730 = vrot.lane.b32.xlu0 %v7539, 64
      %v7731 = vpop.permute.xlu0 %7730
      %7796 = vst.msk [vmem:[#allocation4] sm:$0xff] %vm3679, %v7605
      %7797 = vst.msk [vmem:[#allocation4 + $0x8] sm:$0xff] %vm3679, %v7607
      %7798 = vst.msk [vmem:[#allocation4 + $0x10] sm:$0xff] %vm3679, %v7609
      %7799 = vst.msk [vmem:[#allocation4 + $0x18] sm:$0xff] %vm3679, %v7611
      %7800 = vst.msk [vmem:[#allocation4 + $0x20] sm:$0xff] %vm3679, %v7613
      %7801 = vst.msk [vmem:[#allocation4 + $0x28] sm:$0xff] %vm3679, %v7615
      %7802 = vst.msk [vmem:[#allocation4 + $0x30] sm:$0xff] %vm3679, %v7617
      %7803 = vst.msk [vmem:[#allocation4 + $0x38] sm:$0xff] %vm3679, %v7619
      %7804 = vst.msk [vmem:[#allocation4 + $0x40] sm:$0xff] %vm3679, %v7621
      %7805 = vst.msk [vmem:[#allocation4 + $0x48] sm:$0xff] %vm3679, %v7623
      %7806 = vst.msk [vmem:[#allocation4 + $0x50] sm:$0xff] %vm3679, %v7625
      %7807 = vst.msk [vmem:[#allocation4 + $0x58] sm:$0xff] %vm3679, %v7627
      %7808 = vst.msk [vmem:[#allocation4 + $0x60] sm:$0xff] %vm3679, %v7629
      %7809 = vst.msk [vmem:[#allocation4 + $0x68] sm:$0xff] %vm3679, %v7631
      %7810 = vst.msk [vmem:[#allocation4 + $0x70] sm:$0xff] %vm3679, %v7633
      %7811 = vst.msk [vmem:[#allocation4 + $0x78] sm:$0xff] %vm3679, %v7635
      %7812 = vst.msk [vmem:[#allocation4 + $0x80] sm:$0xff] %vm3679, %v7637
      %7813 = vst.msk [vmem:[#allocation4 + $0x88] sm:$0xff] %vm3679, %v7639
      %7814 = vst.msk [vmem:[#allocation4 + $0x90] sm:$0xff] %vm3679, %v7641
      %7815 = vst.msk [vmem:[#allocation4 + $0x98] sm:$0xff] %vm3679, %v7643
      %7816 = vst.msk [vmem:[#allocation4 + $0xa0] sm:$0xff] %vm3679, %v7645
      %7817 = vst.msk [vmem:[#allocation4 + $0xa8] sm:$0xff] %vm3679, %v7647
      %7818 = vst.msk [vmem:[#allocation4 + $0xb0] sm:$0xff] %vm3679, %v7649
      %7819 = vst.msk [vmem:[#allocation4 + $0xb8] sm:$0xff] %vm3679, %v7651
      %7820 = vst.msk [vmem:[#allocation4 + $0xc0] sm:$0xff] %vm3679, %v7653
      %7821 = vst.msk [vmem:[#allocation4 + $0xc8] sm:$0xff] %vm3679, %v7655
      %7822 = vst.msk [vmem:[#allocation4 + $0xd0] sm:$0xff] %vm3679, %v7657
      %7823 = vst.msk [vmem:[#allocation4 + $0xd8] sm:$0xff] %vm3679, %v7659
      %7824 = vst.msk [vmem:[#allocation4 + $0xe0] sm:$0xff] %vm3679, %v7661
      %7825 = vst.msk [vmem:[#allocation4 + $0xe8] sm:$0xff] %vm3679, %v7663
      %7826 = vst.msk [vmem:[#allocation4 + $0xf0] sm:$0xff] %vm3679, %v7665
      %7827 = vst.msk [vmem:[#allocation4 + $0xf8] sm:$0xff] %vm3679, %v7667
      %7828 = vst.msk [vmem:[#allocation4 + $0x100] sm:$0xff] %vm3679, %v7669
      %7829 = vst.msk [vmem:[#allocation4 + $0x108] sm:$0xff] %vm3679, %v7671
      %7830 = vst.msk [vmem:[#allocation4 + $0x110] sm:$0xff] %vm3679, %v7673
      %7831 = vst.msk [vmem:[#allocation4 + $0x118] sm:$0xff] %vm3679, %v7675
      %7832 = vst.msk [vmem:[#allocation4 + $0x120] sm:$0xff] %vm3679, %v7677
      %7833 = vst.msk [vmem:[#allocation4 + $0x128] sm:$0xff] %vm3679, %v7679
      %7834 = vst.msk [vmem:[#allocation4 + $0x130] sm:$0xff] %vm3679, %v7681
      %7835 = vst.msk [vmem:[#allocation4 + $0x138] sm:$0xff] %vm3679, %v7683
      %7836 = vst.msk [vmem:[#allocation4 + $0x140] sm:$0xff] %vm3679, %v7685
      %7837 = vst.msk [vmem:[#allocation4 + $0x148] sm:$0xff] %vm3679, %v7687
      %7838 = vst.msk [vmem:[#allocation4 + $0x150] sm:$0xff] %vm3679, %v7689
      %7839 = vst.msk [vmem:[#allocation4 + $0x158] sm:$0xff] %vm3679, %v7691
      %7840 = vst.msk [vmem:[#allocation4 + $0x160] sm:$0xff] %vm3679, %v7693
      %7841 = vst.msk [vmem:[#allocation4 + $0x168] sm:$0xff] %vm3679, %v7695
      %7842 = vst.msk [vmem:[#allocation4 + $0x170] sm:$0xff] %vm3679, %v7697
      %7843 = vst.msk [vmem:[#allocation4 + $0x178] sm:$0xff] %vm3679, %v7699
      %7844 = vst.msk [vmem:[#allocation4 + $0x180] sm:$0xff] %vm3679, %v7701
      %7845 = vst.msk [vmem:[#allocation4 + $0x188] sm:$0xff] %vm3679, %v7703
      %7846 = vst.msk [vmem:[#allocation4 + $0x190] sm:$0xff] %vm3679, %v7705
      %7847 = vst.msk [vmem:[#allocation4 + $0x198] sm:$0xff] %vm3679, %v7707
      %7848 = vst.msk [vmem:[#allocation4 + $0x1a0] sm:$0xff] %vm3679, %v7709
      %7849 = vst.msk [vmem:[#allocation4 + $0x1a8] sm:$0xff] %vm3679, %v7711
      %7850 = vst.msk [vmem:[#allocation4 + $0x1b0] sm:$0xff] %vm3679, %v7713
      %7851 = vst.msk [vmem:[#allocation4 + $0x1b8] sm:$0xff] %vm3679, %v7715
      %7852 = vst.msk [vmem:[#allocation4 + $0x1c0] sm:$0xff] %vm3679, %v7717
      %7853 = vst.msk [vmem:[#allocation4 + $0x1c8] sm:$0xff] %vm3679, %v7719
      %7854 = vst.msk [vmem:[#allocation4 + $0x1d0] sm:$0xff] %vm3679, %v7721
      %7855 = vst.msk [vmem:[#allocation4 + $0x1d8] sm:$0xff] %vm3679, %v7723
      %7856 = vst.msk [vmem:[#allocation4 + $0x1e0] sm:$0xff] %vm3679, %v7725
      %7857 = vst.msk [vmem:[#allocation4 + $0x1e8] sm:$0xff] %vm3679, %v7727
      %7858 = vst.msk [vmem:[#allocation4 + $0x1f0] sm:$0xff] %vm3679, %v7729
      %7859 = vst.msk [vmem:[#allocation4 + $0x1f8] sm:$0xff] %vm3679, %v7731
      %v7860 = vld [vmem:[#allocation4] sm:$0xff]
      %v7861 = vld [vmem:[#allocation4 + $0x8] sm:$0xff]
      %v7862 = vld [vmem:[#allocation4 + $0x10] sm:$0xff]
      %v7863 = vld [vmem:[#allocation4 + $0x18] sm:$0xff]
      %v7864 = vld [vmem:[#allocation4 + $0x20] sm:$0xff]
      %v7865 = vld [vmem:[#allocation4 + $0x28] sm:$0xff]
      %v7866 = vld [vmem:[#allocation4 + $0x30] sm:$0xff]
      %v7867 = vld [vmem:[#allocation4 + $0x38] sm:$0xff]
      %v7868 = vld [vmem:[#allocation4 + $0x40] sm:$0xff]
      %v7869 = vld [vmem:[#allocation4 + $0x48] sm:$0xff]
      %v7870 = vld [vmem:[#allocation4 + $0x50] sm:$0xff]
      %v7871 = vld [vmem:[#allocation4 + $0x58] sm:$0xff]
      %v7872 = vld [vmem:[#allocation4 + $0x60] sm:$0xff]
      %v7873 = vld [vmem:[#allocation4 + $0x68] sm:$0xff]
      %v7874 = vld [vmem:[#allocation4 + $0x70] sm:$0xff]
      %v7875 = vld [vmem:[#allocation4 + $0x78] sm:$0xff]
      %v7876 = vld [vmem:[#allocation4 + $0x80] sm:$0xff]
      %v7877 = vld [vmem:[#allocation4 + $0x88] sm:$0xff]
      %v7878 = vld [vmem:[#allocation4 + $0x90] sm:$0xff]
      %v7879 = vld [vmem:[#allocation4 + $0x98] sm:$0xff]
      %v7880 = vld [vmem:[#allocation4 + $0xa0] sm:$0xff]
      %v7881 = vld [vmem:[#allocation4 + $0xa8] sm:$0xff]
      %v7882 = vld [vmem:[#allocation4 + $0xb0] sm:$0xff]
      %v7883 = vld [vmem:[#allocation4 + $0xb8] sm:$0xff]
      %v7884 = vld [vmem:[#allocation4 + $0xc0] sm:$0xff]
      %v7885 = vld [vmem:[#allocation4 + $0xc8] sm:$0xff]
      %v7886 = vld [vmem:[#allocation4 + $0xd0] sm:$0xff]
      %v7887 = vld [vmem:[#allocation4 + $0xd8] sm:$0xff]
      %v7888 = vld [vmem:[#allocation4 + $0xe0] sm:$0xff]
      %v7889 = vld [vmem:[#allocation4 + $0xe8] sm:$0xff]
      %v7890 = vld [vmem:[#allocation4 + $0xf0] sm:$0xff]
      %v7891 = vld [vmem:[#allocation4 + $0xf8] sm:$0xff]
      %v7892 = vld [vmem:[#allocation4 + $0x100] sm:$0xff]
      %v7893 = vld [vmem:[#allocation4 + $0x108] sm:$0xff]
      %v7894 = vld [vmem:[#allocation4 + $0x110] sm:$0xff]
      %v7895 = vld [vmem:[#allocation4 + $0x118] sm:$0xff]
      %v7896 = vld [vmem:[#allocation4 + $0x120] sm:$0xff]
      %v7897 = vld [vmem:[#allocation4 + $0x128] sm:$0xff]
      %v7898 = vld [vmem:[#allocation4 + $0x130] sm:$0xff]
      %v7899 = vld [vmem:[#allocation4 + $0x138] sm:$0xff]
      %v7900 = vld [vmem:[#allocation4 + $0x140] sm:$0xff]
      %v7901 = vld [vmem:[#allocation4 + $0x148] sm:$0xff]
      %v7902 = vld [vmem:[#allocation4 + $0x150] sm:$0xff]
      %v7903 = vld [vmem:[#allocation4 + $0x158] sm:$0xff]
      %v7904 = vld [vmem:[#allocation4 + $0x160] sm:$0xff]
      %v7905 = vld [vmem:[#allocation4 + $0x168] sm:$0xff]
      %v7906 = vld [vmem:[#allocation4 + $0x170] sm:$0xff]
      %v7907 = vld [vmem:[#allocation4 + $0x178] sm:$0xff]
      %v7908 = vld [vmem:[#allocation4 + $0x180] sm:$0xff]
      %v7909 = vld [vmem:[#allocation4 + $0x188] sm:$0xff]
      %v7910 = vld [vmem:[#allocation4 + $0x190] sm:$0xff]
      %v7911 = vld [vmem:[#allocation4 + $0x198] sm:$0xff]
      %v7912 = vld [vmem:[#allocation4 + $0x1a0] sm:$0xff]
      %v7913 = vld [vmem:[#allocation4 + $0x1a8] sm:$0xff]
      %v7914 = vld [vmem:[#allocation4 + $0x1b0] sm:$0xff]
      %v7915 = vld [vmem:[#allocation4 + $0x1b8] sm:$0xff]
      %v7916 = vld [vmem:[#allocation4 + $0x1c0] sm:$0xff]
      %v7917 = vld [vmem:[#allocation4 + $0x1c8] sm:$0xff]
      %v7918 = vld [vmem:[#allocation4 + $0x1d0] sm:$0xff]
      %v7919 = vld [vmem:[#allocation4 + $0x1d8] sm:$0xff]
      %v7920 = vld [vmem:[#allocation4 + $0x1e0] sm:$0xff]
      %v7921 = vld [vmem:[#allocation4 + $0x1e8] sm:$0xff]
      %v7922 = vld [vmem:[#allocation4 + $0x1f0] sm:$0xff]
      %v7923 = vld [vmem:[#allocation4 + $0x1f8] sm:$0xff]
      %v7924 = vld [vmem:[%s3] sm:$0xff]
      %v7925 = vld [vmem:[%s3 + $0x8] sm:$0xff]
      %v7926 = vld [vmem:[%s3 + $0x10] sm:$0xff]
      %v7927 = vld [vmem:[%s3 + $0x18] sm:$0xff]
      %v7928 = vld [vmem:[%s3 + $0x20] sm:$0xff]
      %v7929 = vld [vmem:[%s3 + $0x28] sm:$0xff]
      %v7930 = vld [vmem:[%s3 + $0x30] sm:$0xff]
      %v7931 = vld [vmem:[%s3 + $0x38] sm:$0xff]
      %v7932 = vld [vmem:[%s3 + $0x40] sm:$0xff]
      %v7933 = vld [vmem:[%s4] sm:$0x1]
      %v7935 = vlaneseq
      %v7936 = vshrl.u32 %v7935, 7
      %v7937 = vsub.s32 0, %v7936
      %v7938 = vrot.slane %v7933, %v7937
      %v7941 = vsel %vm3824, %v7860, 0
      %v7944 = vsel %vm3824, %v7861, 0
      %v7947 = vsel %vm3824, %v7862, 0
      %v7950 = vsel %vm3824, %v7863, 0
      %v7953 = vsel %vm3824, %v7864, 0
      %v7956 = vsel %vm3824, %v7865, 0
      %v7959 = vsel %vm3824, %v7866, 0
      %v7962 = vsel %vm3824, %v7867, 0
      %v7965 = vsel %vm3824, %v7868, 0
      %v7968 = vsel %vm3824, %v7869, 0
      %v7971 = vsel %vm3824, %v7870, 0
      %v7974 = vsel %vm3824, %v7871, 0
      %v7977 = vsel %vm3824, %v7872, 0
      %v7980 = vsel %vm3824, %v7873, 0
      %v7983 = vsel %vm3824, %v7874, 0
      %v7986 = vsel %vm3824, %v7875, 0
      %v7989 = vsel %vm3824, %v7876, 0
      %v7992 = vsel %vm3824, %v7877, 0
      %v7995 = vsel %vm3824, %v7878, 0
      %v7998 = vsel %vm3824, %v7879, 0
      %v8001 = vsel %vm3824, %v7880, 0
      %v8004 = vsel %vm3824, %v7881, 0
      %v8007 = vsel %vm3824, %v7882, 0
      %v8010 = vsel %vm3824, %v7883, 0
      %v8013 = vsel %vm3824, %v7884, 0
      %v8016 = vsel %vm3824, %v7885, 0
      %v8019 = vsel %vm3824, %v7886, 0
      %v8022 = vsel %vm3824, %v7887, 0
      %v8025 = vsel %vm3824, %v7888, 0
      %v8028 = vsel %vm3824, %v7889, 0
      %v8031 = vsel %vm3824, %v7890, 0
      %v8034 = vsel %vm3824, %v7891, 0
      %v8037 = vsel %vm3824, %v7892, 0
      %v8040 = vsel %vm3824, %v7893, 0
      %v8043 = vsel %vm3824, %v7894, 0
      %v8046 = vsel %vm3824, %v7895, 0
      %v8049 = vsel %vm3824, %v7896, 0
      %v8052 = vsel %vm3824, %v7897, 0
      %v8055 = vsel %vm3824, %v7898, 0
      %v8058 = vsel %vm3824, %v7899, 0
      %v8061 = vsel %vm3824, %v7900, 0
      %v8064 = vsel %vm3824, %v7901, 0
      %v8067 = vsel %vm3824, %v7902, 0
      %v8070 = vsel %vm3824, %v7903, 0
      %v8073 = vsel %vm3824, %v7904, 0
      %v8076 = vsel %vm3824, %v7905, 0
      %v8079 = vsel %vm3824, %v7906, 0
      %v8082 = vsel %vm3824, %v7907, 0
      %v8085 = vsel %vm3824, %v7908, 0
      %v8088 = vsel %vm3824, %v7909, 0
      %v8091 = vsel %vm3824, %v7910, 0
      %v8094 = vsel %vm3824, %v7911, 0
      %v8097 = vsel %vm3824, %v7912, 0
      %v8100 = vsel %vm3824, %v7913, 0
      %v8103 = vsel %vm3824, %v7914, 0
      %v8106 = vsel %vm3824, %v7915, 0
      %v8109 = vsel %vm3824, %v7916, 0
      %v8112 = vsel %vm3824, %v7917, 0
      %v8115 = vsel %vm3824, %v7918, 0
      %v8118 = vsel %vm3824, %v7919, 0
      %v8121 = vsel %vm3824, %v7920, 0
      %v8124 = vsel %vm3824, %v7921, 0
      %v8127 = vsel %vm3824, %v7922, 0
      %v8130 = vsel %vm3824, %v7923, 0
      %8132 = vmatprep.subr.mxu0 0.0
      %8133 = vmatpush1.msra.mxu0 %v7924
      %8134 = vmatprep.subr.mxu0 0.0
      %8135 = vmatpush1.msra.mxu0 %v7925
      %8136 = vmatprep.subr.mxu0 0.0
      %8137 = vmatpush1.msra.mxu0 %v7926
      %8138 = vmatprep.subr.mxu0 0.0
      %8139 = vmatpush1.msra.mxu0 %v7927
      %8140 = vmatprep.subr.mxu0 0.0
      %8141 = vmatpush1.msra.mxu0 %v7928
      %8142 = vmatprep.subr.mxu0 0.0
      %8143 = vmatpush1.msra.mxu0 %v7929
      %8144 = vmatprep.subr.mxu0 0.0
      %8145 = vmatpush1.msra.mxu0 %v7930
      %8146 = vmatprep.subr.mxu0 0.0
      %8147 = vmatpush1.msra.mxu0 %v7931
      %8148 = vmatprep.subr.mxu0 0.0
      %8149 = vmatpush1.msra.mxu0 %v7932
      %8150 = vmatprep.subr.mxu0 0.0
      %8151 = vmatpush1.msra.mxu0 0.0
      %8152 = vmatprep.subr.mxu0 0.0
      %8153 = vmatpush1.msra.mxu0 0.0
      %8154 = vmatprep.subr.mxu0 0.0
      %8155 = vmatpush1.msra.mxu0 0.0
      %8156 = vmatprep.subr.mxu0 0.0
      %8157 = vmatpush1.msra.mxu0 0.0
      %8158 = vmatprep.subr.mxu0 0.0
      %8159 = vmatpush1.msra.mxu0 0.0
      %8160 = vmatprep.subr.mxu0 0.0
      %8161 = vmatpush1.msra.mxu0 0.0
      %8162 = vmatprep.subr.mxu0 0.0
      %8163 = vmatpush1.msra.mxu0 0.0
      %8164 = vmatprep.subr.mxu0 0.0
      %8165 = vmatpush1.msra.mxu0 0.0
      %8166 = vmatprep.subr.mxu0 0.0
      %8167 = vmatpush1.msra.mxu0 0.0
      %8168 = vmatprep.subr.mxu0 0.0
      %8169 = vmatpush1.msra.mxu0 0.0
      %8170 = vmatprep.subr.mxu0 0.0
      %8171 = vmatpush1.msra.mxu0 0.0
      %8172 = vmatprep.subr.mxu0 0.0
      %8173 = vmatpush1.msra.mxu0 0.0
      %8174 = vmatprep.subr.mxu0 0.0
      %8175 = vmatpush1.msra.mxu0 0.0
      %8176 = vmatprep.subr.mxu0 0.0
      %8177 = vmatpush1.msra.mxu0 0.0
      %8178 = vmatprep.subr.mxu0 0.0
      %8179 = vmatpush1.msra.mxu0 0.0
      %8180 = vmatprep.subr.mxu0 0.0
      %8181 = vmatpush1.msra.mxu0 0.0
      %8182 = vmatprep.subr.mxu0 0.0
      %8183 = vmatpush1.msra.mxu0 0.0
      %8184 = vmatprep.subr.mxu0 0.0
      %8185 = vmatpush1.msra.mxu0 0.0
      %8186 = vmatprep.subr.mxu0 0.0
      %8187 = vmatpush1.msra.mxu0 0.0
      %8188 = vmatprep.subr.mxu0 0.0
      %8189 = vmatpush1.msra.mxu0 0.0
      %8190 = vmatprep.subr.mxu0 0.0
      %8191 = vmatpush1.msra.mxu0 0.0
      %8192 = vmatprep.subr.mxu0 0.0
      %8193 = vmatpush1.msra.mxu0 0.0
      %8194 = vmatprep.subr.mxu0 0.0
      %8195 = vmatpush1.msra.mxu0 0.0
      %8196 = vmatprep.mubr.f32.mxu0 0.0
      %8197 = vmatmul.mubr.f32.gmra.mrb[0].mxu0 %v7941
      %v8198 = vpop.f32.mrb[0].mxu0
      %v8199 = vadd.f32 %v7938, %v8198
      %v8200 = vpop.f32.mrb[0].mxu0
      %8201 = vmatprep.mubr.f32.mxu0 0.0
      %8202 = vmatmul.mubr.f32.gmra.mrb[0].mxu0 %v7944
      %v8203 = vpop.f32.mrb[0].mxu0
      %v8204 = vadd.f32 %v7938, %v8203
      %v8205 = vpop.f32.mrb[0].mxu0
      %8206 = vmatprep.mubr.f32.mxu0 0.0
      %8207 = vmatmul.mubr.f32.gmra.mrb[0].mxu0 %v7947
      %v8208 = vpop.f32.mrb[0].mxu0
      %v8209 = vadd.f32 %v7938, %v8208
      %v8210 = vpop.f32.mrb[0].mxu0
      %8211 = vmatprep.mubr.f32.mxu0 0.0
      %8212 = vmatmul.mubr.f32.gmra.mrb[0].mxu0 %v7950
      %v8213 = vpop.f32.mrb[0].mxu0
      %v8214 = vadd.f32 %v7938, %v8213
      %v8215 = vpop.f32.mrb[0].mxu0
      %8216 = vmatprep.mubr.f32.mxu0 0.0
      %8217 = vmatmul.mubr.f32.gmra.mrb[0].mxu0 %v7953
      %v8218 = vpop.f32.mrb[0].mxu0
      %v8219 = vadd.f32 %v7938, %v8218
      %v8220 = vpop.f32.mrb[0].mxu0
      %8221 = vmatprep.mubr.f32.mxu0 0.0
      %8222 = vmatmul.mubr.f32.gmra.mrb[0].mxu0 %v7956
      %v8223 = vpop.f32.mrb[0].mxu0
      %v8224 = vadd.f32 %v7938, %v8223
      %v8225 = vpop.f32.mrb[0].mxu0
      %8226 = vmatprep.mubr.f32.mxu0 0.0
      %8227 = vmatmul.mubr.f32.gmra.mrb[0].mxu0 %v7959
      %v8228 = vpop.f32.mrb[0].mxu0
      %v8229 = vadd.f32 %v7938, %v8228
      %v8230 = vpop.f32.mrb[0].mxu0
      %8231 = vmatprep.mubr.f32.mxu0 0.0
      %8232 = vmatmul.mubr.f32.gmra.mrb[0].mxu0 %v7962
      %v8233 = vpop.f32.mrb[0].mxu0
      %v8234 = vadd.f32 %v7938, %v8233
      %v8235 = vpop.f32.mrb[0].mxu0
      %8236 = vmatprep.mubr.f32.mxu0 0.0
      %8237 = vmatmul.mubr.f32.gmra.mrb[0].mxu0 %v7965
      %v8238 = vpop.f32.mrb[0].mxu0
      %v8239 = vadd.f32 %v7938, %v8238
      %v8240 = vpop.f32.mrb[0].mxu0
      %8241 = vmatprep.mubr.f32.mxu0 0.0
      %8242 = vmatmul.mubr.f32.gmra.mrb[0].mxu0 %v7968
      %v8243 = vpop.f32.mrb[0].mxu0
      %v8244 = vadd.f32 %v7938, %v8243
      %v8245 = vpop.f32.mrb[0].mxu0
      %8246 = vmatprep.mubr.f32.mxu0 0.0
      %8247 = vmatmul.mubr.f32.gmra.mrb[0].mxu0 %v7971
      %v8248 = vpop.f32.mrb[0].mxu0
      %v8249 = vadd.f32 %v7938, %v8248
      %v8250 = vpop.f32.mrb[0].mxu0
      %8251 = vmatprep.mubr.f32.mxu0 0.0
      %8252 = vmatmul.mubr.f32.gmra.mrb[0].mxu0 %v7974
      %v8253 = vpop.f32.mrb[0].mxu0
      %v8254 = vadd.f32 %v7938, %v8253
      %v8255 = vpop.f32.mrb[0].mxu0
      %8256 = vmatprep.mubr.f32.mxu0 0.0
      %8257 = vmatmul.mubr.f32.gmra.mrb[0].mxu0 %v7977
      %v8258 = vpop.f32.mrb[0].mxu0
      %v8259 = vadd.f32 %v7938, %v8258
      %v8260 = vpop.f32.mrb[0].mxu0
      %8261 = vmatprep.mubr.f32.mxu0 0.0
      %8262 = vmatmul.mubr.f32.gmra.mrb[0].mxu0 %v7980
      %v8263 = vpop.f32.mrb[0].mxu0
      %v8264 = vadd.f32 %v7938, %v8263
      %v8265 = vpop.f32.mrb[0].mxu0
      %8266 = vmatprep.mubr.f32.mxu0 0.0
      %8267 = vmatmul.mubr.f32.gmra.mrb[0].mxu0 %v7983
      %v8268 = vpop.f32.mrb[0].mxu0
      %v8269 = vadd.f32 %v7938, %v8268
      %v8270 = vpop.f32.mrb[0].mxu0
      %8271 = vmatprep.mubr.f32.mxu0 0.0
      %8272 = vmatmul.mubr.f32.gmra.mrb[0].mxu0 %v7986
      %v8273 = vpop.f32.mrb[0].mxu0
      %v8274 = vadd.f32 %v7938, %v8273
      %v8275 = vpop.f32.mrb[0].mxu0
      %8276 = vmatprep.mubr.f32.mxu0 0.0
      %8277 = vmatmul.mubr.f32.gmra.mrb[0].mxu0 %v7989
      %v8278 = vpop.f32.mrb[0].mxu0
      %v8279 = vadd.f32 %v7938, %v8278
      %v8280 = vpop.f32.mrb[0].mxu0
      %8281 = vmatprep.mubr.f32.mxu0 0.0
      %8282 = vmatmul.mubr.f32.gmra.mrb[0].mxu0 %v7992
      %v8283 = vpop.f32.mrb[0].mxu0
      %v8284 = vadd.f32 %v7938, %v8283
      %v8285 = vpop.f32.mrb[0].mxu0
      %8286 = vmatprep.mubr.f32.mxu0 0.0
      %8287 = vmatmul.mubr.f32.gmra.mrb[0].mxu0 %v7995
      %v8288 = vpop.f32.mrb[0].mxu0
      %v8289 = vadd.f32 %v7938, %v8288
      %v8290 = vpop.f32.mrb[0].mxu0
      %8291 = vmatprep.mubr.f32.mxu0 0.0
      %8292 = vmatmul.mubr.f32.gmra.mrb[0].mxu0 %v7998
      %v8293 = vpop.f32.mrb[0].mxu0
      %v8294 = vadd.f32 %v7938, %v8293
      %v8295 = vpop.f32.mrb[0].mxu0
      %8296 = vmatprep.mubr.f32.mxu0 0.0
      %8297 = vmatmul.mubr.f32.gmra.mrb[0].mxu0 %v8001
      %v8298 = vpop.f32.mrb[0].mxu0
      %v8299 = vadd.f32 %v7938, %v8298
      %v8300 = vpop.f32.mrb[0].mxu0
      %8301 = vmatprep.mubr.f32.mxu0 0.0
      %8302 = vmatmul.mubr.f32.gmra.mrb[0].mxu0 %v8004
      %v8303 = vpop.f32.mrb[0].mxu0
      %v8304 = vadd.f32 %v7938, %v8303
      %v8305 = vpop.f32.mrb[0].mxu0
      %8306 = vmatprep.mubr.f32.mxu0 0.0
      %8307 = vmatmul.mubr.f32.gmra.mrb[0].mxu0 %v8007
      %v8308 = vpop.f32.mrb[0].mxu0
      %v8309 = vadd.f32 %v7938, %v8308
      %v8310 = vpop.f32.mrb[0].mxu0
      %8311 = vmatprep.mubr.f32.mxu0 0.0
      %8312 = vmatmul.mubr.f32.gmra.mrb[0].mxu0 %v8010
      %v8313 = vpop.f32.mrb[0].mxu0
      %v8314 = vadd.f32 %v7938, %v8313
      %v8315 = vpop.f32.mrb[0].mxu0
      %8316 = vmatprep.mubr.f32.mxu0 0.0
      %8317 = vmatmul.mubr.f32.gmra.mrb[0].mxu0 %v8013
      %v8318 = vpop.f32.mrb[0].mxu0
      %v8319 = vadd.f32 %v7938, %v8318
      %v8320 = vpop.f32.mrb[0].mxu0
      %8321 = vmatprep.mubr.f32.mxu0 0.0
      %8322 = vmatmul.mubr.f32.gmra.mrb[0].mxu0 %v8016
      %v8323 = vpop.f32.mrb[0].mxu0
      %v8324 = vadd.f32 %v7938, %v8323
      %v8325 = vpop.f32.mrb[0].mxu0
      %8326 = vmatprep.mubr.f32.mxu0 0.0
      %8327 = vmatmul.mubr.f32.gmra.mrb[0].mxu0 %v8019
      %v8328 = vpop.f32.mrb[0].mxu0
      %v8329 = vadd.f32 %v7938, %v8328
      %v8330 = vpop.f32.mrb[0].mxu0
      %8331 = vmatprep.mubr.f32.mxu0 0.0
      %8332 = vmatmul.mubr.f32.gmra.mrb[0].mxu0 %v8022
      %v8333 = vpop.f32.mrb[0].mxu0
      %v8334 = vadd.f32 %v7938, %v8333
      %v8335 = vpop.f32.mrb[0].mxu0
      %8336 = vmatprep.mubr.f32.mxu0 0.0
      %8337 = vmatmul.mubr.f32.gmra.mrb[0].mxu0 %v8025
      %v8338 = vpop.f32.mrb[0].mxu0
      %v8339 = vadd.f32 %v7938, %v8338
      %v8340 = vpop.f32.mrb[0].mxu0
      %8341 = vmatprep.mubr.f32.mxu0 0.0
      %8342 = vmatmul.mubr.f32.gmra.mrb[0].mxu0 %v8028
      %v8343 = vpop.f32.mrb[0].mxu0
      %v8344 = vadd.f32 %v7938, %v8343
      %v8345 = vpop.f32.mrb[0].mxu0
      %8346 = vmatprep.mubr.f32.mxu0 0.0
      %8347 = vmatmul.mubr.f32.gmra.mrb[0].mxu0 %v8031
      %v8348 = vpop.f32.mrb[0].mxu0
      %v8349 = vadd.f32 %v7938, %v8348
      %v8350 = vpop.f32.mrb[0].mxu0
      %8351 = vmatprep.mubr.f32.mxu0 0.0
      %8352 = vmatmul.mubr.f32.gmra.mrb[0].mxu0 %v8034
      %v8353 = vpop.f32.mrb[0].mxu0
      %v8354 = vadd.f32 %v7938, %v8353
      %v8355 = vpop.f32.mrb[0].mxu0
      %8356 = vmatprep.mubr.f32.mxu0 0.0
      %8357 = vmatmul.mubr.f32.gmra.mrb[0].mxu0 %v8037
      %v8358 = vpop.f32.mrb[0].mxu0
      %v8359 = vadd.f32 %v7938, %v8358
      %v8360 = vpop.f32.mrb[0].mxu0
      %8361 = vmatprep.mubr.f32.mxu0 0.0
      %8362 = vmatmul.mubr.f32.gmra.mrb[0].mxu0 %v8040
      %v8363 = vpop.f32.mrb[0].mxu0
      %v8364 = vadd.f32 %v7938, %v8363
      %v8365 = vpop.f32.mrb[0].mxu0
      %8366 = vmatprep.mubr.f32.mxu0 0.0
      %8367 = vmatmul.mubr.f32.gmra.mrb[0].mxu0 %v8043
      %v8368 = vpop.f32.mrb[0].mxu0
      %v8369 = vadd.f32 %v7938, %v8368
      %v8370 = vpop.f32.mrb[0].mxu0
      %8371 = vmatprep.mubr.f32.mxu0 0.0
      %8372 = vmatmul.mubr.f32.gmra.mrb[0].mxu0 %v8046
      %v8373 = vpop.f32.mrb[0].mxu0
      %v8374 = vadd.f32 %v7938, %v8373
      %v8375 = vpop.f32.mrb[0].mxu0
      %8376 = vmatprep.mubr.f32.mxu0 0.0
      %8377 = vmatmul.mubr.f32.gmra.mrb[0].mxu0 %v8049
      %v8378 = vpop.f32.mrb[0].mxu0
      %v8379 = vadd.f32 %v7938, %v8378
      %v8380 = vpop.f32.mrb[0].mxu0
      %8381 = vmatprep.mubr.f32.mxu0 0.0
      %8382 = vmatmul.mubr.f32.gmra.mrb[0].mxu0 %v8052
      %v8383 = vpop.f32.mrb[0].mxu0
      %v8384 = vadd.f32 %v7938, %v8383
      %v8385 = vpop.f32.mrb[0].mxu0
      %8386 = vmatprep.mubr.f32.mxu0 0.0
      %8387 = vmatmul.mubr.f32.gmra.mrb[0].mxu0 %v8055
      %v8388 = vpop.f32.mrb[0].mxu0
      %v8389 = vadd.f32 %v7938, %v8388
      %v8390 = vpop.f32.mrb[0].mxu0
      %8391 = vmatprep.mubr.f32.mxu0 0.0
      %8392 = vmatmul.mubr.f32.gmra.mrb[0].mxu0 %v8058
      %v8393 = vpop.f32.mrb[0].mxu0
      %v8394 = vadd.f32 %v7938, %v8393
      %v8395 = vpop.f32.mrb[0].mxu0
      %8396 = vmatprep.mubr.f32.mxu0 0.0
      %8397 = vmatmul.mubr.f32.gmra.mrb[0].mxu0 %v8061
      %v8398 = vpop.f32.mrb[0].mxu0
      %v8399 = vadd.f32 %v7938, %v8398
      %v8400 = vpop.f32.mrb[0].mxu0
      %8401 = vmatprep.mubr.f32.mxu0 0.0
      %8402 = vmatmul.mubr.f32.gmra.mrb[0].mxu0 %v8064
      %v8403 = vpop.f32.mrb[0].mxu0
      %v8404 = vadd.f32 %v7938, %v8403
      %v8405 = vpop.f32.mrb[0].mxu0
      %8406 = vmatprep.mubr.f32.mxu0 0.0
      %8407 = vmatmul.mubr.f32.gmra.mrb[0].mxu0 %v8067
      %v8408 = vpop.f32.mrb[0].mxu0
      %v8409 = vadd.f32 %v7938, %v8408
      %v8410 = vpop.f32.mrb[0].mxu0
      %8411 = vmatprep.mubr.f32.mxu0 0.0
      %8412 = vmatmul.mubr.f32.gmra.mrb[0].mxu0 %v8070
      %v8413 = vpop.f32.mrb[0].mxu0
      %v8414 = vadd.f32 %v7938, %v8413
      %v8415 = vpop.f32.mrb[0].mxu0
      %8416 = vmatprep.mubr.f32.mxu0 0.0
      %8417 = vmatmul.mubr.f32.gmra.mrb[0].mxu0 %v8073
      %v8418 = vpop.f32.mrb[0].mxu0
      %v8419 = vadd.f32 %v7938, %v8418
      %v8420 = vpop.f32.mrb[0].mxu0
      %8421 = vmatprep.mubr.f32.mxu0 0.0
      %8422 = vmatmul.mubr.f32.gmra.mrb[0].mxu0 %v8076
      %v8423 = vpop.f32.mrb[0].mxu0
      %v8424 = vadd.f32 %v7938, %v8423
      %v8425 = vpop.f32.mrb[0].mxu0
      %8426 = vmatprep.mubr.f32.mxu0 0.0
      %8427 = vmatmul.mubr.f32.gmra.mrb[0].mxu0 %v8079
      %v8428 = vpop.f32.mrb[0].mxu0
      %v8429 = vadd.f32 %v7938, %v8428
      %v8430 = vpop.f32.mrb[0].mxu0
      %8431 = vmatprep.mubr.f32.mxu0 0.0
      %8432 = vmatmul.mubr.f32.gmra.mrb[0].mxu0 %v8082
      %v8433 = vpop.f32.mrb[0].mxu0
      %v8434 = vadd.f32 %v7938, %v8433
      %v8435 = vpop.f32.mrb[0].mxu0
      %8436 = vmatprep.mubr.f32.mxu0 0.0
      %8437 = vmatmul.mubr.f32.gmra.mrb[0].mxu0 %v8085
      %v8438 = vpop.f32.mrb[0].mxu0
      %v8439 = vadd.f32 %v7938, %v8438
      %v8440 = vpop.f32.mrb[0].mxu0
      %8441 = vmatprep.mubr.f32.mxu0 0.0
      %8442 = vmatmul.mubr.f32.gmra.mrb[0].mxu0 %v8088
      %v8443 = vpop.f32.mrb[0].mxu0
      %v8444 = vadd.f32 %v7938, %v8443
      %v8445 = vpop.f32.mrb[0].mxu0
      %8446 = vmatprep.mubr.f32.mxu0 0.0
      %8447 = vmatmul.mubr.f32.gmra.mrb[0].mxu0 %v8091
      %v8448 = vpop.f32.mrb[0].mxu0
      %v8449 = vadd.f32 %v7938, %v8448
      %v8450 = vpop.f32.mrb[0].mxu0
      %8451 = vmatprep.mubr.f32.mxu0 0.0
      %8452 = vmatmul.mubr.f32.gmra.mrb[0].mxu0 %v8094
      %v8453 = vpop.f32.mrb[0].mxu0
      %v8454 = vadd.f32 %v7938, %v8453
      %v8455 = vpop.f32.mrb[0].mxu0
      %8456 = vmatprep.mubr.f32.mxu0 0.0
      %8457 = vmatmul.mubr.f32.gmra.mrb[0].mxu0 %v8097
      %v8458 = vpop.f32.mrb[0].mxu0
      %v8459 = vadd.f32 %v7938, %v8458
      %v8460 = vpop.f32.mrb[0].mxu0
      %8461 = vmatprep.mubr.f32.mxu0 0.0
      %8462 = vmatmul.mubr.f32.gmra.mrb[0].mxu0 %v8100
      %v8463 = vpop.f32.mrb[0].mxu0
      %v8464 = vadd.f32 %v7938, %v8463
      %v8465 = vpop.f32.mrb[0].mxu0
      %8466 = vmatprep.mubr.f32.mxu0 0.0
      %8467 = vmatmul.mubr.f32.gmra.mrb[0].mxu0 %v8103
      %v8468 = vpop.f32.mrb[0].mxu0
      %v8469 = vadd.f32 %v7938, %v8468
      %v8470 = vpop.f32.mrb[0].mxu0
      %8471 = vmatprep.mubr.f32.mxu0 0.0
      %8472 = vmatmul.mubr.f32.gmra.mrb[0].mxu0 %v8106
      %v8473 = vpop.f32.mrb[0].mxu0
      %v8474 = vadd.f32 %v7938, %v8473
      %v8475 = vpop.f32.mrb[0].mxu0
      %8476 = vmatprep.mubr.f32.mxu0 0.0
      %8477 = vmatmul.mubr.f32.gmra.mrb[0].mxu0 %v8109
      %v8478 = vpop.f32.mrb[0].mxu0
      %v8479 = vadd.f32 %v7938, %v8478
      %v8480 = vpop.f32.mrb[0].mxu0
      %8481 = vmatprep.mubr.f32.mxu0 0.0
      %8482 = vmatmul.mubr.f32.gmra.mrb[0].mxu0 %v8112
      %v8483 = vpop.f32.mrb[0].mxu0
      %v8484 = vadd.f32 %v7938, %v8483
      %v8485 = vpop.f32.mrb[0].mxu0
      %8486 = vmatprep.mubr.f32.mxu0 0.0
      %8487 = vmatmul.mubr.f32.gmra.mrb[0].mxu0 %v8115
      %v8488 = vpop.f32.mrb[0].mxu0
      %v8489 = vadd.f32 %v7938, %v8488
      %v8490 = vpop.f32.mrb[0].mxu0
      %8491 = vmatprep.mubr.f32.mxu0 0.0
      %8492 = vmatmul.mubr.f32.gmra.mrb[0].mxu0 %v8118
      %v8493 = vpop.f32.mrb[0].mxu0
      %v8494 = vadd.f32 %v7938, %v8493
      %v8495 = vpop.f32.mrb[0].mxu0
      %8496 = vmatprep.mubr.f32.mxu0 0.0
      %8497 = vmatmul.mubr.f32.gmra.mrb[0].mxu0 %v8121
      %v8498 = vpop.f32.mrb[0].mxu0
      %v8499 = vadd.f32 %v7938, %v8498
      %v8500 = vpop.f32.mrb[0].mxu0
      %8501 = vmatprep.mubr.f32.mxu0 0.0
      %8502 = vmatmul.mubr.f32.gmra.mrb[0].mxu0 %v8124
      %v8503 = vpop.f32.mrb[0].mxu0
      %v8504 = vadd.f32 %v7938, %v8503
      %v8505 = vpop.f32.mrb[0].mxu0
      %8506 = vmatprep.mubr.f32.mxu0 0.0
      %8507 = vmatmul.mubr.f32.gmra.mrb[0].mxu0 %v8127
      %v8508 = vpop.f32.mrb[0].mxu0
      %v8509 = vadd.f32 %v7938, %v8508
      %v8510 = vpop.f32.mrb[0].mxu0
      %8511 = vmatprep.mubr.f32.mxu0 0.0
      %8512 = vmatmul.mubr.f32.gmra.mrb[0].mxu0 %v8130
      %v8513 = vpop.f32.mrb[0].mxu0
      %v8514 = vadd.f32 %v7938, %v8513
      %v8515 = vpop.f32.mrb[0].mxu0
      %8516 = vdwg.mxu0
      %v8517 = vld [vmem:[%s224] sm:$0xff]
      %v8518 = vld [vmem:[%s224 + $0x8] sm:$0xff]
      %v8519 = vld [vmem:[%s224 + $0x10] sm:$0xff]
      %v8520 = vld [vmem:[%s224 + $0x18] sm:$0xff]
      %v8521 = vld [vmem:[%s224 + $0x20] sm:$0xff]
      %v8522 = vld [vmem:[%s224 + $0x28] sm:$0xff]
      %v8523 = vld [vmem:[%s224 + $0x30] sm:$0xff]
      %v8524 = vld [vmem:[%s224 + $0x38] sm:$0xff]
      %v8525 = vld [vmem:[%s224 + $0x40] sm:$0xff]
      %v8526 = vld [vmem:[%s224 + $0x48] sm:$0xff]
      %v8527 = vld [vmem:[%s224 + $0x50] sm:$0xff]
      %v8528 = vld [vmem:[%s224 + $0x58] sm:$0xff]
      %v8529 = vld [vmem:[%s224 + $0x60] sm:$0xff]
      %v8530 = vld [vmem:[%s224 + $0x68] sm:$0xff]
      %v8531 = vld [vmem:[%s224 + $0x70] sm:$0xff]
      %v8532 = vld [vmem:[%s224 + $0x78] sm:$0xff]
      %v8533 = vld [vmem:[%s224 + $0x80] sm:$0xff]
      %v8534 = vld [vmem:[%s224 + $0x88] sm:$0xff]
      %v8535 = vld [vmem:[%s224 + $0x90] sm:$0xff]
      %v8536 = vld [vmem:[%s224 + $0x98] sm:$0xff]
      %v8537 = vld [vmem:[%s224 + $0xa0] sm:$0xff]
      %v8538 = vld [vmem:[%s224 + $0xa8] sm:$0xff]
      %v8539 = vld [vmem:[%s224 + $0xb0] sm:$0xff]
      %v8540 = vld [vmem:[%s224 + $0xb8] sm:$0xff]
      %v8541 = vld [vmem:[%s224 + $0xc0] sm:$0xff]
      %v8542 = vld [vmem:[%s224 + $0xc8] sm:$0xff]
      %v8543 = vld [vmem:[%s224 + $0xd0] sm:$0xff]
      %v8544 = vld [vmem:[%s224 + $0xd8] sm:$0xff]
      %v8545 = vld [vmem:[%s224 + $0xe0] sm:$0xff]
      %v8546 = vld [vmem:[%s224 + $0xe8] sm:$0xff]
      %v8547 = vld [vmem:[%s224 + $0xf0] sm:$0xff]
      %v8548 = vld [vmem:[%s224 + $0xf8] sm:$0xff]
      %v8549 = vld [vmem:[%s224 + $0x100] sm:$0xff]
      %v8550 = vld [vmem:[%s224 + $0x108] sm:$0xff]
      %v8551 = vld [vmem:[%s224 + $0x110] sm:$0xff]
      %v8552 = vld [vmem:[%s224 + $0x118] sm:$0xff]
      %v8553 = vld [vmem:[%s224 + $0x120] sm:$0xff]
      %v8554 = vld [vmem:[%s224 + $0x128] sm:$0xff]
      %v8555 = vld [vmem:[%s224 + $0x130] sm:$0xff]
      %v8556 = vld [vmem:[%s224 + $0x138] sm:$0xff]
      %v8557 = vld [vmem:[%s224 + $0x140] sm:$0xff]
      %v8558 = vld [vmem:[%s224 + $0x148] sm:$0xff]
      %v8559 = vld [vmem:[%s224 + $0x150] sm:$0xff]
      %v8560 = vld [vmem:[%s224 + $0x158] sm:$0xff]
      %v8561 = vld [vmem:[%s224 + $0x160] sm:$0xff]
      %v8562 = vld [vmem:[%s224 + $0x168] sm:$0xff]
      %v8563 = vld [vmem:[%s224 + $0x170] sm:$0xff]
      %v8564 = vld [vmem:[%s224 + $0x178] sm:$0xff]
      %v8565 = vld [vmem:[%s224 + $0x180] sm:$0xff]
      %v8566 = vld [vmem:[%s224 + $0x188] sm:$0xff]
      %v8567 = vld [vmem:[%s224 + $0x190] sm:$0xff]
      %v8568 = vld [vmem:[%s224 + $0x198] sm:$0xff]
      %v8569 = vld [vmem:[%s224 + $0x1a0] sm:$0xff]
      %v8570 = vld [vmem:[%s224 + $0x1a8] sm:$0xff]
      %v8571 = vld [vmem:[%s224 + $0x1b0] sm:$0xff]
      %v8572 = vld [vmem:[%s224 + $0x1b8] sm:$0xff]
      %v8573 = vld [vmem:[%s224 + $0x1c0] sm:$0xff]
      %v8574 = vld [vmem:[%s224 + $0x1c8] sm:$0xff]
      %v8575 = vld [vmem:[%s224 + $0x1d0] sm:$0xff]
      %v8576 = vld [vmem:[%s224 + $0x1d8] sm:$0xff]
      %v8577 = vld [vmem:[%s224 + $0x1e0] sm:$0xff]
      %v8578 = vld [vmem:[%s224 + $0x1e8] sm:$0xff]
      %v8579 = vld [vmem:[%s224 + $0x1f0] sm:$0xff]
      %v8580 = vld [vmem:[%s224 + $0x1f8] sm:$0xff]
      %v8581 = vadd.f32 %v8199, %v8517
      %v8582 = vadd.f32 %v8204, %v8518
      %v8583 = vadd.f32 %v8209, %v8519
      %v8584 = vadd.f32 %v8214, %v8520
      %v8585 = vadd.f32 %v8219, %v8521
      %v8586 = vadd.f32 %v8224, %v8522
      %v8587 = vadd.f32 %v8229, %v8523
      %v8588 = vadd.f32 %v8234, %v8524
      %v8589 = vadd.f32 %v8239, %v8525
      %v8590 = vadd.f32 %v8244, %v8526
      %v8591 = vadd.f32 %v8249, %v8527
      %v8592 = vadd.f32 %v8254, %v8528
      %v8593 = vadd.f32 %v8259, %v8529
      %v8594 = vadd.f32 %v8264, %v8530
      %v8595 = vadd.f32 %v8269, %v8531
      %v8596 = vadd.f32 %v8274, %v8532
      %v8597 = vadd.f32 %v8279, %v8533
      %v8598 = vadd.f32 %v8284, %v8534
      %v8599 = vadd.f32 %v8289, %v8535
      %v8600 = vadd.f32 %v8294, %v8536
      %v8601 = vadd.f32 %v8299, %v8537
      %v8602 = vadd.f32 %v8304, %v8538
      %v8603 = vadd.f32 %v8309, %v8539
      %v8604 = vadd.f32 %v8314, %v8540
      %v8605 = vadd.f32 %v8319, %v8541
      %v8606 = vadd.f32 %v8324, %v8542
      %v8607 = vadd.f32 %v8329, %v8543
      %v8608 = vadd.f32 %v8334, %v8544
      %v8609 = vadd.f32 %v8339, %v8545
      %v8610 = vadd.f32 %v8344, %v8546
      %v8611 = vadd.f32 %v8349, %v8547
      %v8612 = vadd.f32 %v8354, %v8548
      %v8613 = vadd.f32 %v8359, %v8549
      %v8614 = vadd.f32 %v8364, %v8550
      %v8615 = vadd.f32 %v8369, %v8551
      %v8616 = vadd.f32 %v8374, %v8552
      %v8617 = vadd.f32 %v8379, %v8553
      %v8618 = vadd.f32 %v8384, %v8554
      %v8619 = vadd.f32 %v8389, %v8555
      %v8620 = vadd.f32 %v8394, %v8556
      %v8621 = vadd.f32 %v8399, %v8557
      %v8622 = vadd.f32 %v8404, %v8558
      %v8623 = vadd.f32 %v8409, %v8559
      %v8624 = vadd.f32 %v8414, %v8560
      %v8625 = vadd.f32 %v8419, %v8561
      %v8626 = vadd.f32 %v8424, %v8562
      %v8627 = vadd.f32 %v8429, %v8563
      %v8628 = vadd.f32 %v8434, %v8564
      %v8629 = vadd.f32 %v8439, %v8565
      %v8630 = vadd.f32 %v8444, %v8566
      %v8631 = vadd.f32 %v8449, %v8567
      %v8632 = vadd.f32 %v8454, %v8568
      %v8633 = vadd.f32 %v8459, %v8569
      %v8634 = vadd.f32 %v8464, %v8570
      %v8635 = vadd.f32 %v8469, %v8571
      %v8636 = vadd.f32 %v8474, %v8572
      %v8637 = vadd.f32 %v8479, %v8573
      %v8638 = vadd.f32 %v8484, %v8574
      %v8639 = vadd.f32 %v8489, %v8575
      %v8640 = vadd.f32 %v8494, %v8576
      %v8641 = vadd.f32 %v8499, %v8577
      %v8642 = vadd.f32 %v8504, %v8578
      %v8643 = vadd.f32 %v8509, %v8579
      %v8644 = vadd.f32 %v8514, %v8580
      %vm8645 = vcmp.gt.f32.partialorder %v8581, 0.0
      %vm8646 = vcmp.gt.f32.partialorder %v8582, 0.0
      %vm8647 = vcmp.gt.f32.partialorder %v8583, 0.0
      %vm8648 = vcmp.gt.f32.partialorder %v8584, 0.0
      %vm8649 = vcmp.gt.f32.partialorder %v8585, 0.0
      %vm8650 = vcmp.gt.f32.partialorder %v8586, 0.0
      %vm8651 = vcmp.gt.f32.partialorder %v8587, 0.0
      %vm8652 = vcmp.gt.f32.partialorder %v8588, 0.0
      %vm8653 = vcmp.gt.f32.partialorder %v8589, 0.0
      %vm8654 = vcmp.gt.f32.partialorder %v8590, 0.0
      %vm8655 = vcmp.gt.f32.partialorder %v8591, 0.0
      %vm8656 = vcmp.gt.f32.partialorder %v8592, 0.0
      %vm8657 = vcmp.gt.f32.partialorder %v8593, 0.0
      %vm8658 = vcmp.gt.f32.partialorder %v8594, 0.0
      %vm8659 = vcmp.gt.f32.partialorder %v8595, 0.0
      %vm8660 = vcmp.gt.f32.partialorder %v8596, 0.0
      %vm8661 = vcmp.gt.f32.partialorder %v8597, 0.0
      %vm8662 = vcmp.gt.f32.partialorder %v8598, 0.0
      %vm8663 = vcmp.gt.f32.partialorder %v8599, 0.0
      %vm8664 = vcmp.gt.f32.partialorder %v8600, 0.0
      %vm8665 = vcmp.gt.f32.partialorder %v8601, 0.0
      %vm8666 = vcmp.gt.f32.partialorder %v8602, 0.0
      %vm8667 = vcmp.gt.f32.partialorder %v8603, 0.0
      %vm8668 = vcmp.gt.f32.partialorder %v8604, 0.0
      %vm8669 = vcmp.gt.f32.partialorder %v8605, 0.0
      %vm8670 = vcmp.gt.f32.partialorder %v8606, 0.0
      %vm8671 = vcmp.gt.f32.partialorder %v8607, 0.0
      %vm8672 = vcmp.gt.f32.partialorder %v8608, 0.0
      %vm8673 = vcmp.gt.f32.partialorder %v8609, 0.0
      %vm8674 = vcmp.gt.f32.partialorder %v8610, 0.0
      %vm8675 = vcmp.gt.f32.partialorder %v8611, 0.0
      %vm8676 = vcmp.gt.f32.partialorder %v8612, 0.0
      %vm8677 = vcmp.gt.f32.partialorder %v8613, 0.0
      %vm8678 = vcmp.gt.f32.partialorder %v8614, 0.0
      %vm8679 = vcmp.gt.f32.partialorder %v8615, 0.0
      %vm8680 = vcmp.gt.f32.partialorder %v8616, 0.0
      %vm8681 = vcmp.gt.f32.partialorder %v8617, 0.0
      %vm8682 = vcmp.gt.f32.partialorder %v8618, 0.0
      %vm8683 = vcmp.gt.f32.partialorder %v8619, 0.0
      %vm8684 = vcmp.gt.f32.partialorder %v8620, 0.0
      %vm8685 = vcmp.gt.f32.partialorder %v8621, 0.0
      %vm8686 = vcmp.gt.f32.partialorder %v8622, 0.0
      %vm8687 = vcmp.gt.f32.partialorder %v8623, 0.0
      %vm8688 = vcmp.gt.f32.partialorder %v8624, 0.0
      %vm8689 = vcmp.gt.f32.partialorder %v8625, 0.0
      %vm8690 = vcmp.gt.f32.partialorder %v8626, 0.0
      %vm8691 = vcmp.gt.f32.partialorder %v8627, 0.0
      %vm8692 = vcmp.gt.f32.partialorder %v8628, 0.0
      %vm8693 = vcmp.gt.f32.partialorder %v8629, 0.0
      %vm8694 = vcmp.gt.f32.partialorder %v8630, 0.0
      %vm8695 = vcmp.gt.f32.partialorder %v8631, 0.0
      %vm8696 = vcmp.gt.f32.partialorder %v8632, 0.0
      %vm8697 = vcmp.gt.f32.partialorder %v8633, 0.0
      %vm8698 = vcmp.gt.f32.partialorder %v8634, 0.0
      %vm8699 = vcmp.gt.f32.partialorder %v8635, 0.0
      %vm8700 = vcmp.gt.f32.partialorder %v8636, 0.0
      %vm8701 = vcmp.gt.f32.partialorder %v8637, 0.0
      %vm8702 = vcmp.gt.f32.partialorder %v8638, 0.0
      %vm8703 = vcmp.gt.f32.partialorder %v8639, 0.0
      %vm8704 = vcmp.gt.f32.partialorder %v8640, 0.0
      %vm8705 = vcmp.gt.f32.partialorder %v8641, 0.0
      %vm8706 = vcmp.gt.f32.partialorder %v8642, 0.0
      %vm8707 = vcmp.gt.f32.partialorder %v8643, 0.0
      %vm8708 = vcmp.gt.f32.partialorder %v8644, 0.0
      %v8709 = vmul.f32 %v8581, 0.01
      %v8710 = vmul.f32 %v8582, 0.01
      %v8711 = vmul.f32 %v8583, 0.01
      %v8712 = vmul.f32 %v8584, 0.01
      %v8713 = vmul.f32 %v8585, 0.01
      %v8714 = vmul.f32 %v8586, 0.01
      %v8715 = vmul.f32 %v8587, 0.01
      %v8716 = vmul.f32 %v8588, 0.01
      %v8717 = vmul.f32 %v8589, 0.01
      %v8718 = vmul.f32 %v8590, 0.01
      %v8719 = vmul.f32 %v8591, 0.01
      %v8720 = vmul.f32 %v8592, 0.01
      %v8721 = vmul.f32 %v8593, 0.01
      %v8722 = vmul.f32 %v8594, 0.01
      %v8723 = vmul.f32 %v8595, 0.01
      %v8724 = vmul.f32 %v8596, 0.01
      %v8725 = vmul.f32 %v8597, 0.01
      %v8726 = vmul.f32 %v8598, 0.01
      %v8727 = vmul.f32 %v8599, 0.01
      %v8728 = vmul.f32 %v8600, 0.01
      %v8729 = vmul.f32 %v8601, 0.01
      %v8730 = vmul.f32 %v8602, 0.01
      %v8731 = vmul.f32 %v8603, 0.01
      %v8732 = vmul.f32 %v8604, 0.01
      %v8733 = vmul.f32 %v8605, 0.01
      %v8734 = vmul.f32 %v8606, 0.01
      %v8735 = vmul.f32 %v8607, 0.01
      %v8736 = vmul.f32 %v8608, 0.01
      %v8737 = vmul.f32 %v8609, 0.01
      %v8738 = vmul.f32 %v8610, 0.01
      %v8739 = vmul.f32 %v8611, 0.01
      %v8740 = vmul.f32 %v8612, 0.01
      %v8741 = vmul.f32 %v8613, 0.01
      %v8742 = vmul.f32 %v8614, 0.01
      %v8743 = vmul.f32 %v8615, 0.01
      %v8744 = vmul.f32 %v8616, 0.01
      %v8745 = vmul.f32 %v8617, 0.01
      %v8746 = vmul.f32 %v8618, 0.01
      %v8747 = vmul.f32 %v8619, 0.01
      %v8748 = vmul.f32 %v8620, 0.01
      %v8749 = vmul.f32 %v8621, 0.01
      %v8750 = vmul.f32 %v8622, 0.01
      %v8751 = vmul.f32 %v8623, 0.01
      %v8752 = vmul.f32 %v8624, 0.01
      %v8753 = vmul.f32 %v8625, 0.01
      %v8754 = vmul.f32 %v8626, 0.01
      %v8755 = vmul.f32 %v8627, 0.01
      %v8756 = vmul.f32 %v8628, 0.01
      %v8757 = vmul.f32 %v8629, 0.01
      %v8758 = vmul.f32 %v8630, 0.01
      %v8759 = vmul.f32 %v8631, 0.01
      %v8760 = vmul.f32 %v8632, 0.01
      %v8761 = vmul.f32 %v8633, 0.01
      %v8762 = vmul.f32 %v8634, 0.01
      %v8763 = vmul.f32 %v8635, 0.01
      %v8764 = vmul.f32 %v8636, 0.01
      %v8765 = vmul.f32 %v8637, 0.01
      %v8766 = vmul.f32 %v8638, 0.01
      %v8767 = vmul.f32 %v8639, 0.01
      %v8768 = vmul.f32 %v8640, 0.01
      %v8769 = vmul.f32 %v8641, 0.01
      %v8770 = vmul.f32 %v8642, 0.01
      %v8771 = vmul.f32 %v8643, 0.01
      %v8772 = vmul.f32 %v8644, 0.01
      %v8773 = vsel %vm8645, %v8581, %v8709
      %v8774 = vsel %vm8646, %v8582, %v8710
      %v8775 = vsel %vm8647, %v8583, %v8711
      %v8776 = vsel %vm8648, %v8584, %v8712
      %v8777 = vsel %vm8649, %v8585, %v8713
      %v8778 = vsel %vm8650, %v8586, %v8714
      %v8779 = vsel %vm8651, %v8587, %v8715
      %v8780 = vsel %vm8652, %v8588, %v8716
      %v8781 = vsel %vm8653, %v8589, %v8717
      %v8782 = vsel %vm8654, %v8590, %v8718
      %v8783 = vsel %vm8655, %v8591, %v8719
      %v8784 = vsel %vm8656, %v8592, %v8720
      %v8785 = vsel %vm8657, %v8593, %v8721
      %v8786 = vsel %vm8658, %v8594, %v8722
      %v8787 = vsel %vm8659, %v8595, %v8723
      %v8788 = vsel %vm8660, %v8596, %v8724
      %v8789 = vsel %vm8661, %v8597, %v8725
      %v8790 = vsel %vm8662, %v8598, %v8726
      %v8791 = vsel %vm8663, %v8599, %v8727
      %v8792 = vsel %vm8664, %v8600, %v8728
      %v8793 = vsel %vm8665, %v8601, %v8729
      %v8794 = vsel %vm8666, %v8602, %v8730
      %v8795 = vsel %vm8667, %v8603, %v8731
      %v8796 = vsel %vm8668, %v8604, %v8732
      %v8797 = vsel %vm8669, %v8605, %v8733
      %v8798 = vsel %vm8670, %v8606, %v8734
      %v8799 = vsel %vm8671, %v8607, %v8735
      %v8800 = vsel %vm8672, %v8608, %v8736
      %v8801 = vsel %vm8673, %v8609, %v8737
      %v8802 = vsel %vm8674, %v8610, %v8738
      %v8803 = vsel %vm8675, %v8611, %v8739
      %v8804 = vsel %vm8676, %v8612, %v8740
      %v8805 = vsel %vm8677, %v8613, %v8741
      %v8806 = vsel %vm8678, %v8614, %v8742
      %v8807 = vsel %vm8679, %v8615, %v8743
      %v8808 = vsel %vm8680, %v8616, %v8744
      %v8809 = vsel %vm8681, %v8617, %v8745
      %v8810 = vsel %vm8682, %v8618, %v8746
      %v8811 = vsel %vm8683, %v8619, %v8747
      %v8812 = vsel %vm8684, %v8620, %v8748
      %v8813 = vsel %vm8685, %v8621, %v8749
      %v8814 = vsel %vm8686, %v8622, %v8750
      %v8815 = vsel %vm8687, %v8623, %v8751
      %v8816 = vsel %vm8688, %v8624, %v8752
      %v8817 = vsel %vm8689, %v8625, %v8753
      %v8818 = vsel %vm8690, %v8626, %v8754
      %v8819 = vsel %vm8691, %v8627, %v8755
      %v8820 = vsel %vm8692, %v8628, %v8756
      %v8821 = vsel %vm8693, %v8629, %v8757
      %v8822 = vsel %vm8694, %v8630, %v8758
      %v8823 = vsel %vm8695, %v8631, %v8759
      %v8824 = vsel %vm8696, %v8632, %v8760
      %v8825 = vsel %vm8697, %v8633, %v8761
      %v8826 = vsel %vm8698, %v8634, %v8762
      %v8827 = vsel %vm8699, %v8635, %v8763
      %v8828 = vsel %vm8700, %v8636, %v8764
      %v8829 = vsel %vm8701, %v8637, %v8765
      %v8830 = vsel %vm8702, %v8638, %v8766
      %v8831 = vsel %vm8703, %v8639, %v8767
      %v8832 = vsel %vm8704, %v8640, %v8768
      %v8833 = vsel %vm8705, %v8641, %v8769
      %v8834 = vsel %vm8706, %v8642, %v8770
      %v8835 = vsel %vm8707, %v8643, %v8771
      %v8836 = vsel %vm8708, %v8644, %v8772
      %8837 = vst.msk [vmem:[%s231] sm:$0xff] %vm233, %v8773
      %8838 = vst.msk [vmem:[%s231 + $0x8] sm:$0xff] %vm233, %v8774
      %8839 = vst.msk [vmem:[%s231 + $0x10] sm:$0xff] %vm233, %v8775
      %8840 = vst.msk [vmem:[%s231 + $0x18] sm:$0xff] %vm233, %v8776
      %8841 = vst.msk [vmem:[%s231 + $0x20] sm:$0xff] %vm233, %v8777
      %8842 = vst.msk [vmem:[%s231 + $0x28] sm:$0xff] %vm233, %v8778
      %8843 = vst.msk [vmem:[%s231 + $0x30] sm:$0xff] %vm233, %v8779
      %8844 = vst.msk [vmem:[%s231 + $0x38] sm:$0xff] %vm233, %v8780
      %8845 = vst.msk [vmem:[%s231 + $0x40] sm:$0xff] %vm233, %v8781
      %8846 = vst.msk [vmem:[%s231 + $0x48] sm:$0xff] %vm233, %v8782
      %8847 = vst.msk [vmem:[%s231 + $0x50] sm:$0xff] %vm233, %v8783
      %8848 = vst.msk [vmem:[%s231 + $0x58] sm:$0xff] %vm233, %v8784
      %8849 = vst.msk [vmem:[%s231 + $0x60] sm:$0xff] %vm233, %v8785
      %8850 = vst.msk [vmem:[%s231 + $0x68] sm:$0xff] %vm233, %v8786
      %8851 = vst.msk [vmem:[%s231 + $0x70] sm:$0xff] %vm233, %v8787
      %8852 = vst.msk [vmem:[%s231 + $0x78] sm:$0xff] %vm233, %v8788
      %8853 = vst.msk [vmem:[%s231 + $0x80] sm:$0xff] %vm233, %v8789
      %8854 = vst.msk [vmem:[%s231 + $0x88] sm:$0xff] %vm233, %v8790
      %8855 = vst.msk [vmem:[%s231 + $0x90] sm:$0xff] %vm233, %v8791
      %8856 = vst.msk [vmem:[%s231 + $0x98] sm:$0xff] %vm233, %v8792
      %8857 = vst.msk [vmem:[%s231 + $0xa0] sm:$0xff] %vm233, %v8793
      %8858 = vst.msk [vmem:[%s231 + $0xa8] sm:$0xff] %vm233, %v8794
      %8859 = vst.msk [vmem:[%s231 + $0xb0] sm:$0xff] %vm233, %v8795
      %8860 = vst.msk [vmem:[%s231 + $0xb8] sm:$0xff] %vm233, %v8796
      %8861 = vst.msk [vmem:[%s231 + $0xc0] sm:$0xff] %vm233, %v8797
      %8862 = vst.msk [vmem:[%s231 + $0xc8] sm:$0xff] %vm233, %v8798
      %8863 = vst.msk [vmem:[%s231 + $0xd0] sm:$0xff] %vm233, %v8799
      %8864 = vst.msk [vmem:[%s231 + $0xd8] sm:$0xff] %vm233, %v8800
      %8865 = vst.msk [vmem:[%s231 + $0xe0] sm:$0xff] %vm233, %v8801
      %8866 = vst.msk [vmem:[%s231 + $0xe8] sm:$0xff] %vm233, %v8802
      %8867 = vst.msk [vmem:[%s231 + $0xf0] sm:$0xff] %vm233, %v8803
      %8868 = vst.msk [vmem:[%s231 + $0xf8] sm:$0xff] %vm233, %v8804
      %8869 = vst.msk [vmem:[%s231 + $0x100] sm:$0xff] %vm233, %v8805
      %8870 = vst.msk [vmem:[%s231 + $0x108] sm:$0xff] %vm233, %v8806
      %8871 = vst.msk [vmem:[%s231 + $0x110] sm:$0xff] %vm233, %v8807
      %8872 = vst.msk [vmem:[%s231 + $0x118] sm:$0xff] %vm233, %v8808
      %8873 = vst.msk [vmem:[%s231 + $0x120] sm:$0xff] %vm233, %v8809
      %8874 = vst.msk [vmem:[%s231 + $0x128] sm:$0xff] %vm233, %v8810
      %8875 = vst.msk [vmem:[%s231 + $0x130] sm:$0xff] %vm233, %v8811
      %8876 = vst.msk [vmem:[%s231 + $0x138] sm:$0xff] %vm233, %v8812
      %8877 = vst.msk [vmem:[%s231 + $0x140] sm:$0xff] %vm233, %v8813
      %8878 = vst.msk [vmem:[%s231 + $0x148] sm:$0xff] %vm233, %v8814
      %8879 = vst.msk [vmem:[%s231 + $0x150] sm:$0xff] %vm233, %v8815
      %8880 = vst.msk [vmem:[%s231 + $0x158] sm:$0xff] %vm233, %v8816
      %8881 = vst.msk [vmem:[%s231 + $0x160] sm:$0xff] %vm233, %v8817
      %8882 = vst.msk [vmem:[%s231 + $0x168] sm:$0xff] %vm233, %v8818
      %8883 = vst.msk [vmem:[%s231 + $0x170] sm:$0xff] %vm233, %v8819
      %8884 = vst.msk [vmem:[%s231 + $0x178] sm:$0xff] %vm233, %v8820
      %8885 = vst.msk [vmem:[%s231 + $0x180] sm:$0xff] %vm233, %v8821
      %8886 = vst.msk [vmem:[%s231 + $0x188] sm:$0xff] %vm233, %v8822
      %8887 = vst.msk [vmem:[%s231 + $0x190] sm:$0xff] %vm233, %v8823
      %8888 = vst.msk [vmem:[%s231 + $0x198] sm:$0xff] %vm233, %v8824
      %8889 = vst.msk [vmem:[%s231 + $0x1a0] sm:$0xff] %vm233, %v8825
      %8890 = vst.msk [vmem:[%s231 + $0x1a8] sm:$0xff] %vm233, %v8826
      %8891 = vst.msk [vmem:[%s231 + $0x1b0] sm:$0xff] %vm233, %v8827
      %8892 = vst.msk [vmem:[%s231 + $0x1b8] sm:$0xff] %vm233, %v8828
      %8893 = vst.msk [vmem:[%s231 + $0x1c0] sm:$0xff] %vm233, %v8829
      %8894 = vst.msk [vmem:[%s231 + $0x1c8] sm:$0xff] %vm233, %v8830
      %8895 = vst.msk [vmem:[%s231 + $0x1d0] sm:$0xff] %vm233, %v8831
      %8896 = vst.msk [vmem:[%s231 + $0x1d8] sm:$0xff] %vm233, %v8832
      %8897 = vst.msk [vmem:[%s231 + $0x1e0] sm:$0xff] %vm233, %v8833
      %8898 = vst.msk [vmem:[%s231 + $0x1e8] sm:$0xff] %vm233, %v8834
      %8899 = vst.msk [vmem:[%s231 + $0x1f0] sm:$0xff] %vm233, %v8835
      %8900 = vst.msk [vmem:[%s231 + $0x1f8] sm:$0xff] %vm233, %v8836
      %s8901 = smul.u32 2, %s16
      %p8902 = scmp.lt.s32.totalorder %s8901, 3
      %s8903 = scalar_select %p8902, %s8901, 3
      %s8904 = smul.addr %s8903, 32
      %s8905 = smul.addr %s8904, 8
      %s8906 = scalar_lea.vmem %s5, %s8905
      // Predicated region
      $region41: #{tpu_custom_call.1} parent=39 // pred_check
        %p8907 = pneg %p144
      $region42: #{tpu_custom_call.1} parent=39 // pred_check_branch
        %8909 = sbr.rel (%p8907) target = $region44
      $region43: #{tpu_custom_call.1} parent=39 // pred_region
        %s8910 = smul.u32 2, %s16
      $region44: #{tpu_custom_call.1} parent=39 // pred_fallthru
        _
    $region40: #{tpu_custom_call.1} parent=5 // pred_fallthru
      _
    %p8911 = scmp.le.s32.totalorder 2, %s11
    // Predicated region
    $region45: #{tpu_custom_call.1} parent=5 // pred_check
      %p8912 = pneg %p8911
    $region46: #{tpu_custom_call.1} parent=5 // pred_check_branch
      %8914 = sbr.rel (%p8912) target = $region48
    $region47: #{tpu_custom_call.1} parent=5 // pred_region
      %s8915 = ssub.s32 %s11, 2
      // Predicated region
      $region49: #{tpu_custom_call.1} parent=47 // pred_check
        %p8916 = pneg %p150
      $region50: #{tpu_custom_call.1} parent=47 // pred_check_branch
        %8918 = sbr.rel (%p8916) target = $region52
      $region51: #{tpu_custom_call.1} parent=47 // pred_region
        %s8919 = smul.u32 2, %s17
        %p8920 = scmp.lt.s32.totalorder %s8919, 3
        %s8921 = scalar_select %p8920, %s8919, 3
        %s8922 = smul.addr %s8921, 32
        %s8923 = smul.addr %s8922, 8
        %s8924 = scalar_lea.vmem %s5, %s8923
      $region52: #{tpu_custom_call.1} parent=47 // pred_fallthru
        _
    $region48: #{tpu_custom_call.1} parent=5 // pred_fallthru
      _
  $region6: #{tpu_custom_call.1} parent=0 // loop_footer
    %s15 = sadd.s32 1, %s11
  $region7: #{tpu_custom_call.1} parent=0 // loop_footer_branch
    %10 = sbr.rel target = $region3
  $region8: #{tpu_custom_call.1} parent=0 // loop_exit
    _

</llo_original>
